<compile_context>
chip_gen: v6e
topology: v6e:2x2x1
jax: 0.10.0
libtpu: 0.0.40
codegen_flags: <defaults>
</compile_context>

<pallas_src>
import functools

import jax
import jax.numpy as jnp
from jax.experimental import pallas as pl
from jax.experimental.pallas import tpu as pltpu


# ------------------------------- helpers -------------------------------------
def _round_up(n, m):
    return ((n + m - 1) // m) * m


def _pad_to(a, shape):
    pads = [(0, s - d) for d, s in zip(a.shape, shape)]
    return jnp.pad(a, pads)


# ----------------------------- Pallas kernel ---------------------------------
def vae_kernel(x_ref, eps_ref,
               w1_ref, b1_ref, w23_ref, b23_ref,
               w4_ref, b4_ref, w5_ref, b5_ref,
               xr_ref, mu_ref, logvar_ref):
    z_p = mu_ref.shape[1]                    # padded latent width (128)

    x = x_ref[...]                           # (TB, IMG_P) bf16

    # encode: h = relu(x @ W1 + b1)   (bf16 matmul, f32 accumulation)
    h = jnp.dot(x, w1_ref[...], preferred_element_type=jnp.float32) + b1_ref[...]
    h = jnp.maximum(h, 0.0).astype(w23_ref.dtype)

    # fused mu / log_var projection: one matmul into (TB, 2*Z_P), slice at lane boundary
    ml = jnp.dot(h, w23_ref[...], preferred_element_type=jnp.float32) + b23_ref[...]
    mu = ml[:, :z_p]
    log_var = ml[:, z_p:]

    # reparameterize: z = mu + eps * exp(log_var / 2)   (f32 epilogue)
    std = jnp.exp(log_var * 0.5)
    z = mu + eps_ref[...] * std

    # decode: h2 = relu(z @ W4 + b4) ; x_reconst = sigmoid(h2 @ W5 + b5)
    h2 = jnp.dot(z.astype(w4_ref.dtype), w4_ref[...],
                 preferred_element_type=jnp.float32) + b4_ref[...]
    h2 = jnp.maximum(h2, 0.0).astype(w5_ref.dtype)
    logits = jnp.dot(h2, w5_ref[...], preferred_element_type=jnp.float32) + b5_ref[...]

    # sigmoid via tanh -> EUP (avoids VALU divide)
    xr_ref[...] = 0.5 * (jnp.tanh(0.5 * logits) + 1.0)
    mu_ref[...] = mu
    logvar_ref[...] = log_var


# ------------------------------ wrapper ---------------------------------------
def _prepare_padded_params(p, img_p, hid_p, z_p, weight_dtype):
    """Zero-pad all weights/biases to lane-aligned shapes, fuse W2||W3, cast weights."""
    img, hid = p["w1"].shape
    z = p["w2"].shape[1]

    w1 = _pad_to(p["w1"], (img_p, hid_p)).astype(weight_dtype)
    b1 = _pad_to(p["b1"], (1, hid_p)).astype(jnp.float32)

    w23 = jnp.zeros((hid_p, 2 * z_p), jnp.float32)
    w23 = w23.at[:hid, :z].set(p["w2"]).at[:hid, z_p:z_p + z].set(p["w3"])
    w23 = w23.astype(weight_dtype)
    b23 = jnp.zeros((1, 2 * z_p), jnp.float32)
    b23 = b23.at[:, :z].set(p["b2"]).at[:, z_p:z_p + z].set(p["b3"])

    w4 = _pad_to(p["w4"], (z_p, hid_p)).astype(weight_dtype)
    b4 = _pad_to(p["b4"], (1, hid_p)).astype(jnp.float32)
    w5 = _pad_to(p["w5"], (hid_p, img_p)).astype(weight_dtype)
    b5 = _pad_to(p["b5"], (1, img_p)).astype(jnp.float32)
    return w1, b1, w23, b23, w4, b4, w5, b5


@functools.partial(jax.jit, static_argnames=("batch_tile",))
def vae_forward(x, eps, params, *, batch_tile=128):
    """x: (B, image_size) f32, eps: (B, z_size) f32. Returns (x_reconst, mu, log_var)."""
    weight_dtype = jnp.bfloat16

    B, img = x.shape
    z = eps.shape[1]
    hid = params["w1"].shape[1]

    img_p = _round_up(img, 128)
    hid_p = _round_up(hid, 128)
    z_p = _round_up(z, 128)

    tb = min(batch_tile, _round_up(B, 8))     # batch tile (rows), sublane-aligned
    b_pad = _round_up(B, tb)
    grid = (b_pad // tb,)

    x_p = _pad_to(x, (b_pad, img_p)).astype(weight_dtype)
    eps_p = _pad_to(eps, (b_pad, z_p)).astype(jnp.float32)

    w1, b1, w23, b23, w4, b4, w5, b5 = _prepare_padded_params(
        params, img_p, hid_p, z_p, weight_dtype)

    def row_spec(cols):
        return pl.BlockSpec((tb, cols), lambda i: (i, 0))

    def const_spec(arr):
        return pl.BlockSpec(arr.shape, lambda i: (0, 0))   # weights stay resident

    in_specs = (
        row_spec(img_p), row_spec(z_p),
        const_spec(w1), const_spec(b1),
        const_spec(w23), const_spec(b23),
        const_spec(w4), const_spec(b4),
        const_spec(w5), const_spec(b5),
    )
    out_specs = (row_spec(img_p), row_spec(z_p), row_spec(z_p))
    out_shapes = (
        jax.ShapeDtypeStruct((b_pad, img_p), jnp.float32),   # x_reconst (padded)
        jax.ShapeDtypeStruct((b_pad, z_p), jnp.float32),     # mu        (padded)
        jax.ShapeDtypeStruct((b_pad, z_p), jnp.float32),     # log_var   (padded)
    )

    xr, mu, log_var = pl.pallas_call(
        vae_kernel,
        out_shape=out_shapes,
        grid_spec=pltpu.PrefetchScalarGridSpec(
            num_scalar_prefetch=0,
            grid=grid,
            in_specs=list(in_specs),
            out_specs=list(out_specs),
        ),
        compiler_params=pltpu.CompilerParams(
            dimension_semantics=("parallel",),
            vmem_limit_bytes=32 << 20,
        ),
    )(x_p, eps_p, w1, b1, w23, b23, w4, b4, w5, b5)

    # strip padding
    return xr[:B, :img], mu[:B, :z], log_var[:B, :z]


# --------------------------- parameter init -----------------------------------
def init_linear(key, fan_in, fan_out):
    """PyTorch nn.Linear default init (U[-1/sqrt(in), 1/sqrt(in)]).
    Weight stored transposed: (in, out). Bias (1, out) for 2-D TPU layout."""
    kw, kb = jax.random.split(key)
    bound = 1.0 / jnp.sqrt(jnp.float32(fan_in))
    w = jax.random.uniform(kw, (fan_in, fan_out), jnp.float32, -bound, bound)
    b = jax.random.uniform(kb, (1, fan_out), jnp.float32, -bound, bound)
    return w, b


def make_params(key, image_size=784, hidden_size=400, z_size=20):
    k1, k2, k3, k4, k5 = jax.random.split(key, 5)
    w1, b1 = init_linear(k1, image_size, hidden_size)   # fc1
    w2, b2 = init_linear(k2, hidden_size, z_size)       # fc2 (mu)
    w3, b3 = init_linear(k3, hidden_size, z_size)       # fc3 (log_var)
    w4, b4 = init_linear(k4, z_size, hidden_size)       # fc4
    w5, b5 = init_linear(k5, hidden_size, image_size)   # fc5
    return dict(w1=w1, b1=b1, w2=w2, b2=b2, w3=w3, b3=b3,
                w4=w4, b4=b4, w5=w5, b5=b5)


# ------------------------------ reference -------------------------------------
def vae_ref(x, eps, p):
    """Pure-JAX reference matching the kernel's bf16-matmul / f32-accumulate path."""
    def mm(a, w):
        return jnp.dot(a.astype(jnp.bfloat16), w.astype(jnp.bfloat16),
                       preferred_element_type=jnp.float32)
    h = jnp.maximum(mm(x, p["w1"]) + p["b1"], 0.0)
    mu = mm(h, p["w2"]) + p["b2"]
    log_var = mm(h, p["w3"]) + p["b3"]
    z = mu + eps * jnp.exp(log_var * 0.5)
    h2 = jnp.maximum(mm(z, p["w4"]) + p["b4"], 0.0)
    xr = jax.nn.sigmoid(mm(h2, p["w5"]) + p["b5"])
    return xr, mu, log_var


if __name__ == "__main__":
    image_size, hidden_size, z_size = 28 * 28, 400, 20
    batch = 256   # two 128-row grid tiles, sharded across TCs where available

    key = jax.random.PRNGKey(0)
    k_params, k_x, k_eps = jax.random.split(key, 3)

    params = make_params(k_params, image_size, hidden_size, z_size)
    x = jax.random.uniform(k_x, (batch, image_size), jnp.float32)      # MNIST-like [0,1)
    # TODO(synk): torch.randn_like inside reparameterize has no in-kernel equivalent
    # here; noise is generated deterministically host-side and consumed in-kernel.
    eps = jax.random.normal(k_eps, (batch, z_size), jnp.float32)

    x_reconst, mu, log_var = jax.block_until_ready(vae_forward(x, eps, params))

    xr_ref, mu_r, lv_r = vae_ref(x, eps, params)
    assert x_reconst.shape == (batch, image_size)
    assert mu.shape == (batch, z_size) and log_var.shape == (batch, z_size)
    assert jnp.allclose(x_reconst, xr_ref, atol=2e-3, rtol=2e-3)
    assert jnp.allclose(mu, mu_r, atol=2e-3, rtol=2e-3)
    assert jnp.allclose(log_var, lv_r, atol=2e-3, rtol=2e-3)

    print("KERNEL_OK")
</pallas_src>

<mosaic_0001>
module attributes {stable_mosaic.version = 11 : i64} {
  func.func @vae_kernel(%arg0: i32, %arg1: memref<128x896xbf16, #tpu.memory_space<vmem>>, %arg2: memref<128x128xf32, #tpu.memory_space<vmem>>, %arg3: memref<896x512xbf16, #tpu.memory_space<vmem>>, %arg4: memref<1x512xf32, #tpu.memory_space<vmem>>, %arg5: memref<512x256xbf16, #tpu.memory_space<vmem>>, %arg6: memref<1x256xf32, #tpu.memory_space<vmem>>, %arg7: memref<128x512xbf16, #tpu.memory_space<vmem>>, %arg8: memref<1x512xf32, #tpu.memory_space<vmem>>, %arg9: memref<512x896xbf16, #tpu.memory_space<vmem>>, %arg10: memref<1x896xf32, #tpu.memory_space<vmem>>, %arg11: memref<128x896xf32, #tpu.memory_space<vmem>>, %arg12: memref<128x128xf32, #tpu.memory_space<vmem>>, %arg13: memref<128x128xf32, #tpu.memory_space<vmem>>) attributes {dimension_semantics = [#tpu.dimension_semantics<parallel>], iteration_bounds = array<i64: 2>, scalar_prefetch = 0 : i64, scratch_operands = 0 : i64, tpu.core_type = #tpu.core_type<tc>, window_params = [{transform_indices = @transform_0, window_bounds = array<i64: 128, 896>}, {transform_indices = @transform_1, window_bounds = array<i64: 128, 128>}, {pipeline_mode = #tpu.pipeline_mode<synchronous>, transform_indices = @transform_2, window_bounds = array<i64: 896, 512>}, {pipeline_mode = #tpu.pipeline_mode<synchronous>, transform_indices = @transform_3, window_bounds = array<i64: 1, 512>}, {pipeline_mode = #tpu.pipeline_mode<synchronous>, transform_indices = @transform_4, window_bounds = array<i64: 512, 256>}, {pipeline_mode = #tpu.pipeline_mode<synchronous>, transform_indices = @transform_5, window_bounds = array<i64: 1, 256>}, {pipeline_mode = #tpu.pipeline_mode<synchronous>, transform_indices = @transform_6, window_bounds = array<i64: 128, 512>}, {pipeline_mode = #tpu.pipeline_mode<synchronous>, transform_indices = @transform_7, window_bounds = array<i64: 1, 512>}, {pipeline_mode = #tpu.pipeline_mode<synchronous>, transform_indices = @transform_8, window_bounds = array<i64: 512, 896>}, {pipeline_mode = #tpu.pipeline_mode<synchronous>, transform_indices = @transform_9, window_bounds = array<i64: 1, 896>}, {transform_indices = @transform_10, window_bounds = array<i64: 128, 896>}, {transform_indices = @transform_11, window_bounds = array<i64: 128, 128>}, {transform_indices = @transform_12, window_bounds = array<i64: 128, 128>}]} {
    %c0 = arith.constant 0 : index
    %c0_0 = arith.constant 0 : index
    %0 = vector.load %arg1[%c0, %c0_0] : memref<128x896xbf16, #tpu.memory_space<vmem>>, vector<128x896xbf16>
    %c0_1 = arith.constant 0 : index
    %c0_2 = arith.constant 0 : index
    %1 = vector.load %arg3[%c0_1, %c0_2] : memref<896x512xbf16, #tpu.memory_space<vmem>>, vector<896x512xbf16>
    %cst = arith.constant dense<0.000000e+00> : vector<128x512xf32>
    %2 = tpu.matmul %0, %1, %cst {dimension_numbers = #tpu.dot_dimension_numbers<[1], [0], [0], [1], [0, 0, 1, 1], [], []>} : vector<128x896xbf16>, vector<896x512xbf16>, vector<128x512xf32> -> vector<128x512xf32>
    %c0_3 = arith.constant 0 : index
    %c0_4 = arith.constant 0 : index
    %3 = vector.load %arg4[%c0_3, %c0_4] : memref<1x512xf32, #tpu.memory_space<vmem>>, vector<1x512xf32>
    %4 = vector.broadcast %3 : vector<1x512xf32> to vector<128x512xf32>
    %5 = arith.addf %2, %4 : vector<128x512xf32>
    %cst_5 = arith.constant 0.000000e+00 : f32
    %6 = vector.broadcast %cst_5 : f32 to vector<128x512xf32>
    %7 = arith.maximumf %5, %6 : vector<128x512xf32>
    %8 = arith.truncf %7 : vector<128x512xf32> to vector<128x512xbf16>
    %c0_6 = arith.constant 0 : index
    %c0_7 = arith.constant 0 : index
    %9 = vector.load %arg5[%c0_6, %c0_7] : memref<512x256xbf16, #tpu.memory_space<vmem>>, vector<512x256xbf16>
    %cst_8 = arith.constant dense<0.000000e+00> : vector<128x256xf32>
    %10 = tpu.matmul %8, %9, %cst_8 {dimension_numbers = #tpu.dot_dimension_numbers<[1], [0], [0], [1], [0, 0, 1, 1], [], []>} : vector<128x512xbf16>, vector<512x256xbf16>, vector<128x256xf32> -> vector<128x256xf32>
    %c0_9 = arith.constant 0 : index
    %c0_10 = arith.constant 0 : index
    %11 = vector.load %arg6[%c0_9, %c0_10] : memref<1x256xf32, #tpu.memory_space<vmem>>, vector<1x256xf32>
    %12 = vector.broadcast %11 : vector<1x256xf32> to vector<128x256xf32>
    %13 = arith.addf %10, %12 : vector<128x256xf32>
    %14 = vector.extract_strided_slice %13 {offsets = [0, 0], sizes = [128, 128], strides = [1, 1]} : vector<128x256xf32> to vector<128x128xf32>
    %15 = vector.extract_strided_slice %13 {offsets = [0, 128], sizes = [128, 128], strides = [1, 1]} : vector<128x256xf32> to vector<128x128xf32>
    %cst_11 = arith.constant 5.000000e-01 : f32
    %16 = vector.broadcast %cst_11 : f32 to vector<128x128xf32>
    %17 = arith.mulf %15, %16 : vector<128x128xf32>
    %18 = math.exp %17 : vector<128x128xf32>
    %c0_12 = arith.constant 0 : index
    %c0_13 = arith.constant 0 : index
    %19 = vector.load %arg2[%c0_12, %c0_13] : memref<128x128xf32, #tpu.memory_space<vmem>>, vector<128x128xf32>
    %20 = arith.mulf %19, %18 : vector<128x128xf32>
    %21 = arith.addf %14, %20 : vector<128x128xf32>
    %22 = arith.truncf %21 : vector<128x128xf32> to vector<128x128xbf16>
    %c0_14 = arith.constant 0 : index
    %c0_15 = arith.constant 0 : index
    %23 = vector.load %arg7[%c0_14, %c0_15] : memref<128x512xbf16, #tpu.memory_space<vmem>>, vector<128x512xbf16>
    %cst_16 = arith.constant dense<0.000000e+00> : vector<128x512xf32>
    %24 = tpu.matmul %22, %23, %cst_16 {dimension_numbers = #tpu.dot_dimension_numbers<[1], [0], [0], [1], [0, 0, 1, 1], [], []>} : vector<128x128xbf16>, vector<128x512xbf16>, vector<128x512xf32> -> vector<128x512xf32>
    %c0_17 = arith.constant 0 : index
    %c0_18 = arith.constant 0 : index
    %25 = vector.load %arg8[%c0_17, %c0_18] : memref<1x512xf32, #tpu.memory_space<vmem>>, vector<1x512xf32>
    %26 = vector.broadcast %25 : vector<1x512xf32> to vector<128x512xf32>
    %27 = arith.addf %24, %26 : vector<128x512xf32>
    %cst_19 = arith.constant 0.000000e+00 : f32
    %28 = vector.broadcast %cst_19 : f32 to vector<128x512xf32>
    %29 = arith.maximumf %27, %28 : vector<128x512xf32>
    %30 = arith.truncf %29 : vector<128x512xf32> to vector<128x512xbf16>
    %c0_20 = arith.constant 0 : index
    %c0_21 = arith.constant 0 : index
    %31 = vector.load %arg9[%c0_20, %c0_21] : memref<512x896xbf16, #tpu.memory_space<vmem>>, vector<512x896xbf16>
    %cst_22 = arith.constant dense<0.000000e+00> : vector<128x896xf32>
    %32 = tpu.matmul %30, %31, %cst_22 {dimension_numbers = #tpu.dot_dimension_numbers<[1], [0], [0], [1], [0, 0, 1, 1], [], []>} : vector<128x512xbf16>, vector<512x896xbf16>, vector<128x896xf32> -> vector<128x896xf32>
    %c0_23 = arith.constant 0 : index
    %c0_24 = arith.constant 0 : index
    %33 = vector.load %arg10[%c0_23, %c0_24] : memref<1x896xf32, #tpu.memory_space<vmem>>, vector<1x896xf32>
    %34 = vector.broadcast %33 : vector<1x896xf32> to vector<128x896xf32>
    %35 = arith.addf %32, %34 : vector<128x896xf32>
    %cst_25 = arith.constant 5.000000e-01 : f32
    %36 = vector.broadcast %cst_25 : f32 to vector<128x896xf32>
    %37 = arith.mulf %36, %35 : vector<128x896xf32>
    %38 = math.tanh %37 : vector<128x896xf32>
    %cst_26 = arith.constant 1.000000e+00 : f32
    %39 = vector.broadcast %cst_26 : f32 to vector<128x896xf32>
    %40 = arith.addf %38, %39 : vector<128x896xf32>
    %cst_27 = arith.constant 5.000000e-01 : f32
    %41 = vector.broadcast %cst_27 : f32 to vector<128x896xf32>
    %42 = arith.mulf %41, %40 : vector<128x896xf32>
    %c0_28 = arith.constant 0 : index
    %c0_29 = arith.constant 0 : index
    %43 = vector.load %arg11[%c0_28, %c0_29] : memref<128x896xf32, #tpu.memory_space<vmem>>, vector<128x896xf32>
    tpu.vector_store %arg11[%c0_28, %c0_29], %42 {strides = array<i32>} : memref<128x896xf32, #tpu.memory_space<vmem>>, vector<128x896xf32>,
    %c0_30 = arith.constant 0 : index
    %c0_31 = arith.constant 0 : index
    %44 = vector.load %arg12[%c0_30, %c0_31] : memref<128x128xf32, #tpu.memory_space<vmem>>, vector<128x128xf32>
    tpu.vector_store %arg12[%c0_30, %c0_31], %14 {strides = array<i32>} : memref<128x128xf32, #tpu.memory_space<vmem>>, vector<128x128xf32>,
    %c0_32 = arith.constant 0 : index
    %c0_33 = arith.constant 0 : index
    %45 = vector.load %arg13[%c0_32, %c0_33] : memref<128x128xf32, #tpu.memory_space<vmem>>, vector<128x128xf32>
    tpu.vector_store %arg13[%c0_32, %c0_33], %15 {strides = array<i32>} : memref<128x128xf32, #tpu.memory_space<vmem>>, vector<128x128xf32>,
    return
  }
  func.func @transform_0(%arg0: i32) -> (i32, i32) {
    %c0_i32 = arith.constant 0 : i32
    %c0_i32_0 = arith.constant 0 : i32
    return %arg0, %c0_i32 : i32, i32
  }
  func.func @transform_1(%arg0: i32) -> (i32, i32) {
    %c0_i32 = arith.constant 0 : i32
    %c0_i32_0 = arith.constant 0 : i32
    return %arg0, %c0_i32 : i32, i32
  }
  func.func @transform_2(%arg0: i32) -> (i32, i32) {
    %c0_i32 = arith.constant 0 : i32
    %c0_i32_0 = arith.constant 0 : i32
    %c0_i32_1 = arith.constant 0 : i32
    return %c0_i32, %c0_i32_0 : i32, i32
  }
  func.func @transform_3(%arg0: i32) -> (i32, i32) {
    %c0_i32 = arith.constant 0 : i32
    %c0_i32_0 = arith.constant 0 : i32
    %c0_i32_1 = arith.constant 0 : i32
    return %c0_i32, %c0_i32_0 : i32, i32
  }
  func.func @transform_4(%arg0: i32) -> (i32, i32) {
    %c0_i32 = arith.constant 0 : i32
    %c0_i32_0 = arith.constant 0 : i32
    %c0_i32_1 = arith.constant 0 : i32
    return %c0_i32, %c0_i32_0 : i32, i32
  }
  func.func @transform_5(%arg0: i32) -> (i32, i32) {
    %c0_i32 = arith.constant 0 : i32
    %c0_i32_0 = arith.constant 0 : i32
    %c0_i32_1 = arith.constant 0 : i32
    return %c0_i32, %c0_i32_0 : i32, i32
  }
  func.func @transform_6(%arg0: i32) -> (i32, i32) {
    %c0_i32 = arith.constant 0 : i32
    %c0_i32_0 = arith.constant 0 : i32
    %c0_i32_1 = arith.constant 0 : i32
    return %c0_i32, %c0_i32_0 : i32, i32
  }
  func.func @transform_7(%arg0: i32) -> (i32, i32) {
    %c0_i32 = arith.constant 0 : i32
    %c0_i32_0 = arith.constant 0 : i32
    %c0_i32_1 = arith.constant 0 : i32
    return %c0_i32, %c0_i32_0 : i32, i32
  }
  func.func @transform_8(%arg0: i32) -> (i32, i32) {
    %c0_i32 = arith.constant 0 : i32
    %c0_i32_0 = arith.constant 0 : i32
    %c0_i32_1 = arith.constant 0 : i32
    return %c0_i32, %c0_i32_0 : i32, i32
  }
  func.func @transform_9(%arg0: i32) -> (i32, i32) {
    %c0_i32 = arith.constant 0 : i32
    %c0_i32_0 = arith.constant 0 : i32
    %c0_i32_1 = arith.constant 0 : i32
    return %c0_i32, %c0_i32_0 : i32, i32
  }
  func.func @transform_10(%arg0: i32) -> (i32, i32) {
    %c0_i32 = arith.constant 0 : i32
    %c0_i32_0 = arith.constant 0 : i32
    return %arg0, %c0_i32 : i32, i32
  }
  func.func @transform_11(%arg0: i32) -> (i32, i32) {
    %c0_i32 = arith.constant 0 : i32
    %c0_i32_0 = arith.constant 0 : i32
    return %arg0, %c0_i32 : i32, i32
  }
  func.func @transform_12(%arg0: i32) -> (i32, i32) {
    %c0_i32 = arith.constant 0 : i32
    %c0_i32_0 = arith.constant 0 : i32
    return %arg0, %c0_i32 : i32, i32
  }
}

</mosaic_0001>

<llo_original>
// kernel: vae_forward.1
$region0: #{vae_forward.1}
  #allocation0 [shape = 'u32[]', space=smem, size = 0x4, offset = 0x4, fixed_abs, tag = 'smem constant byte address 0x4 - core index']
  #allocation1 [shape = 'u32[144,128]{1,0:T(1,128)}', space=vmem, size = 0x12000, scoped, tag = 'internal scratch']
  %s0 = inlined_call_operand.vmem [shape: bf16[256,896], index: 0, kind: input, shape index: {}]
  %s1 = inlined_call_operand.vmem [shape: f32[256,128], index: 1, kind: input, shape index: {}]
  %s2 = inlined_call_operand.vmem [shape: bf16[896,512], index: 2, kind: input, shape index: {}]
  %s3 = inlined_call_operand.vmem [shape: f32[1,512], index: 3, kind: input, shape index: {}]
  %s4 = inlined_call_operand.vmem [shape: bf16[512,256], index: 4, kind: input, shape index: {}]
  %s5 = inlined_call_operand.vmem [shape: f32[1,256], index: 5, kind: input, shape index: {}]
  %s6 = inlined_call_operand.vmem [shape: bf16[128,512], index: 6, kind: input, shape index: {}]
  %s7 = inlined_call_operand.vmem [shape: f32[1,512], index: 7, kind: input, shape index: {}]
  %s8 = inlined_call_operand.vmem [shape: bf16[512,896], index: 8, kind: input, shape index: {}]
  %s9 = inlined_call_operand.vmem [shape: f32[1,896], index: 9, kind: input, shape index: {}]
  %s10 = inlined_call_operand.vmem [shape: f32[256,896], index: 10, kind: output, shape index: {0}]
  %s11 = inlined_call_operand.vmem [shape: f32[256,128], index: 11, kind: output, shape index: {1}]
  %s12 = inlined_call_operand.vmem [shape: f32[256,128], index: 12, kind: output, shape index: {2}]
  %13 = xla_tuple %s10, %s11, %s12
  %s14 = sld [smem:[#allocation0]]
  $region89: #{vae_forward.1} parent=0
    _
  %s16 = ssub.s32 1, %s14
  %s17 = scalar_select 0, %s16, %s14
  loop: start=0, step=1, limit=4
  $region2: #{vae_forward.1} parent=0 // loop_pre_header
    _
  $region3: #{vae_forward.1} parent=0 // loop_header
    %s19 = sphi 0, %s23
    %p20 = scmp.ge.s32.totalorder %s19, 4
    %s29 = sphi 0, %s31
    %s32 = sphi 0, %s29
    %s33 = sphi 0, %s32
    %s49 = sphi 0, %s33
    %s55 = sphi 0, %s57
    %s58 = sphi 0, %s55
    %s59 = sphi 0, %s58
    %s75 = sphi 0, %s59
    %s79 = sphi 0, %s79
    %s81 = sphi 0, %s79
    %s82 = sphi 0, %s81
    %s96 = sphi 0, %s82
    %s100 = sphi 0, %s100
    %s102 = sphi 0, %s100
    %s103 = sphi 0, %s102
    %s117 = sphi 0, %s103
    %s121 = sphi 0, %s121
    %s123 = sphi 0, %s121
    %s124 = sphi 0, %s123
    %s138 = sphi 0, %s124
    %s142 = sphi 0, %s142
    %s144 = sphi 0, %s142
    %s145 = sphi 0, %s144
    %s159 = sphi 0, %s145
    %s163 = sphi 0, %s163
    %s165 = sphi 0, %s163
    %s166 = sphi 0, %s165
    %s180 = sphi 0, %s166
    %s184 = sphi 0, %s184
    %s186 = sphi 0, %s184
    %s187 = sphi 0, %s186
    %s201 = sphi 0, %s187
    %s205 = sphi 0, %s205
    %s207 = sphi 0, %s205
    %s208 = sphi 0, %s207
    %s222 = sphi 0, %s208
    %s226 = sphi 0, %s226
    %s228 = sphi 0, %s226
    %s229 = sphi 0, %s228
    %s243 = sphi 0, %s229
    %s249 = sphi 0, %s251
    %s252 = sphi 0, %s249
    %s253 = sphi 0, %s252
    %s269 = sphi 0, %s253
    %s275 = sphi 0, %s277
    %s278 = sphi 0, %s275
    %s279 = sphi 0, %s278
    %s295 = sphi 0, %s279
    %s301 = sphi 0, %s303
    %s304 = sphi 0, %s301
    %s305 = sphi 0, %s304
    %s321 = sphi 0, %s305
  $region4: #{vae_forward.1} parent=0 // loop_header_branch
    %22 = sbr.rel (%p20) target = $region8
  $region5: #{vae_forward.1} parent=0 // loop_body
    %s24 = ssub.s32 %s19, 1
    %s25 = ssub.s32 %s19, 2
    %s26 = sadd.s32 %s19, 1
    %s27 = ssub.s32 %s19, %s26
    %p28 = scmp.eq.s32.totalorder %s27, 0
    %s30 = sadd.s32 %s29, 1
    %s31 = scalar_select %p28, %s29, %s30
    %p34 = pneg %p28
    %p35 = scmp.eq.s32.totalorder %s19, 1
    %p36 = por %p34, %p35
    %p37 = scmp.ne.s32.totalorder %s29, %s32
    %p38 = scmp.eq.s32.totalorder %s19, 0
    %p39 = por %p37, %p38
    %p40 = scmp.ne.s32.totalorder %s29, %s32
    %p41 = scmp.eq.s32.totalorder %s24, 1
    %p42 = por %p40, %p41
    %p43 = scmp.ne.s32.totalorder %s32, %s33
    %p44 = scmp.eq.s32.totalorder %s24, 0
    %p45 = por %p43, %p44
    %p46 = scmp.ne.s32.totalorder %s32, %s33
    %p47 = scmp.eq.s32.totalorder %s25, 1
    %p48 = por %p46, %p47
    %p50 = scmp.ne.s32.totalorder %s33, %s49
    %p51 = scmp.eq.s32.totalorder %s25, 0
    %p52 = por %p50, %p51
    %s53 = ssub.s32 %s19, %s26
    %p54 = scmp.eq.s32.totalorder %s53, 0
    %s56 = sadd.s32 %s55, 1
    %s57 = scalar_select %p54, %s55, %s56
    %p60 = pneg %p54
    %p61 = scmp.eq.s32.totalorder %s19, 1
    %p62 = por %p60, %p61
    %p63 = scmp.ne.s32.totalorder %s55, %s58
    %p64 = scmp.eq.s32.totalorder %s19, 0
    %p65 = por %p63, %p64
    %p66 = scmp.ne.s32.totalorder %s55, %s58
    %p67 = scmp.eq.s32.totalorder %s24, 1
    %p68 = por %p66, %p67
    %p69 = scmp.ne.s32.totalorder %s58, %s59
    %p70 = scmp.eq.s32.totalorder %s24, 0
    %p71 = por %p69, %p70
    %p72 = scmp.ne.s32.totalorder %s58, %s59
    %p73 = scmp.eq.s32.totalorder %s25, 1
    %p74 = por %p72, %p73
    %p76 = scmp.ne.s32.totalorder %s59, %s75
    %p77 = scmp.eq.s32.totalorder %s25, 0
    %p78 = por %p76, %p77
    %s80 = sadd.s32 %s79, 1
    %p83 = scmp.eq.s32.totalorder %s19, 1
    %p84 = scmp.ne.s32.totalorder %s79, %s81
    %p85 = scmp.eq.s32.totalorder %s19, 0
    %p86 = por %p84, %p85
    %p87 = scmp.ne.s32.totalorder %s79, %s81
    %p88 = scmp.eq.s32.totalorder %s24, 1
    %p89 = por %p87, %p88
    %p90 = scmp.ne.s32.totalorder %s81, %s82
    %p91 = scmp.eq.s32.totalorder %s24, 0
    %p92 = por %p90, %p91
    %p93 = scmp.ne.s32.totalorder %s81, %s82
    %p94 = scmp.eq.s32.totalorder %s25, 1
    %p95 = por %p93, %p94
    %p97 = scmp.ne.s32.totalorder %s82, %s96
    %p98 = scmp.eq.s32.totalorder %s25, 0
    %p99 = por %p97, %p98
    %s101 = sadd.s32 %s100, 1
    %p104 = scmp.eq.s32.totalorder %s19, 1
    %p105 = scmp.ne.s32.totalorder %s100, %s102
    %p106 = scmp.eq.s32.totalorder %s19, 0
    %p107 = por %p105, %p106
    %p108 = scmp.ne.s32.totalorder %s100, %s102
    %p109 = scmp.eq.s32.totalorder %s24, 1
    %p110 = por %p108, %p109
    %p111 = scmp.ne.s32.totalorder %s102, %s103
    %p112 = scmp.eq.s32.totalorder %s24, 0
    %p113 = por %p111, %p112
    %p114 = scmp.ne.s32.totalorder %s102, %s103
    %p115 = scmp.eq.s32.totalorder %s25, 1
    %p116 = por %p114, %p115
    %p118 = scmp.ne.s32.totalorder %s103, %s117
    %p119 = scmp.eq.s32.totalorder %s25, 0
    %p120 = por %p118, %p119
    %s122 = sadd.s32 %s121, 1
    %p125 = scmp.eq.s32.totalorder %s19, 1
    %p126 = scmp.ne.s32.totalorder %s121, %s123
    %p127 = scmp.eq.s32.totalorder %s19, 0
    %p128 = por %p126, %p127
    %p129 = scmp.ne.s32.totalorder %s121, %s123
    %p130 = scmp.eq.s32.totalorder %s24, 1
    %p131 = por %p129, %p130
    %p132 = scmp.ne.s32.totalorder %s123, %s124
    %p133 = scmp.eq.s32.totalorder %s24, 0
    %p134 = por %p132, %p133
    %p135 = scmp.ne.s32.totalorder %s123, %s124
    %p136 = scmp.eq.s32.totalorder %s25, 1
    %p137 = por %p135, %p136
    %p139 = scmp.ne.s32.totalorder %s124, %s138
    %p140 = scmp.eq.s32.totalorder %s25, 0
    %p141 = por %p139, %p140
    %s143 = sadd.s32 %s142, 1
    %p146 = scmp.eq.s32.totalorder %s19, 1
    %p147 = scmp.ne.s32.totalorder %s142, %s144
    %p148 = scmp.eq.s32.totalorder %s19, 0
    %p149 = por %p147, %p148
    %p150 = scmp.ne.s32.totalorder %s142, %s144
    %p151 = scmp.eq.s32.totalorder %s24, 1
    %p152 = por %p150, %p151
    %p153 = scmp.ne.s32.totalorder %s144, %s145
    %p154 = scmp.eq.s32.totalorder %s24, 0
    %p155 = por %p153, %p154
    %p156 = scmp.ne.s32.totalorder %s144, %s145
    %p157 = scmp.eq.s32.totalorder %s25, 1
    %p158 = por %p156, %p157
    %p160 = scmp.ne.s32.totalorder %s145, %s159
    %p161 = scmp.eq.s32.totalorder %s25, 0
    %p162 = por %p160, %p161
    %s164 = sadd.s32 %s163, 1
    %p167 = scmp.eq.s32.totalorder %s19, 1
    %p168 = scmp.ne.s32.totalorder %s163, %s165
    %p169 = scmp.eq.s32.totalorder %s19, 0
    %p170 = por %p168, %p169
    %p171 = scmp.ne.s32.totalorder %s163, %s165
    %p172 = scmp.eq.s32.totalorder %s24, 1
    %p173 = por %p171, %p172
    %p174 = scmp.ne.s32.totalorder %s165, %s166
    %p175 = scmp.eq.s32.totalorder %s24, 0
    %p176 = por %p174, %p175
    %p177 = scmp.ne.s32.totalorder %s165, %s166
    %p178 = scmp.eq.s32.totalorder %s25, 1
    %p179 = por %p177, %p178
    %p181 = scmp.ne.s32.totalorder %s166, %s180
    %p182 = scmp.eq.s32.totalorder %s25, 0
    %p183 = por %p181, %p182
    %s185 = sadd.s32 %s184, 1
    %p188 = scmp.eq.s32.totalorder %s19, 1
    %p189 = scmp.ne.s32.totalorder %s184, %s186
    %p190 = scmp.eq.s32.totalorder %s19, 0
    %p191 = por %p189, %p190
    %p192 = scmp.ne.s32.totalorder %s184, %s186
    %p193 = scmp.eq.s32.totalorder %s24, 1
    %p194 = por %p192, %p193
    %p195 = scmp.ne.s32.totalorder %s186, %s187
    %p196 = scmp.eq.s32.totalorder %s24, 0
    %p197 = por %p195, %p196
    %p198 = scmp.ne.s32.totalorder %s186, %s187
    %p199 = scmp.eq.s32.totalorder %s25, 1
    %p200 = por %p198, %p199
    %p202 = scmp.ne.s32.totalorder %s187, %s201
    %p203 = scmp.eq.s32.totalorder %s25, 0
    %p204 = por %p202, %p203
    %s206 = sadd.s32 %s205, 1
    %p209 = scmp.eq.s32.totalorder %s19, 1
    %p210 = scmp.ne.s32.totalorder %s205, %s207
    %p211 = scmp.eq.s32.totalorder %s19, 0
    %p212 = por %p210, %p211
    %p213 = scmp.ne.s32.totalorder %s205, %s207
    %p214 = scmp.eq.s32.totalorder %s24, 1
    %p215 = por %p213, %p214
    %p216 = scmp.ne.s32.totalorder %s207, %s208
    %p217 = scmp.eq.s32.totalorder %s24, 0
    %p218 = por %p216, %p217
    %p219 = scmp.ne.s32.totalorder %s207, %s208
    %p220 = scmp.eq.s32.totalorder %s25, 1
    %p221 = por %p219, %p220
    %p223 = scmp.ne.s32.totalorder %s208, %s222
    %p224 = scmp.eq.s32.totalorder %s25, 0
    %p225 = por %p223, %p224
    %s227 = sadd.s32 %s226, 1
    %p230 = scmp.eq.s32.totalorder %s19, 1
    %p231 = scmp.ne.s32.totalorder %s226, %s228
    %p232 = scmp.eq.s32.totalorder %s19, 0
    %p233 = por %p231, %p232
    %p234 = scmp.ne.s32.totalorder %s226, %s228
    %p235 = scmp.eq.s32.totalorder %s24, 1
    %p236 = por %p234, %p235
    %p237 = scmp.ne.s32.totalorder %s228, %s229
    %p238 = scmp.eq.s32.totalorder %s24, 0
    %p239 = por %p237, %p238
    %p240 = scmp.ne.s32.totalorder %s228, %s229
    %p241 = scmp.eq.s32.totalorder %s25, 1
    %p242 = por %p240, %p241
    %p244 = scmp.ne.s32.totalorder %s229, %s243
    %p245 = scmp.eq.s32.totalorder %s25, 0
    %p246 = por %p244, %p245
    %s247 = ssub.s32 %s19, %s26
    %p248 = scmp.eq.s32.totalorder %s247, 0
    %s250 = sadd.s32 %s249, 1
    %s251 = scalar_select %p248, %s249, %s250
    %p254 = pneg %p248
    %p255 = scmp.eq.s32.totalorder %s19, 1
    %p256 = por %p254, %p255
    %p257 = scmp.ne.s32.totalorder %s249, %s252
    %p258 = scmp.eq.s32.totalorder %s19, 0
    %p259 = por %p257, %p258
    %p260 = scmp.ne.s32.totalorder %s249, %s252
    %p261 = scmp.eq.s32.totalorder %s24, 1
    %p262 = por %p260, %p261
    %p263 = scmp.ne.s32.totalorder %s252, %s253
    %p264 = scmp.eq.s32.totalorder %s24, 0
    %p265 = por %p263, %p264
    %p266 = scmp.ne.s32.totalorder %s252, %s253
    %p267 = scmp.eq.s32.totalorder %s25, 1
    %p268 = por %p266, %p267
    %p270 = scmp.ne.s32.totalorder %s253, %s269
    %p271 = scmp.eq.s32.totalorder %s25, 0
    %p272 = por %p270, %p271
    %s273 = ssub.s32 %s19, %s26
    %p274 = scmp.eq.s32.totalorder %s273, 0
    %s276 = sadd.s32 %s275, 1
    %s277 = scalar_select %p274, %s275, %s276
    %p280 = pneg %p274
    %p281 = scmp.eq.s32.totalorder %s19, 1
    %p282 = por %p280, %p281
    %p283 = scmp.ne.s32.totalorder %s275, %s278
    %p284 = scmp.eq.s32.totalorder %s19, 0
    %p285 = por %p283, %p284
    %p286 = scmp.ne.s32.totalorder %s275, %s278
    %p287 = scmp.eq.s32.totalorder %s24, 1
    %p288 = por %p286, %p287
    %p289 = scmp.ne.s32.totalorder %s278, %s279
    %p290 = scmp.eq.s32.totalorder %s24, 0
    %p291 = por %p289, %p290
    %p292 = scmp.ne.s32.totalorder %s278, %s279
    %p293 = scmp.eq.s32.totalorder %s25, 1
    %p294 = por %p292, %p293
    %p296 = scmp.ne.s32.totalorder %s279, %s295
    %p297 = scmp.eq.s32.totalorder %s25, 0
    %p298 = por %p296, %p297
    %s299 = ssub.s32 %s19, %s26
    %p300 = scmp.eq.s32.totalorder %s299, 0
    %s302 = sadd.s32 %s301, 1
    %s303 = scalar_select %p300, %s301, %s302
    %p306 = pneg %p300
    %p307 = scmp.eq.s32.totalorder %s19, 1
    %p308 = por %p306, %p307
    %p309 = scmp.ne.s32.totalorder %s301, %s304
    %p310 = scmp.eq.s32.totalorder %s19, 0
    %p311 = por %p309, %p310
    %p312 = scmp.ne.s32.totalorder %s301, %s304
    %p313 = scmp.eq.s32.totalorder %s24, 1
    %p314 = por %p312, %p313
    %p315 = scmp.ne.s32.totalorder %s304, %s305
    %p316 = scmp.eq.s32.totalorder %s24, 0
    %p317 = por %p315, %p316
    %p318 = scmp.ne.s32.totalorder %s304, %s305
    %p319 = scmp.eq.s32.totalorder %s25, 1
    %p320 = por %p318, %p319
    %p322 = scmp.ne.s32.totalorder %s305, %s321
    %p323 = scmp.eq.s32.totalorder %s25, 0
    %p324 = por %p322, %p323
    %p325 = scmp.le.s32.totalorder 1, %s19
    %p326 = scmp.lt.s32.totalorder %s19, 3
    %p327 = pnand %p325, %p326
    %p328 = pneg %p327
    // Predicated region
    $region9: #{vae_forward.1} parent=5 // pred_check
      _
    $region10: #{vae_forward.1} parent=5 // pred_check_branch
      %330 = sbr.rel (%p327) target = $region12
    $region11: #{vae_forward.1} parent=5 // pred_region
      %s331 = ssub.s32 %s19, 1
      // Predicated region
      $region13: #{vae_forward.1} parent=11 // pred_check
        %p332 = pneg %p92
      $region14: #{vae_forward.1} parent=11 // pred_check_branch
        %334 = sbr.rel (%p332) target = $region16
      $region15: #{vae_forward.1} parent=11 // pred_region
        _
      $region16: #{vae_forward.1} parent=11 // pred_fallthru
        _
      // Predicated region
      $region17: #{vae_forward.1} parent=11 // pred_check
        %p335 = pneg %p113
      $region18: #{vae_forward.1} parent=11 // pred_check_branch
        %337 = sbr.rel (%p335) target = $region20
      $region19: #{vae_forward.1} parent=11 // pred_region
        _
      $region20: #{vae_forward.1} parent=11 // pred_fallthru
        _
      // Predicated region
      $region21: #{vae_forward.1} parent=11 // pred_check
        %p338 = pneg %p134
      $region22: #{vae_forward.1} parent=11 // pred_check_branch
        %340 = sbr.rel (%p338) target = $region24
      $region23: #{vae_forward.1} parent=11 // pred_region
        _
      $region24: #{vae_forward.1} parent=11 // pred_fallthru
        _
      // Predicated region
      $region25: #{vae_forward.1} parent=11 // pred_check
        %p341 = pneg %p155
      $region26: #{vae_forward.1} parent=11 // pred_check_branch
        %343 = sbr.rel (%p341) target = $region28
      $region27: #{vae_forward.1} parent=11 // pred_region
        _
      $region28: #{vae_forward.1} parent=11 // pred_fallthru
        _
      // Predicated region
      $region29: #{vae_forward.1} parent=11 // pred_check
        %p344 = pneg %p176
      $region30: #{vae_forward.1} parent=11 // pred_check_branch
        %346 = sbr.rel (%p344) target = $region32
      $region31: #{vae_forward.1} parent=11 // pred_region
        _
      $region32: #{vae_forward.1} parent=11 // pred_fallthru
        _
      // Predicated region
      $region33: #{vae_forward.1} parent=11 // pred_check
        %p347 = pneg %p197
      $region34: #{vae_forward.1} parent=11 // pred_check_branch
        %349 = sbr.rel (%p347) target = $region36
      $region35: #{vae_forward.1} parent=11 // pred_region
        _
      $region36: #{vae_forward.1} parent=11 // pred_fallthru
        _
      // Predicated region
      $region37: #{vae_forward.1} parent=11 // pred_check
        %p350 = pneg %p218
      $region38: #{vae_forward.1} parent=11 // pred_check_branch
        %352 = sbr.rel (%p350) target = $region40
      $region39: #{vae_forward.1} parent=11 // pred_region
        _
      $region40: #{vae_forward.1} parent=11 // pred_fallthru
        _
      // Predicated region
      $region41: #{vae_forward.1} parent=11 // pred_check
        %p353 = pneg %p239
      $region42: #{vae_forward.1} parent=11 // pred_check_branch
        %355 = sbr.rel (%p353) target = $region44
      $region43: #{vae_forward.1} parent=11 // pred_region
        _
      $region44: #{vae_forward.1} parent=11 // pred_fallthru
        _
    $region12: #{vae_forward.1} parent=5 // pred_fallthru
      _
    %p356 = scmp.lt.s32.totalorder %s19, 2
    // Predicated region
    $region45: #{vae_forward.1} parent=5 // pred_check
      %p357 = pneg %p356
    $region46: #{vae_forward.1} parent=5 // pred_check_branch
      %359 = sbr.rel (%p357) target = $region48
    $region47: #{vae_forward.1} parent=5 // pred_region
      // Predicated region
      $region49: #{vae_forward.1} parent=47 // pred_check
        %p360 = pneg %p39
      $region50: #{vae_forward.1} parent=47 // pred_check_branch
        %362 = sbr.rel (%p360) target = $region52
      $region51: #{vae_forward.1} parent=47 // pred_region
        %s363 = smul.u32 16, %s19
        %p364 = scmp.lt.s32.totalorder %s363, 31
        %s365 = scalar_select %p364, %s363, 31
        %s366 = smul.addr %s365, 7
        %s367 = smul.addr %s366, 4
        %s368 = scalar_lea.vmem %s0, %s367
        %s369 = smul.u32 16, %s19
      $region52: #{vae_forward.1} parent=47 // pred_fallthru
        _
      // Predicated region
      $region53: #{vae_forward.1} parent=47 // pred_check
        %p370 = pneg %p65
      $region54: #{vae_forward.1} parent=47 // pred_check_branch
        %372 = sbr.rel (%p370) target = $region56
      $region55: #{vae_forward.1} parent=47 // pred_region
        %s373 = smul.u32 16, %s19
        %p374 = scmp.lt.s32.totalorder %s373, 31
        %s375 = scalar_select %p374, %s373, 31
        %s376 = smul.addr %s375, 8
        %s377 = scalar_lea.vmem %s1, %s376
        %s378 = smul.u32 16, %s19
      $region56: #{vae_forward.1} parent=47 // pred_fallthru
        _
    $region48: #{vae_forward.1} parent=5 // pred_fallthru
      _
    %p379 = scmp.le.s32.totalorder 1, %s19
    %p380 = scmp.lt.s32.totalorder %s19, 3
    %p381 = pnand %p379, %p380
    %p382 = pneg %p381
    // Predicated region
    $region57: #{vae_forward.1} parent=5 // pred_check
      _
    $region58: #{vae_forward.1} parent=5 // pred_check_branch
      %384 = sbr.rel (%p381) target = $region60
    $region59: #{vae_forward.1} parent=5 // pred_region
      %s385 = ssub.s32 %s19, 1
      %s386 = smul.u32 16, %s24
      %p387 = scmp.lt.s32.totalorder %s386, 31
      %s388 = scalar_select %p387, %s386, 31
      %s389 = smul.addr %s388, 7
      %s390 = smul.addr %s389, 4
      %s391 = scalar_lea.vmem %s0, %s390
      %p392 = pneg %p45
      %p393 = pneg %p42
      %s394 = smul.u32 16, %s24
      %p395 = scmp.lt.s32.totalorder %s394, 31
      %s396 = scalar_select %p395, %s394, 31
      %s397 = smul.addr %s396, 8
      %s398 = scalar_lea.vmem %s1, %s397
      %p399 = pneg %p71
      %p400 = pneg %p68
      %p401 = pneg %p92
      %p402 = pneg %p89
      %p403 = pneg %p113
      %p404 = pneg %p110
      %p405 = pneg %p134
      %p406 = pneg %p131
      %p407 = pneg %p155
      %p408 = pneg %p152
      %p409 = pneg %p176
      %p410 = pneg %p173
      %p411 = pneg %p197
      %p412 = pneg %p194
      %p413 = pneg %p218
      %p414 = pneg %p215
      %p415 = pneg %p239
      %p416 = pneg %p236
      %p417 = pneg %p265
      %p418 = pneg %p262
      %s419 = smul.u32 16, %s24
      %p420 = scmp.lt.s32.totalorder %s419, 31
      %s421 = scalar_select %p420, %s419, 31
      %s422 = smul.addr %s421, 7
      %s423 = smul.addr %s422, 8
      %s424 = scalar_lea.vmem %s10, %s423
      %p425 = pneg %p291
      %p426 = pneg %p288
      %s427 = smul.u32 16, %s24
      %p428 = scmp.lt.s32.totalorder %s427, 31
      %s429 = scalar_select %p428, %s427, 31
      %s430 = smul.addr %s429, 8
      %s431 = scalar_lea.vmem %s11, %s430
      %p432 = pneg %p317
      %p433 = pneg %p314
      %s434 = smul.u32 16, %s24
      %p435 = scmp.lt.s32.totalorder %s434, 31
      %s436 = scalar_select %p435, %s434, 31
      %s437 = smul.addr %s436, 8
      %s438 = scalar_lea.vmem %s12, %s437
      %s439 = smul.u32 16, %s24
      %p440 = scmp.lt.s32.totalorder %s439, 31
      %s441 = scalar_select %p440, %s439, 31
      %s442 = smul.addr %s441, 7
      %s443 = smul.addr %s442, 4
      %s444 = scalar_lea.vmem %s0, %s443
      %s445 = smul.u32 16, %s24
      %s446 = smul.u32 16, %s24
      %p447 = scmp.lt.s32.totalorder %s446, 31
      %s448 = scalar_select %p447, %s446, 31
      %s449 = smul.addr %s448, 8
      %s450 = scalar_lea.vmem %s1, %s449
      %s451 = smul.u32 16, %s24
      %s452 = smul.u32 16, %s24
      %p453 = scmp.lt.s32.totalorder %s452, 31
      %s454 = scalar_select %p453, %s452, 31
      %s455 = smul.addr %s454, 7
      %s456 = smul.addr %s455, 8
      %s457 = scalar_lea.vmem %s10, %s456
      %s458 = smul.u32 16, %s24
      %s459 = smul.u32 16, %s24
      %p460 = scmp.lt.s32.totalorder %s459, 31
      %s461 = scalar_select %p460, %s459, 31
      %s462 = smul.addr %s461, 8
      %s463 = scalar_lea.vmem %s11, %s462
      %s464 = smul.u32 16, %s24
      %s465 = smul.u32 16, %s24
      %p466 = scmp.lt.s32.totalorder %s465, 31
      %s467 = scalar_select %p466, %s465, 31
      %s468 = smul.addr %s467, 8
      %s469 = scalar_lea.vmem %s12, %s468
      %s470 = smul.u32 16, %s24
      %v472 = vld [vmem:[%s444] sm:$0xff]
      %v473 = vld [vmem:[%s444 + $0x8] sm:$0xff]
      %v474 = vld [vmem:[%s444 + $0x10] sm:$0xff]
      %v475 = vld [vmem:[%s444 + $0x18] sm:$0xf]
      %v476 = vld [vmem:[%s444 + $0x1c] sm:$0xff]
      %v477 = vld [vmem:[%s444 + $0x24] sm:$0xff]
      %v478 = vld [vmem:[%s444 + $0x2c] sm:$0xff]
      %v479 = vld [vmem:[%s444 + $0x34] sm:$0xf]
      %v480 = vld [vmem:[%s444 + $0x38] sm:$0xff]
      %v481 = vld [vmem:[%s444 + $0x40] sm:$0xff]
      %v482 = vld [vmem:[%s444 + $0x48] sm:$0xff]
      %v483 = vld [vmem:[%s444 + $0x50] sm:$0xf]
      %v484 = vld [vmem:[%s444 + $0x54] sm:$0xff]
      %v485 = vld [vmem:[%s444 + $0x5c] sm:$0xff]
      %v486 = vld [vmem:[%s444 + $0x64] sm:$0xff]
      %v487 = vld [vmem:[%s444 + $0x6c] sm:$0xf]
      %v488 = vld [vmem:[%s444 + $0x70] sm:$0xff]
      %v489 = vld [vmem:[%s444 + $0x78] sm:$0xff]
      %v490 = vld [vmem:[%s444 + $0x80] sm:$0xff]
      %v491 = vld [vmem:[%s444 + $0x88] sm:$0xf]
      %v492 = vld [vmem:[%s444 + $0x8c] sm:$0xff]
      %v493 = vld [vmem:[%s444 + $0x94] sm:$0xff]
      %v494 = vld [vmem:[%s444 + $0x9c] sm:$0xff]
      %v495 = vld [vmem:[%s444 + $0xa4] sm:$0xf]
      %v496 = vld [vmem:[%s444 + $0xa8] sm:$0xff]
      %v497 = vld [vmem:[%s444 + $0xb0] sm:$0xff]
      %v498 = vld [vmem:[%s444 + $0xb8] sm:$0xff]
      %v499 = vld [vmem:[%s444 + $0xc0] sm:$0xf]
      %v500 = vld [vmem:[%s444 + $0xc4] sm:$0xff]
      %v501 = vld [vmem:[%s444 + $0xcc] sm:$0xff]
      %v502 = vld [vmem:[%s444 + $0xd4] sm:$0xff]
      %v503 = vld [vmem:[%s444 + $0xdc] sm:$0xf]
      %v504 = vld [vmem:[%s444 + $0xe0] sm:$0xff]
      %v505 = vld [vmem:[%s444 + $0xe8] sm:$0xff]
      %v506 = vld [vmem:[%s444 + $0xf0] sm:$0xff]
      %v507 = vld [vmem:[%s444 + $0xf8] sm:$0xf]
      %v508 = vld [vmem:[%s444 + $0xfc] sm:$0xff]
      %v509 = vld [vmem:[%s444 + $0x104] sm:$0xff]
      %v510 = vld [vmem:[%s444 + $0x10c] sm:$0xff]
      %v511 = vld [vmem:[%s444 + $0x114] sm:$0xf]
      %v512 = vld [vmem:[%s444 + $0x118] sm:$0xff]
      %v513 = vld [vmem:[%s444 + $0x120] sm:$0xff]
      %v514 = vld [vmem:[%s444 + $0x128] sm:$0xff]
      %v515 = vld [vmem:[%s444 + $0x130] sm:$0xf]
      %v516 = vld [vmem:[%s444 + $0x134] sm:$0xff]
      %v517 = vld [vmem:[%s444 + $0x13c] sm:$0xff]
      %v518 = vld [vmem:[%s444 + $0x144] sm:$0xff]
      %v519 = vld [vmem:[%s444 + $0x14c] sm:$0xf]
      %v520 = vld [vmem:[%s444 + $0x150] sm:$0xff]
      %v521 = vld [vmem:[%s444 + $0x158] sm:$0xff]
      %v522 = vld [vmem:[%s444 + $0x160] sm:$0xff]
      %v523 = vld [vmem:[%s444 + $0x168] sm:$0xf]
      %v524 = vld [vmem:[%s444 + $0x16c] sm:$0xff]
      %v525 = vld [vmem:[%s444 + $0x174] sm:$0xff]
      %v526 = vld [vmem:[%s444 + $0x17c] sm:$0xff]
      %v527 = vld [vmem:[%s444 + $0x184] sm:$0xf]
      %v528 = vld [vmem:[%s444 + $0x188] sm:$0xff]
      %v529 = vld [vmem:[%s444 + $0x190] sm:$0xff]
      %v530 = vld [vmem:[%s444 + $0x198] sm:$0xff]
      %v531 = vld [vmem:[%s444 + $0x1a0] sm:$0xf]
      %v532 = vld [vmem:[%s444 + $0x1a4] sm:$0xff]
      %v533 = vld [vmem:[%s444 + $0x1ac] sm:$0xff]
      %v534 = vld [vmem:[%s444 + $0x1b4] sm:$0xff]
      %v535 = vld [vmem:[%s444 + $0x1bc] sm:$0xf]
      %v536 = vld [vmem:[%s2] sm:$0xff]
      %v537 = vld [vmem:[%s2 + $0x8] sm:$0xff]
      %v538 = vld [vmem:[%s2 + $0x10] sm:$0xff]
      %v539 = vld [vmem:[%s2 + $0x18] sm:$0xff]
      %v540 = vld [vmem:[%s2 + $0x20] sm:$0xff]
      %v541 = vld [vmem:[%s2 + $0x28] sm:$0xff]
      %v542 = vld [vmem:[%s2 + $0x30] sm:$0xff]
      %v543 = vld [vmem:[%s2 + $0x38] sm:$0xff]
      %v544 = vld [vmem:[%s2 + $0x40] sm:$0xff]
      %v545 = vld [vmem:[%s2 + $0x48] sm:$0xff]
      %v546 = vld [vmem:[%s2 + $0x50] sm:$0xff]
      %v547 = vld [vmem:[%s2 + $0x58] sm:$0xff]
      %v548 = vld [vmem:[%s2 + $0x60] sm:$0xff]
      %v549 = vld [vmem:[%s2 + $0x68] sm:$0xff]
      %v550 = vld [vmem:[%s2 + $0x70] sm:$0xff]
      %v551 = vld [vmem:[%s2 + $0x78] sm:$0xff]
      %v552 = vld [vmem:[%s2 + $0x80] sm:$0xff]
      %v553 = vld [vmem:[%s2 + $0x88] sm:$0xff]
      %v554 = vld [vmem:[%s2 + $0x90] sm:$0xff]
      %v555 = vld [vmem:[%s2 + $0x98] sm:$0xff]
      %v556 = vld [vmem:[%s2 + $0xa0] sm:$0xff]
      %v557 = vld [vmem:[%s2 + $0xa8] sm:$0xff]
      %v558 = vld [vmem:[%s2 + $0xb0] sm:$0xff]
      %v559 = vld [vmem:[%s2 + $0xb8] sm:$0xff]
      %v560 = vld [vmem:[%s2 + $0xc0] sm:$0xff]
      %v561 = vld [vmem:[%s2 + $0xc8] sm:$0xff]
      %v562 = vld [vmem:[%s2 + $0xd0] sm:$0xff]
      %v563 = vld [vmem:[%s2 + $0xd8] sm:$0xff]
      %v564 = vld [vmem:[%s2 + $0xe0] sm:$0xff]
      %v565 = vld [vmem:[%s2 + $0xe8] sm:$0xff]
      %v566 = vld [vmem:[%s2 + $0xf0] sm:$0xff]
      %v567 = vld [vmem:[%s2 + $0xf8] sm:$0xff]
      %v568 = vld [vmem:[%s2 + $0x100] sm:$0xff]
      %v569 = vld [vmem:[%s2 + $0x108] sm:$0xff]
      %v570 = vld [vmem:[%s2 + $0x110] sm:$0xff]
      %v571 = vld [vmem:[%s2 + $0x118] sm:$0xff]
      %v572 = vld [vmem:[%s2 + $0x120] sm:$0xff]
      %v573 = vld [vmem:[%s2 + $0x128] sm:$0xff]
      %v574 = vld [vmem:[%s2 + $0x130] sm:$0xff]
      %v575 = vld [vmem:[%s2 + $0x138] sm:$0xff]
      %v576 = vld [vmem:[%s2 + $0x140] sm:$0xff]
      %v577 = vld [vmem:[%s2 + $0x148] sm:$0xff]
      %v578 = vld [vmem:[%s2 + $0x150] sm:$0xff]
      %v579 = vld [vmem:[%s2 + $0x158] sm:$0xff]
      %v580 = vld [vmem:[%s2 + $0x160] sm:$0xff]
      %v581 = vld [vmem:[%s2 + $0x168] sm:$0xff]
      %v582 = vld [vmem:[%s2 + $0x170] sm:$0xff]
      %v583 = vld [vmem:[%s2 + $0x178] sm:$0xff]
      %v584 = vld [vmem:[%s2 + $0x180] sm:$0xff]
      %v585 = vld [vmem:[%s2 + $0x188] sm:$0xff]
      %v586 = vld [vmem:[%s2 + $0x190] sm:$0xff]
      %v587 = vld [vmem:[%s2 + $0x198] sm:$0xff]
      %v588 = vld [vmem:[%s2 + $0x1a0] sm:$0xff]
      %v589 = vld [vmem:[%s2 + $0x1a8] sm:$0xff]
      %v590 = vld [vmem:[%s2 + $0x1b0] sm:$0xff]
      %v591 = vld [vmem:[%s2 + $0x1b8] sm:$0xff]
      %v592 = vld [vmem:[%s2 + $0x1c0] sm:$0xff]
      %v593 = vld [vmem:[%s2 + $0x1c8] sm:$0xff]
      %v594 = vld [vmem:[%s2 + $0x1d0] sm:$0xff]
      %v595 = vld [vmem:[%s2 + $0x1d8] sm:$0xff]
      %v596 = vld [vmem:[%s2 + $0x1e0] sm:$0xff]
      %v597 = vld [vmem:[%s2 + $0x1e8] sm:$0xff]
      %v598 = vld [vmem:[%s2 + $0x1f0] sm:$0xff]
      %v599 = vld [vmem:[%s2 + $0x1f8] sm:$0xff]
      %v600 = vld [vmem:[%s2 + $0x200] sm:$0xff]
      %v601 = vld [vmem:[%s2 + $0x208] sm:$0xff]
      %v602 = vld [vmem:[%s2 + $0x210] sm:$0xff]
      %v603 = vld [vmem:[%s2 + $0x218] sm:$0xff]
      %v604 = vld [vmem:[%s2 + $0x220] sm:$0xff]
      %v605 = vld [vmem:[%s2 + $0x228] sm:$0xff]
      %v606 = vld [vmem:[%s2 + $0x230] sm:$0xff]
      %v607 = vld [vmem:[%s2 + $0x238] sm:$0xff]
      %v608 = vld [vmem:[%s2 + $0x240] sm:$0xff]
      %v609 = vld [vmem:[%s2 + $0x248] sm:$0xff]
      %v610 = vld [vmem:[%s2 + $0x250] sm:$0xff]
      %v611 = vld [vmem:[%s2 + $0x258] sm:$0xff]
      %v612 = vld [vmem:[%s2 + $0x260] sm:$0xff]
      %v613 = vld [vmem:[%s2 + $0x268] sm:$0xff]
      %v614 = vld [vmem:[%s2 + $0x270] sm:$0xff]
      %v615 = vld [vmem:[%s2 + $0x278] sm:$0xff]
      %v616 = vld [vmem:[%s2 + $0x280] sm:$0xff]
      %v617 = vld [vmem:[%s2 + $0x288] sm:$0xff]
      %v618 = vld [vmem:[%s2 + $0x290] sm:$0xff]
      %v619 = vld [vmem:[%s2 + $0x298] sm:$0xff]
      %v620 = vld [vmem:[%s2 + $0x2a0] sm:$0xff]
      %v621 = vld [vmem:[%s2 + $0x2a8] sm:$0xff]
      %v622 = vld [vmem:[%s2 + $0x2b0] sm:$0xff]
      %v623 = vld [vmem:[%s2 + $0x2b8] sm:$0xff]
      %v624 = vld [vmem:[%s2 + $0x2c0] sm:$0xff]
      %v625 = vld [vmem:[%s2 + $0x2c8] sm:$0xff]
      %v626 = vld [vmem:[%s2 + $0x2d0] sm:$0xff]
      %v627 = vld [vmem:[%s2 + $0x2d8] sm:$0xff]
      %v628 = vld [vmem:[%s2 + $0x2e0] sm:$0xff]
      %v629 = vld [vmem:[%s2 + $0x2e8] sm:$0xff]
      %v630 = vld [vmem:[%s2 + $0x2f0] sm:$0xff]
      %v631 = vld [vmem:[%s2 + $0x2f8] sm:$0xff]
      %v632 = vld [vmem:[%s2 + $0x300] sm:$0xff]
      %v633 = vld [vmem:[%s2 + $0x308] sm:$0xff]
      %v634 = vld [vmem:[%s2 + $0x310] sm:$0xff]
      %v635 = vld [vmem:[%s2 + $0x318] sm:$0xff]
      %v636 = vld [vmem:[%s2 + $0x320] sm:$0xff]
      %v637 = vld [vmem:[%s2 + $0x328] sm:$0xff]
      %v638 = vld [vmem:[%s2 + $0x330] sm:$0xff]
      %v639 = vld [vmem:[%s2 + $0x338] sm:$0xff]
      %v640 = vld [vmem:[%s2 + $0x340] sm:$0xff]
      %v641 = vld [vmem:[%s2 + $0x348] sm:$0xff]
      %v642 = vld [vmem:[%s2 + $0x350] sm:$0xff]
      %v643 = vld [vmem:[%s2 + $0x358] sm:$0xff]
      %v644 = vld [vmem:[%s2 + $0x360] sm:$0xff]
      %v645 = vld [vmem:[%s2 + $0x368] sm:$0xff]
      %v646 = vld [vmem:[%s2 + $0x370] sm:$0xff]
      %v647 = vld [vmem:[%s2 + $0x378] sm:$0xff]
      %v648 = vld [vmem:[%s2 + $0x380] sm:$0xff]
      %v649 = vld [vmem:[%s2 + $0x388] sm:$0xff]
      %v650 = vld [vmem:[%s2 + $0x390] sm:$0xff]
      %v651 = vld [vmem:[%s2 + $0x398] sm:$0xff]
      %v652 = vld [vmem:[%s2 + $0x3a0] sm:$0xff]
      %v653 = vld [vmem:[%s2 + $0x3a8] sm:$0xff]
      %v654 = vld [vmem:[%s2 + $0x3b0] sm:$0xff]
      %v655 = vld [vmem:[%s2 + $0x3b8] sm:$0xff]
      %v656 = vld [vmem:[%s2 + $0x3c0] sm:$0xff]
      %v657 = vld [vmem:[%s2 + $0x3c8] sm:$0xff]
      %v658 = vld [vmem:[%s2 + $0x3d0] sm:$0xff]
      %v659 = vld [vmem:[%s2 + $0x3d8] sm:$0xff]
      %v660 = vld [vmem:[%s2 + $0x3e0] sm:$0xff]
      %v661 = vld [vmem:[%s2 + $0x3e8] sm:$0xff]
      %v662 = vld [vmem:[%s2 + $0x3f0] sm:$0xff]
      %v663 = vld [vmem:[%s2 + $0x3f8] sm:$0xff]
      %v664 = vld [vmem:[%s2 + $0x400] sm:$0xff]
      %v665 = vld [vmem:[%s2 + $0x408] sm:$0xff]
      %v666 = vld [vmem:[%s2 + $0x410] sm:$0xff]
      %v667 = vld [vmem:[%s2 + $0x418] sm:$0xff]
      %v668 = vld [vmem:[%s2 + $0x420] sm:$0xff]
      %v669 = vld [vmem:[%s2 + $0x428] sm:$0xff]
      %v670 = vld [vmem:[%s2 + $0x430] sm:$0xff]
      %v671 = vld [vmem:[%s2 + $0x438] sm:$0xff]
      %v672 = vld [vmem:[%s2 + $0x440] sm:$0xff]
      %v673 = vld [vmem:[%s2 + $0x448] sm:$0xff]
      %v674 = vld [vmem:[%s2 + $0x450] sm:$0xff]
      %v675 = vld [vmem:[%s2 + $0x458] sm:$0xff]
      %v676 = vld [vmem:[%s2 + $0x460] sm:$0xff]
      %v677 = vld [vmem:[%s2 + $0x468] sm:$0xff]
      %v678 = vld [vmem:[%s2 + $0x470] sm:$0xff]
      %v679 = vld [vmem:[%s2 + $0x478] sm:$0xff]
      %v680 = vld [vmem:[%s2 + $0x480] sm:$0xff]
      %v681 = vld [vmem:[%s2 + $0x488] sm:$0xff]
      %v682 = vld [vmem:[%s2 + $0x490] sm:$0xff]
      %v683 = vld [vmem:[%s2 + $0x498] sm:$0xff]
      %v684 = vld [vmem:[%s2 + $0x4a0] sm:$0xff]
      %v685 = vld [vmem:[%s2 + $0x4a8] sm:$0xff]
      %v686 = vld [vmem:[%s2 + $0x4b0] sm:$0xff]
      %v687 = vld [vmem:[%s2 + $0x4b8] sm:$0xff]
      %v688 = vld [vmem:[%s2 + $0x4c0] sm:$0xff]
      %v689 = vld [vmem:[%s2 + $0x4c8] sm:$0xff]
      %v690 = vld [vmem:[%s2 + $0x4d0] sm:$0xff]
      %v691 = vld [vmem:[%s2 + $0x4d8] sm:$0xff]
      %v692 = vld [vmem:[%s2 + $0x4e0] sm:$0xff]
      %v693 = vld [vmem:[%s2 + $0x4e8] sm:$0xff]
      %v694 = vld [vmem:[%s2 + $0x4f0] sm:$0xff]
      %v695 = vld [vmem:[%s2 + $0x4f8] sm:$0xff]
      %v696 = vld [vmem:[%s2 + $0x500] sm:$0xff]
      %v697 = vld [vmem:[%s2 + $0x508] sm:$0xff]
      %v698 = vld [vmem:[%s2 + $0x510] sm:$0xff]
      %v699 = vld [vmem:[%s2 + $0x518] sm:$0xff]
      %v700 = vld [vmem:[%s2 + $0x520] sm:$0xff]
      %v701 = vld [vmem:[%s2 + $0x528] sm:$0xff]
      %v702 = vld [vmem:[%s2 + $0x530] sm:$0xff]
      %v703 = vld [vmem:[%s2 + $0x538] sm:$0xff]
      %v704 = vld [vmem:[%s2 + $0x540] sm:$0xff]
      %v705 = vld [vmem:[%s2 + $0x548] sm:$0xff]
      %v706 = vld [vmem:[%s2 + $0x550] sm:$0xff]
      %v707 = vld [vmem:[%s2 + $0x558] sm:$0xff]
      %v708 = vld [vmem:[%s2 + $0x560] sm:$0xff]
      %v709 = vld [vmem:[%s2 + $0x568] sm:$0xff]
      %v710 = vld [vmem:[%s2 + $0x570] sm:$0xff]
      %v711 = vld [vmem:[%s2 + $0x578] sm:$0xff]
      %v712 = vld [vmem:[%s2 + $0x580] sm:$0xff]
      %v713 = vld [vmem:[%s2 + $0x588] sm:$0xff]
      %v714 = vld [vmem:[%s2 + $0x590] sm:$0xff]
      %v715 = vld [vmem:[%s2 + $0x598] sm:$0xff]
      %v716 = vld [vmem:[%s2 + $0x5a0] sm:$0xff]
      %v717 = vld [vmem:[%s2 + $0x5a8] sm:$0xff]
      %v718 = vld [vmem:[%s2 + $0x5b0] sm:$0xff]
      %v719 = vld [vmem:[%s2 + $0x5b8] sm:$0xff]
      %v720 = vld [vmem:[%s2 + $0x5c0] sm:$0xff]
      %v721 = vld [vmem:[%s2 + $0x5c8] sm:$0xff]
      %v722 = vld [vmem:[%s2 + $0x5d0] sm:$0xff]
      %v723 = vld [vmem:[%s2 + $0x5d8] sm:$0xff]
      %v724 = vld [vmem:[%s2 + $0x5e0] sm:$0xff]
      %v725 = vld [vmem:[%s2 + $0x5e8] sm:$0xff]
      %v726 = vld [vmem:[%s2 + $0x5f0] sm:$0xff]
      %v727 = vld [vmem:[%s2 + $0x5f8] sm:$0xff]
      %v728 = vld [vmem:[%s2 + $0x600] sm:$0xff]
      %v729 = vld [vmem:[%s2 + $0x608] sm:$0xff]
      %v730 = vld [vmem:[%s2 + $0x610] sm:$0xff]
      %v731 = vld [vmem:[%s2 + $0x618] sm:$0xff]
      %v732 = vld [vmem:[%s2 + $0x620] sm:$0xff]
      %v733 = vld [vmem:[%s2 + $0x628] sm:$0xff]
      %v734 = vld [vmem:[%s2 + $0x630] sm:$0xff]
      %v735 = vld [vmem:[%s2 + $0x638] sm:$0xff]
      %v736 = vld [vmem:[%s2 + $0x640] sm:$0xff]
      %v737 = vld [vmem:[%s2 + $0x648] sm:$0xff]
      %v738 = vld [vmem:[%s2 + $0x650] sm:$0xff]
      %v739 = vld [vmem:[%s2 + $0x658] sm:$0xff]
      %v740 = vld [vmem:[%s2 + $0x660] sm:$0xff]
      %v741 = vld [vmem:[%s2 + $0x668] sm:$0xff]
      %v742 = vld [vmem:[%s2 + $0x670] sm:$0xff]
      %v743 = vld [vmem:[%s2 + $0x678] sm:$0xff]
      %v744 = vld [vmem:[%s2 + $0x680] sm:$0xff]
      %v745 = vld [vmem:[%s2 + $0x688] sm:$0xff]
      %v746 = vld [vmem:[%s2 + $0x690] sm:$0xff]
      %v747 = vld [vmem:[%s2 + $0x698] sm:$0xff]
      %v748 = vld [vmem:[%s2 + $0x6a0] sm:$0xff]
      %v749 = vld [vmem:[%s2 + $0x6a8] sm:$0xff]
      %v750 = vld [vmem:[%s2 + $0x6b0] sm:$0xff]
      %v751 = vld [vmem:[%s2 + $0x6b8] sm:$0xff]
      %v752 = vld [vmem:[%s2 + $0x6c0] sm:$0xff]
      %v753 = vld [vmem:[%s2 + $0x6c8] sm:$0xff]
      %v754 = vld [vmem:[%s2 + $0x6d0] sm:$0xff]
      %v755 = vld [vmem:[%s2 + $0x6d8] sm:$0xff]
      %v756 = vld [vmem:[%s2 + $0x6e0] sm:$0xff]
      %v757 = vld [vmem:[%s2 + $0x6e8] sm:$0xff]
      %v758 = vld [vmem:[%s2 + $0x6f0] sm:$0xff]
      %v759 = vld [vmem:[%s2 + $0x6f8] sm:$0xff]
      %v760 = vld [vmem:[%s3] sm:$0xf]
      %v762 = vlaneseq
      %v763 = vshrl.u32 %v762, 7
      %v764 = vsub.s32 0, %v763
      %v765 = vrot.slane %v760, %v764
      %v766 = vlaneseq
      %v767 = vshrl.u32 %v766, 7
      %v768 = vsub.s32 1, %v767
      %v769 = vrot.slane %v760, %v768
      %v770 = vlaneseq
      %v771 = vshrl.u32 %v770, 7
      %v772 = vsub.s32 2, %v771
      %v773 = vrot.slane %v760, %v772
      %v774 = vlaneseq
      %v775 = vshrl.u32 %v774, 7
      %v776 = vsub.s32 3, %v775
      %v777 = vrot.slane %v760, %v776
      %v846 = vunpack.c.l.b16 %v472
      %v847 = vunpack.c.h.b16 %v472
      %v848 = vunpack.c.l.b16 %v473
      %v849 = vunpack.c.h.b16 %v473
      %v850 = vunpack.c.l.b16 %v474
      %v851 = vunpack.c.h.b16 %v474
      %v852 = vunpack.c.l.b16 %v475
      %v853 = vunpack.c.l.b16 %v476
      %v854 = vunpack.c.h.b16 %v476
      %v855 = vunpack.c.l.b16 %v477
      %v856 = vunpack.c.h.b16 %v477
      %v857 = vunpack.c.l.b16 %v478
      %v858 = vunpack.c.h.b16 %v478
      %v859 = vunpack.c.l.b16 %v479
      %v860 = vunpack.c.l.b16 %v480
      %v861 = vunpack.c.h.b16 %v480
      %v862 = vunpack.c.l.b16 %v481
      %v863 = vunpack.c.h.b16 %v481
      %v864 = vunpack.c.l.b16 %v482
      %v865 = vunpack.c.h.b16 %v482
      %v866 = vunpack.c.l.b16 %v483
      %v867 = vunpack.c.l.b16 %v484
      %v868 = vunpack.c.h.b16 %v484
      %v869 = vunpack.c.l.b16 %v485
      %v870 = vunpack.c.h.b16 %v485
      %v871 = vunpack.c.l.b16 %v486
      %v872 = vunpack.c.h.b16 %v486
      %v873 = vunpack.c.l.b16 %v487
      %v874 = vunpack.c.l.b16 %v488
      %v875 = vunpack.c.h.b16 %v488
      %v876 = vunpack.c.l.b16 %v489
      %v877 = vunpack.c.h.b16 %v489
      %v878 = vunpack.c.l.b16 %v490
      %v879 = vunpack.c.h.b16 %v490
      %v880 = vunpack.c.l.b16 %v491
      %v881 = vunpack.c.l.b16 %v492
      %v882 = vunpack.c.h.b16 %v492
      %v883 = vunpack.c.l.b16 %v493
      %v884 = vunpack.c.h.b16 %v493
      %v885 = vunpack.c.l.b16 %v494
      %v886 = vunpack.c.h.b16 %v494
      %v887 = vunpack.c.l.b16 %v495
      %v888 = vunpack.c.l.b16 %v496
      %v889 = vunpack.c.h.b16 %v496
      %v890 = vunpack.c.l.b16 %v497
      %v891 = vunpack.c.h.b16 %v497
      %v892 = vunpack.c.l.b16 %v498
      %v893 = vunpack.c.h.b16 %v498
      %v894 = vunpack.c.l.b16 %v499
      %v895 = vunpack.c.l.b16 %v500
      %v896 = vunpack.c.h.b16 %v500
      %v897 = vunpack.c.l.b16 %v501
      %v898 = vunpack.c.h.b16 %v501
      %v899 = vunpack.c.l.b16 %v502
      %v900 = vunpack.c.h.b16 %v502
      %v901 = vunpack.c.l.b16 %v503
      %v902 = vunpack.c.l.b16 %v504
      %v903 = vunpack.c.h.b16 %v504
      %v904 = vunpack.c.l.b16 %v505
      %v905 = vunpack.c.h.b16 %v505
      %v906 = vunpack.c.l.b16 %v506
      %v907 = vunpack.c.h.b16 %v506
      %v908 = vunpack.c.l.b16 %v507
      %v909 = vunpack.c.l.b16 %v508
      %v910 = vunpack.c.h.b16 %v508
      %v911 = vunpack.c.l.b16 %v509
      %v912 = vunpack.c.h.b16 %v509
      %v913 = vunpack.c.l.b16 %v510
      %v914 = vunpack.c.h.b16 %v510
      %v915 = vunpack.c.l.b16 %v511
      %v916 = vunpack.c.l.b16 %v512
      %v917 = vunpack.c.h.b16 %v512
      %v918 = vunpack.c.l.b16 %v513
      %v919 = vunpack.c.h.b16 %v513
      %v920 = vunpack.c.l.b16 %v514
      %v921 = vunpack.c.h.b16 %v514
      %v922 = vunpack.c.l.b16 %v515
      %v923 = vunpack.c.l.b16 %v516
      %v924 = vunpack.c.h.b16 %v516
      %v925 = vunpack.c.l.b16 %v517
      %v926 = vunpack.c.h.b16 %v517
      %v927 = vunpack.c.l.b16 %v518
      %v928 = vunpack.c.h.b16 %v518
      %v929 = vunpack.c.l.b16 %v519
      %v930 = vunpack.c.l.b16 %v520
      %v931 = vunpack.c.h.b16 %v520
      %v932 = vunpack.c.l.b16 %v521
      %v933 = vunpack.c.h.b16 %v521
      %v934 = vunpack.c.l.b16 %v522
      %v935 = vunpack.c.h.b16 %v522
      %v936 = vunpack.c.l.b16 %v523
      %v937 = vunpack.c.l.b16 %v524
      %v938 = vunpack.c.h.b16 %v524
      %v939 = vunpack.c.l.b16 %v525
      %v940 = vunpack.c.h.b16 %v525
      %v941 = vunpack.c.l.b16 %v526
      %v942 = vunpack.c.h.b16 %v526
      %v943 = vunpack.c.l.b16 %v527
      %v944 = vunpack.c.l.b16 %v528
      %v945 = vunpack.c.h.b16 %v528
      %v946 = vunpack.c.l.b16 %v529
      %v947 = vunpack.c.h.b16 %v529
      %v948 = vunpack.c.l.b16 %v530
      %v949 = vunpack.c.h.b16 %v530
      %v950 = vunpack.c.l.b16 %v531
      %v951 = vunpack.c.l.b16 %v532
      %v952 = vunpack.c.h.b16 %v532
      %v953 = vunpack.c.l.b16 %v533
      %v954 = vunpack.c.h.b16 %v533
      %v955 = vunpack.c.l.b16 %v534
      %v956 = vunpack.c.h.b16 %v534
      %v957 = vunpack.c.l.b16 %v535
      %v958 = vpack.c.b16 %v853, %v846
      %v959 = vpack.c.b16 %v854, %v847
      %v960 = vpack.c.b16 %v855, %v848
      %v961 = vpack.c.b16 %v856, %v849
      %v962 = vpack.c.b16 %v857, %v850
      %v963 = vpack.c.b16 %v858, %v851
      %v964 = vpack.c.b16 %v859, %v852
      %v965 = vpack.c.b16 %v867, %v860
      %v966 = vpack.c.b16 %v868, %v861
      %v967 = vpack.c.b16 %v869, %v862
      %v968 = vpack.c.b16 %v870, %v863
      %v969 = vpack.c.b16 %v871, %v864
      %v970 = vpack.c.b16 %v872, %v865
      %v971 = vpack.c.b16 %v873, %v866
      %v972 = vpack.c.b16 %v881, %v874
      %v973 = vpack.c.b16 %v882, %v875
      %v974 = vpack.c.b16 %v883, %v876
      %v975 = vpack.c.b16 %v884, %v877
      %v976 = vpack.c.b16 %v885, %v878
      %v977 = vpack.c.b16 %v886, %v879
      %v978 = vpack.c.b16 %v887, %v880
      %v979 = vpack.c.b16 %v895, %v888
      %v980 = vpack.c.b16 %v896, %v889
      %v981 = vpack.c.b16 %v897, %v890
      %v982 = vpack.c.b16 %v898, %v891
      %v983 = vpack.c.b16 %v899, %v892
      %v984 = vpack.c.b16 %v900, %v893
      %v985 = vpack.c.b16 %v901, %v894
      %v986 = vpack.c.b16 %v909, %v902
      %v987 = vpack.c.b16 %v910, %v903
      %v988 = vpack.c.b16 %v911, %v904
      %v989 = vpack.c.b16 %v912, %v905
      %v990 = vpack.c.b16 %v913, %v906
      %v991 = vpack.c.b16 %v914, %v907
      %v992 = vpack.c.b16 %v915, %v908
      %v993 = vpack.c.b16 %v923, %v916
      %v994 = vpack.c.b16 %v924, %v917
      %v995 = vpack.c.b16 %v925, %v918
      %v996 = vpack.c.b16 %v926, %v919
      %v997 = vpack.c.b16 %v927, %v920
      %v998 = vpack.c.b16 %v928, %v921
      %v999 = vpack.c.b16 %v929, %v922
      %v1000 = vpack.c.b16 %v937, %v930
      %v1001 = vpack.c.b16 %v938, %v931
      %v1002 = vpack.c.b16 %v939, %v932
      %v1003 = vpack.c.b16 %v940, %v933
      %v1004 = vpack.c.b16 %v941, %v934
      %v1005 = vpack.c.b16 %v942, %v935
      %v1006 = vpack.c.b16 %v943, %v936
      %v1007 = vpack.c.b16 %v951, %v944
      %v1008 = vpack.c.b16 %v952, %v945
      %v1009 = vpack.c.b16 %v953, %v946
      %v1010 = vpack.c.b16 %v954, %v947
      %v1011 = vpack.c.b16 %v955, %v948
      %v1012 = vpack.c.b16 %v956, %v949
      %v1013 = vpack.c.b16 %v957, %v950
      %v1294 = vunpack.c.l.b16 %v536
      %v1295 = vunpack.c.h.b16 %v536
      %v1296 = vunpack.c.l.b16 %v537
      %v1297 = vunpack.c.h.b16 %v537
      %v1298 = vunpack.c.l.b16 %v538
      %v1299 = vunpack.c.h.b16 %v538
      %v1300 = vunpack.c.l.b16 %v539
      %v1301 = vunpack.c.h.b16 %v539
      %v1302 = vunpack.c.l.b16 %v540
      %v1303 = vunpack.c.h.b16 %v540
      %v1304 = vunpack.c.l.b16 %v541
      %v1305 = vunpack.c.h.b16 %v541
      %v1306 = vunpack.c.l.b16 %v542
      %v1307 = vunpack.c.h.b16 %v542
      %v1308 = vunpack.c.l.b16 %v543
      %v1309 = vunpack.c.h.b16 %v543
      %v1310 = vunpack.c.l.b16 %v544
      %v1311 = vunpack.c.h.b16 %v544
      %v1312 = vunpack.c.l.b16 %v545
      %v1313 = vunpack.c.h.b16 %v545
      %v1314 = vunpack.c.l.b16 %v546
      %v1315 = vunpack.c.h.b16 %v546
      %v1316 = vunpack.c.l.b16 %v547
      %v1317 = vunpack.c.h.b16 %v547
      %v1318 = vunpack.c.l.b16 %v548
      %v1319 = vunpack.c.h.b16 %v548
      %v1320 = vunpack.c.l.b16 %v549
      %v1321 = vunpack.c.h.b16 %v549
      %v1322 = vunpack.c.l.b16 %v550
      %v1323 = vunpack.c.h.b16 %v550
      %v1324 = vunpack.c.l.b16 %v551
      %v1325 = vunpack.c.h.b16 %v551
      %v1326 = vunpack.c.l.b16 %v552
      %v1327 = vunpack.c.h.b16 %v552
      %v1328 = vunpack.c.l.b16 %v553
      %v1329 = vunpack.c.h.b16 %v553
      %v1330 = vunpack.c.l.b16 %v554
      %v1331 = vunpack.c.h.b16 %v554
      %v1332 = vunpack.c.l.b16 %v555
      %v1333 = vunpack.c.h.b16 %v555
      %v1334 = vunpack.c.l.b16 %v556
      %v1335 = vunpack.c.h.b16 %v556
      %v1336 = vunpack.c.l.b16 %v557
      %v1337 = vunpack.c.h.b16 %v557
      %v1338 = vunpack.c.l.b16 %v558
      %v1339 = vunpack.c.h.b16 %v558
      %v1340 = vunpack.c.l.b16 %v559
      %v1341 = vunpack.c.h.b16 %v559
      %v1342 = vunpack.c.l.b16 %v560
      %v1343 = vunpack.c.h.b16 %v560
      %v1344 = vunpack.c.l.b16 %v561
      %v1345 = vunpack.c.h.b16 %v561
      %v1346 = vunpack.c.l.b16 %v562
      %v1347 = vunpack.c.h.b16 %v562
      %v1348 = vunpack.c.l.b16 %v563
      %v1349 = vunpack.c.h.b16 %v563
      %v1350 = vunpack.c.l.b16 %v564
      %v1351 = vunpack.c.h.b16 %v564
      %v1352 = vunpack.c.l.b16 %v565
      %v1353 = vunpack.c.h.b16 %v565
      %v1354 = vunpack.c.l.b16 %v566
      %v1355 = vunpack.c.h.b16 %v566
      %v1356 = vunpack.c.l.b16 %v567
      %v1357 = vunpack.c.h.b16 %v567
      %v1358 = vunpack.c.l.b16 %v568
      %v1359 = vunpack.c.h.b16 %v568
      %v1360 = vunpack.c.l.b16 %v569
      %v1361 = vunpack.c.h.b16 %v569
      %v1362 = vunpack.c.l.b16 %v570
      %v1363 = vunpack.c.h.b16 %v570
      %v1364 = vunpack.c.l.b16 %v571
      %v1365 = vunpack.c.h.b16 %v571
      %v1366 = vunpack.c.l.b16 %v572
      %v1367 = vunpack.c.h.b16 %v572
      %v1368 = vunpack.c.l.b16 %v573
      %v1369 = vunpack.c.h.b16 %v573
      %v1370 = vunpack.c.l.b16 %v574
      %v1371 = vunpack.c.h.b16 %v574
      %v1372 = vunpack.c.l.b16 %v575
      %v1373 = vunpack.c.h.b16 %v575
      %v1374 = vunpack.c.l.b16 %v576
      %v1375 = vunpack.c.h.b16 %v576
      %v1376 = vunpack.c.l.b16 %v577
      %v1377 = vunpack.c.h.b16 %v577
      %v1378 = vunpack.c.l.b16 %v578
      %v1379 = vunpack.c.h.b16 %v578
      %v1380 = vunpack.c.l.b16 %v579
      %v1381 = vunpack.c.h.b16 %v579
      %v1382 = vunpack.c.l.b16 %v580
      %v1383 = vunpack.c.h.b16 %v580
      %v1384 = vunpack.c.l.b16 %v581
      %v1385 = vunpack.c.h.b16 %v581
      %v1386 = vunpack.c.l.b16 %v582
      %v1387 = vunpack.c.h.b16 %v582
      %v1388 = vunpack.c.l.b16 %v583
      %v1389 = vunpack.c.h.b16 %v583
      %v1390 = vunpack.c.l.b16 %v584
      %v1391 = vunpack.c.h.b16 %v584
      %v1392 = vunpack.c.l.b16 %v585
      %v1393 = vunpack.c.h.b16 %v585
      %v1394 = vunpack.c.l.b16 %v586
      %v1395 = vunpack.c.h.b16 %v586
      %v1396 = vunpack.c.l.b16 %v587
      %v1397 = vunpack.c.h.b16 %v587
      %v1398 = vunpack.c.l.b16 %v588
      %v1399 = vunpack.c.h.b16 %v588
      %v1400 = vunpack.c.l.b16 %v589
      %v1401 = vunpack.c.h.b16 %v589
      %v1402 = vunpack.c.l.b16 %v590
      %v1403 = vunpack.c.h.b16 %v590
      %v1404 = vunpack.c.l.b16 %v591
      %v1405 = vunpack.c.h.b16 %v591
      %v1406 = vunpack.c.l.b16 %v592
      %v1407 = vunpack.c.h.b16 %v592
      %v1408 = vunpack.c.l.b16 %v593
      %v1409 = vunpack.c.h.b16 %v593
      %v1410 = vunpack.c.l.b16 %v594
      %v1411 = vunpack.c.h.b16 %v594
      %v1412 = vunpack.c.l.b16 %v595
      %v1413 = vunpack.c.h.b16 %v595
      %v1414 = vunpack.c.l.b16 %v596
      %v1415 = vunpack.c.h.b16 %v596
      %v1416 = vunpack.c.l.b16 %v597
      %v1417 = vunpack.c.h.b16 %v597
      %v1418 = vunpack.c.l.b16 %v598
      %v1419 = vunpack.c.h.b16 %v598
      %v1420 = vunpack.c.l.b16 %v599
      %v1421 = vunpack.c.h.b16 %v599
      %v1422 = vunpack.c.l.b16 %v600
      %v1423 = vunpack.c.h.b16 %v600
      %v1424 = vunpack.c.l.b16 %v601
      %v1425 = vunpack.c.h.b16 %v601
      %v1426 = vunpack.c.l.b16 %v602
      %v1427 = vunpack.c.h.b16 %v602
      %v1428 = vunpack.c.l.b16 %v603
      %v1429 = vunpack.c.h.b16 %v603
      %v1430 = vunpack.c.l.b16 %v604
      %v1431 = vunpack.c.h.b16 %v604
      %v1432 = vunpack.c.l.b16 %v605
      %v1433 = vunpack.c.h.b16 %v605
      %v1434 = vunpack.c.l.b16 %v606
      %v1435 = vunpack.c.h.b16 %v606
      %v1436 = vunpack.c.l.b16 %v607
      %v1437 = vunpack.c.h.b16 %v607
      %v1438 = vunpack.c.l.b16 %v608
      %v1439 = vunpack.c.h.b16 %v608
      %v1440 = vunpack.c.l.b16 %v609
      %v1441 = vunpack.c.h.b16 %v609
      %v1442 = vunpack.c.l.b16 %v610
      %v1443 = vunpack.c.h.b16 %v610
      %v1444 = vunpack.c.l.b16 %v611
      %v1445 = vunpack.c.h.b16 %v611
      %v1446 = vunpack.c.l.b16 %v612
      %v1447 = vunpack.c.h.b16 %v612
      %v1448 = vunpack.c.l.b16 %v613
      %v1449 = vunpack.c.h.b16 %v613
      %v1450 = vunpack.c.l.b16 %v614
      %v1451 = vunpack.c.h.b16 %v614
      %v1452 = vunpack.c.l.b16 %v615
      %v1453 = vunpack.c.h.b16 %v615
      %v1454 = vunpack.c.l.b16 %v616
      %v1455 = vunpack.c.h.b16 %v616
      %v1456 = vunpack.c.l.b16 %v617
      %v1457 = vunpack.c.h.b16 %v617
      %v1458 = vunpack.c.l.b16 %v618
      %v1459 = vunpack.c.h.b16 %v618
      %v1460 = vunpack.c.l.b16 %v619
      %v1461 = vunpack.c.h.b16 %v619
      %v1462 = vunpack.c.l.b16 %v620
      %v1463 = vunpack.c.h.b16 %v620
      %v1464 = vunpack.c.l.b16 %v621
      %v1465 = vunpack.c.h.b16 %v621
      %v1466 = vunpack.c.l.b16 %v622
      %v1467 = vunpack.c.h.b16 %v622
      %v1468 = vunpack.c.l.b16 %v623
      %v1469 = vunpack.c.h.b16 %v623
      %v1470 = vunpack.c.l.b16 %v624
      %v1471 = vunpack.c.h.b16 %v624
      %v1472 = vunpack.c.l.b16 %v625
      %v1473 = vunpack.c.h.b16 %v625
      %v1474 = vunpack.c.l.b16 %v626
      %v1475 = vunpack.c.h.b16 %v626
      %v1476 = vunpack.c.l.b16 %v627
      %v1477 = vunpack.c.h.b16 %v627
      %v1478 = vunpack.c.l.b16 %v628
      %v1479 = vunpack.c.h.b16 %v628
      %v1480 = vunpack.c.l.b16 %v629
      %v1481 = vunpack.c.h.b16 %v629
      %v1482 = vunpack.c.l.b16 %v630
      %v1483 = vunpack.c.h.b16 %v630
      %v1484 = vunpack.c.l.b16 %v631
      %v1485 = vunpack.c.h.b16 %v631
      %v1486 = vunpack.c.l.b16 %v632
      %v1487 = vunpack.c.h.b16 %v632
      %v1488 = vunpack.c.l.b16 %v633
      %v1489 = vunpack.c.h.b16 %v633
      %v1490 = vunpack.c.l.b16 %v634
      %v1491 = vunpack.c.h.b16 %v634
      %v1492 = vunpack.c.l.b16 %v635
      %v1493 = vunpack.c.h.b16 %v635
      %v1494 = vunpack.c.l.b16 %v636
      %v1495 = vunpack.c.h.b16 %v636
      %v1496 = vunpack.c.l.b16 %v637
      %v1497 = vunpack.c.h.b16 %v637
      %v1498 = vunpack.c.l.b16 %v638
      %v1499 = vunpack.c.h.b16 %v638
      %v1500 = vunpack.c.l.b16 %v639
      %v1501 = vunpack.c.h.b16 %v639
      %v1502 = vunpack.c.l.b16 %v640
      %v1503 = vunpack.c.h.b16 %v640
      %v1504 = vunpack.c.l.b16 %v641
      %v1505 = vunpack.c.h.b16 %v641
      %v1506 = vunpack.c.l.b16 %v642
      %v1507 = vunpack.c.h.b16 %v642
      %v1508 = vunpack.c.l.b16 %v643
      %v1509 = vunpack.c.h.b16 %v643
      %v1510 = vunpack.c.l.b16 %v644
      %v1511 = vunpack.c.h.b16 %v644
      %v1512 = vunpack.c.l.b16 %v645
      %v1513 = vunpack.c.h.b16 %v645
      %v1514 = vunpack.c.l.b16 %v646
      %v1515 = vunpack.c.h.b16 %v646
      %v1516 = vunpack.c.l.b16 %v647
      %v1517 = vunpack.c.h.b16 %v647
      %v1518 = vunpack.c.l.b16 %v648
      %v1519 = vunpack.c.h.b16 %v648
      %v1520 = vunpack.c.l.b16 %v649
      %v1521 = vunpack.c.h.b16 %v649
      %v1522 = vunpack.c.l.b16 %v650
      %v1523 = vunpack.c.h.b16 %v650
      %v1524 = vunpack.c.l.b16 %v651
      %v1525 = vunpack.c.h.b16 %v651
      %v1526 = vunpack.c.l.b16 %v652
      %v1527 = vunpack.c.h.b16 %v652
      %v1528 = vunpack.c.l.b16 %v653
      %v1529 = vunpack.c.h.b16 %v653
      %v1530 = vunpack.c.l.b16 %v654
      %v1531 = vunpack.c.h.b16 %v654
      %v1532 = vunpack.c.l.b16 %v655
      %v1533 = vunpack.c.h.b16 %v655
      %v1534 = vunpack.c.l.b16 %v656
      %v1535 = vunpack.c.h.b16 %v656
      %v1536 = vunpack.c.l.b16 %v657
      %v1537 = vunpack.c.h.b16 %v657
      %v1538 = vunpack.c.l.b16 %v658
      %v1539 = vunpack.c.h.b16 %v658
      %v1540 = vunpack.c.l.b16 %v659
      %v1541 = vunpack.c.h.b16 %v659
      %v1542 = vunpack.c.l.b16 %v660
      %v1543 = vunpack.c.h.b16 %v660
      %v1544 = vunpack.c.l.b16 %v661
      %v1545 = vunpack.c.h.b16 %v661
      %v1546 = vunpack.c.l.b16 %v662
      %v1547 = vunpack.c.h.b16 %v662
      %v1548 = vunpack.c.l.b16 %v663
      %v1549 = vunpack.c.h.b16 %v663
      %v1550 = vunpack.c.l.b16 %v664
      %v1551 = vunpack.c.h.b16 %v664
      %v1552 = vunpack.c.l.b16 %v665
      %v1553 = vunpack.c.h.b16 %v665
      %v1554 = vunpack.c.l.b16 %v666
      %v1555 = vunpack.c.h.b16 %v666
      %v1556 = vunpack.c.l.b16 %v667
      %v1557 = vunpack.c.h.b16 %v667
      %v1558 = vunpack.c.l.b16 %v668
      %v1559 = vunpack.c.h.b16 %v668
      %v1560 = vunpack.c.l.b16 %v669
      %v1561 = vunpack.c.h.b16 %v669
      %v1562 = vunpack.c.l.b16 %v670
      %v1563 = vunpack.c.h.b16 %v670
      %v1564 = vunpack.c.l.b16 %v671
      %v1565 = vunpack.c.h.b16 %v671
      %v1566 = vunpack.c.l.b16 %v672
      %v1567 = vunpack.c.h.b16 %v672
      %v1568 = vunpack.c.l.b16 %v673
      %v1569 = vunpack.c.h.b16 %v673
      %v1570 = vunpack.c.l.b16 %v674
      %v1571 = vunpack.c.h.b16 %v674
      %v1572 = vunpack.c.l.b16 %v675
      %v1573 = vunpack.c.h.b16 %v675
      %v1574 = vunpack.c.l.b16 %v676
      %v1575 = vunpack.c.h.b16 %v676
      %v1576 = vunpack.c.l.b16 %v677
      %v1577 = vunpack.c.h.b16 %v677
      %v1578 = vunpack.c.l.b16 %v678
      %v1579 = vunpack.c.h.b16 %v678
      %v1580 = vunpack.c.l.b16 %v679
      %v1581 = vunpack.c.h.b16 %v679
      %v1582 = vunpack.c.l.b16 %v680
      %v1583 = vunpack.c.h.b16 %v680
      %v1584 = vunpack.c.l.b16 %v681
      %v1585 = vunpack.c.h.b16 %v681
      %v1586 = vunpack.c.l.b16 %v682
      %v1587 = vunpack.c.h.b16 %v682
      %v1588 = vunpack.c.l.b16 %v683
      %v1589 = vunpack.c.h.b16 %v683
      %v1590 = vunpack.c.l.b16 %v684
      %v1591 = vunpack.c.h.b16 %v684
      %v1592 = vunpack.c.l.b16 %v685
      %v1593 = vunpack.c.h.b16 %v685
      %v1594 = vunpack.c.l.b16 %v686
      %v1595 = vunpack.c.h.b16 %v686
      %v1596 = vunpack.c.l.b16 %v687
      %v1597 = vunpack.c.h.b16 %v687
      %v1598 = vunpack.c.l.b16 %v688
      %v1599 = vunpack.c.h.b16 %v688
      %v1600 = vunpack.c.l.b16 %v689
      %v1601 = vunpack.c.h.b16 %v689
      %v1602 = vunpack.c.l.b16 %v690
      %v1603 = vunpack.c.h.b16 %v690
      %v1604 = vunpack.c.l.b16 %v691
      %v1605 = vunpack.c.h.b16 %v691
      %v1606 = vunpack.c.l.b16 %v692
      %v1607 = vunpack.c.h.b16 %v692
      %v1608 = vunpack.c.l.b16 %v693
      %v1609 = vunpack.c.h.b16 %v693
      %v1610 = vunpack.c.l.b16 %v694
      %v1611 = vunpack.c.h.b16 %v694
      %v1612 = vunpack.c.l.b16 %v695
      %v1613 = vunpack.c.h.b16 %v695
      %v1614 = vunpack.c.l.b16 %v696
      %v1615 = vunpack.c.h.b16 %v696
      %v1616 = vunpack.c.l.b16 %v697
      %v1617 = vunpack.c.h.b16 %v697
      %v1618 = vunpack.c.l.b16 %v698
      %v1619 = vunpack.c.h.b16 %v698
      %v1620 = vunpack.c.l.b16 %v699
      %v1621 = vunpack.c.h.b16 %v699
      %v1622 = vunpack.c.l.b16 %v700
      %v1623 = vunpack.c.h.b16 %v700
      %v1624 = vunpack.c.l.b16 %v701
      %v1625 = vunpack.c.h.b16 %v701
      %v1626 = vunpack.c.l.b16 %v702
      %v1627 = vunpack.c.h.b16 %v702
      %v1628 = vunpack.c.l.b16 %v703
      %v1629 = vunpack.c.h.b16 %v703
      %v1630 = vunpack.c.l.b16 %v704
      %v1631 = vunpack.c.h.b16 %v704
      %v1632 = vunpack.c.l.b16 %v705
      %v1633 = vunpack.c.h.b16 %v705
      %v1634 = vunpack.c.l.b16 %v706
      %v1635 = vunpack.c.h.b16 %v706
      %v1636 = vunpack.c.l.b16 %v707
      %v1637 = vunpack.c.h.b16 %v707
      %v1638 = vunpack.c.l.b16 %v708
      %v1639 = vunpack.c.h.b16 %v708
      %v1640 = vunpack.c.l.b16 %v709
      %v1641 = vunpack.c.h.b16 %v709
      %v1642 = vunpack.c.l.b16 %v710
      %v1643 = vunpack.c.h.b16 %v710
      %v1644 = vunpack.c.l.b16 %v711
      %v1645 = vunpack.c.h.b16 %v711
      %v1646 = vunpack.c.l.b16 %v712
      %v1647 = vunpack.c.h.b16 %v712
      %v1648 = vunpack.c.l.b16 %v713
      %v1649 = vunpack.c.h.b16 %v713
      %v1650 = vunpack.c.l.b16 %v714
      %v1651 = vunpack.c.h.b16 %v714
      %v1652 = vunpack.c.l.b16 %v715
      %v1653 = vunpack.c.h.b16 %v715
      %v1654 = vunpack.c.l.b16 %v716
      %v1655 = vunpack.c.h.b16 %v716
      %v1656 = vunpack.c.l.b16 %v717
      %v1657 = vunpack.c.h.b16 %v717
      %v1658 = vunpack.c.l.b16 %v718
      %v1659 = vunpack.c.h.b16 %v718
      %v1660 = vunpack.c.l.b16 %v719
      %v1661 = vunpack.c.h.b16 %v719
      %v1662 = vunpack.c.l.b16 %v720
      %v1663 = vunpack.c.h.b16 %v720
      %v1664 = vunpack.c.l.b16 %v721
      %v1665 = vunpack.c.h.b16 %v721
      %v1666 = vunpack.c.l.b16 %v722
      %v1667 = vunpack.c.h.b16 %v722
      %v1668 = vunpack.c.l.b16 %v723
      %v1669 = vunpack.c.h.b16 %v723
      %v1670 = vunpack.c.l.b16 %v724
      %v1671 = vunpack.c.h.b16 %v724
      %v1672 = vunpack.c.l.b16 %v725
      %v1673 = vunpack.c.h.b16 %v725
      %v1674 = vunpack.c.l.b16 %v726
      %v1675 = vunpack.c.h.b16 %v726
      %v1676 = vunpack.c.l.b16 %v727
      %v1677 = vunpack.c.h.b16 %v727
      %v1678 = vunpack.c.l.b16 %v728
      %v1679 = vunpack.c.h.b16 %v728
      %v1680 = vunpack.c.l.b16 %v729
      %v1681 = vunpack.c.h.b16 %v729
      %v1682 = vunpack.c.l.b16 %v730
      %v1683 = vunpack.c.h.b16 %v730
      %v1684 = vunpack.c.l.b16 %v731
      %v1685 = vunpack.c.h.b16 %v731
      %v1686 = vunpack.c.l.b16 %v732
      %v1687 = vunpack.c.h.b16 %v732
      %v1688 = vunpack.c.l.b16 %v733
      %v1689 = vunpack.c.h.b16 %v733
      %v1690 = vunpack.c.l.b16 %v734
      %v1691 = vunpack.c.h.b16 %v734
      %v1692 = vunpack.c.l.b16 %v735
      %v1693 = vunpack.c.h.b16 %v735
      %v1694 = vunpack.c.l.b16 %v736
      %v1695 = vunpack.c.h.b16 %v736
      %v1696 = vunpack.c.l.b16 %v737
      %v1697 = vunpack.c.h.b16 %v737
      %v1698 = vunpack.c.l.b16 %v738
      %v1699 = vunpack.c.h.b16 %v738
      %v1700 = vunpack.c.l.b16 %v739
      %v1701 = vunpack.c.h.b16 %v739
      %v1702 = vunpack.c.l.b16 %v740
      %v1703 = vunpack.c.h.b16 %v740
      %v1704 = vunpack.c.l.b16 %v741
      %v1705 = vunpack.c.h.b16 %v741
      %v1706 = vunpack.c.l.b16 %v742
      %v1707 = vunpack.c.h.b16 %v742
      %v1708 = vunpack.c.l.b16 %v743
      %v1709 = vunpack.c.h.b16 %v743
      %v1710 = vunpack.c.l.b16 %v744
      %v1711 = vunpack.c.h.b16 %v744
      %v1712 = vunpack.c.l.b16 %v745
      %v1713 = vunpack.c.h.b16 %v745
      %v1714 = vunpack.c.l.b16 %v746
      %v1715 = vunpack.c.h.b16 %v746
      %v1716 = vunpack.c.l.b16 %v747
      %v1717 = vunpack.c.h.b16 %v747
      %v1718 = vunpack.c.l.b16 %v748
      %v1719 = vunpack.c.h.b16 %v748
      %v1720 = vunpack.c.l.b16 %v749
      %v1721 = vunpack.c.h.b16 %v749
      %v1722 = vunpack.c.l.b16 %v750
      %v1723 = vunpack.c.h.b16 %v750
      %v1724 = vunpack.c.l.b16 %v751
      %v1725 = vunpack.c.h.b16 %v751
      %v1726 = vunpack.c.l.b16 %v752
      %v1727 = vunpack.c.h.b16 %v752
      %v1728 = vunpack.c.l.b16 %v753
      %v1729 = vunpack.c.h.b16 %v753
      %v1730 = vunpack.c.l.b16 %v754
      %v1731 = vunpack.c.h.b16 %v754
      %v1732 = vunpack.c.l.b16 %v755
      %v1733 = vunpack.c.h.b16 %v755
      %v1734 = vunpack.c.l.b16 %v756
      %v1735 = vunpack.c.h.b16 %v756
      %v1736 = vunpack.c.l.b16 %v757
      %v1737 = vunpack.c.h.b16 %v757
      %v1738 = vunpack.c.l.b16 %v758
      %v1739 = vunpack.c.h.b16 %v758
      %v1740 = vunpack.c.l.b16 %v759
      %v1741 = vunpack.c.h.b16 %v759
      %v1742 = vpack.c.b16 %v1298, %v1294
      %v1743 = vpack.c.b16 %v1299, %v1295
      %v1744 = vpack.c.b16 %v1300, %v1296
      %v1745 = vpack.c.b16 %v1301, %v1297
      %v1746 = vpack.c.b16 %v1306, %v1302
      %v1747 = vpack.c.b16 %v1307, %v1303
      %v1748 = vpack.c.b16 %v1308, %v1304
      %v1749 = vpack.c.b16 %v1309, %v1305
      %v1750 = vpack.c.b16 %v1314, %v1310
      %v1751 = vpack.c.b16 %v1315, %v1311
      %v1752 = vpack.c.b16 %v1316, %v1312
      %v1753 = vpack.c.b16 %v1317, %v1313
      %v1754 = vpack.c.b16 %v1322, %v1318
      %v1755 = vpack.c.b16 %v1323, %v1319
      %v1756 = vpack.c.b16 %v1324, %v1320
      %v1757 = vpack.c.b16 %v1325, %v1321
      %v1758 = vpack.c.b16 %v1330, %v1326
      %v1759 = vpack.c.b16 %v1331, %v1327
      %v1760 = vpack.c.b16 %v1332, %v1328
      %v1761 = vpack.c.b16 %v1333, %v1329
      %v1762 = vpack.c.b16 %v1338, %v1334
      %v1763 = vpack.c.b16 %v1339, %v1335
      %v1764 = vpack.c.b16 %v1340, %v1336
      %v1765 = vpack.c.b16 %v1341, %v1337
      %v1766 = vpack.c.b16 %v1346, %v1342
      %v1767 = vpack.c.b16 %v1347, %v1343
      %v1768 = vpack.c.b16 %v1348, %v1344
      %v1769 = vpack.c.b16 %v1349, %v1345
      %v1770 = vpack.c.b16 %v1354, %v1350
      %v1771 = vpack.c.b16 %v1355, %v1351
      %v1772 = vpack.c.b16 %v1356, %v1352
      %v1773 = vpack.c.b16 %v1357, %v1353
      %v1774 = vpack.c.b16 %v1362, %v1358
      %v1775 = vpack.c.b16 %v1363, %v1359
      %v1776 = vpack.c.b16 %v1364, %v1360
      %v1777 = vpack.c.b16 %v1365, %v1361
      %v1778 = vpack.c.b16 %v1370, %v1366
      %v1779 = vpack.c.b16 %v1371, %v1367
      %v1780 = vpack.c.b16 %v1372, %v1368
      %v1781 = vpack.c.b16 %v1373, %v1369
      %v1782 = vpack.c.b16 %v1378, %v1374
      %v1783 = vpack.c.b16 %v1379, %v1375
      %v1784 = vpack.c.b16 %v1380, %v1376
      %v1785 = vpack.c.b16 %v1381, %v1377
      %v1786 = vpack.c.b16 %v1386, %v1382
      %v1787 = vpack.c.b16 %v1387, %v1383
      %v1788 = vpack.c.b16 %v1388, %v1384
      %v1789 = vpack.c.b16 %v1389, %v1385
      %v1790 = vpack.c.b16 %v1394, %v1390
      %v1791 = vpack.c.b16 %v1395, %v1391
      %v1792 = vpack.c.b16 %v1396, %v1392
      %v1793 = vpack.c.b16 %v1397, %v1393
      %v1794 = vpack.c.b16 %v1402, %v1398
      %v1795 = vpack.c.b16 %v1403, %v1399
      %v1796 = vpack.c.b16 %v1404, %v1400
      %v1797 = vpack.c.b16 %v1405, %v1401
      %v1798 = vpack.c.b16 %v1410, %v1406
      %v1799 = vpack.c.b16 %v1411, %v1407
      %v1800 = vpack.c.b16 %v1412, %v1408
      %v1801 = vpack.c.b16 %v1413, %v1409
      %v1802 = vpack.c.b16 %v1418, %v1414
      %v1803 = vpack.c.b16 %v1419, %v1415
      %v1804 = vpack.c.b16 %v1420, %v1416
      %v1805 = vpack.c.b16 %v1421, %v1417
      %v1806 = vpack.c.b16 %v1426, %v1422
      %v1807 = vpack.c.b16 %v1427, %v1423
      %v1808 = vpack.c.b16 %v1428, %v1424
      %v1809 = vpack.c.b16 %v1429, %v1425
      %v1810 = vpack.c.b16 %v1434, %v1430
      %v1811 = vpack.c.b16 %v1435, %v1431
      %v1812 = vpack.c.b16 %v1436, %v1432
      %v1813 = vpack.c.b16 %v1437, %v1433
      %v1814 = vpack.c.b16 %v1442, %v1438
      %v1815 = vpack.c.b16 %v1443, %v1439
      %v1816 = vpack.c.b16 %v1444, %v1440
      %v1817 = vpack.c.b16 %v1445, %v1441
      %v1818 = vpack.c.b16 %v1450, %v1446
      %v1819 = vpack.c.b16 %v1451, %v1447
      %v1820 = vpack.c.b16 %v1452, %v1448
      %v1821 = vpack.c.b16 %v1453, %v1449
      %v1822 = vpack.c.b16 %v1458, %v1454
      %v1823 = vpack.c.b16 %v1459, %v1455
      %v1824 = vpack.c.b16 %v1460, %v1456
      %v1825 = vpack.c.b16 %v1461, %v1457
      %v1826 = vpack.c.b16 %v1466, %v1462
      %v1827 = vpack.c.b16 %v1467, %v1463
      %v1828 = vpack.c.b16 %v1468, %v1464
      %v1829 = vpack.c.b16 %v1469, %v1465
      %v1830 = vpack.c.b16 %v1474, %v1470
      %v1831 = vpack.c.b16 %v1475, %v1471
      %v1832 = vpack.c.b16 %v1476, %v1472
      %v1833 = vpack.c.b16 %v1477, %v1473
      %v1834 = vpack.c.b16 %v1482, %v1478
      %v1835 = vpack.c.b16 %v1483, %v1479
      %v1836 = vpack.c.b16 %v1484, %v1480
      %v1837 = vpack.c.b16 %v1485, %v1481
      %v1838 = vpack.c.b16 %v1490, %v1486
      %v1839 = vpack.c.b16 %v1491, %v1487
      %v1840 = vpack.c.b16 %v1492, %v1488
      %v1841 = vpack.c.b16 %v1493, %v1489
      %v1842 = vpack.c.b16 %v1498, %v1494
      %v1843 = vpack.c.b16 %v1499, %v1495
      %v1844 = vpack.c.b16 %v1500, %v1496
      %v1845 = vpack.c.b16 %v1501, %v1497
      %v1846 = vpack.c.b16 %v1506, %v1502
      %v1847 = vpack.c.b16 %v1507, %v1503
      %v1848 = vpack.c.b16 %v1508, %v1504
      %v1849 = vpack.c.b16 %v1509, %v1505
      %v1850 = vpack.c.b16 %v1514, %v1510
      %v1851 = vpack.c.b16 %v1515, %v1511
      %v1852 = vpack.c.b16 %v1516, %v1512
      %v1853 = vpack.c.b16 %v1517, %v1513
      %v1854 = vpack.c.b16 %v1522, %v1518
      %v1855 = vpack.c.b16 %v1523, %v1519
      %v1856 = vpack.c.b16 %v1524, %v1520
      %v1857 = vpack.c.b16 %v1525, %v1521
      %v1858 = vpack.c.b16 %v1530, %v1526
      %v1859 = vpack.c.b16 %v1531, %v1527
      %v1860 = vpack.c.b16 %v1532, %v1528
      %v1861 = vpack.c.b16 %v1533, %v1529
      %v1862 = vpack.c.b16 %v1538, %v1534
      %v1863 = vpack.c.b16 %v1539, %v1535
      %v1864 = vpack.c.b16 %v1540, %v1536
      %v1865 = vpack.c.b16 %v1541, %v1537
      %v1866 = vpack.c.b16 %v1546, %v1542
      %v1867 = vpack.c.b16 %v1547, %v1543
      %v1868 = vpack.c.b16 %v1548, %v1544
      %v1869 = vpack.c.b16 %v1549, %v1545
      %v1870 = vpack.c.b16 %v1554, %v1550
      %v1871 = vpack.c.b16 %v1555, %v1551
      %v1872 = vpack.c.b16 %v1556, %v1552
      %v1873 = vpack.c.b16 %v1557, %v1553
      %v1874 = vpack.c.b16 %v1562, %v1558
      %v1875 = vpack.c.b16 %v1563, %v1559
      %v1876 = vpack.c.b16 %v1564, %v1560
      %v1877 = vpack.c.b16 %v1565, %v1561
      %v1878 = vpack.c.b16 %v1570, %v1566
      %v1879 = vpack.c.b16 %v1571, %v1567
      %v1880 = vpack.c.b16 %v1572, %v1568
      %v1881 = vpack.c.b16 %v1573, %v1569
      %v1882 = vpack.c.b16 %v1578, %v1574
      %v1883 = vpack.c.b16 %v1579, %v1575
      %v1884 = vpack.c.b16 %v1580, %v1576
      %v1885 = vpack.c.b16 %v1581, %v1577
      %v1886 = vpack.c.b16 %v1586, %v1582
      %v1887 = vpack.c.b16 %v1587, %v1583
      %v1888 = vpack.c.b16 %v1588, %v1584
      %v1889 = vpack.c.b16 %v1589, %v1585
      %v1890 = vpack.c.b16 %v1594, %v1590
      %v1891 = vpack.c.b16 %v1595, %v1591
      %v1892 = vpack.c.b16 %v1596, %v1592
      %v1893 = vpack.c.b16 %v1597, %v1593
      %v1894 = vpack.c.b16 %v1602, %v1598
      %v1895 = vpack.c.b16 %v1603, %v1599
      %v1896 = vpack.c.b16 %v1604, %v1600
      %v1897 = vpack.c.b16 %v1605, %v1601
      %v1898 = vpack.c.b16 %v1610, %v1606
      %v1899 = vpack.c.b16 %v1611, %v1607
      %v1900 = vpack.c.b16 %v1612, %v1608
      %v1901 = vpack.c.b16 %v1613, %v1609
      %v1902 = vpack.c.b16 %v1618, %v1614
      %v1903 = vpack.c.b16 %v1619, %v1615
      %v1904 = vpack.c.b16 %v1620, %v1616
      %v1905 = vpack.c.b16 %v1621, %v1617
      %v1906 = vpack.c.b16 %v1626, %v1622
      %v1907 = vpack.c.b16 %v1627, %v1623
      %v1908 = vpack.c.b16 %v1628, %v1624
      %v1909 = vpack.c.b16 %v1629, %v1625
      %v1910 = vpack.c.b16 %v1634, %v1630
      %v1911 = vpack.c.b16 %v1635, %v1631
      %v1912 = vpack.c.b16 %v1636, %v1632
      %v1913 = vpack.c.b16 %v1637, %v1633
      %v1914 = vpack.c.b16 %v1642, %v1638
      %v1915 = vpack.c.b16 %v1643, %v1639
      %v1916 = vpack.c.b16 %v1644, %v1640
      %v1917 = vpack.c.b16 %v1645, %v1641
      %v1918 = vpack.c.b16 %v1650, %v1646
      %v1919 = vpack.c.b16 %v1651, %v1647
      %v1920 = vpack.c.b16 %v1652, %v1648
      %v1921 = vpack.c.b16 %v1653, %v1649
      %v1922 = vpack.c.b16 %v1658, %v1654
      %v1923 = vpack.c.b16 %v1659, %v1655
      %v1924 = vpack.c.b16 %v1660, %v1656
      %v1925 = vpack.c.b16 %v1661, %v1657
      %v1926 = vpack.c.b16 %v1666, %v1662
      %v1927 = vpack.c.b16 %v1667, %v1663
      %v1928 = vpack.c.b16 %v1668, %v1664
      %v1929 = vpack.c.b16 %v1669, %v1665
      %v1930 = vpack.c.b16 %v1674, %v1670
      %v1931 = vpack.c.b16 %v1675, %v1671
      %v1932 = vpack.c.b16 %v1676, %v1672
      %v1933 = vpack.c.b16 %v1677, %v1673
      %v1934 = vpack.c.b16 %v1682, %v1678
      %v1935 = vpack.c.b16 %v1683, %v1679
      %v1936 = vpack.c.b16 %v1684, %v1680
      %v1937 = vpack.c.b16 %v1685, %v1681
      %v1938 = vpack.c.b16 %v1690, %v1686
      %v1939 = vpack.c.b16 %v1691, %v1687
      %v1940 = vpack.c.b16 %v1692, %v1688
      %v1941 = vpack.c.b16 %v1693, %v1689
      %v1942 = vpack.c.b16 %v1698, %v1694
      %v1943 = vpack.c.b16 %v1699, %v1695
      %v1944 = vpack.c.b16 %v1700, %v1696
      %v1945 = vpack.c.b16 %v1701, %v1697
      %v1946 = vpack.c.b16 %v1706, %v1702
      %v1947 = vpack.c.b16 %v1707, %v1703
      %v1948 = vpack.c.b16 %v1708, %v1704
      %v1949 = vpack.c.b16 %v1709, %v1705
      %v1950 = vpack.c.b16 %v1714, %v1710
      %v1951 = vpack.c.b16 %v1715, %v1711
      %v1952 = vpack.c.b16 %v1716, %v1712
      %v1953 = vpack.c.b16 %v1717, %v1713
      %v1954 = vpack.c.b16 %v1722, %v1718
      %v1955 = vpack.c.b16 %v1723, %v1719
      %v1956 = vpack.c.b16 %v1724, %v1720
      %v1957 = vpack.c.b16 %v1725, %v1721
      %v1958 = vpack.c.b16 %v1730, %v1726
      %v1959 = vpack.c.b16 %v1731, %v1727
      %v1960 = vpack.c.b16 %v1732, %v1728
      %v1961 = vpack.c.b16 %v1733, %v1729
      %v1962 = vpack.c.b16 %v1738, %v1734
      %v1963 = vpack.c.b16 %v1739, %v1735
      %v1964 = vpack.c.b16 %v1740, %v1736
      %v1965 = vpack.c.b16 %v1741, %v1737
      %2190 = vmatprep.subr.bf16.mxu0 %v1771
      %2191 = vmatpush1.bf16.msra.mxu0 %v1770
      %2192 = vmatprep.subr.bf16.mxu0 %v1767
      %2193 = vmatpush1.bf16.msra.mxu0 %v1766
      %2194 = vmatprep.subr.bf16.mxu0 %v1763
      %2195 = vmatpush1.bf16.msra.mxu0 %v1762
      %2196 = vmatprep.subr.bf16.mxu0 %v1759
      %2197 = vmatpush1.bf16.msra.mxu0 %v1758
      %2198 = vmatprep.subr.bf16.mxu0 %v1755
      %2199 = vmatpush1.bf16.msra.mxu0 %v1754
      %2200 = vmatprep.subr.bf16.mxu0 %v1751
      %2201 = vmatpush1.bf16.msra.mxu0 %v1750
      %2202 = vmatprep.subr.bf16.mxu0 %v1747
      %2203 = vmatpush1.bf16.msra.mxu0 %v1746
      %2204 = vmatprep.subr.bf16.mxu0 %v1743
      %2205 = vmatpush1.bf16.msra.mxu0 %v1742
      %2206 = vmatprep.subr.bf16.mxu0 %v1803
      %2207 = vmatpush2.bf16.msra.mxu0 %v1802
      %2208 = vmatprep.subr.bf16.mxu0 %v1799
      %2209 = vmatpush2.bf16.msra.mxu0 %v1798
      %2210 = vmatprep.subr.bf16.mxu0 %v1795
      %2211 = vmatpush2.bf16.msra.mxu0 %v1794
      %2212 = vmatprep.subr.bf16.mxu0 %v1791
      %2213 = vmatpush2.bf16.msra.mxu0 %v1790
      %2214 = vmatprep.subr.bf16.mxu0 %v1787
      %2215 = vmatpush2.bf16.msra.mxu0 %v1786
      %2216 = vmatprep.subr.bf16.mxu0 %v1783
      %2217 = vmatpush2.bf16.msra.mxu0 %v1782
      %2218 = vmatprep.subr.bf16.mxu0 %v1779
      %2219 = vmatpush2.bf16.msra.mxu0 %v1778
      %2220 = vmatprep.subr.bf16.mxu0 %v1775
      %2221 = vmatpush2.bf16.msra.mxu0 %v1774
      %2222 = vmatprep.mubr.bf16.mxu0 %v959
      %2223 = vmatmul.mubr.bf16.gmra.mxu0 %v958
      %v2224 = vpop.f32.mrf.mxu0
      %v2225 = vadd.f32 %v765, %v2224
      %v2226 = vpop.f32.mrf.mxu0
      %v2227 = vadd.f32 %v769, %v2226
      %v2228 = vpop.f32.mrf.mxu0
      %v2229 = vadd.f32 %v765, %v2228
      %v2230 = vpop.f32.mrf.mxu0
      %v2231 = vadd.f32 %v769, %v2230
      %2232 = vmatprep.mubr.bf16.mxu0 %v966
      %2233 = vmatmul.mubr.bf16.gmra.mxu0 %v965
      %v2234 = vpop.f32.mrf.mxu0
      %v2235 = vadd.f32 %v765, %v2234
      %v2236 = vpop.f32.mrf.mxu0
      %v2237 = vadd.f32 %v769, %v2236
      %v2238 = vpop.f32.mrf.mxu0
      %v2239 = vadd.f32 %v765, %v2238
      %v2240 = vpop.f32.mrf.mxu0
      %v2241 = vadd.f32 %v769, %v2240
      %2242 = vmatprep.mubr.bf16.mxu0 %v973
      %2243 = vmatmul.mubr.bf16.gmra.mxu0 %v972
      %v2244 = vpop.f32.mrf.mxu0
      %v2245 = vadd.f32 %v765, %v2244
      %v2246 = vpop.f32.mrf.mxu0
      %v2247 = vadd.f32 %v769, %v2246
      %v2248 = vpop.f32.mrf.mxu0
      %v2249 = vadd.f32 %v765, %v2248
      %v2250 = vpop.f32.mrf.mxu0
      %v2251 = vadd.f32 %v769, %v2250
      %2252 = vmatprep.mubr.bf16.mxu0 %v980
      %2253 = vmatmul.mubr.bf16.gmra.mxu0 %v979
      %v2254 = vpop.f32.mrf.mxu0
      %v2255 = vadd.f32 %v765, %v2254
      %v2256 = vpop.f32.mrf.mxu0
      %v2257 = vadd.f32 %v769, %v2256
      %v2258 = vpop.f32.mrf.mxu0
      %v2259 = vadd.f32 %v765, %v2258
      %v2260 = vpop.f32.mrf.mxu0
      %v2261 = vadd.f32 %v769, %v2260
      %2262 = vmatprep.mubr.bf16.mxu0 %v987
      %2263 = vmatmul.mubr.bf16.gmra.mxu0 %v986
      %v2264 = vpop.f32.mrf.mxu0
      %v2265 = vadd.f32 %v765, %v2264
      %v2266 = vpop.f32.mrf.mxu0
      %v2267 = vadd.f32 %v769, %v2266
      %v2268 = vpop.f32.mrf.mxu0
      %v2269 = vadd.f32 %v765, %v2268
      %v2270 = vpop.f32.mrf.mxu0
      %v2271 = vadd.f32 %v769, %v2270
      %2272 = vmatprep.mubr.bf16.mxu0 %v994
      %2273 = vmatmul.mubr.bf16.gmra.mxu0 %v993
      %v2274 = vpop.f32.mrf.mxu0
      %v2275 = vadd.f32 %v765, %v2274
      %v2276 = vpop.f32.mrf.mxu0
      %v2277 = vadd.f32 %v769, %v2276
      %v2278 = vpop.f32.mrf.mxu0
      %v2279 = vadd.f32 %v765, %v2278
      %v2280 = vpop.f32.mrf.mxu0
      %v2281 = vadd.f32 %v769, %v2280
      %2282 = vmatprep.mubr.bf16.mxu0 %v1001
      %2283 = vmatmul.mubr.bf16.gmra.mxu0 %v1000
      %v2284 = vpop.f32.mrf.mxu0
      %v2285 = vadd.f32 %v765, %v2284
      %v2286 = vpop.f32.mrf.mxu0
      %v2287 = vadd.f32 %v769, %v2286
      %v2288 = vpop.f32.mrf.mxu0
      %v2289 = vadd.f32 %v765, %v2288
      %v2290 = vpop.f32.mrf.mxu0
      %v2291 = vadd.f32 %v769, %v2290
      %2292 = vmatprep.mubr.bf16.mxu0 %v1008
      %2293 = vmatmul.mubr.bf16.gmra.mxu0 %v1007
      %v2294 = vpop.f32.mrf.mxu0
      %v2295 = vadd.f32 %v765, %v2294
      %v2296 = vpop.f32.mrf.mxu0
      %v2297 = vadd.f32 %v769, %v2296
      %v2298 = vpop.f32.mrf.mxu0
      %v2299 = vadd.f32 %v765, %v2298
      %v2300 = vpop.f32.mrf.mxu0
      %v2301 = vadd.f32 %v769, %v2300
      %2302 = vdwg.mxu0
      %2303 = vmatprep.subr.bf16.mxu0 %v1835
      %2304 = vmatpush1.bf16.msra.mxu0 %v1834
      %2305 = vmatprep.subr.bf16.mxu0 %v1831
      %2306 = vmatpush1.bf16.msra.mxu0 %v1830
      %2307 = vmatprep.subr.bf16.mxu0 %v1827
      %2308 = vmatpush1.bf16.msra.mxu0 %v1826
      %2309 = vmatprep.subr.bf16.mxu0 %v1823
      %2310 = vmatpush1.bf16.msra.mxu0 %v1822
      %2311 = vmatprep.subr.bf16.mxu0 %v1819
      %2312 = vmatpush1.bf16.msra.mxu0 %v1818
      %2313 = vmatprep.subr.bf16.mxu0 %v1815
      %2314 = vmatpush1.bf16.msra.mxu0 %v1814
      %2315 = vmatprep.subr.bf16.mxu0 %v1811
      %2316 = vmatpush1.bf16.msra.mxu0 %v1810
      %2317 = vmatprep.subr.bf16.mxu0 %v1807
      %2318 = vmatpush1.bf16.msra.mxu0 %v1806
      %2319 = vmatprep.subr.bf16.mxu0 %v1867
      %2320 = vmatpush2.bf16.msra.mxu0 %v1866
      %2321 = vmatprep.subr.bf16.mxu0 %v1863
      %2322 = vmatpush2.bf16.msra.mxu0 %v1862
      %2323 = vmatprep.subr.bf16.mxu0 %v1859
      %2324 = vmatpush2.bf16.msra.mxu0 %v1858
      %2325 = vmatprep.subr.bf16.mxu0 %v1855
      %2326 = vmatpush2.bf16.msra.mxu0 %v1854
      %2327 = vmatprep.subr.bf16.mxu0 %v1851
      %2328 = vmatpush2.bf16.msra.mxu0 %v1850
      %2329 = vmatprep.subr.bf16.mxu0 %v1847
      %2330 = vmatpush2.bf16.msra.mxu0 %v1846
      %2331 = vmatprep.subr.bf16.mxu0 %v1843
      %2332 = vmatpush2.bf16.msra.mxu0 %v1842
      %2333 = vmatprep.subr.bf16.mxu0 %v1839
      %2334 = vmatpush2.bf16.msra.mxu0 %v1838
      %2335 = vmatprep.mubr.bf16.mxu0 %v961
      %2336 = vmatmul.mubr.bf16.gmra.mxu0 %v960
      %v2337 = vpop.f32.mrf.mxu0
      %v2338 = vadd.f32 %v2225, %v2337
      %v2339 = vpop.f32.mrf.mxu0
      %v2340 = vadd.f32 %v2227, %v2339
      %v2341 = vpop.f32.mrf.mxu0
      %v2342 = vadd.f32 %v2229, %v2341
      %v2343 = vpop.f32.mrf.mxu0
      %v2344 = vadd.f32 %v2231, %v2343
      %2345 = vmatprep.mubr.bf16.mxu0 %v968
      %2346 = vmatmul.mubr.bf16.gmra.mxu0 %v967
      %v2347 = vpop.f32.mrf.mxu0
      %v2348 = vadd.f32 %v2235, %v2347
      %v2349 = vpop.f32.mrf.mxu0
      %v2350 = vadd.f32 %v2237, %v2349
      %v2351 = vpop.f32.mrf.mxu0
      %v2352 = vadd.f32 %v2239, %v2351
      %v2353 = vpop.f32.mrf.mxu0
      %v2354 = vadd.f32 %v2241, %v2353
      %2355 = vmatprep.mubr.bf16.mxu0 %v975
      %2356 = vmatmul.mubr.bf16.gmra.mxu0 %v974
      %v2357 = vpop.f32.mrf.mxu0
      %v2358 = vadd.f32 %v2245, %v2357
      %v2359 = vpop.f32.mrf.mxu0
      %v2360 = vadd.f32 %v2247, %v2359
      %v2361 = vpop.f32.mrf.mxu0
      %v2362 = vadd.f32 %v2249, %v2361
      %v2363 = vpop.f32.mrf.mxu0
      %v2364 = vadd.f32 %v2251, %v2363
      %2365 = vmatprep.mubr.bf16.mxu0 %v982
      %2366 = vmatmul.mubr.bf16.gmra.mxu0 %v981
      %v2367 = vpop.f32.mrf.mxu0
      %v2368 = vadd.f32 %v2255, %v2367
      %v2369 = vpop.f32.mrf.mxu0
      %v2370 = vadd.f32 %v2257, %v2369
      %v2371 = vpop.f32.mrf.mxu0
      %v2372 = vadd.f32 %v2259, %v2371
      %v2373 = vpop.f32.mrf.mxu0
      %v2374 = vadd.f32 %v2261, %v2373
      %2375 = vmatprep.mubr.bf16.mxu0 %v989
      %2376 = vmatmul.mubr.bf16.gmra.mxu0 %v988
      %v2377 = vpop.f32.mrf.mxu0
      %v2378 = vadd.f32 %v2265, %v2377
      %v2379 = vpop.f32.mrf.mxu0
      %v2380 = vadd.f32 %v2267, %v2379
      %v2381 = vpop.f32.mrf.mxu0
      %v2382 = vadd.f32 %v2269, %v2381
      %v2383 = vpop.f32.mrf.mxu0
      %v2384 = vadd.f32 %v2271, %v2383
      %2385 = vmatprep.mubr.bf16.mxu0 %v996
      %2386 = vmatmul.mubr.bf16.gmra.mxu0 %v995
      %v2387 = vpop.f32.mrf.mxu0
      %v2388 = vadd.f32 %v2275, %v2387
      %v2389 = vpop.f32.mrf.mxu0
      %v2390 = vadd.f32 %v2277, %v2389
      %v2391 = vpop.f32.mrf.mxu0
      %v2392 = vadd.f32 %v2279, %v2391
      %v2393 = vpop.f32.mrf.mxu0
      %v2394 = vadd.f32 %v2281, %v2393
      %2395 = vmatprep.mubr.bf16.mxu0 %v1003
      %2396 = vmatmul.mubr.bf16.gmra.mxu0 %v1002
      %v2397 = vpop.f32.mrf.mxu0
      %v2398 = vadd.f32 %v2285, %v2397
      %v2399 = vpop.f32.mrf.mxu0
      %v2400 = vadd.f32 %v2287, %v2399
      %v2401 = vpop.f32.mrf.mxu0
      %v2402 = vadd.f32 %v2289, %v2401
      %v2403 = vpop.f32.mrf.mxu0
      %v2404 = vadd.f32 %v2291, %v2403
      %2405 = vmatprep.mubr.bf16.mxu0 %v1010
      %2406 = vmatmul.mubr.bf16.gmra.mxu0 %v1009
      %v2407 = vpop.f32.mrf.mxu0
      %v2408 = vadd.f32 %v2295, %v2407
      %v2409 = vpop.f32.mrf.mxu0
      %v2410 = vadd.f32 %v2297, %v2409
      %v2411 = vpop.f32.mrf.mxu0
      %v2412 = vadd.f32 %v2299, %v2411
      %v2413 = vpop.f32.mrf.mxu0
      %v2414 = vadd.f32 %v2301, %v2413
      %2415 = vdwg.mxu0
      %2416 = vmatprep.subr.bf16.mxu0 %v1899
      %2417 = vmatpush1.bf16.msra.mxu0 %v1898
      %2418 = vmatprep.subr.bf16.mxu0 %v1895
      %2419 = vmatpush1.bf16.msra.mxu0 %v1894
      %2420 = vmatprep.subr.bf16.mxu0 %v1891
      %2421 = vmatpush1.bf16.msra.mxu0 %v1890
      %2422 = vmatprep.subr.bf16.mxu0 %v1887
      %2423 = vmatpush1.bf16.msra.mxu0 %v1886
      %2424 = vmatprep.subr.bf16.mxu0 %v1883
      %2425 = vmatpush1.bf16.msra.mxu0 %v1882
      %2426 = vmatprep.subr.bf16.mxu0 %v1879
      %2427 = vmatpush1.bf16.msra.mxu0 %v1878
      %2428 = vmatprep.subr.bf16.mxu0 %v1875
      %2429 = vmatpush1.bf16.msra.mxu0 %v1874
      %2430 = vmatprep.subr.bf16.mxu0 %v1871
      %2431 = vmatpush1.bf16.msra.mxu0 %v1870
      %2432 = vmatprep.subr.bf16.mxu0 %v1931
      %2433 = vmatpush2.bf16.msra.mxu0 %v1930
      %2434 = vmatprep.subr.bf16.mxu0 %v1927
      %2435 = vmatpush2.bf16.msra.mxu0 %v1926
      %2436 = vmatprep.subr.bf16.mxu0 %v1923
      %2437 = vmatpush2.bf16.msra.mxu0 %v1922
      %2438 = vmatprep.subr.bf16.mxu0 %v1919
      %2439 = vmatpush2.bf16.msra.mxu0 %v1918
      %2440 = vmatprep.subr.bf16.mxu0 %v1915
      %2441 = vmatpush2.bf16.msra.mxu0 %v1914
      %2442 = vmatprep.subr.bf16.mxu0 %v1911
      %2443 = vmatpush2.bf16.msra.mxu0 %v1910
      %2444 = vmatprep.subr.bf16.mxu0 %v1907
      %2445 = vmatpush2.bf16.msra.mxu0 %v1906
      %2446 = vmatprep.subr.bf16.mxu0 %v1903
      %2447 = vmatpush2.bf16.msra.mxu0 %v1902
      %2448 = vmatprep.mubr.bf16.mxu0 %v963
      %2449 = vmatmul.mubr.bf16.gmra.mxu0 %v962
      %v2450 = vpop.f32.mrf.mxu0
      %v2451 = vadd.f32 %v2338, %v2450
      %v2452 = vpop.f32.mrf.mxu0
      %v2453 = vadd.f32 %v2340, %v2452
      %v2454 = vpop.f32.mrf.mxu0
      %v2455 = vadd.f32 %v2342, %v2454
      %v2456 = vpop.f32.mrf.mxu0
      %v2457 = vadd.f32 %v2344, %v2456
      %2458 = vmatprep.mubr.bf16.mxu0 %v970
      %2459 = vmatmul.mubr.bf16.gmra.mxu0 %v969
      %v2460 = vpop.f32.mrf.mxu0
      %v2461 = vadd.f32 %v2348, %v2460
      %v2462 = vpop.f32.mrf.mxu0
      %v2463 = vadd.f32 %v2350, %v2462
      %v2464 = vpop.f32.mrf.mxu0
      %v2465 = vadd.f32 %v2352, %v2464
      %v2466 = vpop.f32.mrf.mxu0
      %v2467 = vadd.f32 %v2354, %v2466
      %2468 = vmatprep.mubr.bf16.mxu0 %v977
      %2469 = vmatmul.mubr.bf16.gmra.mxu0 %v976
      %v2470 = vpop.f32.mrf.mxu0
      %v2471 = vadd.f32 %v2358, %v2470
      %v2472 = vpop.f32.mrf.mxu0
      %v2473 = vadd.f32 %v2360, %v2472
      %v2474 = vpop.f32.mrf.mxu0
      %v2475 = vadd.f32 %v2362, %v2474
      %v2476 = vpop.f32.mrf.mxu0
      %v2477 = vadd.f32 %v2364, %v2476
      %2478 = vmatprep.mubr.bf16.mxu0 %v984
      %2479 = vmatmul.mubr.bf16.gmra.mxu0 %v983
      %v2480 = vpop.f32.mrf.mxu0
      %v2481 = vadd.f32 %v2368, %v2480
      %v2482 = vpop.f32.mrf.mxu0
      %v2483 = vadd.f32 %v2370, %v2482
      %v2484 = vpop.f32.mrf.mxu0
      %v2485 = vadd.f32 %v2372, %v2484
      %v2486 = vpop.f32.mrf.mxu0
      %v2487 = vadd.f32 %v2374, %v2486
      %2488 = vmatprep.mubr.bf16.mxu0 %v991
      %2489 = vmatmul.mubr.bf16.gmra.mxu0 %v990
      %v2490 = vpop.f32.mrf.mxu0
      %v2491 = vadd.f32 %v2378, %v2490
      %v2492 = vpop.f32.mrf.mxu0
      %v2493 = vadd.f32 %v2380, %v2492
      %v2494 = vpop.f32.mrf.mxu0
      %v2495 = vadd.f32 %v2382, %v2494
      %v2496 = vpop.f32.mrf.mxu0
      %v2497 = vadd.f32 %v2384, %v2496
      %2498 = vmatprep.mubr.bf16.mxu0 %v998
      %2499 = vmatmul.mubr.bf16.gmra.mxu0 %v997
      %v2500 = vpop.f32.mrf.mxu0
      %v2501 = vadd.f32 %v2388, %v2500
      %v2502 = vpop.f32.mrf.mxu0
      %v2503 = vadd.f32 %v2390, %v2502
      %v2504 = vpop.f32.mrf.mxu0
      %v2505 = vadd.f32 %v2392, %v2504
      %v2506 = vpop.f32.mrf.mxu0
      %v2507 = vadd.f32 %v2394, %v2506
      %2508 = vmatprep.mubr.bf16.mxu0 %v1005
      %2509 = vmatmul.mubr.bf16.gmra.mxu0 %v1004
      %v2510 = vpop.f32.mrf.mxu0
      %v2511 = vadd.f32 %v2398, %v2510
      %v2512 = vpop.f32.mrf.mxu0
      %v2513 = vadd.f32 %v2400, %v2512
      %v2514 = vpop.f32.mrf.mxu0
      %v2515 = vadd.f32 %v2402, %v2514
      %v2516 = vpop.f32.mrf.mxu0
      %v2517 = vadd.f32 %v2404, %v2516
      %2518 = vmatprep.mubr.bf16.mxu0 %v1012
      %2519 = vmatmul.mubr.bf16.gmra.mxu0 %v1011
      %v2520 = vpop.f32.mrf.mxu0
      %v2521 = vadd.f32 %v2408, %v2520
      %v2522 = vpop.f32.mrf.mxu0
      %v2523 = vadd.f32 %v2410, %v2522
      %v2524 = vpop.f32.mrf.mxu0
      %v2525 = vadd.f32 %v2412, %v2524
      %v2526 = vpop.f32.mrf.mxu0
      %v2527 = vadd.f32 %v2414, %v2526
      %2528 = vdwg.mxu0
      %2529 = vmatprep.subr.bf16.mxu0 %v1963
      %2530 = vmatpush1.bf16.msra.mxu0 %v1962
      %2531 = vmatprep.subr.bf16.mxu0 %v1959
      %2532 = vmatpush1.bf16.msra.mxu0 %v1958
      %2533 = vmatprep.subr.bf16.mxu0 %v1955
      %2534 = vmatpush1.bf16.msra.mxu0 %v1954
      %2535 = vmatprep.subr.bf16.mxu0 %v1951
      %2536 = vmatpush1.bf16.msra.mxu0 %v1950
      %2537 = vmatprep.subr.bf16.mxu0 %v1947
      %2538 = vmatpush1.bf16.msra.mxu0 %v1946
      %2539 = vmatprep.subr.bf16.mxu0 %v1943
      %2540 = vmatpush1.bf16.msra.mxu0 %v1942
      %2541 = vmatprep.subr.bf16.mxu0 %v1939
      %2542 = vmatpush1.bf16.msra.mxu0 %v1938
      %2543 = vmatprep.subr.bf16.mxu0 %v1935
      %2544 = vmatpush1.bf16.msra.mxu0 %v1934
      %2545 = vmatprep.subr.bf16.mxu0 0
      %2546 = vmatpush2.bf16.msra.mxu0 0
      %2547 = vmatprep.subr.bf16.mxu0 0
      %2548 = vmatpush2.bf16.msra.mxu0 0
      %2549 = vmatprep.subr.bf16.mxu0 0
      %2550 = vmatpush2.bf16.msra.mxu0 0
      %2551 = vmatprep.subr.bf16.mxu0 0
      %2552 = vmatpush2.bf16.msra.mxu0 0
      %2553 = vmatprep.subr.bf16.mxu0 0
      %2554 = vmatpush2.bf16.msra.mxu0 0
      %2555 = vmatprep.subr.bf16.mxu0 0
      %2556 = vmatpush2.bf16.msra.mxu0 0
      %2557 = vmatprep.subr.bf16.mxu0 0
      %2558 = vmatpush2.bf16.msra.mxu0 0
      %2559 = vmatprep.subr.bf16.mxu0 0
      %2560 = vmatpush2.bf16.msra.mxu0 0
      %2561 = vmatprep.mubr.bf16.mxu0 0
      %2562 = vmatmul.mubr.bf16.gmra.mxu0 %v964
      %v2563 = vpop.f32.mrf.mxu0
      %v2564 = vadd.f32 %v2451, %v2563
      %v2565 = vpop.f32.mrf.mxu0
      %v2566 = vadd.f32 %v2453, %v2565
      %v2567 = vpop.f32.mrf.mxu0
      %v2568 = vadd.f32 %v2455, %v2567
      %v2569 = vpop.f32.mrf.mxu0
      %v2570 = vadd.f32 %v2457, %v2569
      %2571 = vmatprep.mubr.bf16.mxu0 0
      %2572 = vmatmul.mubr.bf16.gmra.mxu0 %v971
      %v2573 = vpop.f32.mrf.mxu0
      %v2574 = vadd.f32 %v2461, %v2573
      %v2575 = vpop.f32.mrf.mxu0
      %v2576 = vadd.f32 %v2463, %v2575
      %v2577 = vpop.f32.mrf.mxu0
      %v2578 = vadd.f32 %v2465, %v2577
      %v2579 = vpop.f32.mrf.mxu0
      %v2580 = vadd.f32 %v2467, %v2579
      %2581 = vmatprep.mubr.bf16.mxu0 0
      %2582 = vmatmul.mubr.bf16.gmra.mxu0 %v978
      %v2583 = vpop.f32.mrf.mxu0
      %v2584 = vadd.f32 %v2471, %v2583
      %v2585 = vpop.f32.mrf.mxu0
      %v2586 = vadd.f32 %v2473, %v2585
      %v2587 = vpop.f32.mrf.mxu0
      %v2588 = vadd.f32 %v2475, %v2587
      %v2589 = vpop.f32.mrf.mxu0
      %v2590 = vadd.f32 %v2477, %v2589
      %2591 = vmatprep.mubr.bf16.mxu0 0
      %2592 = vmatmul.mubr.bf16.gmra.mxu0 %v985
      %v2593 = vpop.f32.mrf.mxu0
      %v2594 = vadd.f32 %v2481, %v2593
      %v2595 = vpop.f32.mrf.mxu0
      %v2596 = vadd.f32 %v2483, %v2595
      %v2597 = vpop.f32.mrf.mxu0
      %v2598 = vadd.f32 %v2485, %v2597
      %v2599 = vpop.f32.mrf.mxu0
      %v2600 = vadd.f32 %v2487, %v2599
      %2601 = vmatprep.mubr.bf16.mxu0 0
      %2602 = vmatmul.mubr.bf16.gmra.mxu0 %v992
      %v2603 = vpop.f32.mrf.mxu0
      %v2604 = vadd.f32 %v2491, %v2603
      %v2605 = vpop.f32.mrf.mxu0
      %v2606 = vadd.f32 %v2493, %v2605
      %v2607 = vpop.f32.mrf.mxu0
      %v2608 = vadd.f32 %v2495, %v2607
      %v2609 = vpop.f32.mrf.mxu0
      %v2610 = vadd.f32 %v2497, %v2609
      %2611 = vmatprep.mubr.bf16.mxu0 0
      %2612 = vmatmul.mubr.bf16.gmra.mxu0 %v999
      %v2613 = vpop.f32.mrf.mxu0
      %v2614 = vadd.f32 %v2501, %v2613
      %v2615 = vpop.f32.mrf.mxu0
      %v2616 = vadd.f32 %v2503, %v2615
      %v2617 = vpop.f32.mrf.mxu0
      %v2618 = vadd.f32 %v2505, %v2617
      %v2619 = vpop.f32.mrf.mxu0
      %v2620 = vadd.f32 %v2507, %v2619
      %2621 = vmatprep.mubr.bf16.mxu0 0
      %2622 = vmatmul.mubr.bf16.gmra.mxu0 %v1006
      %v2623 = vpop.f32.mrf.mxu0
      %v2624 = vadd.f32 %v2511, %v2623
      %v2625 = vpop.f32.mrf.mxu0
      %v2626 = vadd.f32 %v2513, %v2625
      %v2627 = vpop.f32.mrf.mxu0
      %v2628 = vadd.f32 %v2515, %v2627
      %v2629 = vpop.f32.mrf.mxu0
      %v2630 = vadd.f32 %v2517, %v2629
      %2631 = vmatprep.mubr.bf16.mxu0 0
      %2632 = vmatmul.mubr.bf16.gmra.mxu0 %v1013
      %v2633 = vpop.f32.mrf.mxu0
      %v2634 = vadd.f32 %v2521, %v2633
      %v2635 = vpop.f32.mrf.mxu0
      %v2636 = vadd.f32 %v2523, %v2635
      %v2637 = vpop.f32.mrf.mxu0
      %v2638 = vadd.f32 %v2525, %v2637
      %v2639 = vpop.f32.mrf.mxu0
      %v2640 = vadd.f32 %v2527, %v2639
      %2641 = vdwg.mxu0
      %2642 = vmatprep.subr.bf16.mxu0 %v1773
      %2643 = vmatpush1.bf16.msra.mxu0 %v1772
      %2644 = vmatprep.subr.bf16.mxu0 %v1769
      %2645 = vmatpush1.bf16.msra.mxu0 %v1768
      %2646 = vmatprep.subr.bf16.mxu0 %v1765
      %2647 = vmatpush1.bf16.msra.mxu0 %v1764
      %2648 = vmatprep.subr.bf16.mxu0 %v1761
      %2649 = vmatpush1.bf16.msra.mxu0 %v1760
      %2650 = vmatprep.subr.bf16.mxu0 %v1757
      %2651 = vmatpush1.bf16.msra.mxu0 %v1756
      %2652 = vmatprep.subr.bf16.mxu0 %v1753
      %2653 = vmatpush1.bf16.msra.mxu0 %v1752
      %2654 = vmatprep.subr.bf16.mxu0 %v1749
      %2655 = vmatpush1.bf16.msra.mxu0 %v1748
      %2656 = vmatprep.subr.bf16.mxu0 %v1745
      %2657 = vmatpush1.bf16.msra.mxu0 %v1744
      %2658 = vmatprep.subr.bf16.mxu0 %v1805
      %2659 = vmatpush2.bf16.msra.mxu0 %v1804
      %2660 = vmatprep.subr.bf16.mxu0 %v1801
      %2661 = vmatpush2.bf16.msra.mxu0 %v1800
      %2662 = vmatprep.subr.bf16.mxu0 %v1797
      %2663 = vmatpush2.bf16.msra.mxu0 %v1796
      %2664 = vmatprep.subr.bf16.mxu0 %v1793
      %2665 = vmatpush2.bf16.msra.mxu0 %v1792
      %2666 = vmatprep.subr.bf16.mxu0 %v1789
      %2667 = vmatpush2.bf16.msra.mxu0 %v1788
      %2668 = vmatprep.subr.bf16.mxu0 %v1785
      %2669 = vmatpush2.bf16.msra.mxu0 %v1784
      %2670 = vmatprep.subr.bf16.mxu0 %v1781
      %2671 = vmatpush2.bf16.msra.mxu0 %v1780
      %2672 = vmatprep.subr.bf16.mxu0 %v1777
      %2673 = vmatpush2.bf16.msra.mxu0 %v1776
      %2674 = vmatprep.mubr.bf16.mxu0 %v959
      %2675 = vmatmul.mubr.bf16.gmra.mxu0 %v958
      %v2676 = vpop.f32.mrf.mxu0
      %v2677 = vadd.f32 %v773, %v2676
      %v2678 = vpop.f32.mrf.mxu0
      %v2679 = vadd.f32 %v777, %v2678
      %v2680 = vpop.f32.mrf.mxu0
      %v2681 = vadd.f32 %v773, %v2680
      %v2682 = vpop.f32.mrf.mxu0
      %v2683 = vadd.f32 %v777, %v2682
      %2684 = vmatprep.mubr.bf16.mxu0 %v966
      %2685 = vmatmul.mubr.bf16.gmra.mxu0 %v965
      %v2686 = vpop.f32.mrf.mxu0
      %v2687 = vadd.f32 %v773, %v2686
      %v2688 = vpop.f32.mrf.mxu0
      %v2689 = vadd.f32 %v777, %v2688
      %v2690 = vpop.f32.mrf.mxu0
      %v2691 = vadd.f32 %v773, %v2690
      %v2692 = vpop.f32.mrf.mxu0
      %v2693 = vadd.f32 %v777, %v2692
      %2694 = vmatprep.mubr.bf16.mxu0 %v973
      %2695 = vmatmul.mubr.bf16.gmra.mxu0 %v972
      %v2696 = vpop.f32.mrf.mxu0
      %v2697 = vadd.f32 %v773, %v2696
      %v2698 = vpop.f32.mrf.mxu0
      %v2699 = vadd.f32 %v777, %v2698
      %v2700 = vpop.f32.mrf.mxu0
      %v2701 = vadd.f32 %v773, %v2700
      %v2702 = vpop.f32.mrf.mxu0
      %v2703 = vadd.f32 %v777, %v2702
      %2704 = vmatprep.mubr.bf16.mxu0 %v980
      %2705 = vmatmul.mubr.bf16.gmra.mxu0 %v979
      %v2706 = vpop.f32.mrf.mxu0
      %v2707 = vadd.f32 %v773, %v2706
      %v2708 = vpop.f32.mrf.mxu0
      %v2709 = vadd.f32 %v777, %v2708
      %v2710 = vpop.f32.mrf.mxu0
      %v2711 = vadd.f32 %v773, %v2710
      %v2712 = vpop.f32.mrf.mxu0
      %v2713 = vadd.f32 %v777, %v2712
      %2714 = vmatprep.mubr.bf16.mxu0 %v987
      %2715 = vmatmul.mubr.bf16.gmra.mxu0 %v986
      %v2716 = vpop.f32.mrf.mxu0
      %v2717 = vadd.f32 %v773, %v2716
      %v2718 = vpop.f32.mrf.mxu0
      %v2719 = vadd.f32 %v777, %v2718
      %v2720 = vpop.f32.mrf.mxu0
      %v2721 = vadd.f32 %v773, %v2720
      %v2722 = vpop.f32.mrf.mxu0
      %v2723 = vadd.f32 %v777, %v2722
      %2724 = vmatprep.mubr.bf16.mxu0 %v994
      %2725 = vmatmul.mubr.bf16.gmra.mxu0 %v993
      %v2726 = vpop.f32.mrf.mxu0
      %v2727 = vadd.f32 %v773, %v2726
      %v2728 = vpop.f32.mrf.mxu0
      %v2729 = vadd.f32 %v777, %v2728
      %v2730 = vpop.f32.mrf.mxu0
      %v2731 = vadd.f32 %v773, %v2730
      %v2732 = vpop.f32.mrf.mxu0
      %v2733 = vadd.f32 %v777, %v2732
      %2734 = vmatprep.mubr.bf16.mxu0 %v1001
      %2735 = vmatmul.mubr.bf16.gmra.mxu0 %v1000
      %v2736 = vpop.f32.mrf.mxu0
      %v2737 = vadd.f32 %v773, %v2736
      %v2738 = vpop.f32.mrf.mxu0
      %v2739 = vadd.f32 %v777, %v2738
      %v2740 = vpop.f32.mrf.mxu0
      %v2741 = vadd.f32 %v773, %v2740
      %v2742 = vpop.f32.mrf.mxu0
      %v2743 = vadd.f32 %v777, %v2742
      %2744 = vmatprep.mubr.bf16.mxu0 %v1008
      %2745 = vmatmul.mubr.bf16.gmra.mxu0 %v1007
      %v2746 = vpop.f32.mrf.mxu0
      %v2747 = vadd.f32 %v773, %v2746
      %v2748 = vpop.f32.mrf.mxu0
      %v2749 = vadd.f32 %v777, %v2748
      %v2750 = vpop.f32.mrf.mxu0
      %v2751 = vadd.f32 %v773, %v2750
      %v2752 = vpop.f32.mrf.mxu0
      %v2753 = vadd.f32 %v777, %v2752
      %2754 = vdwg.mxu0
      %2755 = vmatprep.subr.bf16.mxu0 %v1837
      %2756 = vmatpush1.bf16.msra.mxu0 %v1836
      %2757 = vmatprep.subr.bf16.mxu0 %v1833
      %2758 = vmatpush1.bf16.msra.mxu0 %v1832
      %2759 = vmatprep.subr.bf16.mxu0 %v1829
      %2760 = vmatpush1.bf16.msra.mxu0 %v1828
      %2761 = vmatprep.subr.bf16.mxu0 %v1825
      %2762 = vmatpush1.bf16.msra.mxu0 %v1824
      %2763 = vmatprep.subr.bf16.mxu0 %v1821
      %2764 = vmatpush1.bf16.msra.mxu0 %v1820
      %2765 = vmatprep.subr.bf16.mxu0 %v1817
      %2766 = vmatpush1.bf16.msra.mxu0 %v1816
      %2767 = vmatprep.subr.bf16.mxu0 %v1813
      %2768 = vmatpush1.bf16.msra.mxu0 %v1812
      %2769 = vmatprep.subr.bf16.mxu0 %v1809
      %2770 = vmatpush1.bf16.msra.mxu0 %v1808
      %2771 = vmatprep.subr.bf16.mxu0 %v1869
      %2772 = vmatpush2.bf16.msra.mxu0 %v1868
      %2773 = vmatprep.subr.bf16.mxu0 %v1865
      %2774 = vmatpush2.bf16.msra.mxu0 %v1864
      %2775 = vmatprep.subr.bf16.mxu0 %v1861
      %2776 = vmatpush2.bf16.msra.mxu0 %v1860
      %2777 = vmatprep.subr.bf16.mxu0 %v1857
      %2778 = vmatpush2.bf16.msra.mxu0 %v1856
      %2779 = vmatprep.subr.bf16.mxu0 %v1853
      %2780 = vmatpush2.bf16.msra.mxu0 %v1852
      %2781 = vmatprep.subr.bf16.mxu0 %v1849
      %2782 = vmatpush2.bf16.msra.mxu0 %v1848
      %2783 = vmatprep.subr.bf16.mxu0 %v1845
      %2784 = vmatpush2.bf16.msra.mxu0 %v1844
      %2785 = vmatprep.subr.bf16.mxu0 %v1841
      %2786 = vmatpush2.bf16.msra.mxu0 %v1840
      %2787 = vmatprep.mubr.bf16.mxu0 %v961
      %2788 = vmatmul.mubr.bf16.gmra.mxu0 %v960
      %v2789 = vpop.f32.mrf.mxu0
      %v2790 = vadd.f32 %v2677, %v2789
      %v2791 = vpop.f32.mrf.mxu0
      %v2792 = vadd.f32 %v2679, %v2791
      %v2793 = vpop.f32.mrf.mxu0
      %v2794 = vadd.f32 %v2681, %v2793
      %v2795 = vpop.f32.mrf.mxu0
      %v2796 = vadd.f32 %v2683, %v2795
      %2797 = vmatprep.mubr.bf16.mxu0 %v968
      %2798 = vmatmul.mubr.bf16.gmra.mxu0 %v967
      %v2799 = vpop.f32.mrf.mxu0
      %v2800 = vadd.f32 %v2687, %v2799
      %v2801 = vpop.f32.mrf.mxu0
      %v2802 = vadd.f32 %v2689, %v2801
      %v2803 = vpop.f32.mrf.mxu0
      %v2804 = vadd.f32 %v2691, %v2803
      %v2805 = vpop.f32.mrf.mxu0
      %v2806 = vadd.f32 %v2693, %v2805
      %2807 = vmatprep.mubr.bf16.mxu0 %v975
      %2808 = vmatmul.mubr.bf16.gmra.mxu0 %v974
      %v2809 = vpop.f32.mrf.mxu0
      %v2810 = vadd.f32 %v2697, %v2809
      %v2811 = vpop.f32.mrf.mxu0
      %v2812 = vadd.f32 %v2699, %v2811
      %v2813 = vpop.f32.mrf.mxu0
      %v2814 = vadd.f32 %v2701, %v2813
      %v2815 = vpop.f32.mrf.mxu0
      %v2816 = vadd.f32 %v2703, %v2815
      %2817 = vmatprep.mubr.bf16.mxu0 %v982
      %2818 = vmatmul.mubr.bf16.gmra.mxu0 %v981
      %v2819 = vpop.f32.mrf.mxu0
      %v2820 = vadd.f32 %v2707, %v2819
      %v2821 = vpop.f32.mrf.mxu0
      %v2822 = vadd.f32 %v2709, %v2821
      %v2823 = vpop.f32.mrf.mxu0
      %v2824 = vadd.f32 %v2711, %v2823
      %v2825 = vpop.f32.mrf.mxu0
      %v2826 = vadd.f32 %v2713, %v2825
      %2827 = vmatprep.mubr.bf16.mxu0 %v989
      %2828 = vmatmul.mubr.bf16.gmra.mxu0 %v988
      %v2829 = vpop.f32.mrf.mxu0
      %v2830 = vadd.f32 %v2717, %v2829
      %v2831 = vpop.f32.mrf.mxu0
      %v2832 = vadd.f32 %v2719, %v2831
      %v2833 = vpop.f32.mrf.mxu0
      %v2834 = vadd.f32 %v2721, %v2833
      %v2835 = vpop.f32.mrf.mxu0
      %v2836 = vadd.f32 %v2723, %v2835
      %2837 = vmatprep.mubr.bf16.mxu0 %v996
      %2838 = vmatmul.mubr.bf16.gmra.mxu0 %v995
      %v2839 = vpop.f32.mrf.mxu0
      %v2840 = vadd.f32 %v2727, %v2839
      %v2841 = vpop.f32.mrf.mxu0
      %v2842 = vadd.f32 %v2729, %v2841
      %v2843 = vpop.f32.mrf.mxu0
      %v2844 = vadd.f32 %v2731, %v2843
      %v2845 = vpop.f32.mrf.mxu0
      %v2846 = vadd.f32 %v2733, %v2845
      %2847 = vmatprep.mubr.bf16.mxu0 %v1003
      %2848 = vmatmul.mubr.bf16.gmra.mxu0 %v1002
      %v2849 = vpop.f32.mrf.mxu0
      %v2850 = vadd.f32 %v2737, %v2849
      %v2851 = vpop.f32.mrf.mxu0
      %v2852 = vadd.f32 %v2739, %v2851
      %v2853 = vpop.f32.mrf.mxu0
      %v2854 = vadd.f32 %v2741, %v2853
      %v2855 = vpop.f32.mrf.mxu0
      %v2856 = vadd.f32 %v2743, %v2855
      %2857 = vmatprep.mubr.bf16.mxu0 %v1010
      %2858 = vmatmul.mubr.bf16.gmra.mxu0 %v1009
      %v2859 = vpop.f32.mrf.mxu0
      %v2860 = vadd.f32 %v2747, %v2859
      %v2861 = vpop.f32.mrf.mxu0
      %v2862 = vadd.f32 %v2749, %v2861
      %v2863 = vpop.f32.mrf.mxu0
      %v2864 = vadd.f32 %v2751, %v2863
      %v2865 = vpop.f32.mrf.mxu0
      %v2866 = vadd.f32 %v2753, %v2865
      %2867 = vdwg.mxu0
      %2868 = vmatprep.subr.bf16.mxu0 %v1901
      %2869 = vmatpush1.bf16.msra.mxu0 %v1900
      %2870 = vmatprep.subr.bf16.mxu0 %v1897
      %2871 = vmatpush1.bf16.msra.mxu0 %v1896
      %2872 = vmatprep.subr.bf16.mxu0 %v1893
      %2873 = vmatpush1.bf16.msra.mxu0 %v1892
      %2874 = vmatprep.subr.bf16.mxu0 %v1889
      %2875 = vmatpush1.bf16.msra.mxu0 %v1888
      %2876 = vmatprep.subr.bf16.mxu0 %v1885
      %2877 = vmatpush1.bf16.msra.mxu0 %v1884
      %2878 = vmatprep.subr.bf16.mxu0 %v1881
      %2879 = vmatpush1.bf16.msra.mxu0 %v1880
      %2880 = vmatprep.subr.bf16.mxu0 %v1877
      %2881 = vmatpush1.bf16.msra.mxu0 %v1876
      %2882 = vmatprep.subr.bf16.mxu0 %v1873
      %2883 = vmatpush1.bf16.msra.mxu0 %v1872
      %2884 = vmatprep.subr.bf16.mxu0 %v1933
      %2885 = vmatpush2.bf16.msra.mxu0 %v1932
      %2886 = vmatprep.subr.bf16.mxu0 %v1929
      %2887 = vmatpush2.bf16.msra.mxu0 %v1928
      %2888 = vmatprep.subr.bf16.mxu0 %v1925
      %2889 = vmatpush2.bf16.msra.mxu0 %v1924
      %2890 = vmatprep.subr.bf16.mxu0 %v1921
      %2891 = vmatpush2.bf16.msra.mxu0 %v1920
      %2892 = vmatprep.subr.bf16.mxu0 %v1917
      %2893 = vmatpush2.bf16.msra.mxu0 %v1916
      %2894 = vmatprep.subr.bf16.mxu0 %v1913
      %2895 = vmatpush2.bf16.msra.mxu0 %v1912
      %2896 = vmatprep.subr.bf16.mxu0 %v1909
      %2897 = vmatpush2.bf16.msra.mxu0 %v1908
      %2898 = vmatprep.subr.bf16.mxu0 %v1905
      %2899 = vmatpush2.bf16.msra.mxu0 %v1904
      %2900 = vmatprep.mubr.bf16.mxu0 %v963
      %2901 = vmatmul.mubr.bf16.gmra.mxu0 %v962
      %v2902 = vpop.f32.mrf.mxu0
      %v2903 = vadd.f32 %v2790, %v2902
      %v2904 = vpop.f32.mrf.mxu0
      %v2905 = vadd.f32 %v2792, %v2904
      %v2906 = vpop.f32.mrf.mxu0
      %v2907 = vadd.f32 %v2794, %v2906
      %v2908 = vpop.f32.mrf.mxu0
      %v2909 = vadd.f32 %v2796, %v2908
      %2910 = vmatprep.mubr.bf16.mxu0 %v970
      %2911 = vmatmul.mubr.bf16.gmra.mxu0 %v969
      %v2912 = vpop.f32.mrf.mxu0
      %v2913 = vadd.f32 %v2800, %v2912
      %v2914 = vpop.f32.mrf.mxu0
      %v2915 = vadd.f32 %v2802, %v2914
      %v2916 = vpop.f32.mrf.mxu0
      %v2917 = vadd.f32 %v2804, %v2916
      %v2918 = vpop.f32.mrf.mxu0
      %v2919 = vadd.f32 %v2806, %v2918
      %2920 = vmatprep.mubr.bf16.mxu0 %v977
      %2921 = vmatmul.mubr.bf16.gmra.mxu0 %v976
      %v2922 = vpop.f32.mrf.mxu0
      %v2923 = vadd.f32 %v2810, %v2922
      %v2924 = vpop.f32.mrf.mxu0
      %v2925 = vadd.f32 %v2812, %v2924
      %v2926 = vpop.f32.mrf.mxu0
      %v2927 = vadd.f32 %v2814, %v2926
      %v2928 = vpop.f32.mrf.mxu0
      %v2929 = vadd.f32 %v2816, %v2928
      %2930 = vmatprep.mubr.bf16.mxu0 %v984
      %2931 = vmatmul.mubr.bf16.gmra.mxu0 %v983
      %v2932 = vpop.f32.mrf.mxu0
      %v2933 = vadd.f32 %v2820, %v2932
      %v2934 = vpop.f32.mrf.mxu0
      %v2935 = vadd.f32 %v2822, %v2934
      %v2936 = vpop.f32.mrf.mxu0
      %v2937 = vadd.f32 %v2824, %v2936
      %v2938 = vpop.f32.mrf.mxu0
      %v2939 = vadd.f32 %v2826, %v2938
      %2940 = vmatprep.mubr.bf16.mxu0 %v991
      %2941 = vmatmul.mubr.bf16.gmra.mxu0 %v990
      %v2942 = vpop.f32.mrf.mxu0
      %v2943 = vadd.f32 %v2830, %v2942
      %v2944 = vpop.f32.mrf.mxu0
      %v2945 = vadd.f32 %v2832, %v2944
      %v2946 = vpop.f32.mrf.mxu0
      %v2947 = vadd.f32 %v2834, %v2946
      %v2948 = vpop.f32.mrf.mxu0
      %v2949 = vadd.f32 %v2836, %v2948
      %2950 = vmatprep.mubr.bf16.mxu0 %v998
      %2951 = vmatmul.mubr.bf16.gmra.mxu0 %v997
      %v2952 = vpop.f32.mrf.mxu0
      %v2953 = vadd.f32 %v2840, %v2952
      %v2954 = vpop.f32.mrf.mxu0
      %v2955 = vadd.f32 %v2842, %v2954
      %v2956 = vpop.f32.mrf.mxu0
      %v2957 = vadd.f32 %v2844, %v2956
      %v2958 = vpop.f32.mrf.mxu0
      %v2959 = vadd.f32 %v2846, %v2958
      %2960 = vmatprep.mubr.bf16.mxu0 %v1005
      %2961 = vmatmul.mubr.bf16.gmra.mxu0 %v1004
      %v2962 = vpop.f32.mrf.mxu0
      %v2963 = vadd.f32 %v2850, %v2962
      %v2964 = vpop.f32.mrf.mxu0
      %v2965 = vadd.f32 %v2852, %v2964
      %v2966 = vpop.f32.mrf.mxu0
      %v2967 = vadd.f32 %v2854, %v2966
      %v2968 = vpop.f32.mrf.mxu0
      %v2969 = vadd.f32 %v2856, %v2968
      %2970 = vmatprep.mubr.bf16.mxu0 %v1012
      %2971 = vmatmul.mubr.bf16.gmra.mxu0 %v1011
      %v2972 = vpop.f32.mrf.mxu0
      %v2973 = vadd.f32 %v2860, %v2972
      %v2974 = vpop.f32.mrf.mxu0
      %v2975 = vadd.f32 %v2862, %v2974
      %v2976 = vpop.f32.mrf.mxu0
      %v2977 = vadd.f32 %v2864, %v2976
      %v2978 = vpop.f32.mrf.mxu0
      %v2979 = vadd.f32 %v2866, %v2978
      %2980 = vdwg.mxu0
      %2981 = vmatprep.subr.bf16.mxu0 %v1965
      %2982 = vmatpush1.bf16.msra.mxu0 %v1964
      %2983 = vmatprep.subr.bf16.mxu0 %v1961
      %2984 = vmatpush1.bf16.msra.mxu0 %v1960
      %2985 = vmatprep.subr.bf16.mxu0 %v1957
      %2986 = vmatpush1.bf16.msra.mxu0 %v1956
      %2987 = vmatprep.subr.bf16.mxu0 %v1953
      %2988 = vmatpush1.bf16.msra.mxu0 %v1952
      %2989 = vmatprep.subr.bf16.mxu0 %v1949
      %2990 = vmatpush1.bf16.msra.mxu0 %v1948
      %2991 = vmatprep.subr.bf16.mxu0 %v1945
      %2992 = vmatpush1.bf16.msra.mxu0 %v1944
      %2993 = vmatprep.subr.bf16.mxu0 %v1941
      %2994 = vmatpush1.bf16.msra.mxu0 %v1940
      %2995 = vmatprep.subr.bf16.mxu0 %v1937
      %2996 = vmatpush1.bf16.msra.mxu0 %v1936
      %2997 = vmatprep.subr.bf16.mxu0 0
      %2998 = vmatpush2.bf16.msra.mxu0 0
      %2999 = vmatprep.subr.bf16.mxu0 0
      %3000 = vmatpush2.bf16.msra.mxu0 0
      %3001 = vmatprep.subr.bf16.mxu0 0
      %3002 = vmatpush2.bf16.msra.mxu0 0
      %3003 = vmatprep.subr.bf16.mxu0 0
      %3004 = vmatpush2.bf16.msra.mxu0 0
      %3005 = vmatprep.subr.bf16.mxu0 0
      %3006 = vmatpush2.bf16.msra.mxu0 0
      %3007 = vmatprep.subr.bf16.mxu0 0
      %3008 = vmatpush2.bf16.msra.mxu0 0
      %3009 = vmatprep.subr.bf16.mxu0 0
      %3010 = vmatpush2.bf16.msra.mxu0 0
      %3011 = vmatprep.subr.bf16.mxu0 0
      %3012 = vmatpush2.bf16.msra.mxu0 0
      %3013 = vmatprep.mubr.bf16.mxu0 0
      %3014 = vmatmul.mubr.bf16.gmra.mxu0 %v964
      %v3015 = vpop.f32.mrf.mxu0
      %v3016 = vadd.f32 %v2903, %v3015
      %v3017 = vpop.f32.mrf.mxu0
      %v3018 = vadd.f32 %v2905, %v3017
      %v3019 = vpop.f32.mrf.mxu0
      %v3020 = vadd.f32 %v2907, %v3019
      %v3021 = vpop.f32.mrf.mxu0
      %v3022 = vadd.f32 %v2909, %v3021
      %3023 = vmatprep.mubr.bf16.mxu0 0
      %3024 = vmatmul.mubr.bf16.gmra.mxu0 %v971
      %v3025 = vpop.f32.mrf.mxu0
      %v3026 = vadd.f32 %v2913, %v3025
      %v3027 = vpop.f32.mrf.mxu0
      %v3028 = vadd.f32 %v2915, %v3027
      %v3029 = vpop.f32.mrf.mxu0
      %v3030 = vadd.f32 %v2917, %v3029
      %v3031 = vpop.f32.mrf.mxu0
      %v3032 = vadd.f32 %v2919, %v3031
      %3033 = vmatprep.mubr.bf16.mxu0 0
      %3034 = vmatmul.mubr.bf16.gmra.mxu0 %v978
      %v3035 = vpop.f32.mrf.mxu0
      %v3036 = vadd.f32 %v2923, %v3035
      %v3037 = vpop.f32.mrf.mxu0
      %v3038 = vadd.f32 %v2925, %v3037
      %v3039 = vpop.f32.mrf.mxu0
      %v3040 = vadd.f32 %v2927, %v3039
      %v3041 = vpop.f32.mrf.mxu0
      %v3042 = vadd.f32 %v2929, %v3041
      %3043 = vmatprep.mubr.bf16.mxu0 0
      %3044 = vmatmul.mubr.bf16.gmra.mxu0 %v985
      %v3045 = vpop.f32.mrf.mxu0
      %v3046 = vadd.f32 %v2933, %v3045
      %v3047 = vpop.f32.mrf.mxu0
      %v3048 = vadd.f32 %v2935, %v3047
      %v3049 = vpop.f32.mrf.mxu0
      %v3050 = vadd.f32 %v2937, %v3049
      %v3051 = vpop.f32.mrf.mxu0
      %v3052 = vadd.f32 %v2939, %v3051
      %3053 = vmatprep.mubr.bf16.mxu0 0
      %3054 = vmatmul.mubr.bf16.gmra.mxu0 %v992
      %v3055 = vpop.f32.mrf.mxu0
      %v3056 = vadd.f32 %v2943, %v3055
      %v3057 = vpop.f32.mrf.mxu0
      %v3058 = vadd.f32 %v2945, %v3057
      %v3059 = vpop.f32.mrf.mxu0
      %v3060 = vadd.f32 %v2947, %v3059
      %v3061 = vpop.f32.mrf.mxu0
      %v3062 = vadd.f32 %v2949, %v3061
      %3063 = vmatprep.mubr.bf16.mxu0 0
      %3064 = vmatmul.mubr.bf16.gmra.mxu0 %v999
      %v3065 = vpop.f32.mrf.mxu0
      %v3066 = vadd.f32 %v2953, %v3065
      %v3067 = vpop.f32.mrf.mxu0
      %v3068 = vadd.f32 %v2955, %v3067
      %v3069 = vpop.f32.mrf.mxu0
      %v3070 = vadd.f32 %v2957, %v3069
      %v3071 = vpop.f32.mrf.mxu0
      %v3072 = vadd.f32 %v2959, %v3071
      %3073 = vmatprep.mubr.bf16.mxu0 0
      %3074 = vmatmul.mubr.bf16.gmra.mxu0 %v1006
      %v3075 = vpop.f32.mrf.mxu0
      %v3076 = vadd.f32 %v2963, %v3075
      %v3077 = vpop.f32.mrf.mxu0
      %v3078 = vadd.f32 %v2965, %v3077
      %v3079 = vpop.f32.mrf.mxu0
      %v3080 = vadd.f32 %v2967, %v3079
      %v3081 = vpop.f32.mrf.mxu0
      %v3082 = vadd.f32 %v2969, %v3081
      %3083 = vmatprep.mubr.bf16.mxu0 0
      %3084 = vmatmul.mubr.bf16.gmra.mxu0 %v1013
      %v3085 = vpop.f32.mrf.mxu0
      %v3086 = vadd.f32 %v2973, %v3085
      %v3087 = vpop.f32.mrf.mxu0
      %v3088 = vadd.f32 %v2975, %v3087
      %v3089 = vpop.f32.mrf.mxu0
      %v3090 = vadd.f32 %v2977, %v3089
      %v3091 = vpop.f32.mrf.mxu0
      %v3092 = vadd.f32 %v2979, %v3091
      %3093 = vdwg.mxu0
      %v3094 = vmax.f32 %v2564, 0.0
      %v3095 = vmax.f32 %v2566, 0.0
      %v3096 = vmax.f32 %v3016, 0.0
      %v3097 = vmax.f32 %v3018, 0.0
      %v3098 = vmax.f32 %v2568, 0.0
      %v3099 = vmax.f32 %v2570, 0.0
      %v3100 = vmax.f32 %v3020, 0.0
      %v3101 = vmax.f32 %v3022, 0.0
      %v3102 = vmax.f32 %v2574, 0.0
      %v3103 = vmax.f32 %v2576, 0.0
      %v3104 = vmax.f32 %v3026, 0.0
      %v3105 = vmax.f32 %v3028, 0.0
      %v3106 = vmax.f32 %v2578, 0.0
      %v3107 = vmax.f32 %v2580, 0.0
      %v3108 = vmax.f32 %v3030, 0.0
      %v3109 = vmax.f32 %v3032, 0.0
      %v3110 = vmax.f32 %v2584, 0.0
      %v3111 = vmax.f32 %v2586, 0.0
      %v3112 = vmax.f32 %v3036, 0.0
      %v3113 = vmax.f32 %v3038, 0.0
      %v3114 = vmax.f32 %v2588, 0.0
      %v3115 = vmax.f32 %v2590, 0.0
      %v3116 = vmax.f32 %v3040, 0.0
      %v3117 = vmax.f32 %v3042, 0.0
      %v3118 = vmax.f32 %v2594, 0.0
      %v3119 = vmax.f32 %v2596, 0.0
      %v3120 = vmax.f32 %v3046, 0.0
      %v3121 = vmax.f32 %v3048, 0.0
      %v3122 = vmax.f32 %v2598, 0.0
      %v3123 = vmax.f32 %v2600, 0.0
      %v3124 = vmax.f32 %v3050, 0.0
      %v3125 = vmax.f32 %v3052, 0.0
      %v3126 = vmax.f32 %v2604, 0.0
      %v3127 = vmax.f32 %v2606, 0.0
      %v3128 = vmax.f32 %v3056, 0.0
      %v3129 = vmax.f32 %v3058, 0.0
      %v3130 = vmax.f32 %v2608, 0.0
      %v3131 = vmax.f32 %v2610, 0.0
      %v3132 = vmax.f32 %v3060, 0.0
      %v3133 = vmax.f32 %v3062, 0.0
      %v3134 = vmax.f32 %v2614, 0.0
      %v3135 = vmax.f32 %v2616, 0.0
      %v3136 = vmax.f32 %v3066, 0.0
      %v3137 = vmax.f32 %v3068, 0.0
      %v3138 = vmax.f32 %v2618, 0.0
      %v3139 = vmax.f32 %v2620, 0.0
      %v3140 = vmax.f32 %v3070, 0.0
      %v3141 = vmax.f32 %v3072, 0.0
      %v3142 = vmax.f32 %v2624, 0.0
      %v3143 = vmax.f32 %v2626, 0.0
      %v3144 = vmax.f32 %v3076, 0.0
      %v3145 = vmax.f32 %v3078, 0.0
      %v3146 = vmax.f32 %v2628, 0.0
      %v3147 = vmax.f32 %v2630, 0.0
      %v3148 = vmax.f32 %v3080, 0.0
      %v3149 = vmax.f32 %v3082, 0.0
      %v3150 = vmax.f32 %v2634, 0.0
      %v3151 = vmax.f32 %v2636, 0.0
      %v3152 = vmax.f32 %v3086, 0.0
      %v3153 = vmax.f32 %v3088, 0.0
      %v3154 = vmax.f32 %v2638, 0.0
      %v3155 = vmax.f32 %v2640, 0.0
      %v3156 = vmax.f32 %v3090, 0.0
      %v3157 = vmax.f32 %v3092, 0.0
      %v3158 = vpack.c.bf16 %v3098, %v3094
      %v3159 = vpack.c.bf16 %v3099, %v3095
      %v3160 = vpack.c.bf16 %v3100, %v3096
      %v3161 = vpack.c.bf16 %v3101, %v3097
      %v3162 = vpack.c.bf16 %v3106, %v3102
      %v3163 = vpack.c.bf16 %v3107, %v3103
      %v3164 = vpack.c.bf16 %v3108, %v3104
      %v3165 = vpack.c.bf16 %v3109, %v3105
      %v3166 = vpack.c.bf16 %v3114, %v3110
      %v3167 = vpack.c.bf16 %v3115, %v3111
      %v3168 = vpack.c.bf16 %v3116, %v3112
      %v3169 = vpack.c.bf16 %v3117, %v3113
      %v3170 = vpack.c.bf16 %v3122, %v3118
      %v3171 = vpack.c.bf16 %v3123, %v3119
      %v3172 = vpack.c.bf16 %v3124, %v3120
      %v3173 = vpack.c.bf16 %v3125, %v3121
      %v3174 = vpack.c.bf16 %v3130, %v3126
      %v3175 = vpack.c.bf16 %v3131, %v3127
      %v3176 = vpack.c.bf16 %v3132, %v3128
      %v3177 = vpack.c.bf16 %v3133, %v3129
      %v3178 = vpack.c.bf16 %v3138, %v3134
      %v3179 = vpack.c.bf16 %v3139, %v3135
      %v3180 = vpack.c.bf16 %v3140, %v3136
      %v3181 = vpack.c.bf16 %v3141, %v3137
      %v3182 = vpack.c.bf16 %v3146, %v3142
      %v3183 = vpack.c.bf16 %v3147, %v3143
      %v3184 = vpack.c.bf16 %v3148, %v3144
      %v3185 = vpack.c.bf16 %v3149, %v3145
      %v3186 = vpack.c.bf16 %v3154, %v3150
      %v3187 = vpack.c.bf16 %v3155, %v3151
      %v3188 = vpack.c.bf16 %v3156, %v3152
      %v3189 = vpack.c.bf16 %v3157, %v3153
      %v3190 = vld [vmem:[%s4] sm:$0xff]
      %v3191 = vld [vmem:[%s4 + $0x8] sm:$0xff]
      %v3192 = vld [vmem:[%s4 + $0x10] sm:$0xff]
      %v3193 = vld [vmem:[%s4 + $0x18] sm:$0xff]
      %v3194 = vld [vmem:[%s4 + $0x20] sm:$0xff]
      %v3195 = vld [vmem:[%s4 + $0x28] sm:$0xff]
      %v3196 = vld [vmem:[%s4 + $0x30] sm:$0xff]
      %v3197 = vld [vmem:[%s4 + $0x38] sm:$0xff]
      %v3198 = vld [vmem:[%s4 + $0x40] sm:$0xff]
      %v3199 = vld [vmem:[%s4 + $0x48] sm:$0xff]
      %v3200 = vld [vmem:[%s4 + $0x50] sm:$0xff]
      %v3201 = vld [vmem:[%s4 + $0x58] sm:$0xff]
      %v3202 = vld [vmem:[%s4 + $0x60] sm:$0xff]
      %v3203 = vld [vmem:[%s4 + $0x68] sm:$0xff]
      %v3204 = vld [vmem:[%s4 + $0x70] sm:$0xff]
      %v3205 = vld [vmem:[%s4 + $0x78] sm:$0xff]
      %v3206 = vld [vmem:[%s4 + $0x80] sm:$0xff]
      %v3207 = vld [vmem:[%s4 + $0x88] sm:$0xff]
      %v3208 = vld [vmem:[%s4 + $0x90] sm:$0xff]
      %v3209 = vld [vmem:[%s4 + $0x98] sm:$0xff]
      %v3210 = vld [vmem:[%s4 + $0xa0] sm:$0xff]
      %v3211 = vld [vmem:[%s4 + $0xa8] sm:$0xff]
      %v3212 = vld [vmem:[%s4 + $0xb0] sm:$0xff]
      %v3213 = vld [vmem:[%s4 + $0xb8] sm:$0xff]
      %v3214 = vld [vmem:[%s4 + $0xc0] sm:$0xff]
      %v3215 = vld [vmem:[%s4 + $0xc8] sm:$0xff]
      %v3216 = vld [vmem:[%s4 + $0xd0] sm:$0xff]
      %v3217 = vld [vmem:[%s4 + $0xd8] sm:$0xff]
      %v3218 = vld [vmem:[%s4 + $0xe0] sm:$0xff]
      %v3219 = vld [vmem:[%s4 + $0xe8] sm:$0xff]
      %v3220 = vld [vmem:[%s4 + $0xf0] sm:$0xff]
      %v3221 = vld [vmem:[%s4 + $0xf8] sm:$0xff]
      %v3222 = vld [vmem:[%s4 + $0x100] sm:$0xff]
      %v3223 = vld [vmem:[%s4 + $0x108] sm:$0xff]
      %v3224 = vld [vmem:[%s4 + $0x110] sm:$0xff]
      %v3225 = vld [vmem:[%s4 + $0x118] sm:$0xff]
      %v3226 = vld [vmem:[%s4 + $0x120] sm:$0xff]
      %v3227 = vld [vmem:[%s4 + $0x128] sm:$0xff]
      %v3228 = vld [vmem:[%s4 + $0x130] sm:$0xff]
      %v3229 = vld [vmem:[%s4 + $0x138] sm:$0xff]
      %v3230 = vld [vmem:[%s4 + $0x140] sm:$0xff]
      %v3231 = vld [vmem:[%s4 + $0x148] sm:$0xff]
      %v3232 = vld [vmem:[%s4 + $0x150] sm:$0xff]
      %v3233 = vld [vmem:[%s4 + $0x158] sm:$0xff]
      %v3234 = vld [vmem:[%s4 + $0x160] sm:$0xff]
      %v3235 = vld [vmem:[%s4 + $0x168] sm:$0xff]
      %v3236 = vld [vmem:[%s4 + $0x170] sm:$0xff]
      %v3237 = vld [vmem:[%s4 + $0x178] sm:$0xff]
      %v3238 = vld [vmem:[%s4 + $0x180] sm:$0xff]
      %v3239 = vld [vmem:[%s4 + $0x188] sm:$0xff]
      %v3240 = vld [vmem:[%s4 + $0x190] sm:$0xff]
      %v3241 = vld [vmem:[%s4 + $0x198] sm:$0xff]
      %v3242 = vld [vmem:[%s4 + $0x1a0] sm:$0xff]
      %v3243 = vld [vmem:[%s4 + $0x1a8] sm:$0xff]
      %v3244 = vld [vmem:[%s4 + $0x1b0] sm:$0xff]
      %v3245 = vld [vmem:[%s4 + $0x1b8] sm:$0xff]
      %v3246 = vld [vmem:[%s4 + $0x1c0] sm:$0xff]
      %v3247 = vld [vmem:[%s4 + $0x1c8] sm:$0xff]
      %v3248 = vld [vmem:[%s4 + $0x1d0] sm:$0xff]
      %v3249 = vld [vmem:[%s4 + $0x1d8] sm:$0xff]
      %v3250 = vld [vmem:[%s4 + $0x1e0] sm:$0xff]
      %v3251 = vld [vmem:[%s4 + $0x1e8] sm:$0xff]
      %v3252 = vld [vmem:[%s4 + $0x1f0] sm:$0xff]
      %v3253 = vld [vmem:[%s4 + $0x1f8] sm:$0xff]
      %v3254 = vld [vmem:[%s5] sm:$0x3]
      %v3256 = vlaneseq
      %v3257 = vshrl.u32 %v3256, 7
      %v3258 = vsub.s32 0, %v3257
      %v3259 = vrot.slane %v3254, %v3258
      %v3260 = vlaneseq
      %v3261 = vshrl.u32 %v3260, 7
      %v3262 = vsub.s32 1, %v3261
      %v3263 = vrot.slane %v3254, %v3262
      %v3330 = vunpack.c.l.b16 %v3190
      %v3331 = vunpack.c.h.b16 %v3190
      %v3332 = vunpack.c.l.b16 %v3191
      %v3333 = vunpack.c.h.b16 %v3191
      %v3334 = vunpack.c.l.b16 %v3192
      %v3335 = vunpack.c.h.b16 %v3192
      %v3336 = vunpack.c.l.b16 %v3193
      %v3337 = vunpack.c.h.b16 %v3193
      %v3338 = vunpack.c.l.b16 %v3194
      %v3339 = vunpack.c.h.b16 %v3194
      %v3340 = vunpack.c.l.b16 %v3195
      %v3341 = vunpack.c.h.b16 %v3195
      %v3342 = vunpack.c.l.b16 %v3196
      %v3343 = vunpack.c.h.b16 %v3196
      %v3344 = vunpack.c.l.b16 %v3197
      %v3345 = vunpack.c.h.b16 %v3197
      %v3346 = vunpack.c.l.b16 %v3198
      %v3347 = vunpack.c.h.b16 %v3198
      %v3348 = vunpack.c.l.b16 %v3199
      %v3349 = vunpack.c.h.b16 %v3199
      %v3350 = vunpack.c.l.b16 %v3200
      %v3351 = vunpack.c.h.b16 %v3200
      %v3352 = vunpack.c.l.b16 %v3201
      %v3353 = vunpack.c.h.b16 %v3201
      %v3354 = vunpack.c.l.b16 %v3202
      %v3355 = vunpack.c.h.b16 %v3202
      %v3356 = vunpack.c.l.b16 %v3203
      %v3357 = vunpack.c.h.b16 %v3203
      %v3358 = vunpack.c.l.b16 %v3204
      %v3359 = vunpack.c.h.b16 %v3204
      %v3360 = vunpack.c.l.b16 %v3205
      %v3361 = vunpack.c.h.b16 %v3205
      %v3362 = vunpack.c.l.b16 %v3206
      %v3363 = vunpack.c.h.b16 %v3206
      %v3364 = vunpack.c.l.b16 %v3207
      %v3365 = vunpack.c.h.b16 %v3207
      %v3366 = vunpack.c.l.b16 %v3208
      %v3367 = vunpack.c.h.b16 %v3208
      %v3368 = vunpack.c.l.b16 %v3209
      %v3369 = vunpack.c.h.b16 %v3209
      %v3370 = vunpack.c.l.b16 %v3210
      %v3371 = vunpack.c.h.b16 %v3210
      %v3372 = vunpack.c.l.b16 %v3211
      %v3373 = vunpack.c.h.b16 %v3211
      %v3374 = vunpack.c.l.b16 %v3212
      %v3375 = vunpack.c.h.b16 %v3212
      %v3376 = vunpack.c.l.b16 %v3213
      %v3377 = vunpack.c.h.b16 %v3213
      %v3378 = vunpack.c.l.b16 %v3214
      %v3379 = vunpack.c.h.b16 %v3214
      %v3380 = vunpack.c.l.b16 %v3215
      %v3381 = vunpack.c.h.b16 %v3215
      %v3382 = vunpack.c.l.b16 %v3216
      %v3383 = vunpack.c.h.b16 %v3216
      %v3384 = vunpack.c.l.b16 %v3217
      %v3385 = vunpack.c.h.b16 %v3217
      %v3386 = vunpack.c.l.b16 %v3218
      %v3387 = vunpack.c.h.b16 %v3218
      %v3388 = vunpack.c.l.b16 %v3219
      %v3389 = vunpack.c.h.b16 %v3219
      %v3390 = vunpack.c.l.b16 %v3220
      %v3391 = vunpack.c.h.b16 %v3220
      %v3392 = vunpack.c.l.b16 %v3221
      %v3393 = vunpack.c.h.b16 %v3221
      %v3394 = vunpack.c.l.b16 %v3222
      %v3395 = vunpack.c.h.b16 %v3222
      %v3396 = vunpack.c.l.b16 %v3223
      %v3397 = vunpack.c.h.b16 %v3223
      %v3398 = vunpack.c.l.b16 %v3224
      %v3399 = vunpack.c.h.b16 %v3224
      %v3400 = vunpack.c.l.b16 %v3225
      %v3401 = vunpack.c.h.b16 %v3225
      %v3402 = vunpack.c.l.b16 %v3226
      %v3403 = vunpack.c.h.b16 %v3226
      %v3404 = vunpack.c.l.b16 %v3227
      %v3405 = vunpack.c.h.b16 %v3227
      %v3406 = vunpack.c.l.b16 %v3228
      %v3407 = vunpack.c.h.b16 %v3228
      %v3408 = vunpack.c.l.b16 %v3229
      %v3409 = vunpack.c.h.b16 %v3229
      %v3410 = vunpack.c.l.b16 %v3230
      %v3411 = vunpack.c.h.b16 %v3230
      %v3412 = vunpack.c.l.b16 %v3231
      %v3413 = vunpack.c.h.b16 %v3231
      %v3414 = vunpack.c.l.b16 %v3232
      %v3415 = vunpack.c.h.b16 %v3232
      %v3416 = vunpack.c.l.b16 %v3233
      %v3417 = vunpack.c.h.b16 %v3233
      %v3418 = vunpack.c.l.b16 %v3234
      %v3419 = vunpack.c.h.b16 %v3234
      %v3420 = vunpack.c.l.b16 %v3235
      %v3421 = vunpack.c.h.b16 %v3235
      %v3422 = vunpack.c.l.b16 %v3236
      %v3423 = vunpack.c.h.b16 %v3236
      %v3424 = vunpack.c.l.b16 %v3237
      %v3425 = vunpack.c.h.b16 %v3237
      %v3426 = vunpack.c.l.b16 %v3238
      %v3427 = vunpack.c.h.b16 %v3238
      %v3428 = vunpack.c.l.b16 %v3239
      %v3429 = vunpack.c.h.b16 %v3239
      %v3430 = vunpack.c.l.b16 %v3240
      %v3431 = vunpack.c.h.b16 %v3240
      %v3432 = vunpack.c.l.b16 %v3241
      %v3433 = vunpack.c.h.b16 %v3241
      %v3434 = vunpack.c.l.b16 %v3242
      %v3435 = vunpack.c.h.b16 %v3242
      %v3436 = vunpack.c.l.b16 %v3243
      %v3437 = vunpack.c.h.b16 %v3243
      %v3438 = vunpack.c.l.b16 %v3244
      %v3439 = vunpack.c.h.b16 %v3244
      %v3440 = vunpack.c.l.b16 %v3245
      %v3441 = vunpack.c.h.b16 %v3245
      %v3442 = vunpack.c.l.b16 %v3246
      %v3443 = vunpack.c.h.b16 %v3246
      %v3444 = vunpack.c.l.b16 %v3247
      %v3445 = vunpack.c.h.b16 %v3247
      %v3446 = vunpack.c.l.b16 %v3248
      %v3447 = vunpack.c.h.b16 %v3248
      %v3448 = vunpack.c.l.b16 %v3249
      %v3449 = vunpack.c.h.b16 %v3249
      %v3450 = vunpack.c.l.b16 %v3250
      %v3451 = vunpack.c.h.b16 %v3250
      %v3452 = vunpack.c.l.b16 %v3251
      %v3453 = vunpack.c.h.b16 %v3251
      %v3454 = vunpack.c.l.b16 %v3252
      %v3455 = vunpack.c.h.b16 %v3252
      %v3456 = vunpack.c.l.b16 %v3253
      %v3457 = vunpack.c.h.b16 %v3253
      %v3458 = vpack.c.b16 %v3332, %v3330
      %v3459 = vpack.c.b16 %v3333, %v3331
      %v3460 = vpack.c.b16 %v3336, %v3334
      %v3461 = vpack.c.b16 %v3337, %v3335
      %v3462 = vpack.c.b16 %v3340, %v3338
      %v3463 = vpack.c.b16 %v3341, %v3339
      %v3464 = vpack.c.b16 %v3344, %v3342
      %v3465 = vpack.c.b16 %v3345, %v3343
      %v3466 = vpack.c.b16 %v3348, %v3346
      %v3467 = vpack.c.b16 %v3349, %v3347
      %v3468 = vpack.c.b16 %v3352, %v3350
      %v3469 = vpack.c.b16 %v3353, %v3351
      %v3470 = vpack.c.b16 %v3356, %v3354
      %v3471 = vpack.c.b16 %v3357, %v3355
      %v3472 = vpack.c.b16 %v3360, %v3358
      %v3473 = vpack.c.b16 %v3361, %v3359
      %v3474 = vpack.c.b16 %v3364, %v3362
      %v3475 = vpack.c.b16 %v3365, %v3363
      %v3476 = vpack.c.b16 %v3368, %v3366
      %v3477 = vpack.c.b16 %v3369, %v3367
      %v3478 = vpack.c.b16 %v3372, %v3370
      %v3479 = vpack.c.b16 %v3373, %v3371
      %v3480 = vpack.c.b16 %v3376, %v3374
      %v3481 = vpack.c.b16 %v3377, %v3375
      %v3482 = vpack.c.b16 %v3380, %v3378
      %v3483 = vpack.c.b16 %v3381, %v3379
      %v3484 = vpack.c.b16 %v3384, %v3382
      %v3485 = vpack.c.b16 %v3385, %v3383
      %v3486 = vpack.c.b16 %v3388, %v3386
      %v3487 = vpack.c.b16 %v3389, %v3387
      %v3488 = vpack.c.b16 %v3392, %v3390
      %v3489 = vpack.c.b16 %v3393, %v3391
      %v3490 = vpack.c.b16 %v3396, %v3394
      %v3491 = vpack.c.b16 %v3397, %v3395
      %v3492 = vpack.c.b16 %v3400, %v3398
      %v3493 = vpack.c.b16 %v3401, %v3399
      %v3494 = vpack.c.b16 %v3404, %v3402
      %v3495 = vpack.c.b16 %v3405, %v3403
      %v3496 = vpack.c.b16 %v3408, %v3406
      %v3497 = vpack.c.b16 %v3409, %v3407
      %v3498 = vpack.c.b16 %v3412, %v3410
      %v3499 = vpack.c.b16 %v3413, %v3411
      %v3500 = vpack.c.b16 %v3416, %v3414
      %v3501 = vpack.c.b16 %v3417, %v3415
      %v3502 = vpack.c.b16 %v3420, %v3418
      %v3503 = vpack.c.b16 %v3421, %v3419
      %v3504 = vpack.c.b16 %v3424, %v3422
      %v3505 = vpack.c.b16 %v3425, %v3423
      %v3506 = vpack.c.b16 %v3428, %v3426
      %v3507 = vpack.c.b16 %v3429, %v3427
      %v3508 = vpack.c.b16 %v3432, %v3430
      %v3509 = vpack.c.b16 %v3433, %v3431
      %v3510 = vpack.c.b16 %v3436, %v3434
      %v3511 = vpack.c.b16 %v3437, %v3435
      %v3512 = vpack.c.b16 %v3440, %v3438
      %v3513 = vpack.c.b16 %v3441, %v3439
      %v3514 = vpack.c.b16 %v3444, %v3442
      %v3515 = vpack.c.b16 %v3445, %v3443
      %v3516 = vpack.c.b16 %v3448, %v3446
      %v3517 = vpack.c.b16 %v3449, %v3447
      %v3518 = vpack.c.b16 %v3452, %v3450
      %v3519 = vpack.c.b16 %v3453, %v3451
      %v3520 = vpack.c.b16 %v3456, %v3454
      %v3521 = vpack.c.b16 %v3457, %v3455
      %3586 = vmatprep.subr.bf16.mxu0 %v3473
      %3587 = vmatpush1.bf16.msra.mxu0 %v3472
      %3588 = vmatprep.subr.bf16.mxu0 %v3471
      %3589 = vmatpush1.bf16.msra.mxu0 %v3470
      %3590 = vmatprep.subr.bf16.mxu0 %v3469
      %3591 = vmatpush1.bf16.msra.mxu0 %v3468
      %3592 = vmatprep.subr.bf16.mxu0 %v3467
      %3593 = vmatpush1.bf16.msra.mxu0 %v3466
      %3594 = vmatprep.subr.bf16.mxu0 %v3465
      %3595 = vmatpush1.bf16.msra.mxu0 %v3464
      %3596 = vmatprep.subr.bf16.mxu0 %v3463
      %3597 = vmatpush1.bf16.msra.mxu0 %v3462
      %3598 = vmatprep.subr.bf16.mxu0 %v3461
      %3599 = vmatpush1.bf16.msra.mxu0 %v3460
      %3600 = vmatprep.subr.bf16.mxu0 %v3459
      %3601 = vmatpush1.bf16.msra.mxu0 %v3458
      %3602 = vmatprep.subr.bf16.mxu0 %v3489
      %3603 = vmatpush2.bf16.msra.mxu0 %v3488
      %3604 = vmatprep.subr.bf16.mxu0 %v3487
      %3605 = vmatpush2.bf16.msra.mxu0 %v3486
      %3606 = vmatprep.subr.bf16.mxu0 %v3485
      %3607 = vmatpush2.bf16.msra.mxu0 %v3484
      %3608 = vmatprep.subr.bf16.mxu0 %v3483
      %3609 = vmatpush2.bf16.msra.mxu0 %v3482
      %3610 = vmatprep.subr.bf16.mxu0 %v3481
      %3611 = vmatpush2.bf16.msra.mxu0 %v3480
      %3612 = vmatprep.subr.bf16.mxu0 %v3479
      %3613 = vmatpush2.bf16.msra.mxu0 %v3478
      %3614 = vmatprep.subr.bf16.mxu0 %v3477
      %3615 = vmatpush2.bf16.msra.mxu0 %v3476
      %3616 = vmatprep.subr.bf16.mxu0 %v3475
      %3617 = vmatpush2.bf16.msra.mxu0 %v3474
      %3618 = vmatprep.mubr.bf16.mxu0 %v3159
      %3619 = vmatmul.mubr.bf16.gmra.mxu0 %v3158
      %v3620 = vpop.f32.mrf.mxu0
      %v3621 = vadd.f32 %v3259, %v3620
      %v3622 = vpop.f32.mrf.mxu0
      %v3623 = vadd.f32 %v3263, %v3622
      %v3624 = vpop.f32.mrf.mxu0
      %v3625 = vadd.f32 %v3259, %v3624
      %v3626 = vpop.f32.mrf.mxu0
      %v3627 = vadd.f32 %v3263, %v3626
      %3628 = vmatprep.mubr.bf16.mxu0 %v3163
      %3629 = vmatmul.mubr.bf16.gmra.mxu0 %v3162
      %v3630 = vpop.f32.mrf.mxu0
      %v3631 = vadd.f32 %v3259, %v3630
      %v3632 = vpop.f32.mrf.mxu0
      %v3633 = vadd.f32 %v3263, %v3632
      %v3634 = vpop.f32.mrf.mxu0
      %v3635 = vadd.f32 %v3259, %v3634
      %v3636 = vpop.f32.mrf.mxu0
      %v3637 = vadd.f32 %v3263, %v3636
      %3638 = vmatprep.mubr.bf16.mxu0 %v3167
      %3639 = vmatmul.mubr.bf16.gmra.mxu0 %v3166
      %v3640 = vpop.f32.mrf.mxu0
      %v3641 = vadd.f32 %v3259, %v3640
      %v3642 = vpop.f32.mrf.mxu0
      %v3643 = vadd.f32 %v3263, %v3642
      %v3644 = vpop.f32.mrf.mxu0
      %v3645 = vadd.f32 %v3259, %v3644
      %v3646 = vpop.f32.mrf.mxu0
      %v3647 = vadd.f32 %v3263, %v3646
      %3648 = vmatprep.mubr.bf16.mxu0 %v3171
      %3649 = vmatmul.mubr.bf16.gmra.mxu0 %v3170
      %v3650 = vpop.f32.mrf.mxu0
      %v3651 = vadd.f32 %v3259, %v3650
      %v3652 = vpop.f32.mrf.mxu0
      %v3653 = vadd.f32 %v3263, %v3652
      %v3654 = vpop.f32.mrf.mxu0
      %v3655 = vadd.f32 %v3259, %v3654
      %v3656 = vpop.f32.mrf.mxu0
      %v3657 = vadd.f32 %v3263, %v3656
      %3658 = vmatprep.mubr.bf16.mxu0 %v3175
      %3659 = vmatmul.mubr.bf16.gmra.mxu0 %v3174
      %v3660 = vpop.f32.mrf.mxu0
      %v3661 = vadd.f32 %v3259, %v3660
      %v3662 = vpop.f32.mrf.mxu0
      %v3663 = vadd.f32 %v3263, %v3662
      %v3664 = vpop.f32.mrf.mxu0
      %v3665 = vadd.f32 %v3259, %v3664
      %v3666 = vpop.f32.mrf.mxu0
      %v3667 = vadd.f32 %v3263, %v3666
      %3668 = vmatprep.mubr.bf16.mxu0 %v3179
      %3669 = vmatmul.mubr.bf16.gmra.mxu0 %v3178
      %v3670 = vpop.f32.mrf.mxu0
      %v3671 = vadd.f32 %v3259, %v3670
      %v3672 = vpop.f32.mrf.mxu0
      %v3673 = vadd.f32 %v3263, %v3672
      %v3674 = vpop.f32.mrf.mxu0
      %v3675 = vadd.f32 %v3259, %v3674
      %v3676 = vpop.f32.mrf.mxu0
      %v3677 = vadd.f32 %v3263, %v3676
      %3678 = vmatprep.mubr.bf16.mxu0 %v3183
      %3679 = vmatmul.mubr.bf16.gmra.mxu0 %v3182
      %v3680 = vpop.f32.mrf.mxu0
      %v3681 = vadd.f32 %v3259, %v3680
      %v3682 = vpop.f32.mrf.mxu0
      %v3683 = vadd.f32 %v3263, %v3682
      %v3684 = vpop.f32.mrf.mxu0
      %v3685 = vadd.f32 %v3259, %v3684
      %v3686 = vpop.f32.mrf.mxu0
      %v3687 = vadd.f32 %v3263, %v3686
      %3688 = vmatprep.mubr.bf16.mxu0 %v3187
      %3689 = vmatmul.mubr.bf16.gmra.mxu0 %v3186
      %v3690 = vpop.f32.mrf.mxu0
      %v3691 = vadd.f32 %v3259, %v3690
      %v3692 = vpop.f32.mrf.mxu0
      %v3693 = vadd.f32 %v3263, %v3692
      %v3694 = vpop.f32.mrf.mxu0
      %v3695 = vadd.f32 %v3259, %v3694
      %v3696 = vpop.f32.mrf.mxu0
      %v3697 = vadd.f32 %v3263, %v3696
      %3698 = vdwg.mxu0
      %3699 = vmatprep.subr.bf16.mxu0 %v3505
      %3700 = vmatpush1.bf16.msra.mxu0 %v3504
      %3701 = vmatprep.subr.bf16.mxu0 %v3503
      %3702 = vmatpush1.bf16.msra.mxu0 %v3502
      %3703 = vmatprep.subr.bf16.mxu0 %v3501
      %3704 = vmatpush1.bf16.msra.mxu0 %v3500
      %3705 = vmatprep.subr.bf16.mxu0 %v3499
      %3706 = vmatpush1.bf16.msra.mxu0 %v3498
      %3707 = vmatprep.subr.bf16.mxu0 %v3497
      %3708 = vmatpush1.bf16.msra.mxu0 %v3496
      %3709 = vmatprep.subr.bf16.mxu0 %v3495
      %3710 = vmatpush1.bf16.msra.mxu0 %v3494
      %3711 = vmatprep.subr.bf16.mxu0 %v3493
      %3712 = vmatpush1.bf16.msra.mxu0 %v3492
      %3713 = vmatprep.subr.bf16.mxu0 %v3491
      %3714 = vmatpush1.bf16.msra.mxu0 %v3490
      %3715 = vmatprep.subr.bf16.mxu0 %v3521
      %3716 = vmatpush2.bf16.msra.mxu0 %v3520
      %3717 = vmatprep.subr.bf16.mxu0 %v3519
      %3718 = vmatpush2.bf16.msra.mxu0 %v3518
      %3719 = vmatprep.subr.bf16.mxu0 %v3517
      %3720 = vmatpush2.bf16.msra.mxu0 %v3516
      %3721 = vmatprep.subr.bf16.mxu0 %v3515
      %3722 = vmatpush2.bf16.msra.mxu0 %v3514
      %3723 = vmatprep.subr.bf16.mxu0 %v3513
      %3724 = vmatpush2.bf16.msra.mxu0 %v3512
      %3725 = vmatprep.subr.bf16.mxu0 %v3511
      %3726 = vmatpush2.bf16.msra.mxu0 %v3510
      %3727 = vmatprep.subr.bf16.mxu0 %v3509
      %3728 = vmatpush2.bf16.msra.mxu0 %v3508
      %3729 = vmatprep.subr.bf16.mxu0 %v3507
      %3730 = vmatpush2.bf16.msra.mxu0 %v3506
      %3731 = vmatprep.mubr.bf16.mxu0 %v3161
      %3732 = vmatmul.mubr.bf16.gmra.mxu0 %v3160
      %v3733 = vpop.f32.mrf.mxu0
      %v3734 = vadd.f32 %v3621, %v3733
      %v3735 = vpop.f32.mrf.mxu0
      %v3736 = vadd.f32 %v3623, %v3735
      %v3737 = vpop.f32.mrf.mxu0
      %v3738 = vadd.f32 %v3625, %v3737
      %v3739 = vpop.f32.mrf.mxu0
      %v3740 = vadd.f32 %v3627, %v3739
      %3741 = vmatprep.mubr.bf16.mxu0 %v3165
      %3742 = vmatmul.mubr.bf16.gmra.mxu0 %v3164
      %v3743 = vpop.f32.mrf.mxu0
      %v3744 = vadd.f32 %v3631, %v3743
      %v3745 = vpop.f32.mrf.mxu0
      %v3746 = vadd.f32 %v3633, %v3745
      %v3747 = vpop.f32.mrf.mxu0
      %v3748 = vadd.f32 %v3635, %v3747
      %v3749 = vpop.f32.mrf.mxu0
      %v3750 = vadd.f32 %v3637, %v3749
      %3751 = vmatprep.mubr.bf16.mxu0 %v3169
      %3752 = vmatmul.mubr.bf16.gmra.mxu0 %v3168
      %v3753 = vpop.f32.mrf.mxu0
      %v3754 = vadd.f32 %v3641, %v3753
      %v3755 = vpop.f32.mrf.mxu0
      %v3756 = vadd.f32 %v3643, %v3755
      %v3757 = vpop.f32.mrf.mxu0
      %v3758 = vadd.f32 %v3645, %v3757
      %v3759 = vpop.f32.mrf.mxu0
      %v3760 = vadd.f32 %v3647, %v3759
      %3761 = vmatprep.mubr.bf16.mxu0 %v3173
      %3762 = vmatmul.mubr.bf16.gmra.mxu0 %v3172
      %v3763 = vpop.f32.mrf.mxu0
      %v3764 = vadd.f32 %v3651, %v3763
      %v3765 = vpop.f32.mrf.mxu0
      %v3766 = vadd.f32 %v3653, %v3765
      %v3767 = vpop.f32.mrf.mxu0
      %v3768 = vadd.f32 %v3655, %v3767
      %v3769 = vpop.f32.mrf.mxu0
      %v3770 = vadd.f32 %v3657, %v3769
      %3771 = vmatprep.mubr.bf16.mxu0 %v3177
      %3772 = vmatmul.mubr.bf16.gmra.mxu0 %v3176
      %v3773 = vpop.f32.mrf.mxu0
      %v3774 = vadd.f32 %v3661, %v3773
      %v3775 = vpop.f32.mrf.mxu0
      %v3776 = vadd.f32 %v3663, %v3775
      %v3777 = vpop.f32.mrf.mxu0
      %v3778 = vadd.f32 %v3665, %v3777
      %v3779 = vpop.f32.mrf.mxu0
      %v3780 = vadd.f32 %v3667, %v3779
      %3781 = vmatprep.mubr.bf16.mxu0 %v3181
      %3782 = vmatmul.mubr.bf16.gmra.mxu0 %v3180
      %v3783 = vpop.f32.mrf.mxu0
      %v3784 = vadd.f32 %v3671, %v3783
      %v3785 = vpop.f32.mrf.mxu0
      %v3786 = vadd.f32 %v3673, %v3785
      %v3787 = vpop.f32.mrf.mxu0
      %v3788 = vadd.f32 %v3675, %v3787
      %v3789 = vpop.f32.mrf.mxu0
      %v3790 = vadd.f32 %v3677, %v3789
      %3791 = vmatprep.mubr.bf16.mxu0 %v3185
      %3792 = vmatmul.mubr.bf16.gmra.mxu0 %v3184
      %v3793 = vpop.f32.mrf.mxu0
      %v3794 = vadd.f32 %v3681, %v3793
      %v3795 = vpop.f32.mrf.mxu0
      %v3796 = vadd.f32 %v3683, %v3795
      %v3797 = vpop.f32.mrf.mxu0
      %v3798 = vadd.f32 %v3685, %v3797
      %v3799 = vpop.f32.mrf.mxu0
      %v3800 = vadd.f32 %v3687, %v3799
      %3801 = vmatprep.mubr.bf16.mxu0 %v3189
      %3802 = vmatmul.mubr.bf16.gmra.mxu0 %v3188
      %v3803 = vpop.f32.mrf.mxu0
      %v3804 = vadd.f32 %v3691, %v3803
      %v3805 = vpop.f32.mrf.mxu0
      %v3806 = vadd.f32 %v3693, %v3805
      %v3807 = vpop.f32.mrf.mxu0
      %v3808 = vadd.f32 %v3695, %v3807
      %v3809 = vpop.f32.mrf.mxu0
      %v3810 = vadd.f32 %v3697, %v3809
      %3811 = vdwg.mxu0
      %v3812 = vmul.f32 %v3736, 0.5
      %v3813 = vmul.f32 %v3740, 0.5
      %v3814 = vmul.f32 %v3746, 0.5
      %v3815 = vmul.f32 %v3750, 0.5
      %v3816 = vmul.f32 %v3756, 0.5
      %v3817 = vmul.f32 %v3760, 0.5
      %v3818 = vmul.f32 %v3766, 0.5
      %v3819 = vmul.f32 %v3770, 0.5
      %v3820 = vmul.f32 %v3776, 0.5
      %v3821 = vmul.f32 %v3780, 0.5
      %v3822 = vmul.f32 %v3786, 0.5
      %v3823 = vmul.f32 %v3790, 0.5
      %v3824 = vmul.f32 %v3796, 0.5
      %v3825 = vmul.f32 %v3800, 0.5
      %v3826 = vmul.f32 %v3806, 0.5
      %v3827 = vmul.f32 %v3810, 0.5
      %v3828 = vmul.f32 %v3812, 1.442695
      %v3829 = vpow.pop %v3828
      %v3830 = vmul.f32 %v3813, 1.442695
      %v3831 = vpow.pop %v3830
      %v3832 = vmul.f32 %v3814, 1.442695
      %v3833 = vpow.pop %v3832
      %v3834 = vmul.f32 %v3815, 1.442695
      %v3835 = vpow.pop %v3834
      %v3836 = vmul.f32 %v3816, 1.442695
      %v3837 = vpow.pop %v3836
      %v3838 = vmul.f32 %v3817, 1.442695
      %v3839 = vpow.pop %v3838
      %v3840 = vmul.f32 %v3818, 1.442695
      %v3841 = vpow.pop %v3840
      %v3842 = vmul.f32 %v3819, 1.442695
      %v3843 = vpow.pop %v3842
      %v3844 = vmul.f32 %v3820, 1.442695
      %v3845 = vpow.pop %v3844
      %v3846 = vmul.f32 %v3821, 1.442695
      %v3847 = vpow.pop %v3846
      %v3848 = vmul.f32 %v3822, 1.442695
      %v3849 = vpow.pop %v3848
      %v3850 = vmul.f32 %v3823, 1.442695
      %v3851 = vpow.pop %v3850
      %v3852 = vmul.f32 %v3824, 1.442695
      %v3853 = vpow.pop %v3852
      %v3854 = vmul.f32 %v3825, 1.442695
      %v3855 = vpow.pop %v3854
      %v3856 = vmul.f32 %v3826, 1.442695
      %v3857 = vpow.pop %v3856
      %v3858 = vmul.f32 %v3827, 1.442695
      %v3859 = vpow.pop %v3858
      %v3860 = vld [vmem:[%s450] sm:$0xff]
      %v3861 = vld [vmem:[%s450 + $0x8] sm:$0xff]
      %v3862 = vld [vmem:[%s450 + $0x10] sm:$0xff]
      %v3863 = vld [vmem:[%s450 + $0x18] sm:$0xff]
      %v3864 = vld [vmem:[%s450 + $0x20] sm:$0xff]
      %v3865 = vld [vmem:[%s450 + $0x28] sm:$0xff]
      %v3866 = vld [vmem:[%s450 + $0x30] sm:$0xff]
      %v3867 = vld [vmem:[%s450 + $0x38] sm:$0xff]
      %v3868 = vld [vmem:[%s450 + $0x40] sm:$0xff]
      %v3869 = vld [vmem:[%s450 + $0x48] sm:$0xff]
      %v3870 = vld [vmem:[%s450 + $0x50] sm:$0xff]
      %v3871 = vld [vmem:[%s450 + $0x58] sm:$0xff]
      %v3872 = vld [vmem:[%s450 + $0x60] sm:$0xff]
      %v3873 = vld [vmem:[%s450 + $0x68] sm:$0xff]
      %v3874 = vld [vmem:[%s450 + $0x70] sm:$0xff]
      %v3875 = vld [vmem:[%s450 + $0x78] sm:$0xff]
      %v3876 = vmul.f32 %v3860, %v3829
      %v3877 = vmul.f32 %v3861, %v3831
      %v3878 = vmul.f32 %v3862, %v3833
      %v3879 = vmul.f32 %v3863, %v3835
      %v3880 = vmul.f32 %v3864, %v3837
      %v3881 = vmul.f32 %v3865, %v3839
      %v3882 = vmul.f32 %v3866, %v3841
      %v3883 = vmul.f32 %v3867, %v3843
      %v3884 = vmul.f32 %v3868, %v3845
      %v3885 = vmul.f32 %v3869, %v3847
      %v3886 = vmul.f32 %v3870, %v3849
      %v3887 = vmul.f32 %v3871, %v3851
      %v3888 = vmul.f32 %v3872, %v3853
      %v3889 = vmul.f32 %v3873, %v3855
      %v3890 = vmul.f32 %v3874, %v3857
      %v3891 = vmul.f32 %v3875, %v3859
      %v3892 = vadd.f32 %v3734, %v3876
      %v3893 = vadd.f32 %v3738, %v3877
      %v3894 = vadd.f32 %v3744, %v3878
      %v3895 = vadd.f32 %v3748, %v3879
      %v3896 = vadd.f32 %v3754, %v3880
      %v3897 = vadd.f32 %v3758, %v3881
      %v3898 = vadd.f32 %v3764, %v3882
      %v3899 = vadd.f32 %v3768, %v3883
      %v3900 = vadd.f32 %v3774, %v3884
      %v3901 = vadd.f32 %v3778, %v3885
      %v3902 = vadd.f32 %v3784, %v3886
      %v3903 = vadd.f32 %v3788, %v3887
      %v3904 = vadd.f32 %v3794, %v3888
      %v3905 = vadd.f32 %v3798, %v3889
      %v3906 = vadd.f32 %v3804, %v3890
      %v3907 = vadd.f32 %v3808, %v3891
      %v3908 = vpack.c.bf16 %v3893, %v3892
      %v3909 = vpack.c.bf16 %v3895, %v3894
      %v3910 = vpack.c.bf16 %v3897, %v3896
      %v3911 = vpack.c.bf16 %v3899, %v3898
      %v3912 = vpack.c.bf16 %v3901, %v3900
      %v3913 = vpack.c.bf16 %v3903, %v3902
      %v3914 = vpack.c.bf16 %v3905, %v3904
      %v3915 = vpack.c.bf16 %v3907, %v3906
      %v3916 = vld [vmem:[%s6] sm:$0xff]
      %v3917 = vld [vmem:[%s6 + $0x8] sm:$0xff]
      %v3918 = vld [vmem:[%s6 + $0x10] sm:$0xff]
      %v3919 = vld [vmem:[%s6 + $0x18] sm:$0xff]
      %v3920 = vld [vmem:[%s6 + $0x20] sm:$0xff]
      %v3921 = vld [vmem:[%s6 + $0x28] sm:$0xff]
      %v3922 = vld [vmem:[%s6 + $0x30] sm:$0xff]
      %v3923 = vld [vmem:[%s6 + $0x38] sm:$0xff]
      %v3924 = vld [vmem:[%s6 + $0x40] sm:$0xff]
      %v3925 = vld [vmem:[%s6 + $0x48] sm:$0xff]
      %v3926 = vld [vmem:[%s6 + $0x50] sm:$0xff]
      %v3927 = vld [vmem:[%s6 + $0x58] sm:$0xff]
      %v3928 = vld [vmem:[%s6 + $0x60] sm:$0xff]
      %v3929 = vld [vmem:[%s6 + $0x68] sm:$0xff]
      %v3930 = vld [vmem:[%s6 + $0x70] sm:$0xff]
      %v3931 = vld [vmem:[%s6 + $0x78] sm:$0xff]
      %v3932 = vld [vmem:[%s6 + $0x80] sm:$0xff]
      %v3933 = vld [vmem:[%s6 + $0x88] sm:$0xff]
      %v3934 = vld [vmem:[%s6 + $0x90] sm:$0xff]
      %v3935 = vld [vmem:[%s6 + $0x98] sm:$0xff]
      %v3936 = vld [vmem:[%s6 + $0xa0] sm:$0xff]
      %v3937 = vld [vmem:[%s6 + $0xa8] sm:$0xff]
      %v3938 = vld [vmem:[%s6 + $0xb0] sm:$0xff]
      %v3939 = vld [vmem:[%s6 + $0xb8] sm:$0xff]
      %v3940 = vld [vmem:[%s6 + $0xc0] sm:$0xff]
      %v3941 = vld [vmem:[%s6 + $0xc8] sm:$0xff]
      %v3942 = vld [vmem:[%s6 + $0xd0] sm:$0xff]
      %v3943 = vld [vmem:[%s6 + $0xd8] sm:$0xff]
      %v3944 = vld [vmem:[%s6 + $0xe0] sm:$0xff]
      %v3945 = vld [vmem:[%s6 + $0xe8] sm:$0xff]
      %v3946 = vld [vmem:[%s6 + $0xf0] sm:$0xff]
      %v3947 = vld [vmem:[%s6 + $0xf8] sm:$0xff]
      %v3948 = vld [vmem:[%s7] sm:$0xf]
      %v3950 = vlaneseq
      %v3951 = vshrl.u32 %v3950, 7
      %v3952 = vsub.s32 0, %v3951
      %v3953 = vrot.slane %v3948, %v3952
      %v3954 = vlaneseq
      %v3955 = vshrl.u32 %v3954, 7
      %v3956 = vsub.s32 1, %v3955
      %v3957 = vrot.slane %v3948, %v3956
      %v3958 = vlaneseq
      %v3959 = vshrl.u32 %v3958, 7
      %v3960 = vsub.s32 2, %v3959
      %v3961 = vrot.slane %v3948, %v3960
      %v3962 = vlaneseq
      %v3963 = vshrl.u32 %v3962, 7
      %v3964 = vsub.s32 3, %v3963
      %v3965 = vrot.slane %v3948, %v3964
      %v4002 = vunpack.c.l.b16 %v3916
      %v4003 = vunpack.c.h.b16 %v3916
      %v4004 = vunpack.c.l.b16 %v3917
      %v4005 = vunpack.c.h.b16 %v3917
      %v4006 = vunpack.c.l.b16 %v3918
      %v4007 = vunpack.c.h.b16 %v3918
      %v4008 = vunpack.c.l.b16 %v3919
      %v4009 = vunpack.c.h.b16 %v3919
      %v4010 = vunpack.c.l.b16 %v3920
      %v4011 = vunpack.c.h.b16 %v3920
      %v4012 = vunpack.c.l.b16 %v3921
      %v4013 = vunpack.c.h.b16 %v3921
      %v4014 = vunpack.c.l.b16 %v3922
      %v4015 = vunpack.c.h.b16 %v3922
      %v4016 = vunpack.c.l.b16 %v3923
      %v4017 = vunpack.c.h.b16 %v3923
      %v4018 = vunpack.c.l.b16 %v3924
      %v4019 = vunpack.c.h.b16 %v3924
      %v4020 = vunpack.c.l.b16 %v3925
      %v4021 = vunpack.c.h.b16 %v3925
      %v4022 = vunpack.c.l.b16 %v3926
      %v4023 = vunpack.c.h.b16 %v3926
      %v4024 = vunpack.c.l.b16 %v3927
      %v4025 = vunpack.c.h.b16 %v3927
      %v4026 = vunpack.c.l.b16 %v3928
      %v4027 = vunpack.c.h.b16 %v3928
      %v4028 = vunpack.c.l.b16 %v3929
      %v4029 = vunpack.c.h.b16 %v3929
      %v4030 = vunpack.c.l.b16 %v3930
      %v4031 = vunpack.c.h.b16 %v3930
      %v4032 = vunpack.c.l.b16 %v3931
      %v4033 = vunpack.c.h.b16 %v3931
      %v4034 = vunpack.c.l.b16 %v3932
      %v4035 = vunpack.c.h.b16 %v3932
      %v4036 = vunpack.c.l.b16 %v3933
      %v4037 = vunpack.c.h.b16 %v3933
      %v4038 = vunpack.c.l.b16 %v3934
      %v4039 = vunpack.c.h.b16 %v3934
      %v4040 = vunpack.c.l.b16 %v3935
      %v4041 = vunpack.c.h.b16 %v3935
      %v4042 = vunpack.c.l.b16 %v3936
      %v4043 = vunpack.c.h.b16 %v3936
      %v4044 = vunpack.c.l.b16 %v3937
      %v4045 = vunpack.c.h.b16 %v3937
      %v4046 = vunpack.c.l.b16 %v3938
      %v4047 = vunpack.c.h.b16 %v3938
      %v4048 = vunpack.c.l.b16 %v3939
      %v4049 = vunpack.c.h.b16 %v3939
      %v4050 = vunpack.c.l.b16 %v3940
      %v4051 = vunpack.c.h.b16 %v3940
      %v4052 = vunpack.c.l.b16 %v3941
      %v4053 = vunpack.c.h.b16 %v3941
      %v4054 = vunpack.c.l.b16 %v3942
      %v4055 = vunpack.c.h.b16 %v3942
      %v4056 = vunpack.c.l.b16 %v3943
      %v4057 = vunpack.c.h.b16 %v3943
      %v4058 = vunpack.c.l.b16 %v3944
      %v4059 = vunpack.c.h.b16 %v3944
      %v4060 = vunpack.c.l.b16 %v3945
      %v4061 = vunpack.c.h.b16 %v3945
      %v4062 = vunpack.c.l.b16 %v3946
      %v4063 = vunpack.c.h.b16 %v3946
      %v4064 = vunpack.c.l.b16 %v3947
      %v4065 = vunpack.c.h.b16 %v3947
      %v4066 = vpack.c.b16 %v4006, %v4002
      %v4067 = vpack.c.b16 %v4007, %v4003
      %v4068 = vpack.c.b16 %v4008, %v4004
      %v4069 = vpack.c.b16 %v4009, %v4005
      %v4070 = vpack.c.b16 %v4014, %v4010
      %v4071 = vpack.c.b16 %v4015, %v4011
      %v4072 = vpack.c.b16 %v4016, %v4012
      %v4073 = vpack.c.b16 %v4017, %v4013
      %v4074 = vpack.c.b16 %v4022, %v4018
      %v4075 = vpack.c.b16 %v4023, %v4019
      %v4076 = vpack.c.b16 %v4024, %v4020
      %v4077 = vpack.c.b16 %v4025, %v4021
      %v4078 = vpack.c.b16 %v4030, %v4026
      %v4079 = vpack.c.b16 %v4031, %v4027
      %v4080 = vpack.c.b16 %v4032, %v4028
      %v4081 = vpack.c.b16 %v4033, %v4029
      %v4082 = vpack.c.b16 %v4038, %v4034
      %v4083 = vpack.c.b16 %v4039, %v4035
      %v4084 = vpack.c.b16 %v4040, %v4036
      %v4085 = vpack.c.b16 %v4041, %v4037
      %v4086 = vpack.c.b16 %v4046, %v4042
      %v4087 = vpack.c.b16 %v4047, %v4043
      %v4088 = vpack.c.b16 %v4048, %v4044
      %v4089 = vpack.c.b16 %v4049, %v4045
      %v4090 = vpack.c.b16 %v4054, %v4050
      %v4091 = vpack.c.b16 %v4055, %v4051
      %v4092 = vpack.c.b16 %v4056, %v4052
      %v4093 = vpack.c.b16 %v4057, %v4053
      %v4094 = vpack.c.b16 %v4062, %v4058
      %v4095 = vpack.c.b16 %v4063, %v4059
      %v4096 = vpack.c.b16 %v4064, %v4060
      %v4097 = vpack.c.b16 %v4065, %v4061
      %4130 = vmatprep.subr.bf16.mxu0 %v4095
      %4131 = vmatpush1.bf16.msra.mxu0 %v4094
      %4132 = vmatprep.subr.bf16.mxu0 %v4091
      %4133 = vmatpush1.bf16.msra.mxu0 %v4090
      %4134 = vmatprep.subr.bf16.mxu0 %v4087
      %4135 = vmatpush1.bf16.msra.mxu0 %v4086
      %4136 = vmatprep.subr.bf16.mxu0 %v4083
      %4137 = vmatpush1.bf16.msra.mxu0 %v4082
      %4138 = vmatprep.subr.bf16.mxu0 %v4079
      %4139 = vmatpush1.bf16.msra.mxu0 %v4078
      %4140 = vmatprep.subr.bf16.mxu0 %v4075
      %4141 = vmatpush1.bf16.msra.mxu0 %v4074
      %4142 = vmatprep.subr.bf16.mxu0 %v4071
      %4143 = vmatpush1.bf16.msra.mxu0 %v4070
      %4144 = vmatprep.subr.bf16.mxu0 %v4067
      %4145 = vmatpush1.bf16.msra.mxu0 %v4066
      %4146 = vmatprep.subr.bf16.mxu0 0
      %4147 = vmatpush2.bf16.msra.mxu0 0
      %4148 = vmatprep.subr.bf16.mxu0 0
      %4149 = vmatpush2.bf16.msra.mxu0 0
      %4150 = vmatprep.subr.bf16.mxu0 0
      %4151 = vmatpush2.bf16.msra.mxu0 0
      %4152 = vmatprep.subr.bf16.mxu0 0
      %4153 = vmatpush2.bf16.msra.mxu0 0
      %4154 = vmatprep.subr.bf16.mxu0 0
      %4155 = vmatpush2.bf16.msra.mxu0 0
      %4156 = vmatprep.subr.bf16.mxu0 0
      %4157 = vmatpush2.bf16.msra.mxu0 0
      %4158 = vmatprep.subr.bf16.mxu0 0
      %4159 = vmatpush2.bf16.msra.mxu0 0
      %4160 = vmatprep.subr.bf16.mxu0 0
      %4161 = vmatpush2.bf16.msra.mxu0 0
      %4162 = vmatprep.mubr.bf16.mxu0 0
      %4163 = vmatmul.mubr.bf16.gmra.mxu0 %v3908
      %v4164 = vpop.f32.mrf.mxu0
      %v4165 = vadd.f32 %v3953, %v4164
      %v4166 = vpop.f32.mrf.mxu0
      %v4167 = vadd.f32 %v3957, %v4166
      %v4168 = vpop.f32.mrf.mxu0
      %v4169 = vadd.f32 %v3953, %v4168
      %v4170 = vpop.f32.mrf.mxu0
      %v4171 = vadd.f32 %v3957, %v4170
      %4172 = vmatprep.mubr.bf16.mxu0 0
      %4173 = vmatmul.mubr.bf16.gmra.mxu0 %v3909
      %v4174 = vpop.f32.mrf.mxu0
      %v4175 = vadd.f32 %v3953, %v4174
      %v4176 = vpop.f32.mrf.mxu0
      %v4177 = vadd.f32 %v3957, %v4176
      %v4178 = vpop.f32.mrf.mxu0
      %v4179 = vadd.f32 %v3953, %v4178
      %v4180 = vpop.f32.mrf.mxu0
      %v4181 = vadd.f32 %v3957, %v4180
      %4182 = vmatprep.mubr.bf16.mxu0 0
      %4183 = vmatmul.mubr.bf16.gmra.mxu0 %v3910
      %v4184 = vpop.f32.mrf.mxu0
      %v4185 = vadd.f32 %v3953, %v4184
      %v4186 = vpop.f32.mrf.mxu0
      %v4187 = vadd.f32 %v3957, %v4186
      %v4188 = vpop.f32.mrf.mxu0
      %v4189 = vadd.f32 %v3953, %v4188
      %v4190 = vpop.f32.mrf.mxu0
      %v4191 = vadd.f32 %v3957, %v4190
      %4192 = vmatprep.mubr.bf16.mxu0 0
      %4193 = vmatmul.mubr.bf16.gmra.mxu0 %v3911
      %v4194 = vpop.f32.mrf.mxu0
      %v4195 = vadd.f32 %v3953, %v4194
      %v4196 = vpop.f32.mrf.mxu0
      %v4197 = vadd.f32 %v3957, %v4196
      %v4198 = vpop.f32.mrf.mxu0
      %v4199 = vadd.f32 %v3953, %v4198
      %v4200 = vpop.f32.mrf.mxu0
      %v4201 = vadd.f32 %v3957, %v4200
      %4202 = vmatprep.mubr.bf16.mxu0 0
      %4203 = vmatmul.mubr.bf16.gmra.mxu0 %v3912
      %v4204 = vpop.f32.mrf.mxu0
      %v4205 = vadd.f32 %v3953, %v4204
      %v4206 = vpop.f32.mrf.mxu0
      %v4207 = vadd.f32 %v3957, %v4206
      %v4208 = vpop.f32.mrf.mxu0
      %v4209 = vadd.f32 %v3953, %v4208
      %v4210 = vpop.f32.mrf.mxu0
      %v4211 = vadd.f32 %v3957, %v4210
      %4212 = vmatprep.mubr.bf16.mxu0 0
      %4213 = vmatmul.mubr.bf16.gmra.mxu0 %v3913
      %v4214 = vpop.f32.mrf.mxu0
      %v4215 = vadd.f32 %v3953, %v4214
      %v4216 = vpop.f32.mrf.mxu0
      %v4217 = vadd.f32 %v3957, %v4216
      %v4218 = vpop.f32.mrf.mxu0
      %v4219 = vadd.f32 %v3953, %v4218
      %v4220 = vpop.f32.mrf.mxu0
      %v4221 = vadd.f32 %v3957, %v4220
      %4222 = vmatprep.mubr.bf16.mxu0 0
      %4223 = vmatmul.mubr.bf16.gmra.mxu0 %v3914
      %v4224 = vpop.f32.mrf.mxu0
      %v4225 = vadd.f32 %v3953, %v4224
      %v4226 = vpop.f32.mrf.mxu0
      %v4227 = vadd.f32 %v3957, %v4226
      %v4228 = vpop.f32.mrf.mxu0
      %v4229 = vadd.f32 %v3953, %v4228
      %v4230 = vpop.f32.mrf.mxu0
      %v4231 = vadd.f32 %v3957, %v4230
      %4232 = vmatprep.mubr.bf16.mxu0 0
      %4233 = vmatmul.mubr.bf16.gmra.mxu0 %v3915
      %v4234 = vpop.f32.mrf.mxu0
      %v4235 = vadd.f32 %v3953, %v4234
      %v4236 = vpop.f32.mrf.mxu0
      %v4237 = vadd.f32 %v3957, %v4236
      %v4238 = vpop.f32.mrf.mxu0
      %v4239 = vadd.f32 %v3953, %v4238
      %v4240 = vpop.f32.mrf.mxu0
      %v4241 = vadd.f32 %v3957, %v4240
      %4242 = vdwg.mxu0
      %4243 = vmatprep.subr.bf16.mxu0 %v4097
      %4244 = vmatpush1.bf16.msra.mxu0 %v4096
      %4245 = vmatprep.subr.bf16.mxu0 %v4093
      %4246 = vmatpush1.bf16.msra.mxu0 %v4092
      %4247 = vmatprep.subr.bf16.mxu0 %v4089
      %4248 = vmatpush1.bf16.msra.mxu0 %v4088
      %4249 = vmatprep.subr.bf16.mxu0 %v4085
      %4250 = vmatpush1.bf16.msra.mxu0 %v4084
      %4251 = vmatprep.subr.bf16.mxu0 %v4081
      %4252 = vmatpush1.bf16.msra.mxu0 %v4080
      %4253 = vmatprep.subr.bf16.mxu0 %v4077
      %4254 = vmatpush1.bf16.msra.mxu0 %v4076
      %4255 = vmatprep.subr.bf16.mxu0 %v4073
      %4256 = vmatpush1.bf16.msra.mxu0 %v4072
      %4257 = vmatprep.subr.bf16.mxu0 %v4069
      %4258 = vmatpush1.bf16.msra.mxu0 %v4068
      %4259 = vmatprep.subr.bf16.mxu0 0
      %4260 = vmatpush2.bf16.msra.mxu0 0
      %4261 = vmatprep.subr.bf16.mxu0 0
      %4262 = vmatpush2.bf16.msra.mxu0 0
      %4263 = vmatprep.subr.bf16.mxu0 0
      %4264 = vmatpush2.bf16.msra.mxu0 0
      %4265 = vmatprep.subr.bf16.mxu0 0
      %4266 = vmatpush2.bf16.msra.mxu0 0
      %4267 = vmatprep.subr.bf16.mxu0 0
      %4268 = vmatpush2.bf16.msra.mxu0 0
      %4269 = vmatprep.subr.bf16.mxu0 0
      %4270 = vmatpush2.bf16.msra.mxu0 0
      %4271 = vmatprep.subr.bf16.mxu0 0
      %4272 = vmatpush2.bf16.msra.mxu0 0
      %4273 = vmatprep.subr.bf16.mxu0 0
      %4274 = vmatpush2.bf16.msra.mxu0 0
      %4275 = vmatprep.mubr.bf16.mxu0 0
      %4276 = vmatmul.mubr.bf16.gmra.mxu0 %v3908
      %v4277 = vpop.f32.mrf.mxu0
      %v4278 = vadd.f32 %v3961, %v4277
      %v4279 = vpop.f32.mrf.mxu0
      %v4280 = vadd.f32 %v3965, %v4279
      %v4281 = vpop.f32.mrf.mxu0
      %v4282 = vadd.f32 %v3961, %v4281
      %v4283 = vpop.f32.mrf.mxu0
      %v4284 = vadd.f32 %v3965, %v4283
      %4285 = vmatprep.mubr.bf16.mxu0 0
      %4286 = vmatmul.mubr.bf16.gmra.mxu0 %v3909
      %v4287 = vpop.f32.mrf.mxu0
      %v4288 = vadd.f32 %v3961, %v4287
      %v4289 = vpop.f32.mrf.mxu0
      %v4290 = vadd.f32 %v3965, %v4289
      %v4291 = vpop.f32.mrf.mxu0
      %v4292 = vadd.f32 %v3961, %v4291
      %v4293 = vpop.f32.mrf.mxu0
      %v4294 = vadd.f32 %v3965, %v4293
      %4295 = vmatprep.mubr.bf16.mxu0 0
      %4296 = vmatmul.mubr.bf16.gmra.mxu0 %v3910
      %v4297 = vpop.f32.mrf.mxu0
      %v4298 = vadd.f32 %v3961, %v4297
      %v4299 = vpop.f32.mrf.mxu0
      %v4300 = vadd.f32 %v3965, %v4299
      %v4301 = vpop.f32.mrf.mxu0
      %v4302 = vadd.f32 %v3961, %v4301
      %v4303 = vpop.f32.mrf.mxu0
      %v4304 = vadd.f32 %v3965, %v4303
      %4305 = vmatprep.mubr.bf16.mxu0 0
      %4306 = vmatmul.mubr.bf16.gmra.mxu0 %v3911
      %v4307 = vpop.f32.mrf.mxu0
      %v4308 = vadd.f32 %v3961, %v4307
      %v4309 = vpop.f32.mrf.mxu0
      %v4310 = vadd.f32 %v3965, %v4309
      %v4311 = vpop.f32.mrf.mxu0
      %v4312 = vadd.f32 %v3961, %v4311
      %v4313 = vpop.f32.mrf.mxu0
      %v4314 = vadd.f32 %v3965, %v4313
      %4315 = vmatprep.mubr.bf16.mxu0 0
      %4316 = vmatmul.mubr.bf16.gmra.mxu0 %v3912
      %v4317 = vpop.f32.mrf.mxu0
      %v4318 = vadd.f32 %v3961, %v4317
      %v4319 = vpop.f32.mrf.mxu0
      %v4320 = vadd.f32 %v3965, %v4319
      %v4321 = vpop.f32.mrf.mxu0
      %v4322 = vadd.f32 %v3961, %v4321
      %v4323 = vpop.f32.mrf.mxu0
      %v4324 = vadd.f32 %v3965, %v4323
      %4325 = vmatprep.mubr.bf16.mxu0 0
      %4326 = vmatmul.mubr.bf16.gmra.mxu0 %v3913
      %v4327 = vpop.f32.mrf.mxu0
      %v4328 = vadd.f32 %v3961, %v4327
      %v4329 = vpop.f32.mrf.mxu0
      %v4330 = vadd.f32 %v3965, %v4329
      %v4331 = vpop.f32.mrf.mxu0
      %v4332 = vadd.f32 %v3961, %v4331
      %v4333 = vpop.f32.mrf.mxu0
      %v4334 = vadd.f32 %v3965, %v4333
      %4335 = vmatprep.mubr.bf16.mxu0 0
      %4336 = vmatmul.mubr.bf16.gmra.mxu0 %v3914
      %v4337 = vpop.f32.mrf.mxu0
      %v4338 = vadd.f32 %v3961, %v4337
      %v4339 = vpop.f32.mrf.mxu0
      %v4340 = vadd.f32 %v3965, %v4339
      %v4341 = vpop.f32.mrf.mxu0
      %v4342 = vadd.f32 %v3961, %v4341
      %v4343 = vpop.f32.mrf.mxu0
      %v4344 = vadd.f32 %v3965, %v4343
      %4345 = vmatprep.mubr.bf16.mxu0 0
      %4346 = vmatmul.mubr.bf16.gmra.mxu0 %v3915
      %v4347 = vpop.f32.mrf.mxu0
      %v4348 = vadd.f32 %v3961, %v4347
      %v4349 = vpop.f32.mrf.mxu0
      %v4350 = vadd.f32 %v3965, %v4349
      %v4351 = vpop.f32.mrf.mxu0
      %v4352 = vadd.f32 %v3961, %v4351
      %v4353 = vpop.f32.mrf.mxu0
      %v4354 = vadd.f32 %v3965, %v4353
      %4355 = vdwg.mxu0
      %v4356 = vmax.f32 %v4165, 0.0
      %v4357 = vmax.f32 %v4167, 0.0
      %v4358 = vmax.f32 %v4278, 0.0
      %v4359 = vmax.f32 %v4280, 0.0
      %v4360 = vmax.f32 %v4169, 0.0
      %v4361 = vmax.f32 %v4171, 0.0
      %v4362 = vmax.f32 %v4282, 0.0
      %v4363 = vmax.f32 %v4284, 0.0
      %v4364 = vmax.f32 %v4175, 0.0
      %v4365 = vmax.f32 %v4177, 0.0
      %v4366 = vmax.f32 %v4288, 0.0
      %v4367 = vmax.f32 %v4290, 0.0
      %v4368 = vmax.f32 %v4179, 0.0
      %v4369 = vmax.f32 %v4181, 0.0
      %v4370 = vmax.f32 %v4292, 0.0
      %v4371 = vmax.f32 %v4294, 0.0
      %v4372 = vmax.f32 %v4185, 0.0
      %v4373 = vmax.f32 %v4187, 0.0
      %v4374 = vmax.f32 %v4298, 0.0
      %v4375 = vmax.f32 %v4300, 0.0
      %v4376 = vmax.f32 %v4189, 0.0
      %v4377 = vmax.f32 %v4191, 0.0
      %v4378 = vmax.f32 %v4302, 0.0
      %v4379 = vmax.f32 %v4304, 0.0
      %v4380 = vmax.f32 %v4195, 0.0
      %v4381 = vmax.f32 %v4197, 0.0
      %v4382 = vmax.f32 %v4308, 0.0
      %v4383 = vmax.f32 %v4310, 0.0
      %v4384 = vmax.f32 %v4199, 0.0
      %v4385 = vmax.f32 %v4201, 0.0
      %v4386 = vmax.f32 %v4312, 0.0
      %v4387 = vmax.f32 %v4314, 0.0
      %v4388 = vmax.f32 %v4205, 0.0
      %v4389 = vmax.f32 %v4207, 0.0
      %v4390 = vmax.f32 %v4318, 0.0
      %v4391 = vmax.f32 %v4320, 0.0
      %v4392 = vmax.f32 %v4209, 0.0
      %v4393 = vmax.f32 %v4211, 0.0
      %v4394 = vmax.f32 %v4322, 0.0
      %v4395 = vmax.f32 %v4324, 0.0
      %v4396 = vmax.f32 %v4215, 0.0
      %v4397 = vmax.f32 %v4217, 0.0
      %v4398 = vmax.f32 %v4328, 0.0
      %v4399 = vmax.f32 %v4330, 0.0
      %v4400 = vmax.f32 %v4219, 0.0
      %v4401 = vmax.f32 %v4221, 0.0
      %v4402 = vmax.f32 %v4332, 0.0
      %v4403 = vmax.f32 %v4334, 0.0
      %v4404 = vmax.f32 %v4225, 0.0
      %v4405 = vmax.f32 %v4227, 0.0
      %v4406 = vmax.f32 %v4338, 0.0
      %v4407 = vmax.f32 %v4340, 0.0
      %v4408 = vmax.f32 %v4229, 0.0
      %v4409 = vmax.f32 %v4231, 0.0
      %v4410 = vmax.f32 %v4342, 0.0
      %v4411 = vmax.f32 %v4344, 0.0
      %v4412 = vmax.f32 %v4235, 0.0
      %v4413 = vmax.f32 %v4237, 0.0
      %v4414 = vmax.f32 %v4348, 0.0
      %v4415 = vmax.f32 %v4350, 0.0
      %v4416 = vmax.f32 %v4239, 0.0
      %v4417 = vmax.f32 %v4241, 0.0
      %v4418 = vmax.f32 %v4352, 0.0
      %v4419 = vmax.f32 %v4354, 0.0
      %v4420 = vpack.c.bf16 %v4360, %v4356
      %v4421 = vpack.c.bf16 %v4361, %v4357
      %v4422 = vpack.c.bf16 %v4362, %v4358
      %v4423 = vpack.c.bf16 %v4363, %v4359
      %v4424 = vpack.c.bf16 %v4368, %v4364
      %v4425 = vpack.c.bf16 %v4369, %v4365
      %v4426 = vpack.c.bf16 %v4370, %v4366
      %v4427 = vpack.c.bf16 %v4371, %v4367
      %v4428 = vpack.c.bf16 %v4376, %v4372
      %v4429 = vpack.c.bf16 %v4377, %v4373
      %v4430 = vpack.c.bf16 %v4378, %v4374
      %v4431 = vpack.c.bf16 %v4379, %v4375
      %v4432 = vpack.c.bf16 %v4384, %v4380
      %v4433 = vpack.c.bf16 %v4385, %v4381
      %v4434 = vpack.c.bf16 %v4386, %v4382
      %v4435 = vpack.c.bf16 %v4387, %v4383
      %v4436 = vpack.c.bf16 %v4392, %v4388
      %v4437 = vpack.c.bf16 %v4393, %v4389
      %v4438 = vpack.c.bf16 %v4394, %v4390
      %v4439 = vpack.c.bf16 %v4395, %v4391
      %v4440 = vpack.c.bf16 %v4400, %v4396
      %v4441 = vpack.c.bf16 %v4401, %v4397
      %v4442 = vpack.c.bf16 %v4402, %v4398
      %v4443 = vpack.c.bf16 %v4403, %v4399
      %v4444 = vpack.c.bf16 %v4408, %v4404
      %v4445 = vpack.c.bf16 %v4409, %v4405
      %v4446 = vpack.c.bf16 %v4410, %v4406
      %v4447 = vpack.c.bf16 %v4411, %v4407
      %v4448 = vpack.c.bf16 %v4416, %v4412
      %v4449 = vpack.c.bf16 %v4417, %v4413
      %v4450 = vpack.c.bf16 %v4418, %v4414
      %v4451 = vpack.c.bf16 %v4419, %v4415
      %v4452 = vld [vmem:[%s8] sm:$0xff]
      %v4453 = vld [vmem:[%s8 + $0x8] sm:$0xff]
      %v4454 = vld [vmem:[%s8 + $0x10] sm:$0xff]
      %v4455 = vld [vmem:[%s8 + $0x18] sm:$0xf]
      %v4456 = vld [vmem:[%s8 + $0x1c] sm:$0xff]
      %v4457 = vld [vmem:[%s8 + $0x24] sm:$0xff]
      %v4458 = vld [vmem:[%s8 + $0x2c] sm:$0xff]
      %v4459 = vld [vmem:[%s8 + $0x34] sm:$0xf]
      %v4460 = vld [vmem:[%s8 + $0x38] sm:$0xff]
      %v4461 = vld [vmem:[%s8 + $0x40] sm:$0xff]
      %v4462 = vld [vmem:[%s8 + $0x48] sm:$0xff]
      %v4463 = vld [vmem:[%s8 + $0x50] sm:$0xf]
      %v4464 = vld [vmem:[%s8 + $0x54] sm:$0xff]
      %v4465 = vld [vmem:[%s8 + $0x5c] sm:$0xff]
      %v4466 = vld [vmem:[%s8 + $0x64] sm:$0xff]
      %v4467 = vld [vmem:[%s8 + $0x6c] sm:$0xf]
      %v4468 = vld [vmem:[%s8 + $0x70] sm:$0xff]
      %v4469 = vld [vmem:[%s8 + $0x78] sm:$0xff]
      %v4470 = vld [vmem:[%s8 + $0x80] sm:$0xff]
      %v4471 = vld [vmem:[%s8 + $0x88] sm:$0xf]
      %v4472 = vld [vmem:[%s8 + $0x8c] sm:$0xff]
      %v4473 = vld [vmem:[%s8 + $0x94] sm:$0xff]
      %v4474 = vld [vmem:[%s8 + $0x9c] sm:$0xff]
      %v4475 = vld [vmem:[%s8 + $0xa4] sm:$0xf]
      %v4476 = vld [vmem:[%s8 + $0xa8] sm:$0xff]
      %v4477 = vld [vmem:[%s8 + $0xb0] sm:$0xff]
      %v4478 = vld [vmem:[%s8 + $0xb8] sm:$0xff]
      %v4479 = vld [vmem:[%s8 + $0xc0] sm:$0xf]
      %v4480 = vld [vmem:[%s8 + $0xc4] sm:$0xff]
      %v4481 = vld [vmem:[%s8 + $0xcc] sm:$0xff]
      %v4482 = vld [vmem:[%s8 + $0xd4] sm:$0xff]
      %v4483 = vld [vmem:[%s8 + $0xdc] sm:$0xf]
      %v4484 = vld [vmem:[%s8 + $0xe0] sm:$0xff]
      %v4485 = vld [vmem:[%s8 + $0xe8] sm:$0xff]
      %v4486 = vld [vmem:[%s8 + $0xf0] sm:$0xff]
      %v4487 = vld [vmem:[%s8 + $0xf8] sm:$0xf]
      %v4488 = vld [vmem:[%s8 + $0xfc] sm:$0xff]
      %v4489 = vld [vmem:[%s8 + $0x104] sm:$0xff]
      %v4490 = vld [vmem:[%s8 + $0x10c] sm:$0xff]
      %v4491 = vld [vmem:[%s8 + $0x114] sm:$0xf]
      %v4492 = vld [vmem:[%s8 + $0x118] sm:$0xff]
      %v4493 = vld [vmem:[%s8 + $0x120] sm:$0xff]
      %v4494 = vld [vmem:[%s8 + $0x128] sm:$0xff]
      %v4495 = vld [vmem:[%s8 + $0x130] sm:$0xf]
      %v4496 = vld [vmem:[%s8 + $0x134] sm:$0xff]
      %v4497 = vld [vmem:[%s8 + $0x13c] sm:$0xff]
      %v4498 = vld [vmem:[%s8 + $0x144] sm:$0xff]
      %v4499 = vld [vmem:[%s8 + $0x14c] sm:$0xf]
      %v4500 = vld [vmem:[%s8 + $0x150] sm:$0xff]
      %v4501 = vld [vmem:[%s8 + $0x158] sm:$0xff]
      %v4502 = vld [vmem:[%s8 + $0x160] sm:$0xff]
      %v4503 = vld [vmem:[%s8 + $0x168] sm:$0xf]
      %v4504 = vld [vmem:[%s8 + $0x16c] sm:$0xff]
      %v4505 = vld [vmem:[%s8 + $0x174] sm:$0xff]
      %v4506 = vld [vmem:[%s8 + $0x17c] sm:$0xff]
      %v4507 = vld [vmem:[%s8 + $0x184] sm:$0xf]
      %v4508 = vld [vmem:[%s8 + $0x188] sm:$0xff]
      %v4509 = vld [vmem:[%s8 + $0x190] sm:$0xff]
      %v4510 = vld [vmem:[%s8 + $0x198] sm:$0xff]
      %v4511 = vld [vmem:[%s8 + $0x1a0] sm:$0xf]
      %v4512 = vld [vmem:[%s8 + $0x1a4] sm:$0xff]
      %v4513 = vld [vmem:[%s8 + $0x1ac] sm:$0xff]
      %v4514 = vld [vmem:[%s8 + $0x1b4] sm:$0xff]
      %v4515 = vld [vmem:[%s8 + $0x1bc] sm:$0xf]
      %v4516 = vld [vmem:[%s8 + $0x1c0] sm:$0xff]
      %v4517 = vld [vmem:[%s8 + $0x1c8] sm:$0xff]
      %v4518 = vld [vmem:[%s8 + $0x1d0] sm:$0xff]
      %v4519 = vld [vmem:[%s8 + $0x1d8] sm:$0xf]
      %v4520 = vld [vmem:[%s8 + $0x1dc] sm:$0xff]
      %v4521 = vld [vmem:[%s8 + $0x1e4] sm:$0xff]
      %v4522 = vld [vmem:[%s8 + $0x1ec] sm:$0xff]
      %v4523 = vld [vmem:[%s8 + $0x1f4] sm:$0xf]
      %v4524 = vld [vmem:[%s8 + $0x1f8] sm:$0xff]
      %v4525 = vld [vmem:[%s8 + $0x200] sm:$0xff]
      %v4526 = vld [vmem:[%s8 + $0x208] sm:$0xff]
      %v4527 = vld [vmem:[%s8 + $0x210] sm:$0xf]
      %v4528 = vld [vmem:[%s8 + $0x214] sm:$0xff]
      %v4529 = vld [vmem:[%s8 + $0x21c] sm:$0xff]
      %v4530 = vld [vmem:[%s8 + $0x224] sm:$0xff]
      %v4531 = vld [vmem:[%s8 + $0x22c] sm:$0xf]
      %v4532 = vld [vmem:[%s8 + $0x230] sm:$0xff]
      %v4533 = vld [vmem:[%s8 + $0x238] sm:$0xff]
      %v4534 = vld [vmem:[%s8 + $0x240] sm:$0xff]
      %v4535 = vld [vmem:[%s8 + $0x248] sm:$0xf]
      %v4536 = vld [vmem:[%s8 + $0x24c] sm:$0xff]
      %v4537 = vld [vmem:[%s8 + $0x254] sm:$0xff]
      %v4538 = vld [vmem:[%s8 + $0x25c] sm:$0xff]
      %v4539 = vld [vmem:[%s8 + $0x264] sm:$0xf]
      %v4540 = vld [vmem:[%s8 + $0x268] sm:$0xff]
      %v4541 = vld [vmem:[%s8 + $0x270] sm:$0xff]
      %v4542 = vld [vmem:[%s8 + $0x278] sm:$0xff]
      %v4543 = vld [vmem:[%s8 + $0x280] sm:$0xf]
      %v4544 = vld [vmem:[%s8 + $0x284] sm:$0xff]
      %v4545 = vld [vmem:[%s8 + $0x28c] sm:$0xff]
      %v4546 = vld [vmem:[%s8 + $0x294] sm:$0xff]
      %v4547 = vld [vmem:[%s8 + $0x29c] sm:$0xf]
      %v4548 = vld [vmem:[%s8 + $0x2a0] sm:$0xff]
      %v4549 = vld [vmem:[%s8 + $0x2a8] sm:$0xff]
      %v4550 = vld [vmem:[%s8 + $0x2b0] sm:$0xff]
      %v4551 = vld [vmem:[%s8 + $0x2b8] sm:$0xf]
      %v4552 = vld [vmem:[%s8 + $0x2bc] sm:$0xff]
      %v4553 = vld [vmem:[%s8 + $0x2c4] sm:$0xff]
      %v4554 = vld [vmem:[%s8 + $0x2cc] sm:$0xff]
      %v4555 = vld [vmem:[%s8 + $0x2d4] sm:$0xf]
      %v4556 = vld [vmem:[%s8 + $0x2d8] sm:$0xff]
      %v4557 = vld [vmem:[%s8 + $0x2e0] sm:$0xff]
      %v4558 = vld [vmem:[%s8 + $0x2e8] sm:$0xff]
      %v4559 = vld [vmem:[%s8 + $0x2f0] sm:$0xf]
      %v4560 = vld [vmem:[%s8 + $0x2f4] sm:$0xff]
      %v4561 = vld [vmem:[%s8 + $0x2fc] sm:$0xff]
      %v4562 = vld [vmem:[%s8 + $0x304] sm:$0xff]
      %v4563 = vld [vmem:[%s8 + $0x30c] sm:$0xf]
      %v4564 = vld [vmem:[%s8 + $0x310] sm:$0xff]
      %v4565 = vld [vmem:[%s8 + $0x318] sm:$0xff]
      %v4566 = vld [vmem:[%s8 + $0x320] sm:$0xff]
      %v4567 = vld [vmem:[%s8 + $0x328] sm:$0xf]
      %v4568 = vld [vmem:[%s8 + $0x32c] sm:$0xff]
      %v4569 = vld [vmem:[%s8 + $0x334] sm:$0xff]
      %v4570 = vld [vmem:[%s8 + $0x33c] sm:$0xff]
      %v4571 = vld [vmem:[%s8 + $0x344] sm:$0xf]
      %v4572 = vld [vmem:[%s8 + $0x348] sm:$0xff]
      %v4573 = vld [vmem:[%s8 + $0x350] sm:$0xff]
      %v4574 = vld [vmem:[%s8 + $0x358] sm:$0xff]
      %v4575 = vld [vmem:[%s8 + $0x360] sm:$0xf]
      %v4576 = vld [vmem:[%s8 + $0x364] sm:$0xff]
      %v4577 = vld [vmem:[%s8 + $0x36c] sm:$0xff]
      %v4578 = vld [vmem:[%s8 + $0x374] sm:$0xff]
      %v4579 = vld [vmem:[%s8 + $0x37c] sm:$0xf]
      %v4580 = vld [vmem:[%s8 + $0x380] sm:$0xff]
      %v4581 = vld [vmem:[%s8 + $0x388] sm:$0xff]
      %v4582 = vld [vmem:[%s8 + $0x390] sm:$0xff]
      %v4583 = vld [vmem:[%s8 + $0x398] sm:$0xf]
      %v4584 = vld [vmem:[%s8 + $0x39c] sm:$0xff]
      %v4585 = vld [vmem:[%s8 + $0x3a4] sm:$0xff]
      %v4586 = vld [vmem:[%s8 + $0x3ac] sm:$0xff]
      %v4587 = vld [vmem:[%s8 + $0x3b4] sm:$0xf]
      %v4588 = vld [vmem:[%s8 + $0x3b8] sm:$0xff]
      %v4589 = vld [vmem:[%s8 + $0x3c0] sm:$0xff]
      %v4590 = vld [vmem:[%s8 + $0x3c8] sm:$0xff]
      %v4591 = vld [vmem:[%s8 + $0x3d0] sm:$0xf]
      %v4592 = vld [vmem:[%s8 + $0x3d4] sm:$0xff]
      %v4593 = vld [vmem:[%s8 + $0x3dc] sm:$0xff]
      %v4594 = vld [vmem:[%s8 + $0x3e4] sm:$0xff]
      %v4595 = vld [vmem:[%s8 + $0x3ec] sm:$0xf]
      %v4596 = vld [vmem:[%s8 + $0x3f0] sm:$0xff]
      %v4597 = vld [vmem:[%s8 + $0x3f8] sm:$0xff]
      %v4598 = vld [vmem:[%s8 + $0x400] sm:$0xff]
      %v4599 = vld [vmem:[%s8 + $0x408] sm:$0xf]
      %v4600 = vld [vmem:[%s8 + $0x40c] sm:$0xff]
      %v4601 = vld [vmem:[%s8 + $0x414] sm:$0xff]
      %v4602 = vld [vmem:[%s8 + $0x41c] sm:$0xff]
      %v4603 = vld [vmem:[%s8 + $0x424] sm:$0xf]
      %v4604 = vld [vmem:[%s8 + $0x428] sm:$0xff]
      %v4605 = vld [vmem:[%s8 + $0x430] sm:$0xff]
      %v4606 = vld [vmem:[%s8 + $0x438] sm:$0xff]
      %v4607 = vld [vmem:[%s8 + $0x440] sm:$0xf]
      %v4608 = vld [vmem:[%s8 + $0x444] sm:$0xff]
      %v4609 = vld [vmem:[%s8 + $0x44c] sm:$0xff]
      %v4610 = vld [vmem:[%s8 + $0x454] sm:$0xff]
      %v4611 = vld [vmem:[%s8 + $0x45c] sm:$0xf]
      %v4612 = vld [vmem:[%s8 + $0x460] sm:$0xff]
      %v4613 = vld [vmem:[%s8 + $0x468] sm:$0xff]
      %v4614 = vld [vmem:[%s8 + $0x470] sm:$0xff]
      %v4615 = vld [vmem:[%s8 + $0x478] sm:$0xf]
      %v4616 = vld [vmem:[%s8 + $0x47c] sm:$0xff]
      %v4617 = vld [vmem:[%s8 + $0x484] sm:$0xff]
      %v4618 = vld [vmem:[%s8 + $0x48c] sm:$0xff]
      %v4619 = vld [vmem:[%s8 + $0x494] sm:$0xf]
      %v4620 = vld [vmem:[%s8 + $0x498] sm:$0xff]
      %v4621 = vld [vmem:[%s8 + $0x4a0] sm:$0xff]
      %v4622 = vld [vmem:[%s8 + $0x4a8] sm:$0xff]
      %v4623 = vld [vmem:[%s8 + $0x4b0] sm:$0xf]
      %v4624 = vld [vmem:[%s8 + $0x4b4] sm:$0xff]
      %v4625 = vld [vmem:[%s8 + $0x4bc] sm:$0xff]
      %v4626 = vld [vmem:[%s8 + $0x4c4] sm:$0xff]
      %v4627 = vld [vmem:[%s8 + $0x4cc] sm:$0xf]
      %v4628 = vld [vmem:[%s8 + $0x4d0] sm:$0xff]
      %v4629 = vld [vmem:[%s8 + $0x4d8] sm:$0xff]
      %v4630 = vld [vmem:[%s8 + $0x4e0] sm:$0xff]
      %v4631 = vld [vmem:[%s8 + $0x4e8] sm:$0xf]
      %v4632 = vld [vmem:[%s8 + $0x4ec] sm:$0xff]
      %v4633 = vld [vmem:[%s8 + $0x4f4] sm:$0xff]
      %v4634 = vld [vmem:[%s8 + $0x4fc] sm:$0xff]
      %v4635 = vld [vmem:[%s8 + $0x504] sm:$0xf]
      %v4636 = vld [vmem:[%s8 + $0x508] sm:$0xff]
      %v4637 = vld [vmem:[%s8 + $0x510] sm:$0xff]
      %v4638 = vld [vmem:[%s8 + $0x518] sm:$0xff]
      %v4639 = vld [vmem:[%s8 + $0x520] sm:$0xf]
      %v4640 = vld [vmem:[%s8 + $0x524] sm:$0xff]
      %v4641 = vld [vmem:[%s8 + $0x52c] sm:$0xff]
      %v4642 = vld [vmem:[%s8 + $0x534] sm:$0xff]
      %v4643 = vld [vmem:[%s8 + $0x53c] sm:$0xf]
      %v4644 = vld [vmem:[%s8 + $0x540] sm:$0xff]
      %v4645 = vld [vmem:[%s8 + $0x548] sm:$0xff]
      %v4646 = vld [vmem:[%s8 + $0x550] sm:$0xff]
      %v4647 = vld [vmem:[%s8 + $0x558] sm:$0xf]
      %v4648 = vld [vmem:[%s8 + $0x55c] sm:$0xff]
      %v4649 = vld [vmem:[%s8 + $0x564] sm:$0xff]
      %v4650 = vld [vmem:[%s8 + $0x56c] sm:$0xff]
      %v4651 = vld [vmem:[%s8 + $0x574] sm:$0xf]
      %v4652 = vld [vmem:[%s8 + $0x578] sm:$0xff]
      %v4653 = vld [vmem:[%s8 + $0x580] sm:$0xff]
      %v4654 = vld [vmem:[%s8 + $0x588] sm:$0xff]
      %v4655 = vld [vmem:[%s8 + $0x590] sm:$0xf]
      %v4656 = vld [vmem:[%s8 + $0x594] sm:$0xff]
      %v4657 = vld [vmem:[%s8 + $0x59c] sm:$0xff]
      %v4658 = vld [vmem:[%s8 + $0x5a4] sm:$0xff]
      %v4659 = vld [vmem:[%s8 + $0x5ac] sm:$0xf]
      %v4660 = vld [vmem:[%s8 + $0x5b0] sm:$0xff]
      %v4661 = vld [vmem:[%s8 + $0x5b8] sm:$0xff]
      %v4662 = vld [vmem:[%s8 + $0x5c0] sm:$0xff]
      %v4663 = vld [vmem:[%s8 + $0x5c8] sm:$0xf]
      %v4664 = vld [vmem:[%s8 + $0x5cc] sm:$0xff]
      %v4665 = vld [vmem:[%s8 + $0x5d4] sm:$0xff]
      %v4666 = vld [vmem:[%s8 + $0x5dc] sm:$0xff]
      %v4667 = vld [vmem:[%s8 + $0x5e4] sm:$0xf]
      %v4668 = vld [vmem:[%s8 + $0x5e8] sm:$0xff]
      %v4669 = vld [vmem:[%s8 + $0x5f0] sm:$0xff]
      %v4670 = vld [vmem:[%s8 + $0x5f8] sm:$0xff]
      %v4671 = vld [vmem:[%s8 + $0x600] sm:$0xf]
      %v4672 = vld [vmem:[%s8 + $0x604] sm:$0xff]
      %v4673 = vld [vmem:[%s8 + $0x60c] sm:$0xff]
      %v4674 = vld [vmem:[%s8 + $0x614] sm:$0xff]
      %v4675 = vld [vmem:[%s8 + $0x61c] sm:$0xf]
      %v4676 = vld [vmem:[%s8 + $0x620] sm:$0xff]
      %v4677 = vld [vmem:[%s8 + $0x628] sm:$0xff]
      %v4678 = vld [vmem:[%s8 + $0x630] sm:$0xff]
      %v4679 = vld [vmem:[%s8 + $0x638] sm:$0xf]
      %v4680 = vld [vmem:[%s8 + $0x63c] sm:$0xff]
      %v4681 = vld [vmem:[%s8 + $0x644] sm:$0xff]
      %v4682 = vld [vmem:[%s8 + $0x64c] sm:$0xff]
      %v4683 = vld [vmem:[%s8 + $0x654] sm:$0xf]
      %v4684 = vld [vmem:[%s8 + $0x658] sm:$0xff]
      %v4685 = vld [vmem:[%s8 + $0x660] sm:$0xff]
      %v4686 = vld [vmem:[%s8 + $0x668] sm:$0xff]
      %v4687 = vld [vmem:[%s8 + $0x670] sm:$0xf]
      %v4688 = vld [vmem:[%s8 + $0x674] sm:$0xff]
      %v4689 = vld [vmem:[%s8 + $0x67c] sm:$0xff]
      %v4690 = vld [vmem:[%s8 + $0x684] sm:$0xff]
      %v4691 = vld [vmem:[%s8 + $0x68c] sm:$0xf]
      %v4692 = vld [vmem:[%s8 + $0x690] sm:$0xff]
      %v4693 = vld [vmem:[%s8 + $0x698] sm:$0xff]
      %v4694 = vld [vmem:[%s8 + $0x6a0] sm:$0xff]
      %v4695 = vld [vmem:[%s8 + $0x6a8] sm:$0xf]
      %v4696 = vld [vmem:[%s8 + $0x6ac] sm:$0xff]
      %v4697 = vld [vmem:[%s8 + $0x6b4] sm:$0xff]
      %v4698 = vld [vmem:[%s8 + $0x6bc] sm:$0xff]
      %v4699 = vld [vmem:[%s8 + $0x6c4] sm:$0xf]
      %v4700 = vld [vmem:[%s8 + $0x6c8] sm:$0xff]
      %v4701 = vld [vmem:[%s8 + $0x6d0] sm:$0xff]
      %v4702 = vld [vmem:[%s8 + $0x6d8] sm:$0xff]
      %v4703 = vld [vmem:[%s8 + $0x6e0] sm:$0xf]
      %v4704 = vld [vmem:[%s8 + $0x6e4] sm:$0xff]
      %v4705 = vld [vmem:[%s8 + $0x6ec] sm:$0xff]
      %v4706 = vld [vmem:[%s8 + $0x6f4] sm:$0xff]
      %v4707 = vld [vmem:[%s8 + $0x6fc] sm:$0xf]
      %v4708 = vld [vmem:[%s9] sm:$0xff]
      %v4710 = vlaneseq
      %v4711 = vshrl.u32 %v4710, 7
      %v4712 = vsub.s32 0, %v4711
      %v4713 = vrot.slane %v4708, %v4712
      %v4714 = vlaneseq
      %v4715 = vshrl.u32 %v4714, 7
      %v4716 = vsub.s32 1, %v4715
      %v4717 = vrot.slane %v4708, %v4716
      %v4718 = vlaneseq
      %v4719 = vshrl.u32 %v4718, 7
      %v4720 = vsub.s32 2, %v4719
      %v4721 = vrot.slane %v4708, %v4720
      %v4722 = vlaneseq
      %v4723 = vshrl.u32 %v4722, 7
      %v4724 = vsub.s32 3, %v4723
      %v4725 = vrot.slane %v4708, %v4724
      %v4726 = vlaneseq
      %v4727 = vshrl.u32 %v4726, 7
      %v4728 = vsub.s32 4, %v4727
      %v4729 = vrot.slane %v4708, %v4728
      %v4730 = vlaneseq
      %v4731 = vshrl.u32 %v4730, 7
      %v4732 = vsub.s32 5, %v4731
      %v4733 = vrot.slane %v4708, %v4732
      %v4734 = vlaneseq
      %v4735 = vshrl.u32 %v4734, 7
      %v4736 = vsub.s32 6, %v4735
      %v4737 = vrot.slane %v4708, %v4736
      %v5001 = vunpack.c.l.b16 %v4452
      %v5002 = vunpack.c.h.b16 %v4452
      %v5003 = vunpack.c.l.b16 %v4453
      %v5004 = vunpack.c.h.b16 %v4453
      %v5005 = vunpack.c.l.b16 %v4454
      %v5006 = vunpack.c.h.b16 %v4454
      %v5007 = vunpack.c.l.b16 %v4455
      %v5008 = vunpack.c.l.b16 %v4456
      %v5009 = vunpack.c.h.b16 %v4456
      %v5010 = vunpack.c.l.b16 %v4457
      %v5011 = vunpack.c.h.b16 %v4457
      %v5012 = vunpack.c.l.b16 %v4458
      %v5013 = vunpack.c.h.b16 %v4458
      %v5014 = vunpack.c.l.b16 %v4459
      %v5015 = vunpack.c.l.b16 %v4460
      %v5016 = vunpack.c.h.b16 %v4460
      %v5017 = vunpack.c.l.b16 %v4461
      %v5018 = vunpack.c.h.b16 %v4461
      %v5019 = vunpack.c.l.b16 %v4462
      %v5020 = vunpack.c.h.b16 %v4462
      %v5021 = vunpack.c.l.b16 %v4463
      %v5022 = vunpack.c.l.b16 %v4464
      %v5023 = vunpack.c.h.b16 %v4464
      %v5024 = vunpack.c.l.b16 %v4465
      %v5025 = vunpack.c.h.b16 %v4465
      %v5026 = vunpack.c.l.b16 %v4466
      %v5027 = vunpack.c.h.b16 %v4466
      %v5028 = vunpack.c.l.b16 %v4467
      %v5029 = vunpack.c.l.b16 %v4468
      %v5030 = vunpack.c.h.b16 %v4468
      %v5031 = vunpack.c.l.b16 %v4469
      %v5032 = vunpack.c.h.b16 %v4469
      %v5033 = vunpack.c.l.b16 %v4470
      %v5034 = vunpack.c.h.b16 %v4470
      %v5035 = vunpack.c.l.b16 %v4471
      %v5036 = vunpack.c.l.b16 %v4472
      %v5037 = vunpack.c.h.b16 %v4472
      %v5038 = vunpack.c.l.b16 %v4473
      %v5039 = vunpack.c.h.b16 %v4473
      %v5040 = vunpack.c.l.b16 %v4474
      %v5041 = vunpack.c.h.b16 %v4474
      %v5042 = vunpack.c.l.b16 %v4475
      %v5043 = vunpack.c.l.b16 %v4476
      %v5044 = vunpack.c.h.b16 %v4476
      %v5045 = vunpack.c.l.b16 %v4477
      %v5046 = vunpack.c.h.b16 %v4477
      %v5047 = vunpack.c.l.b16 %v4478
      %v5048 = vunpack.c.h.b16 %v4478
      %v5049 = vunpack.c.l.b16 %v4479
      %v5050 = vunpack.c.l.b16 %v4480
      %v5051 = vunpack.c.h.b16 %v4480
      %v5052 = vunpack.c.l.b16 %v4481
      %v5053 = vunpack.c.h.b16 %v4481
      %v5054 = vunpack.c.l.b16 %v4482
      %v5055 = vunpack.c.h.b16 %v4482
      %v5056 = vunpack.c.l.b16 %v4483
      %v5057 = vunpack.c.l.b16 %v4484
      %v5058 = vunpack.c.h.b16 %v4484
      %v5059 = vunpack.c.l.b16 %v4485
      %v5060 = vunpack.c.h.b16 %v4485
      %v5061 = vunpack.c.l.b16 %v4486
      %v5062 = vunpack.c.h.b16 %v4486
      %v5063 = vunpack.c.l.b16 %v4487
      %v5064 = vunpack.c.l.b16 %v4488
      %v5065 = vunpack.c.h.b16 %v4488
      %v5066 = vunpack.c.l.b16 %v4489
      %v5067 = vunpack.c.h.b16 %v4489
      %v5068 = vunpack.c.l.b16 %v4490
      %v5069 = vunpack.c.h.b16 %v4490
      %v5070 = vunpack.c.l.b16 %v4491
      %v5071 = vunpack.c.l.b16 %v4492
      %v5072 = vunpack.c.h.b16 %v4492
      %v5073 = vunpack.c.l.b16 %v4493
      %v5074 = vunpack.c.h.b16 %v4493
      %v5075 = vunpack.c.l.b16 %v4494
      %v5076 = vunpack.c.h.b16 %v4494
      %v5077 = vunpack.c.l.b16 %v4495
      %v5078 = vunpack.c.l.b16 %v4496
      %v5079 = vunpack.c.h.b16 %v4496
      %v5080 = vunpack.c.l.b16 %v4497
      %v5081 = vunpack.c.h.b16 %v4497
      %v5082 = vunpack.c.l.b16 %v4498
      %v5083 = vunpack.c.h.b16 %v4498
      %v5084 = vunpack.c.l.b16 %v4499
      %v5085 = vunpack.c.l.b16 %v4500
      %v5086 = vunpack.c.h.b16 %v4500
      %v5087 = vunpack.c.l.b16 %v4501
      %v5088 = vunpack.c.h.b16 %v4501
      %v5089 = vunpack.c.l.b16 %v4502
      %v5090 = vunpack.c.h.b16 %v4502
      %v5091 = vunpack.c.l.b16 %v4503
      %v5092 = vunpack.c.l.b16 %v4504
      %v5093 = vunpack.c.h.b16 %v4504
      %v5094 = vunpack.c.l.b16 %v4505
      %v5095 = vunpack.c.h.b16 %v4505
      %v5096 = vunpack.c.l.b16 %v4506
      %v5097 = vunpack.c.h.b16 %v4506
      %v5098 = vunpack.c.l.b16 %v4507
      %v5099 = vunpack.c.l.b16 %v4508
      %v5100 = vunpack.c.h.b16 %v4508
      %v5101 = vunpack.c.l.b16 %v4509
      %v5102 = vunpack.c.h.b16 %v4509
      %v5103 = vunpack.c.l.b16 %v4510
      %v5104 = vunpack.c.h.b16 %v4510
      %v5105 = vunpack.c.l.b16 %v4511
      %v5106 = vunpack.c.l.b16 %v4512
      %v5107 = vunpack.c.h.b16 %v4512
      %v5108 = vunpack.c.l.b16 %v4513
      %v5109 = vunpack.c.h.b16 %v4513
      %v5110 = vunpack.c.l.b16 %v4514
      %v5111 = vunpack.c.h.b16 %v4514
      %v5112 = vunpack.c.l.b16 %v4515
      %v5113 = vunpack.c.l.b16 %v4516
      %v5114 = vunpack.c.h.b16 %v4516
      %v5115 = vunpack.c.l.b16 %v4517
      %v5116 = vunpack.c.h.b16 %v4517
      %v5117 = vunpack.c.l.b16 %v4518
      %v5118 = vunpack.c.h.b16 %v4518
      %v5119 = vunpack.c.l.b16 %v4519
      %v5120 = vunpack.c.l.b16 %v4520
      %v5121 = vunpack.c.h.b16 %v4520
      %v5122 = vunpack.c.l.b16 %v4521
      %v5123 = vunpack.c.h.b16 %v4521
      %v5124 = vunpack.c.l.b16 %v4522
      %v5125 = vunpack.c.h.b16 %v4522
      %v5126 = vunpack.c.l.b16 %v4523
      %v5127 = vunpack.c.l.b16 %v4524
      %v5128 = vunpack.c.h.b16 %v4524
      %v5129 = vunpack.c.l.b16 %v4525
      %v5130 = vunpack.c.h.b16 %v4525
      %v5131 = vunpack.c.l.b16 %v4526
      %v5132 = vunpack.c.h.b16 %v4526
      %v5133 = vunpack.c.l.b16 %v4527
      %v5134 = vunpack.c.l.b16 %v4528
      %v5135 = vunpack.c.h.b16 %v4528
      %v5136 = vunpack.c.l.b16 %v4529
      %v5137 = vunpack.c.h.b16 %v4529
      %v5138 = vunpack.c.l.b16 %v4530
      %v5139 = vunpack.c.h.b16 %v4530
      %v5140 = vunpack.c.l.b16 %v4531
      %v5141 = vunpack.c.l.b16 %v4532
      %v5142 = vunpack.c.h.b16 %v4532
      %v5143 = vunpack.c.l.b16 %v4533
      %v5144 = vunpack.c.h.b16 %v4533
      %v5145 = vunpack.c.l.b16 %v4534
      %v5146 = vunpack.c.h.b16 %v4534
      %v5147 = vunpack.c.l.b16 %v4535
      %v5148 = vunpack.c.l.b16 %v4536
      %v5149 = vunpack.c.h.b16 %v4536
      %v5150 = vunpack.c.l.b16 %v4537
      %v5151 = vunpack.c.h.b16 %v4537
      %v5152 = vunpack.c.l.b16 %v4538
      %v5153 = vunpack.c.h.b16 %v4538
      %v5154 = vunpack.c.l.b16 %v4539
      %v5155 = vunpack.c.l.b16 %v4540
      %v5156 = vunpack.c.h.b16 %v4540
      %v5157 = vunpack.c.l.b16 %v4541
      %v5158 = vunpack.c.h.b16 %v4541
      %v5159 = vunpack.c.l.b16 %v4542
      %v5160 = vunpack.c.h.b16 %v4542
      %v5161 = vunpack.c.l.b16 %v4543
      %v5162 = vunpack.c.l.b16 %v4544
      %v5163 = vunpack.c.h.b16 %v4544
      %v5164 = vunpack.c.l.b16 %v4545
      %v5165 = vunpack.c.h.b16 %v4545
      %v5166 = vunpack.c.l.b16 %v4546
      %v5167 = vunpack.c.h.b16 %v4546
      %v5168 = vunpack.c.l.b16 %v4547
      %v5169 = vunpack.c.l.b16 %v4548
      %v5170 = vunpack.c.h.b16 %v4548
      %v5171 = vunpack.c.l.b16 %v4549
      %v5172 = vunpack.c.h.b16 %v4549
      %v5173 = vunpack.c.l.b16 %v4550
      %v5174 = vunpack.c.h.b16 %v4550
      %v5175 = vunpack.c.l.b16 %v4551
      %v5176 = vunpack.c.l.b16 %v4552
      %v5177 = vunpack.c.h.b16 %v4552
      %v5178 = vunpack.c.l.b16 %v4553
      %v5179 = vunpack.c.h.b16 %v4553
      %v5180 = vunpack.c.l.b16 %v4554
      %v5181 = vunpack.c.h.b16 %v4554
      %v5182 = vunpack.c.l.b16 %v4555
      %v5183 = vunpack.c.l.b16 %v4556
      %v5184 = vunpack.c.h.b16 %v4556
      %v5185 = vunpack.c.l.b16 %v4557
      %v5186 = vunpack.c.h.b16 %v4557
      %v5187 = vunpack.c.l.b16 %v4558
      %v5188 = vunpack.c.h.b16 %v4558
      %v5189 = vunpack.c.l.b16 %v4559
      %v5190 = vunpack.c.l.b16 %v4560
      %v5191 = vunpack.c.h.b16 %v4560
      %v5192 = vunpack.c.l.b16 %v4561
      %v5193 = vunpack.c.h.b16 %v4561
      %v5194 = vunpack.c.l.b16 %v4562
      %v5195 = vunpack.c.h.b16 %v4562
      %v5196 = vunpack.c.l.b16 %v4563
      %v5197 = vunpack.c.l.b16 %v4564
      %v5198 = vunpack.c.h.b16 %v4564
      %v5199 = vunpack.c.l.b16 %v4565
      %v5200 = vunpack.c.h.b16 %v4565
      %v5201 = vunpack.c.l.b16 %v4566
      %v5202 = vunpack.c.h.b16 %v4566
      %v5203 = vunpack.c.l.b16 %v4567
      %v5204 = vunpack.c.l.b16 %v4568
      %v5205 = vunpack.c.h.b16 %v4568
      %v5206 = vunpack.c.l.b16 %v4569
      %v5207 = vunpack.c.h.b16 %v4569
      %v5208 = vunpack.c.l.b16 %v4570
      %v5209 = vunpack.c.h.b16 %v4570
      %v5210 = vunpack.c.l.b16 %v4571
      %v5211 = vunpack.c.l.b16 %v4572
      %v5212 = vunpack.c.h.b16 %v4572
      %v5213 = vunpack.c.l.b16 %v4573
      %v5214 = vunpack.c.h.b16 %v4573
      %v5215 = vunpack.c.l.b16 %v4574
      %v5216 = vunpack.c.h.b16 %v4574
      %v5217 = vunpack.c.l.b16 %v4575
      %v5218 = vunpack.c.l.b16 %v4576
      %v5219 = vunpack.c.h.b16 %v4576
      %v5220 = vunpack.c.l.b16 %v4577
      %v5221 = vunpack.c.h.b16 %v4577
      %v5222 = vunpack.c.l.b16 %v4578
      %v5223 = vunpack.c.h.b16 %v4578
      %v5224 = vunpack.c.l.b16 %v4579
      %v5225 = vunpack.c.l.b16 %v4580
      %v5226 = vunpack.c.h.b16 %v4580
      %v5227 = vunpack.c.l.b16 %v4581
      %v5228 = vunpack.c.h.b16 %v4581
      %v5229 = vunpack.c.l.b16 %v4582
      %v5230 = vunpack.c.h.b16 %v4582
      %v5231 = vunpack.c.l.b16 %v4583
      %v5232 = vunpack.c.l.b16 %v4584
      %v5233 = vunpack.c.h.b16 %v4584
      %v5234 = vunpack.c.l.b16 %v4585
      %v5235 = vunpack.c.h.b16 %v4585
      %v5236 = vunpack.c.l.b16 %v4586
      %v5237 = vunpack.c.h.b16 %v4586
      %v5238 = vunpack.c.l.b16 %v4587
      %v5239 = vunpack.c.l.b16 %v4588
      %v5240 = vunpack.c.h.b16 %v4588
      %v5241 = vunpack.c.l.b16 %v4589
      %v5242 = vunpack.c.h.b16 %v4589
      %v5243 = vunpack.c.l.b16 %v4590
      %v5244 = vunpack.c.h.b16 %v4590
      %v5245 = vunpack.c.l.b16 %v4591
      %v5246 = vunpack.c.l.b16 %v4592
      %v5247 = vunpack.c.h.b16 %v4592
      %v5248 = vunpack.c.l.b16 %v4593
      %v5249 = vunpack.c.h.b16 %v4593
      %v5250 = vunpack.c.l.b16 %v4594
      %v5251 = vunpack.c.h.b16 %v4594
      %v5252 = vunpack.c.l.b16 %v4595
      %v5253 = vunpack.c.l.b16 %v4596
      %v5254 = vunpack.c.h.b16 %v4596
      %v5255 = vunpack.c.l.b16 %v4597
      %v5256 = vunpack.c.h.b16 %v4597
      %v5257 = vunpack.c.l.b16 %v4598
      %v5258 = vunpack.c.h.b16 %v4598
      %v5259 = vunpack.c.l.b16 %v4599
      %v5260 = vunpack.c.l.b16 %v4600
      %v5261 = vunpack.c.h.b16 %v4600
      %v5262 = vunpack.c.l.b16 %v4601
      %v5263 = vunpack.c.h.b16 %v4601
      %v5264 = vunpack.c.l.b16 %v4602
      %v5265 = vunpack.c.h.b16 %v4602
      %v5266 = vunpack.c.l.b16 %v4603
      %v5267 = vunpack.c.l.b16 %v4604
      %v5268 = vunpack.c.h.b16 %v4604
      %v5269 = vunpack.c.l.b16 %v4605
      %v5270 = vunpack.c.h.b16 %v4605
      %v5271 = vunpack.c.l.b16 %v4606
      %v5272 = vunpack.c.h.b16 %v4606
      %v5273 = vunpack.c.l.b16 %v4607
      %v5274 = vunpack.c.l.b16 %v4608
      %v5275 = vunpack.c.h.b16 %v4608
      %v5276 = vunpack.c.l.b16 %v4609
      %v5277 = vunpack.c.h.b16 %v4609
      %v5278 = vunpack.c.l.b16 %v4610
      %v5279 = vunpack.c.h.b16 %v4610
      %v5280 = vunpack.c.l.b16 %v4611
      %v5281 = vunpack.c.l.b16 %v4612
      %v5282 = vunpack.c.h.b16 %v4612
      %v5283 = vunpack.c.l.b16 %v4613
      %v5284 = vunpack.c.h.b16 %v4613
      %v5285 = vunpack.c.l.b16 %v4614
      %v5286 = vunpack.c.h.b16 %v4614
      %v5287 = vunpack.c.l.b16 %v4615
      %v5288 = vunpack.c.l.b16 %v4616
      %v5289 = vunpack.c.h.b16 %v4616
      %v5290 = vunpack.c.l.b16 %v4617
      %v5291 = vunpack.c.h.b16 %v4617
      %v5292 = vunpack.c.l.b16 %v4618
      %v5293 = vunpack.c.h.b16 %v4618
      %v5294 = vunpack.c.l.b16 %v4619
      %v5295 = vunpack.c.l.b16 %v4620
      %v5296 = vunpack.c.h.b16 %v4620
      %v5297 = vunpack.c.l.b16 %v4621
      %v5298 = vunpack.c.h.b16 %v4621
      %v5299 = vunpack.c.l.b16 %v4622
      %v5300 = vunpack.c.h.b16 %v4622
      %v5301 = vunpack.c.l.b16 %v4623
      %v5302 = vunpack.c.l.b16 %v4624
      %v5303 = vunpack.c.h.b16 %v4624
      %v5304 = vunpack.c.l.b16 %v4625
      %v5305 = vunpack.c.h.b16 %v4625
      %v5306 = vunpack.c.l.b16 %v4626
      %v5307 = vunpack.c.h.b16 %v4626
      %v5308 = vunpack.c.l.b16 %v4627
      %v5309 = vunpack.c.l.b16 %v4628
      %v5310 = vunpack.c.h.b16 %v4628
      %v5311 = vunpack.c.l.b16 %v4629
      %v5312 = vunpack.c.h.b16 %v4629
      %v5313 = vunpack.c.l.b16 %v4630
      %v5314 = vunpack.c.h.b16 %v4630
      %v5315 = vunpack.c.l.b16 %v4631
      %v5316 = vunpack.c.l.b16 %v4632
      %v5317 = vunpack.c.h.b16 %v4632
      %v5318 = vunpack.c.l.b16 %v4633
      %v5319 = vunpack.c.h.b16 %v4633
      %v5320 = vunpack.c.l.b16 %v4634
      %v5321 = vunpack.c.h.b16 %v4634
      %v5322 = vunpack.c.l.b16 %v4635
      %v5323 = vunpack.c.l.b16 %v4636
      %v5324 = vunpack.c.h.b16 %v4636
      %v5325 = vunpack.c.l.b16 %v4637
      %v5326 = vunpack.c.h.b16 %v4637
      %v5327 = vunpack.c.l.b16 %v4638
      %v5328 = vunpack.c.h.b16 %v4638
      %v5329 = vunpack.c.l.b16 %v4639
      %v5330 = vunpack.c.l.b16 %v4640
      %v5331 = vunpack.c.h.b16 %v4640
      %v5332 = vunpack.c.l.b16 %v4641
      %v5333 = vunpack.c.h.b16 %v4641
      %v5334 = vunpack.c.l.b16 %v4642
      %v5335 = vunpack.c.h.b16 %v4642
      %v5336 = vunpack.c.l.b16 %v4643
      %v5337 = vunpack.c.l.b16 %v4644
      %v5338 = vunpack.c.h.b16 %v4644
      %v5339 = vunpack.c.l.b16 %v4645
      %v5340 = vunpack.c.h.b16 %v4645
      %v5341 = vunpack.c.l.b16 %v4646
      %v5342 = vunpack.c.h.b16 %v4646
      %v5343 = vunpack.c.l.b16 %v4647
      %v5344 = vunpack.c.l.b16 %v4648
      %v5345 = vunpack.c.h.b16 %v4648
      %v5346 = vunpack.c.l.b16 %v4649
      %v5347 = vunpack.c.h.b16 %v4649
      %v5348 = vunpack.c.l.b16 %v4650
      %v5349 = vunpack.c.h.b16 %v4650
      %v5350 = vunpack.c.l.b16 %v4651
      %v5351 = vunpack.c.l.b16 %v4652
      %v5352 = vunpack.c.h.b16 %v4652
      %v5353 = vunpack.c.l.b16 %v4653
      %v5354 = vunpack.c.h.b16 %v4653
      %v5355 = vunpack.c.l.b16 %v4654
      %v5356 = vunpack.c.h.b16 %v4654
      %v5357 = vunpack.c.l.b16 %v4655
      %v5358 = vunpack.c.l.b16 %v4656
      %v5359 = vunpack.c.h.b16 %v4656
      %v5360 = vunpack.c.l.b16 %v4657
      %v5361 = vunpack.c.h.b16 %v4657
      %v5362 = vunpack.c.l.b16 %v4658
      %v5363 = vunpack.c.h.b16 %v4658
      %v5364 = vunpack.c.l.b16 %v4659
      %v5365 = vunpack.c.l.b16 %v4660
      %v5366 = vunpack.c.h.b16 %v4660
      %v5367 = vunpack.c.l.b16 %v4661
      %v5368 = vunpack.c.h.b16 %v4661
      %v5369 = vunpack.c.l.b16 %v4662
      %v5370 = vunpack.c.h.b16 %v4662
      %v5371 = vunpack.c.l.b16 %v4663
      %v5372 = vunpack.c.l.b16 %v4664
      %v5373 = vunpack.c.h.b16 %v4664
      %v5374 = vunpack.c.l.b16 %v4665
      %v5375 = vunpack.c.h.b16 %v4665
      %v5376 = vunpack.c.l.b16 %v4666
      %v5377 = vunpack.c.h.b16 %v4666
      %v5378 = vunpack.c.l.b16 %v4667
      %v5379 = vunpack.c.l.b16 %v4668
      %v5380 = vunpack.c.h.b16 %v4668
      %v5381 = vunpack.c.l.b16 %v4669
      %v5382 = vunpack.c.h.b16 %v4669
      %v5383 = vunpack.c.l.b16 %v4670
      %v5384 = vunpack.c.h.b16 %v4670
      %v5385 = vunpack.c.l.b16 %v4671
      %v5386 = vunpack.c.l.b16 %v4672
      %v5387 = vunpack.c.h.b16 %v4672
      %v5388 = vunpack.c.l.b16 %v4673
      %v5389 = vunpack.c.h.b16 %v4673
      %v5390 = vunpack.c.l.b16 %v4674
      %v5391 = vunpack.c.h.b16 %v4674
      %v5392 = vunpack.c.l.b16 %v4675
      %v5393 = vunpack.c.l.b16 %v4676
      %v5394 = vunpack.c.h.b16 %v4676
      %v5395 = vunpack.c.l.b16 %v4677
      %v5396 = vunpack.c.h.b16 %v4677
      %v5397 = vunpack.c.l.b16 %v4678
      %v5398 = vunpack.c.h.b16 %v4678
      %v5399 = vunpack.c.l.b16 %v4679
      %v5400 = vunpack.c.l.b16 %v4680
      %v5401 = vunpack.c.h.b16 %v4680
      %v5402 = vunpack.c.l.b16 %v4681
      %v5403 = vunpack.c.h.b16 %v4681
      %v5404 = vunpack.c.l.b16 %v4682
      %v5405 = vunpack.c.h.b16 %v4682
      %v5406 = vunpack.c.l.b16 %v4683
      %v5407 = vunpack.c.l.b16 %v4684
      %v5408 = vunpack.c.h.b16 %v4684
      %v5409 = vunpack.c.l.b16 %v4685
      %v5410 = vunpack.c.h.b16 %v4685
      %v5411 = vunpack.c.l.b16 %v4686
      %v5412 = vunpack.c.h.b16 %v4686
      %v5413 = vunpack.c.l.b16 %v4687
      %v5414 = vunpack.c.l.b16 %v4688
      %v5415 = vunpack.c.h.b16 %v4688
      %v5416 = vunpack.c.l.b16 %v4689
      %v5417 = vunpack.c.h.b16 %v4689
      %v5418 = vunpack.c.l.b16 %v4690
      %v5419 = vunpack.c.h.b16 %v4690
      %v5420 = vunpack.c.l.b16 %v4691
      %v5421 = vunpack.c.l.b16 %v4692
      %v5422 = vunpack.c.h.b16 %v4692
      %v5423 = vunpack.c.l.b16 %v4693
      %v5424 = vunpack.c.h.b16 %v4693
      %v5425 = vunpack.c.l.b16 %v4694
      %v5426 = vunpack.c.h.b16 %v4694
      %v5427 = vunpack.c.l.b16 %v4695
      %v5428 = vunpack.c.l.b16 %v4696
      %v5429 = vunpack.c.h.b16 %v4696
      %v5430 = vunpack.c.l.b16 %v4697
      %v5431 = vunpack.c.h.b16 %v4697
      %v5432 = vunpack.c.l.b16 %v4698
      %v5433 = vunpack.c.h.b16 %v4698
      %v5434 = vunpack.c.l.b16 %v4699
      %v5435 = vunpack.c.l.b16 %v4700
      %v5436 = vunpack.c.h.b16 %v4700
      %v5437 = vunpack.c.l.b16 %v4701
      %v5438 = vunpack.c.h.b16 %v4701
      %v5439 = vunpack.c.l.b16 %v4702
      %v5440 = vunpack.c.h.b16 %v4702
      %v5441 = vunpack.c.l.b16 %v4703
      %v5442 = vunpack.c.l.b16 %v4704
      %v5443 = vunpack.c.h.b16 %v4704
      %v5444 = vunpack.c.l.b16 %v4705
      %v5445 = vunpack.c.h.b16 %v4705
      %v5446 = vunpack.c.l.b16 %v4706
      %v5447 = vunpack.c.h.b16 %v4706
      %v5448 = vunpack.c.l.b16 %v4707
      %v5449 = vpack.c.b16 %v5008, %v5001
      %v5450 = vpack.c.b16 %v5009, %v5002
      %v5451 = vpack.c.b16 %v5010, %v5003
      %v5452 = vpack.c.b16 %v5011, %v5004
      %v5453 = vpack.c.b16 %v5012, %v5005
      %v5454 = vpack.c.b16 %v5013, %v5006
      %v5455 = vpack.c.b16 %v5014, %v5007
      %v5456 = vpack.c.b16 %v5022, %v5015
      %v5457 = vpack.c.b16 %v5023, %v5016
      %v5458 = vpack.c.b16 %v5024, %v5017
      %v5459 = vpack.c.b16 %v5025, %v5018
      %v5460 = vpack.c.b16 %v5026, %v5019
      %v5461 = vpack.c.b16 %v5027, %v5020
      %v5462 = vpack.c.b16 %v5028, %v5021
      %v5463 = vpack.c.b16 %v5036, %v5029
      %v5464 = vpack.c.b16 %v5037, %v5030
      %v5465 = vpack.c.b16 %v5038, %v5031
      %v5466 = vpack.c.b16 %v5039, %v5032
      %v5467 = vpack.c.b16 %v5040, %v5033
      %v5468 = vpack.c.b16 %v5041, %v5034
      %v5469 = vpack.c.b16 %v5042, %v5035
      %v5470 = vpack.c.b16 %v5050, %v5043
      %v5471 = vpack.c.b16 %v5051, %v5044
      %v5472 = vpack.c.b16 %v5052, %v5045
      %v5473 = vpack.c.b16 %v5053, %v5046
      %v5474 = vpack.c.b16 %v5054, %v5047
      %v5475 = vpack.c.b16 %v5055, %v5048
      %v5476 = vpack.c.b16 %v5056, %v5049
      %v5477 = vpack.c.b16 %v5064, %v5057
      %v5478 = vpack.c.b16 %v5065, %v5058
      %v5479 = vpack.c.b16 %v5066, %v5059
      %v5480 = vpack.c.b16 %v5067, %v5060
      %v5481 = vpack.c.b16 %v5068, %v5061
      %v5482 = vpack.c.b16 %v5069, %v5062
      %v5483 = vpack.c.b16 %v5070, %v5063
      %v5484 = vpack.c.b16 %v5078, %v5071
      %v5485 = vpack.c.b16 %v5079, %v5072
      %v5486 = vpack.c.b16 %v5080, %v5073
      %v5487 = vpack.c.b16 %v5081, %v5074
      %v5488 = vpack.c.b16 %v5082, %v5075
      %v5489 = vpack.c.b16 %v5083, %v5076
      %v5490 = vpack.c.b16 %v5084, %v5077
      %v5491 = vpack.c.b16 %v5092, %v5085
      %v5492 = vpack.c.b16 %v5093, %v5086
      %v5493 = vpack.c.b16 %v5094, %v5087
      %v5494 = vpack.c.b16 %v5095, %v5088
      %v5495 = vpack.c.b16 %v5096, %v5089
      %v5496 = vpack.c.b16 %v5097, %v5090
      %v5497 = vpack.c.b16 %v5098, %v5091
      %v5498 = vpack.c.b16 %v5106, %v5099
      %v5499 = vpack.c.b16 %v5107, %v5100
      %v5500 = vpack.c.b16 %v5108, %v5101
      %v5501 = vpack.c.b16 %v5109, %v5102
      %v5502 = vpack.c.b16 %v5110, %v5103
      %v5503 = vpack.c.b16 %v5111, %v5104
      %v5504 = vpack.c.b16 %v5112, %v5105
      %v5505 = vpack.c.b16 %v5120, %v5113
      %v5506 = vpack.c.b16 %v5121, %v5114
      %v5507 = vpack.c.b16 %v5122, %v5115
      %v5508 = vpack.c.b16 %v5123, %v5116
      %v5509 = vpack.c.b16 %v5124, %v5117
      %v5510 = vpack.c.b16 %v5125, %v5118
      %v5511 = vpack.c.b16 %v5126, %v5119
      %v5512 = vpack.c.b16 %v5134, %v5127
      %v5513 = vpack.c.b16 %v5135, %v5128
      %v5514 = vpack.c.b16 %v5136, %v5129
      %v5515 = vpack.c.b16 %v5137, %v5130
      %v5516 = vpack.c.b16 %v5138, %v5131
      %v5517 = vpack.c.b16 %v5139, %v5132
      %v5518 = vpack.c.b16 %v5140, %v5133
      %v5519 = vpack.c.b16 %v5148, %v5141
      %v5520 = vpack.c.b16 %v5149, %v5142
      %v5521 = vpack.c.b16 %v5150, %v5143
      %v5522 = vpack.c.b16 %v5151, %v5144
      %v5523 = vpack.c.b16 %v5152, %v5145
      %v5524 = vpack.c.b16 %v5153, %v5146
      %v5525 = vpack.c.b16 %v5154, %v5147
      %v5526 = vpack.c.b16 %v5162, %v5155
      %v5527 = vpack.c.b16 %v5163, %v5156
      %v5528 = vpack.c.b16 %v5164, %v5157
      %v5529 = vpack.c.b16 %v5165, %v5158
      %v5530 = vpack.c.b16 %v5166, %v5159
      %v5531 = vpack.c.b16 %v5167, %v5160
      %v5532 = vpack.c.b16 %v5168, %v5161
      %v5533 = vpack.c.b16 %v5176, %v5169
      %v5534 = vpack.c.b16 %v5177, %v5170
      %v5535 = vpack.c.b16 %v5178, %v5171
      %v5536 = vpack.c.b16 %v5179, %v5172
      %v5537 = vpack.c.b16 %v5180, %v5173
      %v5538 = vpack.c.b16 %v5181, %v5174
      %v5539 = vpack.c.b16 %v5182, %v5175
      %v5540 = vpack.c.b16 %v5190, %v5183
      %v5541 = vpack.c.b16 %v5191, %v5184
      %v5542 = vpack.c.b16 %v5192, %v5185
      %v5543 = vpack.c.b16 %v5193, %v5186
      %v5544 = vpack.c.b16 %v5194, %v5187
      %v5545 = vpack.c.b16 %v5195, %v5188
      %v5546 = vpack.c.b16 %v5196, %v5189
      %v5547 = vpack.c.b16 %v5204, %v5197
      %v5548 = vpack.c.b16 %v5205, %v5198
      %v5549 = vpack.c.b16 %v5206, %v5199
      %v5550 = vpack.c.b16 %v5207, %v5200
      %v5551 = vpack.c.b16 %v5208, %v5201
      %v5552 = vpack.c.b16 %v5209, %v5202
      %v5553 = vpack.c.b16 %v5210, %v5203
      %v5554 = vpack.c.b16 %v5218, %v5211
      %v5555 = vpack.c.b16 %v5219, %v5212
      %v5556 = vpack.c.b16 %v5220, %v5213
      %v5557 = vpack.c.b16 %v5221, %v5214
      %v5558 = vpack.c.b16 %v5222, %v5215
      %v5559 = vpack.c.b16 %v5223, %v5216
      %v5560 = vpack.c.b16 %v5224, %v5217
      %v5561 = vpack.c.b16 %v5232, %v5225
      %v5562 = vpack.c.b16 %v5233, %v5226
      %v5563 = vpack.c.b16 %v5234, %v5227
      %v5564 = vpack.c.b16 %v5235, %v5228
      %v5565 = vpack.c.b16 %v5236, %v5229
      %v5566 = vpack.c.b16 %v5237, %v5230
      %v5567 = vpack.c.b16 %v5238, %v5231
      %v5568 = vpack.c.b16 %v5246, %v5239
      %v5569 = vpack.c.b16 %v5247, %v5240
      %v5570 = vpack.c.b16 %v5248, %v5241
      %v5571 = vpack.c.b16 %v5249, %v5242
      %v5572 = vpack.c.b16 %v5250, %v5243
      %v5573 = vpack.c.b16 %v5251, %v5244
      %v5574 = vpack.c.b16 %v5252, %v5245
      %v5575 = vpack.c.b16 %v5260, %v5253
      %v5576 = vpack.c.b16 %v5261, %v5254
      %v5577 = vpack.c.b16 %v5262, %v5255
      %v5578 = vpack.c.b16 %v5263, %v5256
      %v5579 = vpack.c.b16 %v5264, %v5257
      %v5580 = vpack.c.b16 %v5265, %v5258
      %v5581 = vpack.c.b16 %v5266, %v5259
      %v5582 = vpack.c.b16 %v5274, %v5267
      %v5583 = vpack.c.b16 %v5275, %v5268
      %v5584 = vpack.c.b16 %v5276, %v5269
      %v5585 = vpack.c.b16 %v5277, %v5270
      %v5586 = vpack.c.b16 %v5278, %v5271
      %v5587 = vpack.c.b16 %v5279, %v5272
      %v5588 = vpack.c.b16 %v5280, %v5273
      %v5589 = vpack.c.b16 %v5288, %v5281
      %v5590 = vpack.c.b16 %v5289, %v5282
      %v5591 = vpack.c.b16 %v5290, %v5283
      %v5592 = vpack.c.b16 %v5291, %v5284
      %v5593 = vpack.c.b16 %v5292, %v5285
      %v5594 = vpack.c.b16 %v5293, %v5286
      %v5595 = vpack.c.b16 %v5294, %v5287
      %v5596 = vpack.c.b16 %v5302, %v5295
      %v5597 = vpack.c.b16 %v5303, %v5296
      %v5598 = vpack.c.b16 %v5304, %v5297
      %v5599 = vpack.c.b16 %v5305, %v5298
      %v5600 = vpack.c.b16 %v5306, %v5299
      %v5601 = vpack.c.b16 %v5307, %v5300
      %v5602 = vpack.c.b16 %v5308, %v5301
      %v5603 = vpack.c.b16 %v5316, %v5309
      %v5604 = vpack.c.b16 %v5317, %v5310
      %v5605 = vpack.c.b16 %v5318, %v5311
      %v5606 = vpack.c.b16 %v5319, %v5312
      %v5607 = vpack.c.b16 %v5320, %v5313
      %v5608 = vpack.c.b16 %v5321, %v5314
      %v5609 = vpack.c.b16 %v5322, %v5315
      %v5610 = vpack.c.b16 %v5330, %v5323
      %v5611 = vpack.c.b16 %v5331, %v5324
      %v5612 = vpack.c.b16 %v5332, %v5325
      %v5613 = vpack.c.b16 %v5333, %v5326
      %v5614 = vpack.c.b16 %v5334, %v5327
      %v5615 = vpack.c.b16 %v5335, %v5328
      %v5616 = vpack.c.b16 %v5336, %v5329
      %v5617 = vpack.c.b16 %v5344, %v5337
      %v5618 = vpack.c.b16 %v5345, %v5338
      %v5619 = vpack.c.b16 %v5346, %v5339
      %v5620 = vpack.c.b16 %v5347, %v5340
      %v5621 = vpack.c.b16 %v5348, %v5341
      %v5622 = vpack.c.b16 %v5349, %v5342
      %v5623 = vpack.c.b16 %v5350, %v5343
      %v5624 = vpack.c.b16 %v5358, %v5351
      %v5625 = vpack.c.b16 %v5359, %v5352
      %v5626 = vpack.c.b16 %v5360, %v5353
      %v5627 = vpack.c.b16 %v5361, %v5354
      %v5628 = vpack.c.b16 %v5362, %v5355
      %v5629 = vpack.c.b16 %v5363, %v5356
      %v5630 = vpack.c.b16 %v5364, %v5357
      %v5631 = vpack.c.b16 %v5372, %v5365
      %v5632 = vpack.c.b16 %v5373, %v5366
      %v5633 = vpack.c.b16 %v5374, %v5367
      %v5634 = vpack.c.b16 %v5375, %v5368
      %v5635 = vpack.c.b16 %v5376, %v5369
      %v5636 = vpack.c.b16 %v5377, %v5370
      %v5637 = vpack.c.b16 %v5378, %v5371
      %v5638 = vpack.c.b16 %v5386, %v5379
      %v5639 = vpack.c.b16 %v5387, %v5380
      %v5640 = vpack.c.b16 %v5388, %v5381
      %v5641 = vpack.c.b16 %v5389, %v5382
      %v5642 = vpack.c.b16 %v5390, %v5383
      %v5643 = vpack.c.b16 %v5391, %v5384
      %v5644 = vpack.c.b16 %v5392, %v5385
      %v5645 = vpack.c.b16 %v5400, %v5393
      %v5646 = vpack.c.b16 %v5401, %v5394
      %v5647 = vpack.c.b16 %v5402, %v5395
      %v5648 = vpack.c.b16 %v5403, %v5396
      %v5649 = vpack.c.b16 %v5404, %v5397
      %v5650 = vpack.c.b16 %v5405, %v5398
      %v5651 = vpack.c.b16 %v5406, %v5399
      %v5652 = vpack.c.b16 %v5414, %v5407
      %v5653 = vpack.c.b16 %v5415, %v5408
      %v5654 = vpack.c.b16 %v5416, %v5409
      %v5655 = vpack.c.b16 %v5417, %v5410
      %v5656 = vpack.c.b16 %v5418, %v5411
      %v5657 = vpack.c.b16 %v5419, %v5412
      %v5658 = vpack.c.b16 %v5420, %v5413
      %v5659 = vpack.c.b16 %v5428, %v5421
      %v5660 = vpack.c.b16 %v5429, %v5422
      %v5661 = vpack.c.b16 %v5430, %v5423
      %v5662 = vpack.c.b16 %v5431, %v5424
      %v5663 = vpack.c.b16 %v5432, %v5425
      %v5664 = vpack.c.b16 %v5433, %v5426
      %v5665 = vpack.c.b16 %v5434, %v5427
      %v5666 = vpack.c.b16 %v5442, %v5435
      %v5667 = vpack.c.b16 %v5443, %v5436
      %v5668 = vpack.c.b16 %v5444, %v5437
      %v5669 = vpack.c.b16 %v5445, %v5438
      %v5670 = vpack.c.b16 %v5446, %v5439
      %v5671 = vpack.c.b16 %v5447, %v5440
      %v5672 = vpack.c.b16 %v5448, %v5441
      %5897 = vmatprep.subr.bf16.mxu0 %v5499
      %5898 = vmatpush1.bf16.msra.mxu0 %v5498
      %5899 = vmatprep.subr.bf16.mxu0 %v5492
      %5900 = vmatpush1.bf16.msra.mxu0 %v5491
      %5901 = vmatprep.subr.bf16.mxu0 %v5485
      %5902 = vmatpush1.bf16.msra.mxu0 %v5484
      %5903 = vmatprep.subr.bf16.mxu0 %v5478
      %5904 = vmatpush1.bf16.msra.mxu0 %v5477
      %5905 = vmatprep.subr.bf16.mxu0 %v5471
      %5906 = vmatpush1.bf16.msra.mxu0 %v5470
      %5907 = vmatprep.subr.bf16.mxu0 %v5464
      %5908 = vmatpush1.bf16.msra.mxu0 %v5463
      %5909 = vmatprep.subr.bf16.mxu0 %v5457
      %5910 = vmatpush1.bf16.msra.mxu0 %v5456
      %5911 = vmatprep.subr.bf16.mxu0 %v5450
      %5912 = vmatpush1.bf16.msra.mxu0 %v5449
      %5913 = vmatprep.subr.bf16.mxu0 %v5555
      %5914 = vmatpush2.bf16.msra.mxu0 %v5554
      %5915 = vmatprep.subr.bf16.mxu0 %v5548
      %5916 = vmatpush2.bf16.msra.mxu0 %v5547
      %5917 = vmatprep.subr.bf16.mxu0 %v5541
      %5918 = vmatpush2.bf16.msra.mxu0 %v5540
      %5919 = vmatprep.subr.bf16.mxu0 %v5534
      %5920 = vmatpush2.bf16.msra.mxu0 %v5533
      %5921 = vmatprep.subr.bf16.mxu0 %v5527
      %5922 = vmatpush2.bf16.msra.mxu0 %v5526
      %5923 = vmatprep.subr.bf16.mxu0 %v5520
      %5924 = vmatpush2.bf16.msra.mxu0 %v5519
      %5925 = vmatprep.subr.bf16.mxu0 %v5513
      %5926 = vmatpush2.bf16.msra.mxu0 %v5512
      %5927 = vmatprep.subr.bf16.mxu0 %v5506
      %5928 = vmatpush2.bf16.msra.mxu0 %v5505
      %5929 = vmatprep.mubr.bf16.mxu0 %v4421
      %5930 = vmatmul.mubr.bf16.gmra.mxu0 %v4420
      %v5931 = vpop.f32.mrf.mxu0
      %v5932 = vadd.f32 %v4713, %v5931
      %v5933 = vpop.f32.mrf.mxu0
      %v5934 = vadd.f32 %v4717, %v5933
      %v5935 = vpop.f32.mrf.mxu0
      %v5936 = vadd.f32 %v4713, %v5935
      %v5937 = vpop.f32.mrf.mxu0
      %v5938 = vadd.f32 %v4717, %v5937
      %5939 = vmatprep.mubr.bf16.mxu0 %v4425
      %5940 = vmatmul.mubr.bf16.gmra.mxu0 %v4424
      %v5941 = vpop.f32.mrf.mxu0
      %v5942 = vadd.f32 %v4713, %v5941
      %v5943 = vpop.f32.mrf.mxu0
      %v5944 = vadd.f32 %v4717, %v5943
      %v5945 = vpop.f32.mrf.mxu0
      %v5946 = vadd.f32 %v4713, %v5945
      %v5947 = vpop.f32.mrf.mxu0
      %v5948 = vadd.f32 %v4717, %v5947
      %5949 = vmatprep.mubr.bf16.mxu0 %v4429
      %5950 = vmatmul.mubr.bf16.gmra.mxu0 %v4428
      %v5951 = vpop.f32.mrf.mxu0
      %v5952 = vadd.f32 %v4713, %v5951
      %v5953 = vpop.f32.mrf.mxu0
      %v5954 = vadd.f32 %v4717, %v5953
      %v5955 = vpop.f32.mrf.mxu0
      %v5956 = vadd.f32 %v4713, %v5955
      %v5957 = vpop.f32.mrf.mxu0
      %v5958 = vadd.f32 %v4717, %v5957
      %5959 = vmatprep.mubr.bf16.mxu0 %v4433
      %5960 = vmatmul.mubr.bf16.gmra.mxu0 %v4432
      %v5961 = vpop.f32.mrf.mxu0
      %v5962 = vadd.f32 %v4713, %v5961
      %v5963 = vpop.f32.mrf.mxu0
      %v5964 = vadd.f32 %v4717, %v5963
      %v5965 = vpop.f32.mrf.mxu0
      %v5966 = vadd.f32 %v4713, %v5965
      %v5967 = vpop.f32.mrf.mxu0
      %v5968 = vadd.f32 %v4717, %v5967
      %5969 = vmatprep.mubr.bf16.mxu0 %v4437
      %5970 = vmatmul.mubr.bf16.gmra.mxu0 %v4436
      %v5971 = vpop.f32.mrf.mxu0
      %v5972 = vadd.f32 %v4713, %v5971
      %v5973 = vpop.f32.mrf.mxu0
      %v5974 = vadd.f32 %v4717, %v5973
      %v5975 = vpop.f32.mrf.mxu0
      %v5976 = vadd.f32 %v4713, %v5975
      %v5977 = vpop.f32.mrf.mxu0
      %v5978 = vadd.f32 %v4717, %v5977
      %5979 = vmatprep.mubr.bf16.mxu0 %v4441
      %5980 = vmatmul.mubr.bf16.gmra.mxu0 %v4440
      %v5981 = vpop.f32.mrf.mxu0
      %v5982 = vadd.f32 %v4713, %v5981
      %v5983 = vpop.f32.mrf.mxu0
      %v5984 = vadd.f32 %v4717, %v5983
      %v5985 = vpop.f32.mrf.mxu0
      %v5986 = vadd.f32 %v4713, %v5985
      %v5987 = vpop.f32.mrf.mxu0
      %v5988 = vadd.f32 %v4717, %v5987
      %5989 = vmatprep.mubr.bf16.mxu0 %v4445
      %5990 = vmatmul.mubr.bf16.gmra.mxu0 %v4444
      %v5991 = vpop.f32.mrf.mxu0
      %v5992 = vadd.f32 %v4713, %v5991
      %v5993 = vpop.f32.mrf.mxu0
      %v5994 = vadd.f32 %v4717, %v5993
      %v5995 = vpop.f32.mrf.mxu0
      %v5996 = vadd.f32 %v4713, %v5995
      %v5997 = vpop.f32.mrf.mxu0
      %v5998 = vadd.f32 %v4717, %v5997
      %5999 = vmatprep.mubr.bf16.mxu0 %v4449
      %6000 = vmatmul.mubr.bf16.gmra.mxu0 %v4448
      %v6001 = vpop.f32.mrf.mxu0
      %v6002 = vadd.f32 %v4713, %v6001
      %v6003 = vpop.f32.mrf.mxu0
      %v6004 = vadd.f32 %v4717, %v6003
      %v6005 = vpop.f32.mrf.mxu0
      %v6006 = vadd.f32 %v4713, %v6005
      %v6007 = vpop.f32.mrf.mxu0
      %v6008 = vadd.f32 %v4717, %v6007
      %6009 = vdwg.mxu0
      %6010 = vmatprep.subr.bf16.mxu0 %v5611
      %6011 = vmatpush1.bf16.msra.mxu0 %v5610
      %6012 = vmatprep.subr.bf16.mxu0 %v5604
      %6013 = vmatpush1.bf16.msra.mxu0 %v5603
      %6014 = vmatprep.subr.bf16.mxu0 %v5597
      %6015 = vmatpush1.bf16.msra.mxu0 %v5596
      %6016 = vmatprep.subr.bf16.mxu0 %v5590
      %6017 = vmatpush1.bf16.msra.mxu0 %v5589
      %6018 = vmatprep.subr.bf16.mxu0 %v5583
      %6019 = vmatpush1.bf16.msra.mxu0 %v5582
      %6020 = vmatprep.subr.bf16.mxu0 %v5576
      %6021 = vmatpush1.bf16.msra.mxu0 %v5575
      %6022 = vmatprep.subr.bf16.mxu0 %v5569
      %6023 = vmatpush1.bf16.msra.mxu0 %v5568
      %6024 = vmatprep.subr.bf16.mxu0 %v5562
      %6025 = vmatpush1.bf16.msra.mxu0 %v5561
      %6026 = vmatprep.subr.bf16.mxu0 %v5667
      %6027 = vmatpush2.bf16.msra.mxu0 %v5666
      %6028 = vmatprep.subr.bf16.mxu0 %v5660
      %6029 = vmatpush2.bf16.msra.mxu0 %v5659
      %6030 = vmatprep.subr.bf16.mxu0 %v5653
      %6031 = vmatpush2.bf16.msra.mxu0 %v5652
      %6032 = vmatprep.subr.bf16.mxu0 %v5646
      %6033 = vmatpush2.bf16.msra.mxu0 %v5645
      %6034 = vmatprep.subr.bf16.mxu0 %v5639
      %6035 = vmatpush2.bf16.msra.mxu0 %v5638
      %6036 = vmatprep.subr.bf16.mxu0 %v5632
      %6037 = vmatpush2.bf16.msra.mxu0 %v5631
      %6038 = vmatprep.subr.bf16.mxu0 %v5625
      %6039 = vmatpush2.bf16.msra.mxu0 %v5624
      %6040 = vmatprep.subr.bf16.mxu0 %v5618
      %6041 = vmatpush2.bf16.msra.mxu0 %v5617
      %6042 = vmatprep.mubr.bf16.mxu0 %v4423
      %6043 = vmatmul.mubr.bf16.gmra.mxu0 %v4422
      %v6044 = vpop.f32.mrf.mxu0
      %v6045 = vadd.f32 %v5932, %v6044
      %v6046 = vpop.f32.mrf.mxu0
      %v6047 = vadd.f32 %v5934, %v6046
      %v6048 = vpop.f32.mrf.mxu0
      %v6049 = vadd.f32 %v5936, %v6048
      %v6050 = vpop.f32.mrf.mxu0
      %v6051 = vadd.f32 %v5938, %v6050
      %6052 = vmatprep.mubr.bf16.mxu0 %v4427
      %6053 = vmatmul.mubr.bf16.gmra.mxu0 %v4426
      %v6054 = vpop.f32.mrf.mxu0
      %v6055 = vadd.f32 %v5942, %v6054
      %v6056 = vpop.f32.mrf.mxu0
      %v6057 = vadd.f32 %v5944, %v6056
      %v6058 = vpop.f32.mrf.mxu0
      %v6059 = vadd.f32 %v5946, %v6058
      %v6060 = vpop.f32.mrf.mxu0
      %v6061 = vadd.f32 %v5948, %v6060
      %6062 = vmatprep.mubr.bf16.mxu0 %v4431
      %6063 = vmatmul.mubr.bf16.gmra.mxu0 %v4430
      %v6064 = vpop.f32.mrf.mxu0
      %v6065 = vadd.f32 %v5952, %v6064
      %v6066 = vpop.f32.mrf.mxu0
      %v6067 = vadd.f32 %v5954, %v6066
      %v6068 = vpop.f32.mrf.mxu0
      %v6069 = vadd.f32 %v5956, %v6068
      %v6070 = vpop.f32.mrf.mxu0
      %v6071 = vadd.f32 %v5958, %v6070
      %6072 = vmatprep.mubr.bf16.mxu0 %v4435
      %6073 = vmatmul.mubr.bf16.gmra.mxu0 %v4434
      %v6074 = vpop.f32.mrf.mxu0
      %v6075 = vadd.f32 %v5962, %v6074
      %v6076 = vpop.f32.mrf.mxu0
      %v6077 = vadd.f32 %v5964, %v6076
      %v6078 = vpop.f32.mrf.mxu0
      %v6079 = vadd.f32 %v5966, %v6078
      %v6080 = vpop.f32.mrf.mxu0
      %v6081 = vadd.f32 %v5968, %v6080
      %6082 = vmatprep.mubr.bf16.mxu0 %v4439
      %6083 = vmatmul.mubr.bf16.gmra.mxu0 %v4438
      %v6084 = vpop.f32.mrf.mxu0
      %v6085 = vadd.f32 %v5972, %v6084
      %v6086 = vpop.f32.mrf.mxu0
      %v6087 = vadd.f32 %v5974, %v6086
      %v6088 = vpop.f32.mrf.mxu0
      %v6089 = vadd.f32 %v5976, %v6088
      %v6090 = vpop.f32.mrf.mxu0
      %v6091 = vadd.f32 %v5978, %v6090
      %6092 = vmatprep.mubr.bf16.mxu0 %v4443
      %6093 = vmatmul.mubr.bf16.gmra.mxu0 %v4442
      %v6094 = vpop.f32.mrf.mxu0
      %v6095 = vadd.f32 %v5982, %v6094
      %v6096 = vpop.f32.mrf.mxu0
      %v6097 = vadd.f32 %v5984, %v6096
      %v6098 = vpop.f32.mrf.mxu0
      %v6099 = vadd.f32 %v5986, %v6098
      %v6100 = vpop.f32.mrf.mxu0
      %v6101 = vadd.f32 %v5988, %v6100
      %6102 = vmatprep.mubr.bf16.mxu0 %v4447
      %6103 = vmatmul.mubr.bf16.gmra.mxu0 %v4446
      %v6104 = vpop.f32.mrf.mxu0
      %v6105 = vadd.f32 %v5992, %v6104
      %v6106 = vpop.f32.mrf.mxu0
      %v6107 = vadd.f32 %v5994, %v6106
      %v6108 = vpop.f32.mrf.mxu0
      %v6109 = vadd.f32 %v5996, %v6108
      %v6110 = vpop.f32.mrf.mxu0
      %v6111 = vadd.f32 %v5998, %v6110
      %6112 = vmatprep.mubr.bf16.mxu0 %v4451
      %6113 = vmatmul.mubr.bf16.gmra.mxu0 %v4450
      %v6114 = vpop.f32.mrf.mxu0
      %v6115 = vadd.f32 %v6002, %v6114
      %v6116 = vpop.f32.mrf.mxu0
      %v6117 = vadd.f32 %v6004, %v6116
      %v6118 = vpop.f32.mrf.mxu0
      %v6119 = vadd.f32 %v6006, %v6118
      %v6120 = vpop.f32.mrf.mxu0
      %v6121 = vadd.f32 %v6008, %v6120
      %6122 = vdwg.mxu0
      %6123 = vmatprep.subr.bf16.mxu0 %v5501
      %6124 = vmatpush1.bf16.msra.mxu0 %v5500
      %6125 = vmatprep.subr.bf16.mxu0 %v5494
      %6126 = vmatpush1.bf16.msra.mxu0 %v5493
      %6127 = vmatprep.subr.bf16.mxu0 %v5487
      %6128 = vmatpush1.bf16.msra.mxu0 %v5486
      %6129 = vmatprep.subr.bf16.mxu0 %v5480
      %6130 = vmatpush1.bf16.msra.mxu0 %v5479
      %6131 = vmatprep.subr.bf16.mxu0 %v5473
      %6132 = vmatpush1.bf16.msra.mxu0 %v5472
      %6133 = vmatprep.subr.bf16.mxu0 %v5466
      %6134 = vmatpush1.bf16.msra.mxu0 %v5465
      %6135 = vmatprep.subr.bf16.mxu0 %v5459
      %6136 = vmatpush1.bf16.msra.mxu0 %v5458
      %6137 = vmatprep.subr.bf16.mxu0 %v5452
      %6138 = vmatpush1.bf16.msra.mxu0 %v5451
      %6139 = vmatprep.subr.bf16.mxu0 %v5557
      %6140 = vmatpush2.bf16.msra.mxu0 %v5556
      %6141 = vmatprep.subr.bf16.mxu0 %v5550
      %6142 = vmatpush2.bf16.msra.mxu0 %v5549
      %6143 = vmatprep.subr.bf16.mxu0 %v5543
      %6144 = vmatpush2.bf16.msra.mxu0 %v5542
      %6145 = vmatprep.subr.bf16.mxu0 %v5536
      %6146 = vmatpush2.bf16.msra.mxu0 %v5535
      %6147 = vmatprep.subr.bf16.mxu0 %v5529
      %6148 = vmatpush2.bf16.msra.mxu0 %v5528
      %6149 = vmatprep.subr.bf16.mxu0 %v5522
      %6150 = vmatpush2.bf16.msra.mxu0 %v5521
      %6151 = vmatprep.subr.bf16.mxu0 %v5515
      %6152 = vmatpush2.bf16.msra.mxu0 %v5514
      %6153 = vmatprep.subr.bf16.mxu0 %v5508
      %6154 = vmatpush2.bf16.msra.mxu0 %v5507
      %6155 = vmatprep.mubr.bf16.mxu0 %v4421
      %6156 = vmatmul.mubr.bf16.gmra.mxu0 %v4420
      %v6157 = vpop.f32.mrf.mxu0
      %v6158 = vadd.f32 %v4721, %v6157
      %v6159 = vpop.f32.mrf.mxu0
      %v6160 = vadd.f32 %v4725, %v6159
      %v6161 = vpop.f32.mrf.mxu0
      %v6162 = vadd.f32 %v4721, %v6161
      %v6163 = vpop.f32.mrf.mxu0
      %v6164 = vadd.f32 %v4725, %v6163
      %6165 = vmatprep.mubr.bf16.mxu0 %v4425
      %6166 = vmatmul.mubr.bf16.gmra.mxu0 %v4424
      %v6167 = vpop.f32.mrf.mxu0
      %v6168 = vadd.f32 %v4721, %v6167
      %v6169 = vpop.f32.mrf.mxu0
      %v6170 = vadd.f32 %v4725, %v6169
      %v6171 = vpop.f32.mrf.mxu0
      %v6172 = vadd.f32 %v4721, %v6171
      %v6173 = vpop.f32.mrf.mxu0
      %v6174 = vadd.f32 %v4725, %v6173
      %6175 = vmatprep.mubr.bf16.mxu0 %v4429
      %6176 = vmatmul.mubr.bf16.gmra.mxu0 %v4428
      %v6177 = vpop.f32.mrf.mxu0
      %v6178 = vadd.f32 %v4721, %v6177
      %v6179 = vpop.f32.mrf.mxu0
      %v6180 = vadd.f32 %v4725, %v6179
      %v6181 = vpop.f32.mrf.mxu0
      %v6182 = vadd.f32 %v4721, %v6181
      %v6183 = vpop.f32.mrf.mxu0
      %v6184 = vadd.f32 %v4725, %v6183
      %6185 = vmatprep.mubr.bf16.mxu0 %v4433
      %6186 = vmatmul.mubr.bf16.gmra.mxu0 %v4432
      %v6187 = vpop.f32.mrf.mxu0
      %v6188 = vadd.f32 %v4721, %v6187
      %v6189 = vpop.f32.mrf.mxu0
      %v6190 = vadd.f32 %v4725, %v6189
      %v6191 = vpop.f32.mrf.mxu0
      %v6192 = vadd.f32 %v4721, %v6191
      %v6193 = vpop.f32.mrf.mxu0
      %v6194 = vadd.f32 %v4725, %v6193
      %6195 = vmatprep.mubr.bf16.mxu0 %v4437
      %6196 = vmatmul.mubr.bf16.gmra.mxu0 %v4436
      %v6197 = vpop.f32.mrf.mxu0
      %v6198 = vadd.f32 %v4721, %v6197
      %v6199 = vpop.f32.mrf.mxu0
      %v6200 = vadd.f32 %v4725, %v6199
      %v6201 = vpop.f32.mrf.mxu0
      %v6202 = vadd.f32 %v4721, %v6201
      %v6203 = vpop.f32.mrf.mxu0
      %v6204 = vadd.f32 %v4725, %v6203
      %6205 = vmatprep.mubr.bf16.mxu0 %v4441
      %6206 = vmatmul.mubr.bf16.gmra.mxu0 %v4440
      %v6207 = vpop.f32.mrf.mxu0
      %v6208 = vadd.f32 %v4721, %v6207
      %v6209 = vpop.f32.mrf.mxu0
      %v6210 = vadd.f32 %v4725, %v6209
      %v6211 = vpop.f32.mrf.mxu0
      %v6212 = vadd.f32 %v4721, %v6211
      %v6213 = vpop.f32.mrf.mxu0
      %v6214 = vadd.f32 %v4725, %v6213
      %6215 = vmatprep.mubr.bf16.mxu0 %v4445
      %6216 = vmatmul.mubr.bf16.gmra.mxu0 %v4444
      %v6217 = vpop.f32.mrf.mxu0
      %v6218 = vadd.f32 %v4721, %v6217
      %v6219 = vpop.f32.mrf.mxu0
      %v6220 = vadd.f32 %v4725, %v6219
      %v6221 = vpop.f32.mrf.mxu0
      %v6222 = vadd.f32 %v4721, %v6221
      %v6223 = vpop.f32.mrf.mxu0
      %v6224 = vadd.f32 %v4725, %v6223
      %6225 = vmatprep.mubr.bf16.mxu0 %v4449
      %6226 = vmatmul.mubr.bf16.gmra.mxu0 %v4448
      %v6227 = vpop.f32.mrf.mxu0
      %v6228 = vadd.f32 %v4721, %v6227
      %v6229 = vpop.f32.mrf.mxu0
      %v6230 = vadd.f32 %v4725, %v6229
      %v6231 = vpop.f32.mrf.mxu0
      %v6232 = vadd.f32 %v4721, %v6231
      %v6233 = vpop.f32.mrf.mxu0
      %v6234 = vadd.f32 %v4725, %v6233
      %6235 = vdwg.mxu0
      %6236 = vmatprep.subr.bf16.mxu0 %v5613
      %6237 = vmatpush1.bf16.msra.mxu0 %v5612
      %6238 = vmatprep.subr.bf16.mxu0 %v5606
      %6239 = vmatpush1.bf16.msra.mxu0 %v5605
      %6240 = vmatprep.subr.bf16.mxu0 %v5599
      %6241 = vmatpush1.bf16.msra.mxu0 %v5598
      %6242 = vmatprep.subr.bf16.mxu0 %v5592
      %6243 = vmatpush1.bf16.msra.mxu0 %v5591
      %6244 = vmatprep.subr.bf16.mxu0 %v5585
      %6245 = vmatpush1.bf16.msra.mxu0 %v5584
      %6246 = vmatprep.subr.bf16.mxu0 %v5578
      %6247 = vmatpush1.bf16.msra.mxu0 %v5577
      %6248 = vmatprep.subr.bf16.mxu0 %v5571
      %6249 = vmatpush1.bf16.msra.mxu0 %v5570
      %6250 = vmatprep.subr.bf16.mxu0 %v5564
      %6251 = vmatpush1.bf16.msra.mxu0 %v5563
      %6252 = vmatprep.subr.bf16.mxu0 %v5669
      %6253 = vmatpush2.bf16.msra.mxu0 %v5668
      %6254 = vmatprep.subr.bf16.mxu0 %v5662
      %6255 = vmatpush2.bf16.msra.mxu0 %v5661
      %6256 = vmatprep.subr.bf16.mxu0 %v5655
      %6257 = vmatpush2.bf16.msra.mxu0 %v5654
      %6258 = vmatprep.subr.bf16.mxu0 %v5648
      %6259 = vmatpush2.bf16.msra.mxu0 %v5647
      %6260 = vmatprep.subr.bf16.mxu0 %v5641
      %6261 = vmatpush2.bf16.msra.mxu0 %v5640
      %6262 = vmatprep.subr.bf16.mxu0 %v5634
      %6263 = vmatpush2.bf16.msra.mxu0 %v5633
      %6264 = vmatprep.subr.bf16.mxu0 %v5627
      %6265 = vmatpush2.bf16.msra.mxu0 %v5626
      %6266 = vmatprep.subr.bf16.mxu0 %v5620
      %6267 = vmatpush2.bf16.msra.mxu0 %v5619
      %6268 = vmatprep.mubr.bf16.mxu0 %v4423
      %6269 = vmatmul.mubr.bf16.gmra.mxu0 %v4422
      %v6270 = vpop.f32.mrf.mxu0
      %v6271 = vadd.f32 %v6158, %v6270
      %v6272 = vpop.f32.mrf.mxu0
      %v6273 = vadd.f32 %v6160, %v6272
      %v6274 = vpop.f32.mrf.mxu0
      %v6275 = vadd.f32 %v6162, %v6274
      %v6276 = vpop.f32.mrf.mxu0
      %v6277 = vadd.f32 %v6164, %v6276
      %6278 = vmatprep.mubr.bf16.mxu0 %v4427
      %6279 = vmatmul.mubr.bf16.gmra.mxu0 %v4426
      %v6280 = vpop.f32.mrf.mxu0
      %v6281 = vadd.f32 %v6168, %v6280
      %v6282 = vpop.f32.mrf.mxu0
      %v6283 = vadd.f32 %v6170, %v6282
      %v6284 = vpop.f32.mrf.mxu0
      %v6285 = vadd.f32 %v6172, %v6284
      %v6286 = vpop.f32.mrf.mxu0
      %v6287 = vadd.f32 %v6174, %v6286
      %6288 = vmatprep.mubr.bf16.mxu0 %v4431
      %6289 = vmatmul.mubr.bf16.gmra.mxu0 %v4430
      %v6290 = vpop.f32.mrf.mxu0
      %v6291 = vadd.f32 %v6178, %v6290
      %v6292 = vpop.f32.mrf.mxu0
      %v6293 = vadd.f32 %v6180, %v6292
      %v6294 = vpop.f32.mrf.mxu0
      %v6295 = vadd.f32 %v6182, %v6294
      %v6296 = vpop.f32.mrf.mxu0
      %v6297 = vadd.f32 %v6184, %v6296
      %6298 = vmatprep.mubr.bf16.mxu0 %v4435
      %6299 = vmatmul.mubr.bf16.gmra.mxu0 %v4434
      %v6300 = vpop.f32.mrf.mxu0
      %v6301 = vadd.f32 %v6188, %v6300
      %v6302 = vpop.f32.mrf.mxu0
      %v6303 = vadd.f32 %v6190, %v6302
      %v6304 = vpop.f32.mrf.mxu0
      %v6305 = vadd.f32 %v6192, %v6304
      %v6306 = vpop.f32.mrf.mxu0
      %v6307 = vadd.f32 %v6194, %v6306
      %6308 = vmatprep.mubr.bf16.mxu0 %v4439
      %6309 = vmatmul.mubr.bf16.gmra.mxu0 %v4438
      %v6310 = vpop.f32.mrf.mxu0
      %v6311 = vadd.f32 %v6198, %v6310
      %v6312 = vpop.f32.mrf.mxu0
      %v6313 = vadd.f32 %v6200, %v6312
      %v6314 = vpop.f32.mrf.mxu0
      %v6315 = vadd.f32 %v6202, %v6314
      %v6316 = vpop.f32.mrf.mxu0
      %v6317 = vadd.f32 %v6204, %v6316
      %6318 = vmatprep.mubr.bf16.mxu0 %v4443
      %6319 = vmatmul.mubr.bf16.gmra.mxu0 %v4442
      %v6320 = vpop.f32.mrf.mxu0
      %v6321 = vadd.f32 %v6208, %v6320
      %v6322 = vpop.f32.mrf.mxu0
      %v6323 = vadd.f32 %v6210, %v6322
      %v6324 = vpop.f32.mrf.mxu0
      %v6325 = vadd.f32 %v6212, %v6324
      %v6326 = vpop.f32.mrf.mxu0
      %v6327 = vadd.f32 %v6214, %v6326
      %6328 = vmatprep.mubr.bf16.mxu0 %v4447
      %6329 = vmatmul.mubr.bf16.gmra.mxu0 %v4446
      %v6330 = vpop.f32.mrf.mxu0
      %v6331 = vadd.f32 %v6218, %v6330
      %v6332 = vpop.f32.mrf.mxu0
      %v6333 = vadd.f32 %v6220, %v6332
      %v6334 = vpop.f32.mrf.mxu0
      %v6335 = vadd.f32 %v6222, %v6334
      %v6336 = vpop.f32.mrf.mxu0
      %v6337 = vadd.f32 %v6224, %v6336
      %6338 = vmatprep.mubr.bf16.mxu0 %v4451
      %6339 = vmatmul.mubr.bf16.gmra.mxu0 %v4450
      %v6340 = vpop.f32.mrf.mxu0
      %v6341 = vadd.f32 %v6228, %v6340
      %v6342 = vpop.f32.mrf.mxu0
      %v6343 = vadd.f32 %v6230, %v6342
      %v6344 = vpop.f32.mrf.mxu0
      %v6345 = vadd.f32 %v6232, %v6344
      %v6346 = vpop.f32.mrf.mxu0
      %v6347 = vadd.f32 %v6234, %v6346
      %6348 = vdwg.mxu0
      %6349 = vmatprep.subr.bf16.mxu0 %v5503
      %6350 = vmatpush1.bf16.msra.mxu0 %v5502
      %6351 = vmatprep.subr.bf16.mxu0 %v5496
      %6352 = vmatpush1.bf16.msra.mxu0 %v5495
      %6353 = vmatprep.subr.bf16.mxu0 %v5489
      %6354 = vmatpush1.bf16.msra.mxu0 %v5488
      %6355 = vmatprep.subr.bf16.mxu0 %v5482
      %6356 = vmatpush1.bf16.msra.mxu0 %v5481
      %6357 = vmatprep.subr.bf16.mxu0 %v5475
      %6358 = vmatpush1.bf16.msra.mxu0 %v5474
      %6359 = vmatprep.subr.bf16.mxu0 %v5468
      %6360 = vmatpush1.bf16.msra.mxu0 %v5467
      %6361 = vmatprep.subr.bf16.mxu0 %v5461
      %6362 = vmatpush1.bf16.msra.mxu0 %v5460
      %6363 = vmatprep.subr.bf16.mxu0 %v5454
      %6364 = vmatpush1.bf16.msra.mxu0 %v5453
      %6365 = vmatprep.subr.bf16.mxu0 %v5559
      %6366 = vmatpush2.bf16.msra.mxu0 %v5558
      %6367 = vmatprep.subr.bf16.mxu0 %v5552
      %6368 = vmatpush2.bf16.msra.mxu0 %v5551
      %6369 = vmatprep.subr.bf16.mxu0 %v5545
      %6370 = vmatpush2.bf16.msra.mxu0 %v5544
      %6371 = vmatprep.subr.bf16.mxu0 %v5538
      %6372 = vmatpush2.bf16.msra.mxu0 %v5537
      %6373 = vmatprep.subr.bf16.mxu0 %v5531
      %6374 = vmatpush2.bf16.msra.mxu0 %v5530
      %6375 = vmatprep.subr.bf16.mxu0 %v5524
      %6376 = vmatpush2.bf16.msra.mxu0 %v5523
      %6377 = vmatprep.subr.bf16.mxu0 %v5517
      %6378 = vmatpush2.bf16.msra.mxu0 %v5516
      %6379 = vmatprep.subr.bf16.mxu0 %v5510
      %6380 = vmatpush2.bf16.msra.mxu0 %v5509
      %6381 = vmatprep.mubr.bf16.mxu0 %v4421
      %6382 = vmatmul.mubr.bf16.gmra.mxu0 %v4420
      %v6383 = vpop.f32.mrf.mxu0
      %v6384 = vadd.f32 %v4729, %v6383
      %v6385 = vpop.f32.mrf.mxu0
      %v6386 = vadd.f32 %v4733, %v6385
      %v6387 = vpop.f32.mrf.mxu0
      %v6388 = vadd.f32 %v4729, %v6387
      %v6389 = vpop.f32.mrf.mxu0
      %v6390 = vadd.f32 %v4733, %v6389
      %6391 = vmatprep.mubr.bf16.mxu0 %v4425
      %6392 = vmatmul.mubr.bf16.gmra.mxu0 %v4424
      %v6393 = vpop.f32.mrf.mxu0
      %v6394 = vadd.f32 %v4729, %v6393
      %v6395 = vpop.f32.mrf.mxu0
      %v6396 = vadd.f32 %v4733, %v6395
      %v6397 = vpop.f32.mrf.mxu0
      %v6398 = vadd.f32 %v4729, %v6397
      %v6399 = vpop.f32.mrf.mxu0
      %v6400 = vadd.f32 %v4733, %v6399
      %6401 = vmatprep.mubr.bf16.mxu0 %v4429
      %6402 = vmatmul.mubr.bf16.gmra.mxu0 %v4428
      %v6403 = vpop.f32.mrf.mxu0
      %v6404 = vadd.f32 %v4729, %v6403
      %v6405 = vpop.f32.mrf.mxu0
      %v6406 = vadd.f32 %v4733, %v6405
      %v6407 = vpop.f32.mrf.mxu0
      %v6408 = vadd.f32 %v4729, %v6407
      %v6409 = vpop.f32.mrf.mxu0
      %v6410 = vadd.f32 %v4733, %v6409
      %6411 = vmatprep.mubr.bf16.mxu0 %v4433
      %6412 = vmatmul.mubr.bf16.gmra.mxu0 %v4432
      %v6413 = vpop.f32.mrf.mxu0
      %v6414 = vadd.f32 %v4729, %v6413
      %v6415 = vpop.f32.mrf.mxu0
      %v6416 = vadd.f32 %v4733, %v6415
      %v6417 = vpop.f32.mrf.mxu0
      %v6418 = vadd.f32 %v4729, %v6417
      %v6419 = vpop.f32.mrf.mxu0
      %v6420 = vadd.f32 %v4733, %v6419
      %6421 = vmatprep.mubr.bf16.mxu0 %v4437
      %6422 = vmatmul.mubr.bf16.gmra.mxu0 %v4436
      %v6423 = vpop.f32.mrf.mxu0
      %v6424 = vadd.f32 %v4729, %v6423
      %v6425 = vpop.f32.mrf.mxu0
      %v6426 = vadd.f32 %v4733, %v6425
      %v6427 = vpop.f32.mrf.mxu0
      %v6428 = vadd.f32 %v4729, %v6427
      %v6429 = vpop.f32.mrf.mxu0
      %v6430 = vadd.f32 %v4733, %v6429
      %6431 = vmatprep.mubr.bf16.mxu0 %v4441
      %6432 = vmatmul.mubr.bf16.gmra.mxu0 %v4440
      %v6433 = vpop.f32.mrf.mxu0
      %v6434 = vadd.f32 %v4729, %v6433
      %v6435 = vpop.f32.mrf.mxu0
      %v6436 = vadd.f32 %v4733, %v6435
      %v6437 = vpop.f32.mrf.mxu0
      %v6438 = vadd.f32 %v4729, %v6437
      %v6439 = vpop.f32.mrf.mxu0
      %v6440 = vadd.f32 %v4733, %v6439
      %6441 = vmatprep.mubr.bf16.mxu0 %v4445
      %6442 = vmatmul.mubr.bf16.gmra.mxu0 %v4444
      %v6443 = vpop.f32.mrf.mxu0
      %v6444 = vadd.f32 %v4729, %v6443
      %v6445 = vpop.f32.mrf.mxu0
      %v6446 = vadd.f32 %v4733, %v6445
      %v6447 = vpop.f32.mrf.mxu0
      %v6448 = vadd.f32 %v4729, %v6447
      %v6449 = vpop.f32.mrf.mxu0
      %v6450 = vadd.f32 %v4733, %v6449
      %6451 = vmatprep.mubr.bf16.mxu0 %v4449
      %6452 = vmatmul.mubr.bf16.gmra.mxu0 %v4448
      %v6453 = vpop.f32.mrf.mxu0
      %v6454 = vadd.f32 %v4729, %v6453
      %v6455 = vpop.f32.mrf.mxu0
      %v6456 = vadd.f32 %v4733, %v6455
      %v6457 = vpop.f32.mrf.mxu0
      %v6458 = vadd.f32 %v4729, %v6457
      %v6459 = vpop.f32.mrf.mxu0
      %v6460 = vadd.f32 %v4733, %v6459
      %6461 = vdwg.mxu0
      %6462 = vmatprep.subr.bf16.mxu0 %v5615
      %6463 = vmatpush1.bf16.msra.mxu0 %v5614
      %6464 = vmatprep.subr.bf16.mxu0 %v5608
      %6465 = vmatpush1.bf16.msra.mxu0 %v5607
      %6466 = vmatprep.subr.bf16.mxu0 %v5601
      %6467 = vmatpush1.bf16.msra.mxu0 %v5600
      %6468 = vmatprep.subr.bf16.mxu0 %v5594
      %6469 = vmatpush1.bf16.msra.mxu0 %v5593
      %6470 = vmatprep.subr.bf16.mxu0 %v5587
      %6471 = vmatpush1.bf16.msra.mxu0 %v5586
      %6472 = vmatprep.subr.bf16.mxu0 %v5580
      %6473 = vmatpush1.bf16.msra.mxu0 %v5579
      %6474 = vmatprep.subr.bf16.mxu0 %v5573
      %6475 = vmatpush1.bf16.msra.mxu0 %v5572
      %6476 = vmatprep.subr.bf16.mxu0 %v5566
      %6477 = vmatpush1.bf16.msra.mxu0 %v5565
      %6478 = vmatprep.subr.bf16.mxu0 %v5671
      %6479 = vmatpush2.bf16.msra.mxu0 %v5670
      %6480 = vmatprep.subr.bf16.mxu0 %v5664
      %6481 = vmatpush2.bf16.msra.mxu0 %v5663
      %6482 = vmatprep.subr.bf16.mxu0 %v5657
      %6483 = vmatpush2.bf16.msra.mxu0 %v5656
      %6484 = vmatprep.subr.bf16.mxu0 %v5650
      %6485 = vmatpush2.bf16.msra.mxu0 %v5649
      %6486 = vmatprep.subr.bf16.mxu0 %v5643
      %6487 = vmatpush2.bf16.msra.mxu0 %v5642
      %6488 = vmatprep.subr.bf16.mxu0 %v5636
      %6489 = vmatpush2.bf16.msra.mxu0 %v5635
      %6490 = vmatprep.subr.bf16.mxu0 %v5629
      %6491 = vmatpush2.bf16.msra.mxu0 %v5628
      %6492 = vmatprep.subr.bf16.mxu0 %v5622
      %6493 = vmatpush2.bf16.msra.mxu0 %v5621
      %6494 = vmatprep.mubr.bf16.mxu0 %v4423
      %6495 = vmatmul.mubr.bf16.gmra.mxu0 %v4422
      %v6496 = vpop.f32.mrf.mxu0
      %v6497 = vadd.f32 %v6384, %v6496
      %v6498 = vpop.f32.mrf.mxu0
      %v6499 = vadd.f32 %v6386, %v6498
      %v6500 = vpop.f32.mrf.mxu0
      %v6501 = vadd.f32 %v6388, %v6500
      %v6502 = vpop.f32.mrf.mxu0
      %v6503 = vadd.f32 %v6390, %v6502
      %6504 = vmatprep.mubr.bf16.mxu0 %v4427
      %6505 = vmatmul.mubr.bf16.gmra.mxu0 %v4426
      %v6506 = vpop.f32.mrf.mxu0
      %v6507 = vadd.f32 %v6394, %v6506
      %v6508 = vpop.f32.mrf.mxu0
      %v6509 = vadd.f32 %v6396, %v6508
      %v6510 = vpop.f32.mrf.mxu0
      %v6511 = vadd.f32 %v6398, %v6510
      %v6512 = vpop.f32.mrf.mxu0
      %v6513 = vadd.f32 %v6400, %v6512
      %6514 = vmatprep.mubr.bf16.mxu0 %v4431
      %6515 = vmatmul.mubr.bf16.gmra.mxu0 %v4430
      %v6516 = vpop.f32.mrf.mxu0
      %v6517 = vadd.f32 %v6404, %v6516
      %v6518 = vpop.f32.mrf.mxu0
      %v6519 = vadd.f32 %v6406, %v6518
      %v6520 = vpop.f32.mrf.mxu0
      %v6521 = vadd.f32 %v6408, %v6520
      %v6522 = vpop.f32.mrf.mxu0
      %v6523 = vadd.f32 %v6410, %v6522
      %6524 = vmatprep.mubr.bf16.mxu0 %v4435
      %6525 = vmatmul.mubr.bf16.gmra.mxu0 %v4434
      %v6526 = vpop.f32.mrf.mxu0
      %v6527 = vadd.f32 %v6414, %v6526
      %v6528 = vpop.f32.mrf.mxu0
      %v6529 = vadd.f32 %v6416, %v6528
      %v6530 = vpop.f32.mrf.mxu0
      %v6531 = vadd.f32 %v6418, %v6530
      %v6532 = vpop.f32.mrf.mxu0
      %v6533 = vadd.f32 %v6420, %v6532
      %6534 = vmatprep.mubr.bf16.mxu0 %v4439
      %6535 = vmatmul.mubr.bf16.gmra.mxu0 %v4438
      %v6536 = vpop.f32.mrf.mxu0
      %v6537 = vadd.f32 %v6424, %v6536
      %v6538 = vpop.f32.mrf.mxu0
      %v6539 = vadd.f32 %v6426, %v6538
      %v6540 = vpop.f32.mrf.mxu0
      %v6541 = vadd.f32 %v6428, %v6540
      %v6542 = vpop.f32.mrf.mxu0
      %v6543 = vadd.f32 %v6430, %v6542
      %6544 = vmatprep.mubr.bf16.mxu0 %v4443
      %6545 = vmatmul.mubr.bf16.gmra.mxu0 %v4442
      %v6546 = vpop.f32.mrf.mxu0
      %v6547 = vadd.f32 %v6434, %v6546
      %v6548 = vpop.f32.mrf.mxu0
      %v6549 = vadd.f32 %v6436, %v6548
      %v6550 = vpop.f32.mrf.mxu0
      %v6551 = vadd.f32 %v6438, %v6550
      %v6552 = vpop.f32.mrf.mxu0
      %v6553 = vadd.f32 %v6440, %v6552
      %6554 = vmatprep.mubr.bf16.mxu0 %v4447
      %6555 = vmatmul.mubr.bf16.gmra.mxu0 %v4446
      %v6556 = vpop.f32.mrf.mxu0
      %v6557 = vadd.f32 %v6444, %v6556
      %v6558 = vpop.f32.mrf.mxu0
      %v6559 = vadd.f32 %v6446, %v6558
      %v6560 = vpop.f32.mrf.mxu0
      %v6561 = vadd.f32 %v6448, %v6560
      %v6562 = vpop.f32.mrf.mxu0
      %v6563 = vadd.f32 %v6450, %v6562
      %6564 = vmatprep.mubr.bf16.mxu0 %v4451
      %6565 = vmatmul.mubr.bf16.gmra.mxu0 %v4450
      %v6566 = vpop.f32.mrf.mxu0
      %v6567 = vadd.f32 %v6454, %v6566
      %v6568 = vpop.f32.mrf.mxu0
      %v6569 = vadd.f32 %v6456, %v6568
      %v6570 = vpop.f32.mrf.mxu0
      %v6571 = vadd.f32 %v6458, %v6570
      %v6572 = vpop.f32.mrf.mxu0
      %v6573 = vadd.f32 %v6460, %v6572
      %6574 = vdwg.mxu0
      %6575 = vmatprep.subr.bf16.mxu0 0
      %6576 = vmatpush1.bf16.msra.mxu0 %v5504
      %6577 = vmatprep.subr.bf16.mxu0 0
      %6578 = vmatpush1.bf16.msra.mxu0 %v5497
      %6579 = vmatprep.subr.bf16.mxu0 0
      %6580 = vmatpush1.bf16.msra.mxu0 %v5490
      %6581 = vmatprep.subr.bf16.mxu0 0
      %6582 = vmatpush1.bf16.msra.mxu0 %v5483
      %6583 = vmatprep.subr.bf16.mxu0 0
      %6584 = vmatpush1.bf16.msra.mxu0 %v5476
      %6585 = vmatprep.subr.bf16.mxu0 0
      %6586 = vmatpush1.bf16.msra.mxu0 %v5469
      %6587 = vmatprep.subr.bf16.mxu0 0
      %6588 = vmatpush1.bf16.msra.mxu0 %v5462
      %6589 = vmatprep.subr.bf16.mxu0 0
      %6590 = vmatpush1.bf16.msra.mxu0 %v5455
      %6591 = vmatprep.subr.bf16.mxu0 0
      %6592 = vmatpush2.bf16.msra.mxu0 %v5560
      %6593 = vmatprep.subr.bf16.mxu0 0
      %6594 = vmatpush2.bf16.msra.mxu0 %v5553
      %6595 = vmatprep.subr.bf16.mxu0 0
      %6596 = vmatpush2.bf16.msra.mxu0 %v5546
      %6597 = vmatprep.subr.bf16.mxu0 0
      %6598 = vmatpush2.bf16.msra.mxu0 %v5539
      %6599 = vmatprep.subr.bf16.mxu0 0
      %6600 = vmatpush2.bf16.msra.mxu0 %v5532
      %6601 = vmatprep.subr.bf16.mxu0 0
      %6602 = vmatpush2.bf16.msra.mxu0 %v5525
      %6603 = vmatprep.subr.bf16.mxu0 0
      %6604 = vmatpush2.bf16.msra.mxu0 %v5518
      %6605 = vmatprep.subr.bf16.mxu0 0
      %6606 = vmatpush2.bf16.msra.mxu0 %v5511
      %6607 = vmatprep.mubr.bf16.mxu0 %v4421
      %6608 = vmatmul.mubr.bf16.gmra.mxu0 %v4420
      %v6609 = vpop.f32.mrf.mxu0
      %v6610 = vadd.f32 %v4737, %v6609
      %v6611 = vpop.f32.mrf.mxu0
      %v6612 = vpop.f32.mrf.mxu0
      %v6613 = vadd.f32 %v4737, %v6612
      %v6614 = vpop.f32.mrf.mxu0
      %6615 = vmatprep.mubr.bf16.mxu0 %v4425
      %6616 = vmatmul.mubr.bf16.gmra.mxu0 %v4424
      %v6617 = vpop.f32.mrf.mxu0
      %v6618 = vadd.f32 %v4737, %v6617
      %v6619 = vpop.f32.mrf.mxu0
      %v6620 = vpop.f32.mrf.mxu0
      %v6621 = vadd.f32 %v4737, %v6620
      %v6622 = vpop.f32.mrf.mxu0
      %6623 = vmatprep.mubr.bf16.mxu0 %v4429
      %6624 = vmatmul.mubr.bf16.gmra.mxu0 %v4428
      %v6625 = vpop.f32.mrf.mxu0
      %v6626 = vadd.f32 %v4737, %v6625
      %v6627 = vpop.f32.mrf.mxu0
      %v6628 = vpop.f32.mrf.mxu0
      %v6629 = vadd.f32 %v4737, %v6628
      %v6630 = vpop.f32.mrf.mxu0
      %6631 = vmatprep.mubr.bf16.mxu0 %v4433
      %6632 = vmatmul.mubr.bf16.gmra.mxu0 %v4432
      %v6633 = vpop.f32.mrf.mxu0
      %v6634 = vadd.f32 %v4737, %v6633
      %v6635 = vpop.f32.mrf.mxu0
      %v6636 = vpop.f32.mrf.mxu0
      %v6637 = vadd.f32 %v4737, %v6636
      %v6638 = vpop.f32.mrf.mxu0
      %6639 = vmatprep.mubr.bf16.mxu0 %v4437
      %6640 = vmatmul.mubr.bf16.gmra.mxu0 %v4436
      %v6641 = vpop.f32.mrf.mxu0
      %v6642 = vadd.f32 %v4737, %v6641
      %v6643 = vpop.f32.mrf.mxu0
      %v6644 = vpop.f32.mrf.mxu0
      %v6645 = vadd.f32 %v4737, %v6644
      %v6646 = vpop.f32.mrf.mxu0
      %6647 = vmatprep.mubr.bf16.mxu0 %v4441
      %6648 = vmatmul.mubr.bf16.gmra.mxu0 %v4440
      %v6649 = vpop.f32.mrf.mxu0
      %v6650 = vadd.f32 %v4737, %v6649
      %v6651 = vpop.f32.mrf.mxu0
      %v6652 = vpop.f32.mrf.mxu0
      %v6653 = vadd.f32 %v4737, %v6652
      %v6654 = vpop.f32.mrf.mxu0
      %6655 = vmatprep.mubr.bf16.mxu0 %v4445
      %6656 = vmatmul.mubr.bf16.gmra.mxu0 %v4444
      %v6657 = vpop.f32.mrf.mxu0
      %v6658 = vadd.f32 %v4737, %v6657
      %v6659 = vpop.f32.mrf.mxu0
      %v6660 = vpop.f32.mrf.mxu0
      %v6661 = vadd.f32 %v4737, %v6660
      %v6662 = vpop.f32.mrf.mxu0
      %6663 = vmatprep.mubr.bf16.mxu0 %v4449
      %6664 = vmatmul.mubr.bf16.gmra.mxu0 %v4448
      %v6665 = vpop.f32.mrf.mxu0
      %v6666 = vadd.f32 %v4737, %v6665
      %v6667 = vpop.f32.mrf.mxu0
      %v6668 = vpop.f32.mrf.mxu0
      %v6669 = vadd.f32 %v4737, %v6668
      %v6670 = vpop.f32.mrf.mxu0
      %6671 = vdwg.mxu0
      %6672 = vmatprep.subr.bf16.mxu0 0
      %6673 = vmatpush1.bf16.msra.mxu0 %v5616
      %6674 = vmatprep.subr.bf16.mxu0 0
      %6675 = vmatpush1.bf16.msra.mxu0 %v5609
      %6676 = vmatprep.subr.bf16.mxu0 0
      %6677 = vmatpush1.bf16.msra.mxu0 %v5602
      %6678 = vmatprep.subr.bf16.mxu0 0
      %6679 = vmatpush1.bf16.msra.mxu0 %v5595
      %6680 = vmatprep.subr.bf16.mxu0 0
      %6681 = vmatpush1.bf16.msra.mxu0 %v5588
      %6682 = vmatprep.subr.bf16.mxu0 0
      %6683 = vmatpush1.bf16.msra.mxu0 %v5581
      %6684 = vmatprep.subr.bf16.mxu0 0
      %6685 = vmatpush1.bf16.msra.mxu0 %v5574
      %6686 = vmatprep.subr.bf16.mxu0 0
      %6687 = vmatpush1.bf16.msra.mxu0 %v5567
      %6688 = vmatprep.subr.bf16.mxu0 0
      %6689 = vmatpush2.bf16.msra.mxu0 %v5672
      %6690 = vmatprep.subr.bf16.mxu0 0
      %6691 = vmatpush2.bf16.msra.mxu0 %v5665
      %6692 = vmatprep.subr.bf16.mxu0 0
      %6693 = vmatpush2.bf16.msra.mxu0 %v5658
      %6694 = vmatprep.subr.bf16.mxu0 0
      %6695 = vmatpush2.bf16.msra.mxu0 %v5651
      %6696 = vmatprep.subr.bf16.mxu0 0
      %6697 = vmatpush2.bf16.msra.mxu0 %v5644
      %6698 = vmatprep.subr.bf16.mxu0 0
      %6699 = vmatpush2.bf16.msra.mxu0 %v5637
      %6700 = vmatprep.subr.bf16.mxu0 0
      %6701 = vmatpush2.bf16.msra.mxu0 %v5630
      %6702 = vmatprep.subr.bf16.mxu0 0
      %6703 = vmatpush2.bf16.msra.mxu0 %v5623
      %6704 = vmatprep.mubr.bf16.mxu0 %v4423
      %6705 = vmatmul.mubr.bf16.gmra.mxu0 %v4422
      %v6706 = vpop.f32.mrf.mxu0
      %v6707 = vadd.f32 %v6610, %v6706
      %v6708 = vpop.f32.mrf.mxu0
      %v6709 = vpop.f32.mrf.mxu0
      %v6710 = vadd.f32 %v6613, %v6709
      %v6711 = vpop.f32.mrf.mxu0
      %6712 = vmatprep.mubr.bf16.mxu0 %v4427
      %6713 = vmatmul.mubr.bf16.gmra.mxu0 %v4426
      %v6714 = vpop.f32.mrf.mxu0
      %v6715 = vadd.f32 %v6618, %v6714
      %v6716 = vpop.f32.mrf.mxu0
      %v6717 = vpop.f32.mrf.mxu0
      %v6718 = vadd.f32 %v6621, %v6717
      %v6719 = vpop.f32.mrf.mxu0
      %6720 = vmatprep.mubr.bf16.mxu0 %v4431
      %6721 = vmatmul.mubr.bf16.gmra.mxu0 %v4430
      %v6722 = vpop.f32.mrf.mxu0
      %v6723 = vadd.f32 %v6626, %v6722
      %v6724 = vpop.f32.mrf.mxu0
      %v6725 = vpop.f32.mrf.mxu0
      %v6726 = vadd.f32 %v6629, %v6725
      %v6727 = vpop.f32.mrf.mxu0
      %6728 = vmatprep.mubr.bf16.mxu0 %v4435
      %6729 = vmatmul.mubr.bf16.gmra.mxu0 %v4434
      %v6730 = vpop.f32.mrf.mxu0
      %v6731 = vadd.f32 %v6634, %v6730
      %v6732 = vpop.f32.mrf.mxu0
      %v6733 = vpop.f32.mrf.mxu0
      %v6734 = vadd.f32 %v6637, %v6733
      %v6735 = vpop.f32.mrf.mxu0
      %6736 = vmatprep.mubr.bf16.mxu0 %v4439
      %6737 = vmatmul.mubr.bf16.gmra.mxu0 %v4438
      %v6738 = vpop.f32.mrf.mxu0
      %v6739 = vadd.f32 %v6642, %v6738
      %v6740 = vpop.f32.mrf.mxu0
      %v6741 = vpop.f32.mrf.mxu0
      %v6742 = vadd.f32 %v6645, %v6741
      %v6743 = vpop.f32.mrf.mxu0
      %6744 = vmatprep.mubr.bf16.mxu0 %v4443
      %6745 = vmatmul.mubr.bf16.gmra.mxu0 %v4442
      %v6746 = vpop.f32.mrf.mxu0
      %v6747 = vadd.f32 %v6650, %v6746
      %v6748 = vpop.f32.mrf.mxu0
      %v6749 = vpop.f32.mrf.mxu0
      %v6750 = vadd.f32 %v6653, %v6749
      %v6751 = vpop.f32.mrf.mxu0
      %6752 = vmatprep.mubr.bf16.mxu0 %v4447
      %6753 = vmatmul.mubr.bf16.gmra.mxu0 %v4446
      %v6754 = vpop.f32.mrf.mxu0
      %v6755 = vadd.f32 %v6658, %v6754
      %v6756 = vpop.f32.mrf.mxu0
      %v6757 = vpop.f32.mrf.mxu0
      %v6758 = vadd.f32 %v6661, %v6757
      %v6759 = vpop.f32.mrf.mxu0
      %6760 = vmatprep.mubr.bf16.mxu0 %v4451
      %6761 = vmatmul.mubr.bf16.gmra.mxu0 %v4450
      %v6762 = vpop.f32.mrf.mxu0
      %v6763 = vadd.f32 %v6666, %v6762
      %v6764 = vpop.f32.mrf.mxu0
      %v6765 = vpop.f32.mrf.mxu0
      %v6766 = vadd.f32 %v6669, %v6765
      %v6767 = vpop.f32.mrf.mxu0
      %6768 = vdwg.mxu0
      %v6769 = vmul.f32 %v6045, 0.5
      %v6770 = vmul.f32 %v6047, 0.5
      %v6771 = vmul.f32 %v6271, 0.5
      %v6772 = vmul.f32 %v6273, 0.5
      %v6773 = vmul.f32 %v6497, 0.5
      %v6774 = vmul.f32 %v6499, 0.5
      %v6775 = vmul.f32 %v6707, 0.5
      %v6776 = vmul.f32 %v6049, 0.5
      %v6777 = vmul.f32 %v6051, 0.5
      %v6778 = vmul.f32 %v6275, 0.5
      %v6779 = vmul.f32 %v6277, 0.5
      %v6780 = vmul.f32 %v6501, 0.5
      %v6781 = vmul.f32 %v6503, 0.5
      %v6782 = vmul.f32 %v6710, 0.5
      %v6783 = vmul.f32 %v6055, 0.5
      %v6784 = vmul.f32 %v6057, 0.5
      %v6785 = vmul.f32 %v6281, 0.5
      %v6786 = vmul.f32 %v6283, 0.5
      %v6787 = vmul.f32 %v6507, 0.5
      %v6788 = vmul.f32 %v6509, 0.5
      %v6789 = vmul.f32 %v6715, 0.5
      %v6790 = vmul.f32 %v6059, 0.5
      %v6791 = vmul.f32 %v6061, 0.5
      %v6792 = vmul.f32 %v6285, 0.5
      %v6793 = vmul.f32 %v6287, 0.5
      %v6794 = vmul.f32 %v6511, 0.5
      %v6795 = vmul.f32 %v6513, 0.5
      %v6796 = vmul.f32 %v6718, 0.5
      %v6797 = vmul.f32 %v6065, 0.5
      %v6798 = vmul.f32 %v6067, 0.5
      %v6799 = vmul.f32 %v6291, 0.5
      %v6800 = vmul.f32 %v6293, 0.5
      %v6801 = vmul.f32 %v6517, 0.5
      %v6802 = vmul.f32 %v6519, 0.5
      %v6803 = vmul.f32 %v6723, 0.5
      %v6804 = vmul.f32 %v6069, 0.5
      %v6805 = vmul.f32 %v6071, 0.5
      %v6806 = vmul.f32 %v6295, 0.5
      %v6807 = vmul.f32 %v6297, 0.5
      %v6808 = vmul.f32 %v6521, 0.5
      %v6809 = vmul.f32 %v6523, 0.5
      %v6810 = vmul.f32 %v6726, 0.5
      %v6811 = vmul.f32 %v6075, 0.5
      %v6812 = vmul.f32 %v6077, 0.5
      %v6813 = vmul.f32 %v6301, 0.5
      %v6814 = vmul.f32 %v6303, 0.5
      %v6815 = vmul.f32 %v6527, 0.5
      %v6816 = vmul.f32 %v6529, 0.5
      %v6817 = vmul.f32 %v6731, 0.5
      %v6818 = vmul.f32 %v6079, 0.5
      %v6819 = vmul.f32 %v6081, 0.5
      %v6820 = vmul.f32 %v6305, 0.5
      %v6821 = vmul.f32 %v6307, 0.5
      %v6822 = vmul.f32 %v6531, 0.5
      %v6823 = vmul.f32 %v6533, 0.5
      %v6824 = vmul.f32 %v6734, 0.5
      %v6825 = vmul.f32 %v6085, 0.5
      %v6826 = vmul.f32 %v6087, 0.5
      %v6827 = vmul.f32 %v6311, 0.5
      %v6828 = vmul.f32 %v6313, 0.5
      %v6829 = vmul.f32 %v6537, 0.5
      %v6830 = vmul.f32 %v6539, 0.5
      %v6831 = vmul.f32 %v6739, 0.5
      %v6832 = vmul.f32 %v6089, 0.5
      %v6833 = vmul.f32 %v6091, 0.5
      %v6834 = vmul.f32 %v6315, 0.5
      %v6835 = vmul.f32 %v6317, 0.5
      %v6836 = vmul.f32 %v6541, 0.5
      %v6837 = vmul.f32 %v6543, 0.5
      %v6838 = vmul.f32 %v6742, 0.5
      %v6839 = vmul.f32 %v6095, 0.5
      %v6840 = vmul.f32 %v6097, 0.5
      %v6841 = vmul.f32 %v6321, 0.5
      %v6842 = vmul.f32 %v6323, 0.5
      %v6843 = vmul.f32 %v6547, 0.5
      %v6844 = vmul.f32 %v6549, 0.5
      %v6845 = vmul.f32 %v6747, 0.5
      %v6846 = vmul.f32 %v6099, 0.5
      %v6847 = vmul.f32 %v6101, 0.5
      %v6848 = vmul.f32 %v6325, 0.5
      %v6849 = vmul.f32 %v6327, 0.5
      %v6850 = vmul.f32 %v6551, 0.5
      %v6851 = vmul.f32 %v6553, 0.5
      %v6852 = vmul.f32 %v6750, 0.5
      %v6853 = vmul.f32 %v6105, 0.5
      %v6854 = vmul.f32 %v6107, 0.5
      %v6855 = vmul.f32 %v6331, 0.5
      %v6856 = vmul.f32 %v6333, 0.5
      %v6857 = vmul.f32 %v6557, 0.5
      %v6858 = vmul.f32 %v6559, 0.5
      %v6859 = vmul.f32 %v6755, 0.5
      %v6860 = vmul.f32 %v6109, 0.5
      %v6861 = vmul.f32 %v6111, 0.5
      %v6862 = vmul.f32 %v6335, 0.5
      %v6863 = vmul.f32 %v6337, 0.5
      %v6864 = vmul.f32 %v6561, 0.5
      %v6865 = vmul.f32 %v6563, 0.5
      %v6866 = vmul.f32 %v6758, 0.5
      %v6867 = vmul.f32 %v6115, 0.5
      %v6868 = vmul.f32 %v6117, 0.5
      %v6869 = vmul.f32 %v6341, 0.5
      %v6870 = vmul.f32 %v6343, 0.5
      %v6871 = vmul.f32 %v6567, 0.5
      %v6872 = vmul.f32 %v6569, 0.5
      %v6873 = vmul.f32 %v6763, 0.5
      %v6874 = vmul.f32 %v6119, 0.5
      %v6875 = vmul.f32 %v6121, 0.5
      %v6876 = vmul.f32 %v6345, 0.5
      %v6877 = vmul.f32 %v6347, 0.5
      %v6878 = vmul.f32 %v6571, 0.5
      %v6879 = vmul.f32 %v6573, 0.5
      %v6880 = vmul.f32 %v6766, 0.5
      %v6881 = vtanh.pop %v6769
      %v6882 = vtanh.pop %v6770
      %v6883 = vtanh.pop %v6771
      %v6884 = vtanh.pop %v6772
      %v6885 = vtanh.pop %v6773
      %v6886 = vtanh.pop %v6774
      %v6887 = vtanh.pop %v6775
      %v6888 = vtanh.pop %v6776
      %v6889 = vtanh.pop %v6777
      %v6890 = vtanh.pop %v6778
      %v6891 = vtanh.pop %v6779
      %v6892 = vtanh.pop %v6780
      %v6893 = vtanh.pop %v6781
      %v6894 = vtanh.pop %v6782
      %v6895 = vtanh.pop %v6783
      %v6896 = vtanh.pop %v6784
      %v6897 = vtanh.pop %v6785
      %v6898 = vtanh.pop %v6786
      %v6899 = vtanh.pop %v6787
      %v6900 = vtanh.pop %v6788
      %v6901 = vtanh.pop %v6789
      %v6902 = vtanh.pop %v6790
      %v6903 = vtanh.pop %v6791
      %v6904 = vtanh.pop %v6792
      %v6905 = vtanh.pop %v6793
      %v6906 = vtanh.pop %v6794
      %v6907 = vtanh.pop %v6795
      %v6908 = vtanh.pop %v6796
      %v6909 = vtanh.pop %v6797
      %v6910 = vtanh.pop %v6798
      %v6911 = vtanh.pop %v6799
      %v6912 = vtanh.pop %v6800
      %v6913 = vtanh.pop %v6801
      %v6914 = vtanh.pop %v6802
      %v6915 = vtanh.pop %v6803
      %v6916 = vtanh.pop %v6804
      %v6917 = vtanh.pop %v6805
      %v6918 = vtanh.pop %v6806
      %v6919 = vtanh.pop %v6807
      %v6920 = vtanh.pop %v6808
      %v6921 = vtanh.pop %v6809
      %v6922 = vtanh.pop %v6810
      %v6923 = vtanh.pop %v6811
      %v6924 = vtanh.pop %v6812
      %v6925 = vtanh.pop %v6813
      %v6926 = vtanh.pop %v6814
      %v6927 = vtanh.pop %v6815
      %v6928 = vtanh.pop %v6816
      %v6929 = vtanh.pop %v6817
      %v6930 = vtanh.pop %v6818
      %v6931 = vtanh.pop %v6819
      %v6932 = vtanh.pop %v6820
      %v6933 = vtanh.pop %v6821
      %v6934 = vtanh.pop %v6822
      %v6935 = vtanh.pop %v6823
      %v6936 = vtanh.pop %v6824
      %v6937 = vtanh.pop %v6825
      %v6938 = vtanh.pop %v6826
      %v6939 = vtanh.pop %v6827
      %v6940 = vtanh.pop %v6828
      %v6941 = vtanh.pop %v6829
      %v6942 = vtanh.pop %v6830
      %v6943 = vtanh.pop %v6831
      %v6944 = vtanh.pop %v6832
      %v6945 = vtanh.pop %v6833
      %v6946 = vtanh.pop %v6834
      %v6947 = vtanh.pop %v6835
      %v6948 = vtanh.pop %v6836
      %v6949 = vtanh.pop %v6837
      %v6950 = vtanh.pop %v6838
      %v6951 = vtanh.pop %v6839
      %v6952 = vtanh.pop %v6840
      %v6953 = vtanh.pop %v6841
      %v6954 = vtanh.pop %v6842
      %v6955 = vtanh.pop %v6843
      %v6956 = vtanh.pop %v6844
      %v6957 = vtanh.pop %v6845
      %v6958 = vtanh.pop %v6846
      %v6959 = vtanh.pop %v6847
      %v6960 = vtanh.pop %v6848
      %v6961 = vtanh.pop %v6849
      %v6962 = vtanh.pop %v6850
      %v6963 = vtanh.pop %v6851
      %v6964 = vtanh.pop %v6852
      %v6965 = vtanh.pop %v6853
      %v6966 = vtanh.pop %v6854
      %v6967 = vtanh.pop %v6855
      %v6968 = vtanh.pop %v6856
      %v6969 = vtanh.pop %v6857
      %v6970 = vtanh.pop %v6858
      %v6971 = vtanh.pop %v6859
      %v6972 = vtanh.pop %v6860
      %v6973 = vtanh.pop %v6861
      %v6974 = vtanh.pop %v6862
      %v6975 = vtanh.pop %v6863
      %v6976 = vtanh.pop %v6864
      %v6977 = vtanh.pop %v6865
      %v6978 = vtanh.pop %v6866
      %v6979 = vtanh.pop %v6867
      %v6980 = vtanh.pop %v6868
      %v6981 = vtanh.pop %v6869
      %v6982 = vtanh.pop %v6870
      %v6983 = vtanh.pop %v6871
      %v6984 = vtanh.pop %v6872
      %v6985 = vtanh.pop %v6873
      %v6986 = vtanh.pop %v6874
      %v6987 = vtanh.pop %v6875
      %v6988 = vtanh.pop %v6876
      %v6989 = vtanh.pop %v6877
      %v6990 = vtanh.pop %v6878
      %v6991 = vtanh.pop %v6879
      %v6992 = vtanh.pop %v6880
      %v6993 = vadd.f32 %v6881, 1.0
      %v6994 = vadd.f32 %v6882, 1.0
      %v6995 = vadd.f32 %v6883, 1.0
      %v6996 = vadd.f32 %v6884, 1.0
      %v6997 = vadd.f32 %v6885, 1.0
      %v6998 = vadd.f32 %v6886, 1.0
      %v6999 = vadd.f32 %v6887, 1.0
      %v7000 = vadd.f32 %v6888, 1.0
      %v7001 = vadd.f32 %v6889, 1.0
      %v7002 = vadd.f32 %v6890, 1.0
      %v7003 = vadd.f32 %v6891, 1.0
      %v7004 = vadd.f32 %v6892, 1.0
      %v7005 = vadd.f32 %v6893, 1.0
      %v7006 = vadd.f32 %v6894, 1.0
      %v7007 = vadd.f32 %v6895, 1.0
      %v7008 = vadd.f32 %v6896, 1.0
      %v7009 = vadd.f32 %v6897, 1.0
      %v7010 = vadd.f32 %v6898, 1.0
      %v7011 = vadd.f32 %v6899, 1.0
      %v7012 = vadd.f32 %v6900, 1.0
      %v7013 = vadd.f32 %v6901, 1.0
      %v7014 = vadd.f32 %v6902, 1.0
      %v7015 = vadd.f32 %v6903, 1.0
      %v7016 = vadd.f32 %v6904, 1.0
      %v7017 = vadd.f32 %v6905, 1.0
      %v7018 = vadd.f32 %v6906, 1.0
      %v7019 = vadd.f32 %v6907, 1.0
      %v7020 = vadd.f32 %v6908, 1.0
      %v7021 = vadd.f32 %v6909, 1.0
      %v7022 = vadd.f32 %v6910, 1.0
      %v7023 = vadd.f32 %v6911, 1.0
      %v7024 = vadd.f32 %v6912, 1.0
      %v7025 = vadd.f32 %v6913, 1.0
      %v7026 = vadd.f32 %v6914, 1.0
      %v7027 = vadd.f32 %v6915, 1.0
      %v7028 = vadd.f32 %v6916, 1.0
      %v7029 = vadd.f32 %v6917, 1.0
      %v7030 = vadd.f32 %v6918, 1.0
      %v7031 = vadd.f32 %v6919, 1.0
      %v7032 = vadd.f32 %v6920, 1.0
      %v7033 = vadd.f32 %v6921, 1.0
      %v7034 = vadd.f32 %v6922, 1.0
      %v7035 = vadd.f32 %v6923, 1.0
      %v7036 = vadd.f32 %v6924, 1.0
      %v7037 = vadd.f32 %v6925, 1.0
      %v7038 = vadd.f32 %v6926, 1.0
      %v7039 = vadd.f32 %v6927, 1.0
      %v7040 = vadd.f32 %v6928, 1.0
      %v7041 = vadd.f32 %v6929, 1.0
      %v7042 = vadd.f32 %v6930, 1.0
      %v7043 = vadd.f32 %v6931, 1.0
      %v7044 = vadd.f32 %v6932, 1.0
      %v7045 = vadd.f32 %v6933, 1.0
      %v7046 = vadd.f32 %v6934, 1.0
      %v7047 = vadd.f32 %v6935, 1.0
      %v7048 = vadd.f32 %v6936, 1.0
      %v7049 = vadd.f32 %v6937, 1.0
      %v7050 = vadd.f32 %v6938, 1.0
      %v7051 = vadd.f32 %v6939, 1.0
      %v7052 = vadd.f32 %v6940, 1.0
      %v7053 = vadd.f32 %v6941, 1.0
      %v7054 = vadd.f32 %v6942, 1.0
      %v7055 = vadd.f32 %v6943, 1.0
      %v7056 = vadd.f32 %v6944, 1.0
      %v7057 = vadd.f32 %v6945, 1.0
      %v7058 = vadd.f32 %v6946, 1.0
      %v7059 = vadd.f32 %v6947, 1.0
      %v7060 = vadd.f32 %v6948, 1.0
      %v7061 = vadd.f32 %v6949, 1.0
      %v7062 = vadd.f32 %v6950, 1.0
      %v7063 = vadd.f32 %v6951, 1.0
      %v7064 = vadd.f32 %v6952, 1.0
      %v7065 = vadd.f32 %v6953, 1.0
      %v7066 = vadd.f32 %v6954, 1.0
      %v7067 = vadd.f32 %v6955, 1.0
      %v7068 = vadd.f32 %v6956, 1.0
      %v7069 = vadd.f32 %v6957, 1.0
      %v7070 = vadd.f32 %v6958, 1.0
      %v7071 = vadd.f32 %v6959, 1.0
      %v7072 = vadd.f32 %v6960, 1.0
      %v7073 = vadd.f32 %v6961, 1.0
      %v7074 = vadd.f32 %v6962, 1.0
      %v7075 = vadd.f32 %v6963, 1.0
      %v7076 = vadd.f32 %v6964, 1.0
      %v7077 = vadd.f32 %v6965, 1.0
      %v7078 = vadd.f32 %v6966, 1.0
      %v7079 = vadd.f32 %v6967, 1.0
      %v7080 = vadd.f32 %v6968, 1.0
      %v7081 = vadd.f32 %v6969, 1.0
      %v7082 = vadd.f32 %v6970, 1.0
      %v7083 = vadd.f32 %v6971, 1.0
      %v7084 = vadd.f32 %v6972, 1.0
      %v7085 = vadd.f32 %v6973, 1.0
      %v7086 = vadd.f32 %v6974, 1.0
      %v7087 = vadd.f32 %v6975, 1.0
      %v7088 = vadd.f32 %v6976, 1.0
      %v7089 = vadd.f32 %v6977, 1.0
      %v7090 = vadd.f32 %v6978, 1.0
      %v7091 = vadd.f32 %v6979, 1.0
      %v7092 = vadd.f32 %v6980, 1.0
      %v7093 = vadd.f32 %v6981, 1.0
      %v7094 = vadd.f32 %v6982, 1.0
      %v7095 = vadd.f32 %v6983, 1.0
      %v7096 = vadd.f32 %v6984, 1.0
      %v7097 = vadd.f32 %v6985, 1.0
      %v7098 = vadd.f32 %v6986, 1.0
      %v7099 = vadd.f32 %v6987, 1.0
      %v7100 = vadd.f32 %v6988, 1.0
      %v7101 = vadd.f32 %v6989, 1.0
      %v7102 = vadd.f32 %v6990, 1.0
      %v7103 = vadd.f32 %v6991, 1.0
      %v7104 = vadd.f32 %v6992, 1.0
      %v7105 = vmul.f32 %v6993, 0.5
      %v7106 = vmul.f32 %v6994, 0.5
      %v7107 = vmul.f32 %v6995, 0.5
      %v7108 = vmul.f32 %v6996, 0.5
      %v7109 = vmul.f32 %v6997, 0.5
      %v7110 = vmul.f32 %v6998, 0.5
      %v7111 = vmul.f32 %v6999, 0.5
      %v7112 = vmul.f32 %v7000, 0.5
      %v7113 = vmul.f32 %v7001, 0.5
      %v7114 = vmul.f32 %v7002, 0.5
      %v7115 = vmul.f32 %v7003, 0.5
      %v7116 = vmul.f32 %v7004, 0.5
      %v7117 = vmul.f32 %v7005, 0.5
      %v7118 = vmul.f32 %v7006, 0.5
      %v7119 = vmul.f32 %v7007, 0.5
      %v7120 = vmul.f32 %v7008, 0.5
      %v7121 = vmul.f32 %v7009, 0.5
      %v7122 = vmul.f32 %v7010, 0.5
      %v7123 = vmul.f32 %v7011, 0.5
      %v7124 = vmul.f32 %v7012, 0.5
      %v7125 = vmul.f32 %v7013, 0.5
      %v7126 = vmul.f32 %v7014, 0.5
      %v7127 = vmul.f32 %v7015, 0.5
      %v7128 = vmul.f32 %v7016, 0.5
      %v7129 = vmul.f32 %v7017, 0.5
      %v7130 = vmul.f32 %v7018, 0.5
      %v7131 = vmul.f32 %v7019, 0.5
      %v7132 = vmul.f32 %v7020, 0.5
      %v7133 = vmul.f32 %v7021, 0.5
      %v7134 = vmul.f32 %v7022, 0.5
      %v7135 = vmul.f32 %v7023, 0.5
      %v7136 = vmul.f32 %v7024, 0.5
      %v7137 = vmul.f32 %v7025, 0.5
      %v7138 = vmul.f32 %v7026, 0.5
      %v7139 = vmul.f32 %v7027, 0.5
      %v7140 = vmul.f32 %v7028, 0.5
      %v7141 = vmul.f32 %v7029, 0.5
      %v7142 = vmul.f32 %v7030, 0.5
      %v7143 = vmul.f32 %v7031, 0.5
      %v7144 = vmul.f32 %v7032, 0.5
      %v7145 = vmul.f32 %v7033, 0.5
      %v7146 = vmul.f32 %v7034, 0.5
      %v7147 = vmul.f32 %v7035, 0.5
      %v7148 = vmul.f32 %v7036, 0.5
      %v7149 = vmul.f32 %v7037, 0.5
      %v7150 = vmul.f32 %v7038, 0.5
      %v7151 = vmul.f32 %v7039, 0.5
      %v7152 = vmul.f32 %v7040, 0.5
      %v7153 = vmul.f32 %v7041, 0.5
      %v7154 = vmul.f32 %v7042, 0.5
      %v7155 = vmul.f32 %v7043, 0.5
      %v7156 = vmul.f32 %v7044, 0.5
      %v7157 = vmul.f32 %v7045, 0.5
      %v7158 = vmul.f32 %v7046, 0.5
      %v7159 = vmul.f32 %v7047, 0.5
      %v7160 = vmul.f32 %v7048, 0.5
      %v7161 = vmul.f32 %v7049, 0.5
      %v7162 = vmul.f32 %v7050, 0.5
      %v7163 = vmul.f32 %v7051, 0.5
      %v7164 = vmul.f32 %v7052, 0.5
      %v7165 = vmul.f32 %v7053, 0.5
      %v7166 = vmul.f32 %v7054, 0.5
      %v7167 = vmul.f32 %v7055, 0.5
      %v7168 = vmul.f32 %v7056, 0.5
      %v7169 = vmul.f32 %v7057, 0.5
      %v7170 = vmul.f32 %v7058, 0.5
      %v7171 = vmul.f32 %v7059, 0.5
      %v7172 = vmul.f32 %v7060, 0.5
      %v7173 = vmul.f32 %v7061, 0.5
      %v7174 = vmul.f32 %v7062, 0.5
      %v7175 = vmul.f32 %v7063, 0.5
      %v7176 = vmul.f32 %v7064, 0.5
      %v7177 = vmul.f32 %v7065, 0.5
      %v7178 = vmul.f32 %v7066, 0.5
      %v7179 = vmul.f32 %v7067, 0.5
      %v7180 = vmul.f32 %v7068, 0.5
      %v7181 = vmul.f32 %v7069, 0.5
      %v7182 = vmul.f32 %v7070, 0.5
      %v7183 = vmul.f32 %v7071, 0.5
      %v7184 = vmul.f32 %v7072, 0.5
      %v7185 = vmul.f32 %v7073, 0.5
      %v7186 = vmul.f32 %v7074, 0.5
      %v7187 = vmul.f32 %v7075, 0.5
      %v7188 = vmul.f32 %v7076, 0.5
      %v7189 = vmul.f32 %v7077, 0.5
      %v7190 = vmul.f32 %v7078, 0.5
      %v7191 = vmul.f32 %v7079, 0.5
      %v7192 = vmul.f32 %v7080, 0.5
      %v7193 = vmul.f32 %v7081, 0.5
      %v7194 = vmul.f32 %v7082, 0.5
      %v7195 = vmul.f32 %v7083, 0.5
      %v7196 = vmul.f32 %v7084, 0.5
      %v7197 = vmul.f32 %v7085, 0.5
      %v7198 = vmul.f32 %v7086, 0.5
      %v7199 = vmul.f32 %v7087, 0.5
      %v7200 = vmul.f32 %v7088, 0.5
      %v7201 = vmul.f32 %v7089, 0.5
      %v7202 = vmul.f32 %v7090, 0.5
      %v7203 = vmul.f32 %v7091, 0.5
      %v7204 = vmul.f32 %v7092, 0.5
      %v7205 = vmul.f32 %v7093, 0.5
      %v7206 = vmul.f32 %v7094, 0.5
      %v7207 = vmul.f32 %v7095, 0.5
      %v7208 = vmul.f32 %v7096, 0.5
      %v7209 = vmul.f32 %v7097, 0.5
      %v7210 = vmul.f32 %v7098, 0.5
      %v7211 = vmul.f32 %v7099, 0.5
      %v7212 = vmul.f32 %v7100, 0.5
      %v7213 = vmul.f32 %v7101, 0.5
      %v7214 = vmul.f32 %v7102, 0.5
      %v7215 = vmul.f32 %v7103, 0.5
      %v7216 = vmul.f32 %v7104, 0.5
      %7217 = vst [vmem:[%s457] sm:$0xff] %v7105
      %7218 = vst [vmem:[%s457 + $0x8] sm:$0xff] %v7106
      %7219 = vst [vmem:[%s457 + $0x10] sm:$0xff] %v7107
      %7220 = vst [vmem:[%s457 + $0x18] sm:$0xff] %v7108
      %7221 = vst [vmem:[%s457 + $0x20] sm:$0xff] %v7109
      %7222 = vst [vmem:[%s457 + $0x28] sm:$0xff] %v7110
      %7223 = vst [vmem:[%s457 + $0x30] sm:$0xff] %v7111
      %7224 = vst [vmem:[%s457 + $0x38] sm:$0xff] %v7112
      %7225 = vst [vmem:[%s457 + $0x40] sm:$0xff] %v7113
      %7226 = vst [vmem:[%s457 + $0x48] sm:$0xff] %v7114
      %7227 = vst [vmem:[%s457 + $0x50] sm:$0xff] %v7115
      %7228 = vst [vmem:[%s457 + $0x58] sm:$0xff] %v7116
      %7229 = vst [vmem:[%s457 + $0x60] sm:$0xff] %v7117
      %7230 = vst [vmem:[%s457 + $0x68] sm:$0xff] %v7118
      %7231 = vst [vmem:[%s457 + $0x70] sm:$0xff] %v7119
      %7232 = vst [vmem:[%s457 + $0x78] sm:$0xff] %v7120
      %7233 = vst [vmem:[%s457 + $0x80] sm:$0xff] %v7121
      %7234 = vst [vmem:[%s457 + $0x88] sm:$0xff] %v7122
      %7235 = vst [vmem:[%s457 + $0x90] sm:$0xff] %v7123
      %7236 = vst [vmem:[%s457 + $0x98] sm:$0xff] %v7124
      %7237 = vst [vmem:[%s457 + $0xa0] sm:$0xff] %v7125
      %7238 = vst [vmem:[%s457 + $0xa8] sm:$0xff] %v7126
      %7239 = vst [vmem:[%s457 + $0xb0] sm:$0xff] %v7127
      %7240 = vst [vmem:[%s457 + $0xb8] sm:$0xff] %v7128
      %7241 = vst [vmem:[%s457 + $0xc0] sm:$0xff] %v7129
      %7242 = vst [vmem:[%s457 + $0xc8] sm:$0xff] %v7130
      %7243 = vst [vmem:[%s457 + $0xd0] sm:$0xff] %v7131
      %7244 = vst [vmem:[%s457 + $0xd8] sm:$0xff] %v7132
      %7245 = vst [vmem:[%s457 + $0xe0] sm:$0xff] %v7133
      %7246 = vst [vmem:[%s457 + $0xe8] sm:$0xff] %v7134
      %7247 = vst [vmem:[%s457 + $0xf0] sm:$0xff] %v7135
      %7248 = vst [vmem:[%s457 + $0xf8] sm:$0xff] %v7136
      %7249 = vst [vmem:[%s457 + $0x100] sm:$0xff] %v7137
      %7250 = vst [vmem:[%s457 + $0x108] sm:$0xff] %v7138
      %7251 = vst [vmem:[%s457 + $0x110] sm:$0xff] %v7139
      %7252 = vst [vmem:[%s457 + $0x118] sm:$0xff] %v7140
      %7253 = vst [vmem:[%s457 + $0x120] sm:$0xff] %v7141
      %7254 = vst [vmem:[%s457 + $0x128] sm:$0xff] %v7142
      %7255 = vst [vmem:[%s457 + $0x130] sm:$0xff] %v7143
      %7256 = vst [vmem:[%s457 + $0x138] sm:$0xff] %v7144
      %7257 = vst [vmem:[%s457 + $0x140] sm:$0xff] %v7145
      %7258 = vst [vmem:[%s457 + $0x148] sm:$0xff] %v7146
      %7259 = vst [vmem:[%s457 + $0x150] sm:$0xff] %v7147
      %7260 = vst [vmem:[%s457 + $0x158] sm:$0xff] %v7148
      %7261 = vst [vmem:[%s457 + $0x160] sm:$0xff] %v7149
      %7262 = vst [vmem:[%s457 + $0x168] sm:$0xff] %v7150
      %7263 = vst [vmem:[%s457 + $0x170] sm:$0xff] %v7151
      %7264 = vst [vmem:[%s457 + $0x178] sm:$0xff] %v7152
      %7265 = vst [vmem:[%s457 + $0x180] sm:$0xff] %v7153
      %7266 = vst [vmem:[%s457 + $0x188] sm:$0xff] %v7154
      %7267 = vst [vmem:[%s457 + $0x190] sm:$0xff] %v7155
      %7268 = vst [vmem:[%s457 + $0x198] sm:$0xff] %v7156
      %7269 = vst [vmem:[%s457 + $0x1a0] sm:$0xff] %v7157
      %7270 = vst [vmem:[%s457 + $0x1a8] sm:$0xff] %v7158
      %7271 = vst [vmem:[%s457 + $0x1b0] sm:$0xff] %v7159
      %7272 = vst [vmem:[%s457 + $0x1b8] sm:$0xff] %v7160
      %7273 = vst [vmem:[%s457 + $0x1c0] sm:$0xff] %v7161
      %7274 = vst [vmem:[%s457 + $0x1c8] sm:$0xff] %v7162
      %7275 = vst [vmem:[%s457 + $0x1d0] sm:$0xff] %v7163
      %7276 = vst [vmem:[%s457 + $0x1d8] sm:$0xff] %v7164
      %7277 = vst [vmem:[%s457 + $0x1e0] sm:$0xff] %v7165
      %7278 = vst [vmem:[%s457 + $0x1e8] sm:$0xff] %v7166
      %7279 = vst [vmem:[%s457 + $0x1f0] sm:$0xff] %v7167
      %7280 = vst [vmem:[%s457 + $0x1f8] sm:$0xff] %v7168
      %7281 = vst [vmem:[%s457 + $0x200] sm:$0xff] %v7169
      %7282 = vst [vmem:[%s457 + $0x208] sm:$0xff] %v7170
      %7283 = vst [vmem:[%s457 + $0x210] sm:$0xff] %v7171
      %7284 = vst [vmem:[%s457 + $0x218] sm:$0xff] %v7172
      %7285 = vst [vmem:[%s457 + $0x220] sm:$0xff] %v7173
      %7286 = vst [vmem:[%s457 + $0x228] sm:$0xff] %v7174
      %7287 = vst [vmem:[%s457 + $0x230] sm:$0xff] %v7175
      %7288 = vst [vmem:[%s457 + $0x238] sm:$0xff] %v7176
      %7289 = vst [vmem:[%s457 + $0x240] sm:$0xff] %v7177
      %7290 = vst [vmem:[%s457 + $0x248] sm:$0xff] %v7178
      %7291 = vst [vmem:[%s457 + $0x250] sm:$0xff] %v7179
      %7292 = vst [vmem:[%s457 + $0x258] sm:$0xff] %v7180
      %7293 = vst [vmem:[%s457 + $0x260] sm:$0xff] %v7181
      %7294 = vst [vmem:[%s457 + $0x268] sm:$0xff] %v7182
      %7295 = vst [vmem:[%s457 + $0x270] sm:$0xff] %v7183
      %7296 = vst [vmem:[%s457 + $0x278] sm:$0xff] %v7184
      %7297 = vst [vmem:[%s457 + $0x280] sm:$0xff] %v7185
      %7298 = vst [vmem:[%s457 + $0x288] sm:$0xff] %v7186
      %7299 = vst [vmem:[%s457 + $0x290] sm:$0xff] %v7187
      %7300 = vst [vmem:[%s457 + $0x298] sm:$0xff] %v7188
      %7301 = vst [vmem:[%s457 + $0x2a0] sm:$0xff] %v7189
      %7302 = vst [vmem:[%s457 + $0x2a8] sm:$0xff] %v7190
      %7303 = vst [vmem:[%s457 + $0x2b0] sm:$0xff] %v7191
      %7304 = vst [vmem:[%s457 + $0x2b8] sm:$0xff] %v7192
      %7305 = vst [vmem:[%s457 + $0x2c0] sm:$0xff] %v7193
      %7306 = vst [vmem:[%s457 + $0x2c8] sm:$0xff] %v7194
      %7307 = vst [vmem:[%s457 + $0x2d0] sm:$0xff] %v7195
      %7308 = vst [vmem:[%s457 + $0x2d8] sm:$0xff] %v7196
      %7309 = vst [vmem:[%s457 + $0x2e0] sm:$0xff] %v7197
      %7310 = vst [vmem:[%s457 + $0x2e8] sm:$0xff] %v7198
      %7311 = vst [vmem:[%s457 + $0x2f0] sm:$0xff] %v7199
      %7312 = vst [vmem:[%s457 + $0x2f8] sm:$0xff] %v7200
      %7313 = vst [vmem:[%s457 + $0x300] sm:$0xff] %v7201
      %7314 = vst [vmem:[%s457 + $0x308] sm:$0xff] %v7202
      %7315 = vst [vmem:[%s457 + $0x310] sm:$0xff] %v7203
      %7316 = vst [vmem:[%s457 + $0x318] sm:$0xff] %v7204
      %7317 = vst [vmem:[%s457 + $0x320] sm:$0xff] %v7205
      %7318 = vst [vmem:[%s457 + $0x328] sm:$0xff] %v7206
      %7319 = vst [vmem:[%s457 + $0x330] sm:$0xff] %v7207
      %7320 = vst [vmem:[%s457 + $0x338] sm:$0xff] %v7208
      %7321 = vst [vmem:[%s457 + $0x340] sm:$0xff] %v7209
      %7322 = vst [vmem:[%s457 + $0x348] sm:$0xff] %v7210
      %7323 = vst [vmem:[%s457 + $0x350] sm:$0xff] %v7211
      %7324 = vst [vmem:[%s457 + $0x358] sm:$0xff] %v7212
      %7325 = vst [vmem:[%s457 + $0x360] sm:$0xff] %v7213
      %7326 = vst [vmem:[%s457 + $0x368] sm:$0xff] %v7214
      %7327 = vst [vmem:[%s457 + $0x370] sm:$0xff] %v7215
      %7328 = vst [vmem:[%s457 + $0x378] sm:$0xff] %v7216
      %7329 = vst [vmem:[%s463] sm:$0xff] %v3734
      %7330 = vst [vmem:[%s463 + $0x8] sm:$0xff] %v3738
      %7331 = vst [vmem:[%s463 + $0x10] sm:$0xff] %v3744
      %7332 = vst [vmem:[%s463 + $0x18] sm:$0xff] %v3748
      %7333 = vst [vmem:[%s463 + $0x20] sm:$0xff] %v3754
      %7334 = vst [vmem:[%s463 + $0x28] sm:$0xff] %v3758
      %7335 = vst [vmem:[%s463 + $0x30] sm:$0xff] %v3764
      %7336 = vst [vmem:[%s463 + $0x38] sm:$0xff] %v3768
      %7337 = vst [vmem:[%s463 + $0x40] sm:$0xff] %v3774
      %7338 = vst [vmem:[%s463 + $0x48] sm:$0xff] %v3778
      %7339 = vst [vmem:[%s463 + $0x50] sm:$0xff] %v3784
      %7340 = vst [vmem:[%s463 + $0x58] sm:$0xff] %v3788
      %7341 = vst [vmem:[%s463 + $0x60] sm:$0xff] %v3794
      %7342 = vst [vmem:[%s463 + $0x68] sm:$0xff] %v3798
      %7343 = vst [vmem:[%s463 + $0x70] sm:$0xff] %v3804
      %7344 = vst [vmem:[%s463 + $0x78] sm:$0xff] %v3808
      %7345 = vst [vmem:[%s469] sm:$0xff] %v3736
      %7346 = vst [vmem:[%s469 + $0x8] sm:$0xff] %v3740
      %7347 = vst [vmem:[%s469 + $0x10] sm:$0xff] %v3746
      %7348 = vst [vmem:[%s469 + $0x18] sm:$0xff] %v3750
      %7349 = vst [vmem:[%s469 + $0x20] sm:$0xff] %v3756
      %7350 = vst [vmem:[%s469 + $0x28] sm:$0xff] %v3760
      %7351 = vst [vmem:[%s469 + $0x30] sm:$0xff] %v3766
      %7352 = vst [vmem:[%s469 + $0x38] sm:$0xff] %v3770
      %7353 = vst [vmem:[%s469 + $0x40] sm:$0xff] %v3776
      %7354 = vst [vmem:[%s469 + $0x48] sm:$0xff] %v3780
      %7355 = vst [vmem:[%s469 + $0x50] sm:$0xff] %v3786
      %7356 = vst [vmem:[%s469 + $0x58] sm:$0xff] %v3790
      %7357 = vst [vmem:[%s469 + $0x60] sm:$0xff] %v3796
      %7358 = vst [vmem:[%s469 + $0x68] sm:$0xff] %v3800
      %7359 = vst [vmem:[%s469 + $0x70] sm:$0xff] %v3806
      %7360 = vst [vmem:[%s469 + $0x78] sm:$0xff] %v3810
      %s7361 = smul.u32 16, %s24
      %p7362 = scmp.lt.s32.totalorder %s7361, 31
      %s7363 = scalar_select %p7362, %s7361, 31
      %s7364 = smul.addr %s7363, 7
      %s7365 = smul.addr %s7364, 8
      %s7366 = scalar_lea.vmem %s10, %s7365
      %s7367 = smul.u32 16, %s24
      %p7368 = scmp.lt.s32.totalorder %s7367, 31
      %s7369 = scalar_select %p7368, %s7367, 31
      %s7370 = smul.addr %s7369, 8
      %s7371 = scalar_lea.vmem %s11, %s7370
      %s7372 = smul.u32 16, %s24
      %p7373 = scmp.lt.s32.totalorder %s7372, 31
      %s7374 = scalar_select %p7373, %s7372, 31
      %s7375 = smul.addr %s7374, 8
      %s7376 = scalar_lea.vmem %s12, %s7375
      // Predicated region
      $region61: #{vae_forward.1} parent=59 // pred_check
        %p7377 = pneg %p262
      $region62: #{vae_forward.1} parent=59 // pred_check_branch
        %7379 = sbr.rel (%p7377) target = $region64
      $region63: #{vae_forward.1} parent=59 // pred_region
        %s7380 = smul.u32 16, %s24
      $region64: #{vae_forward.1} parent=59 // pred_fallthru
        _
      // Predicated region
      $region65: #{vae_forward.1} parent=59 // pred_check
        %p7381 = pneg %p288
      $region66: #{vae_forward.1} parent=59 // pred_check_branch
        %7383 = sbr.rel (%p7381) target = $region68
      $region67: #{vae_forward.1} parent=59 // pred_region
        %s7384 = smul.u32 16, %s24
      $region68: #{vae_forward.1} parent=59 // pred_fallthru
        _
      // Predicated region
      $region69: #{vae_forward.1} parent=59 // pred_check
        %p7385 = pneg %p314
      $region70: #{vae_forward.1} parent=59 // pred_check_branch
        %7387 = sbr.rel (%p7385) target = $region72
      $region71: #{vae_forward.1} parent=59 // pred_region
        %s7388 = smul.u32 16, %s24
      $region72: #{vae_forward.1} parent=59 // pred_fallthru
        _
    $region60: #{vae_forward.1} parent=5 // pred_fallthru
      _
    %p7389 = scmp.le.s32.totalorder 2, %s19
    // Predicated region
    $region73: #{vae_forward.1} parent=5 // pred_check
      %p7390 = pneg %p7389
    $region74: #{vae_forward.1} parent=5 // pred_check_branch
      %7392 = sbr.rel (%p7390) target = $region76
    $region75: #{vae_forward.1} parent=5 // pred_region
      %s7393 = ssub.s32 %s19, 2
      // Predicated region
      $region77: #{vae_forward.1} parent=75 // pred_check
        %p7394 = pneg %p268
      $region78: #{vae_forward.1} parent=75 // pred_check_branch
        %7396 = sbr.rel (%p7394) target = $region80
      $region79: #{vae_forward.1} parent=75 // pred_region
        %s7397 = smul.u32 16, %s25
        %p7398 = scmp.lt.s32.totalorder %s7397, 31
        %s7399 = scalar_select %p7398, %s7397, 31
        %s7400 = smul.addr %s7399, 7
        %s7401 = smul.addr %s7400, 8
        %s7402 = scalar_lea.vmem %s10, %s7401
      $region80: #{vae_forward.1} parent=75 // pred_fallthru
        _
      // Predicated region
      $region81: #{vae_forward.1} parent=75 // pred_check
        %p7403 = pneg %p294
      $region82: #{vae_forward.1} parent=75 // pred_check_branch
        %7405 = sbr.rel (%p7403) target = $region84
      $region83: #{vae_forward.1} parent=75 // pred_region
        %s7406 = smul.u32 16, %s25
        %p7407 = scmp.lt.s32.totalorder %s7406, 31
        %s7408 = scalar_select %p7407, %s7406, 31
        %s7409 = smul.addr %s7408, 8
        %s7410 = scalar_lea.vmem %s11, %s7409
      $region84: #{vae_forward.1} parent=75 // pred_fallthru
        _
      // Predicated region
      $region85: #{vae_forward.1} parent=75 // pred_check
        %p7411 = pneg %p320
      $region86: #{vae_forward.1} parent=75 // pred_check_branch
        %7413 = sbr.rel (%p7411) target = $region88
      $region87: #{vae_forward.1} parent=75 // pred_region
        %s7414 = smul.u32 16, %s25
        %p7415 = scmp.lt.s32.totalorder %s7414, 31
        %s7416 = scalar_select %p7415, %s7414, 31
        %s7417 = smul.addr %s7416, 8
        %s7418 = scalar_lea.vmem %s12, %s7417
      $region88: #{vae_forward.1} parent=75 // pred_fallthru
        _
    $region76: #{vae_forward.1} parent=5 // pred_fallthru
      _
  $region6: #{vae_forward.1} parent=0 // loop_footer
    %s23 = sadd.s32 1, %s19
  $region7: #{vae_forward.1} parent=0 // loop_footer_branch
    %18 = sbr.rel target = $region3
  $region8: #{vae_forward.1} parent=0 // loop_exit
    _

</llo_original>
